<compile_context>
chip_gen: v7x
topology: tpu7x:2x2x1
jax: 0.10.0
libtpu: 0.0.40
codegen_flags: <defaults>
</compile_context>

<pallas_src>
import functools
import jax
import jax.numpy as jnp
from jax.experimental import pallas as pl
from jax.experimental.pallas import tpu as pltpu

NEG_SLOPE = 0.2  # leakyrelu slope used by conv_block / classifier in SRTGAN


def _leaky_relu(x):
    # LeakyReLU(0.2) == max(x, 0.2*x) for slope in (0, 1); stays on the VPU.
    return jnp.maximum(x, NEG_SLOPE * x)


# --------------------------------------------------------------------------
# Fused Pallas kernel: 6x conv3x3 (+BN folded) + LeakyReLU, GAP, 3-layer MLP.
# One image per grid step; everything stays in VMEM.
# --------------------------------------------------------------------------
def _fused_vgg_gap_kernel(cfg, x_ref, *refs):
    """cfg: static tuple of (H, W, Cin, Cout, stride) per conv layer.

    refs = [w0, b0, ..., w5, b5, fw1, fb1, fw2, fb2, fw3, fb3, o_ref, pad_ref]
      wi  : (9*Cin, Cout) bf16   (BN already folded into w/b)
      bi  : (1, Cout)     f32
      fwi : (Ci, Co) f32 ; fbi : (1, Co) f32
      o_ref  : (1, 1, 1)  f32 output block
      pad_ref: (Hmax+2, Wmax+2, Cmax) f32 VMEM scratch (zero halo workspace)
    """
    n_conv = len(cfg)
    conv_refs = refs[:2 * n_conv]
    fc_refs = refs[2 * n_conv:2 * n_conv + 6]
    o_ref = refs[2 * n_conv + 6]
    pad_ref = refs[2 * n_conv + 7]

    x = x_ref[0]  # (H0, W0, Cin0) f32 activation value

    for li, (H, W, Cin, Cout, stride) in enumerate(cfg):
        w_ref = conv_refs[2 * li]       # (9*Cin, Cout) bf16
        b_ref = conv_refs[2 * li + 1]   # (1, Cout) f32
        Ho, Wo = H // stride, W // stride
        M = Ho * Wo

        # In-kernel zero-halo padding (no HBM pad copies): zero the scratch,
        # write the interior, then read shifted windows.
        pad_ref[...] = jnp.zeros(pad_ref.shape, pad_ref.dtype)
        pad_ref[1:H + 1, 1:W + 1, :Cin] = x

        if stride == 1:
            # 3x3 taps as contiguous shifted windows of the padded scratch.
            patches = [
                pad_ref[dy:dy + H, dx:dx + W, :Cin].reshape(M, Cin)
                for dy in range(3) for dx in range(3)
            ]
        else:
            # Direct stride-2 conv: parity-decompose the padded activation
            # once (even/odd rows x even/odd cols); each tap then becomes a
            # contiguous slice, so only Ho*Wo output rows are computed.
            Hp, Wp = H + 2, W + 2
            A, B = Hp // 2, Wp // 2
            p_full = pad_ref[:Hp, :Wp, :Cin]                 # (Hp, Wp, Cin)
            rows = p_full.reshape(A, 2, Wp, Cin)
            par = []
            for r in range(2):
                row_r = rows[:, r:r + 1, :, :].reshape(A, Wp, Cin)
                cols_r = row_r.reshape(A, B, 2, Cin)
                par.append([cols_r[:, :, c:c + 1, :].reshape(A, B, Cin)
                            for c in range(2)])
            # tap (dy, dx) needs pad[2i+dy, 2j+dx] ->
            #   parity (dy%2, dx%2), offsets (dy//2, dx//2)
            patches = []
            for dy in range(3):
                for dx in range(3):
                    src = par[dy % 2][dx % 2]
                    patches.append(
                        src[dy // 2:dy // 2 + Ho,
                            dx // 2:dx // 2 + Wo, :].reshape(M, Cin))

        # One im2col-style matmul per layer: (M, 9*Cin) @ (9*Cin, Cout).
        # bf16 MXU inputs, f32 accumulation, f32 bias + LeakyReLU epilogue.
        cols = jnp.concatenate(patches, axis=-1).astype(jnp.bfloat16)
        acc = jnp.dot(cols, w_ref[...], preferred_element_type=jnp.float32)
        acc = _leaky_relu(acc + b_ref[...])
        x = acc.reshape(Ho, Wo, Cout)

    # Global average pool, fused — the final feature map never leaves VMEM.
    Ho, Wo, C = x.shape
    g = jnp.sum(x.reshape(Ho * Wo, C), axis=0, keepdims=True) * (1.0 / (Ho * Wo))

    # 3-layer MLP head (Dropout = identity in eval mode).
    w1, b1, w2, b2, w3, b3 = fc_refs
    h = _leaky_relu(jnp.dot(g, w1[...], preferred_element_type=jnp.float32) + b1[...])
    h = _leaky_relu(jnp.dot(h, w2[...], preferred_element_type=jnp.float32) + b2[...])
    h = jnp.dot(h, w3[...], preferred_element_type=jnp.float32) + b3[...]
    o_ref[...] = h.reshape(1, 1, 1)


# --------------------------------------------------------------------------
# Wrapper: builds the single pallas_call (grid over batch, megacore-parallel).
# --------------------------------------------------------------------------
def vgg_gap_qualifier_forward(x_nchw, params):
    """x_nchw: (N, C, H, W) like the PyTorch module. Returns (N, 1)."""
    x = jnp.transpose(x_nchw, (0, 2, 3, 1)).astype(jnp.float32)  # -> NHWC
    N, H, W, Cin = x.shape

    cfg = []
    args = [x]
    in_specs = [pl.BlockSpec((1, H, W, Cin), lambda n: (n, 0, 0, 0))]

    h, w_sp, cin = H, W, Cin
    for (wc, bc, stride) in params["convs"]:
        cout = wc.shape[-1]
        cfg.append((h, w_sp, cin, cout, stride))
        w9 = wc.reshape(9 * cin, cout).astype(jnp.bfloat16)   # (9*Cin, Cout)
        b2 = bc.reshape(1, cout).astype(jnp.float32)
        args += [w9, b2]
        in_specs += [pl.BlockSpec(w9.shape, lambda n: (0, 0)),
                     pl.BlockSpec(b2.shape, lambda n: (0, 0))]
        if stride > 1:
            assert h % stride == 0 and w_sp % stride == 0
            h //= stride
            w_sp //= stride
        cin = cout

    for (wf, bf) in params["fcs"]:
        wf = wf.astype(jnp.float32)
        b2 = bf.reshape(1, -1).astype(jnp.float32)
        args += [wf, b2]
        in_specs += [pl.BlockSpec(wf.shape, lambda n: (0, 0)),
                     pl.BlockSpec(b2.shape, lambda n: (0, 0))]

    hmax = max(c[0] for c in cfg) + 2
    wmax = max(c[1] for c in cfg) + 2
    cmax = max(c[2] for c in cfg)

    kernel = functools.partial(_fused_vgg_gap_kernel, tuple(cfg))
    out = pl.pallas_call(
        kernel,
        out_shape=jax.ShapeDtypeStruct((N, 1, 1), jnp.float32),
        grid=(N,),
        in_specs=in_specs,
        out_specs=pl.BlockSpec((1, 1, 1), lambda n: (n, 0, 0)),
        scratch_shapes=[pltpu.VMEM((hmax, wmax, cmax), jnp.float32)],
        compiler_params=pltpu.CompilerParams(
            dimension_semantics=("parallel",)),
    )(*args)
    return out.reshape(N, 1)


# --------------------------------------------------------------------------
# Parameter construction (deterministic, eval-mode BN folded into conv)
# --------------------------------------------------------------------------
def _fold_bn(w, b, gamma, beta, mean, var, eps=1e-5):
    scale = gamma / jnp.sqrt(var + eps)
    return w * scale[None, None, None, :], beta + (b - mean) * scale


def make_params(key, in_nc, nf):
    # conv blocks: (cin, cout, stride, has_bn)
    cfg = [(in_nc, nf, 1, False),
           (nf, nf, 2, True),
           (nf, 2 * nf, 1, True),
           (2 * nf, 2 * nf, 2, True),
           (2 * nf, 4 * nf, 1, True),
           (4 * nf, 4 * nf, 2, True)]
    params = {"convs": []}
    for (cin, cout, stride, has_bn) in cfg:
        key, kw, kb, kg, kbt, km, kv = jax.random.split(key, 7)
        fan_in = 9 * cin
        w = jax.random.normal(kw, (3, 3, cin, cout), jnp.float32) * (2.0 / fan_in) ** 0.5
        b = jax.random.normal(kb, (cout,), jnp.float32) * 0.01
        if has_bn:
            gamma = 1.0 + 0.1 * jax.random.normal(kg, (cout,), jnp.float32)
            beta = 0.1 * jax.random.normal(kbt, (cout,), jnp.float32)
            mean = 0.1 * jax.random.normal(km, (cout,), jnp.float32)
            var = 1.0 + 0.1 * jnp.abs(jax.random.normal(kv, (cout,), jnp.float32))
            w, b = _fold_bn(w, b, gamma, beta, mean, var)
        params["convs"].append((w, b, stride))

    dims = [4 * nf, 2 * nf, nf, 1]
    fcs = []
    for i in range(3):
        key, kw, kb = jax.random.split(key, 3)
        w = jax.random.normal(kw, (dims[i], dims[i + 1]), jnp.float32) * (1.0 / dims[i]) ** 0.5
        b = jax.random.normal(kb, (dims[i + 1],), jnp.float32) * 0.01
        fcs.append((w, b))
    params["fcs"] = fcs
    return params


# --------------------------------------------------------------------------
if __name__ == "__main__":
    key = jax.random.PRNGKey(0)
    k_x, k_p = jax.random.split(key)

    N, in_nc, H, W = 2, 4, 16, 16
    nf = 8
    x = jax.random.normal(k_x, (N, in_nc, H, W), jnp.float32)   # NCHW, as PyTorch

    params = make_params(k_p, in_nc, nf)
    out = vgg_gap_qualifier_forward(x, params)
    out = jax.block_until_ready(out)

    assert out.shape == (N, 1), out.shape
    assert jnp.all(jnp.isfinite(out))
    print("KERNEL_OK")
</pallas_src>

<mosaic_0001>
module attributes {stable_mosaic.version = 11 : i64} {
  func.func @_fused_vgg_gap_kernel(%arg0: i32, %arg1: memref<1x16x16x4xf32, #tpu.memory_space<vmem>>, %arg2: memref<36x8xbf16, #tpu.memory_space<vmem>>, %arg3: memref<1x8xf32, #tpu.memory_space<vmem>>, %arg4: memref<72x8xbf16, #tpu.memory_space<vmem>>, %arg5: memref<1x8xf32, #tpu.memory_space<vmem>>, %arg6: memref<72x16xbf16, #tpu.memory_space<vmem>>, %arg7: memref<1x16xf32, #tpu.memory_space<vmem>>, %arg8: memref<144x16xbf16, #tpu.memory_space<vmem>>, %arg9: memref<1x16xf32, #tpu.memory_space<vmem>>, %arg10: memref<144x32xbf16, #tpu.memory_space<vmem>>, %arg11: memref<1x32xf32, #tpu.memory_space<vmem>>, %arg12: memref<288x32xbf16, #tpu.memory_space<vmem>>, %arg13: memref<1x32xf32, #tpu.memory_space<vmem>>, %arg14: memref<32x16xf32, #tpu.memory_space<vmem>>, %arg15: memref<1x16xf32, #tpu.memory_space<vmem>>, %arg16: memref<16x8xf32, #tpu.memory_space<vmem>>, %arg17: memref<1x8xf32, #tpu.memory_space<vmem>>, %arg18: memref<8x1xf32, #tpu.memory_space<vmem>>, %arg19: memref<1x1xf32, #tpu.memory_space<vmem>>, %arg20: memref<1x1x1xf32, #tpu.memory_space<vmem>>, %arg21: memref<18x18x32xf32, #tpu.memory_space<vmem>>) attributes {dimension_semantics = [#tpu.dimension_semantics<parallel>], iteration_bounds = array<i64: 2>, scalar_prefetch = 0 : i64, scratch_operands = 1 : i64, tpu.core_type = #tpu.core_type<tc>, window_params = [{transform_indices = @transform_0, window_bounds = array<i64: 1, 16, 16, 4>}, {pipeline_mode = #tpu.pipeline_mode<synchronous>, transform_indices = @transform_1, window_bounds = array<i64: 36, 8>}, {pipeline_mode = #tpu.pipeline_mode<synchronous>, transform_indices = @transform_2, window_bounds = array<i64: 1, 8>}, {pipeline_mode = #tpu.pipeline_mode<synchronous>, transform_indices = @transform_3, window_bounds = array<i64: 72, 8>}, {pipeline_mode = #tpu.pipeline_mode<synchronous>, transform_indices = @transform_4, window_bounds = array<i64: 1, 8>}, {pipeline_mode = #tpu.pipeline_mode<synchronous>, transform_indices = @transform_5, window_bounds = array<i64: 72, 16>}, {pipeline_mode = #tpu.pipeline_mode<synchronous>, transform_indices = @transform_6, window_bounds = array<i64: 1, 16>}, {pipeline_mode = #tpu.pipeline_mode<synchronous>, transform_indices = @transform_7, window_bounds = array<i64: 144, 16>}, {pipeline_mode = #tpu.pipeline_mode<synchronous>, transform_indices = @transform_8, window_bounds = array<i64: 1, 16>}, {pipeline_mode = #tpu.pipeline_mode<synchronous>, transform_indices = @transform_9, window_bounds = array<i64: 144, 32>}, {pipeline_mode = #tpu.pipeline_mode<synchronous>, transform_indices = @transform_10, window_bounds = array<i64: 1, 32>}, {pipeline_mode = #tpu.pipeline_mode<synchronous>, transform_indices = @transform_11, window_bounds = array<i64: 288, 32>}, {pipeline_mode = #tpu.pipeline_mode<synchronous>, transform_indices = @transform_12, window_bounds = array<i64: 1, 32>}, {pipeline_mode = #tpu.pipeline_mode<synchronous>, transform_indices = @transform_13, window_bounds = array<i64: 32, 16>}, {pipeline_mode = #tpu.pipeline_mode<synchronous>, transform_indices = @transform_14, window_bounds = array<i64: 1, 16>}, {pipeline_mode = #tpu.pipeline_mode<synchronous>, transform_indices = @transform_15, window_bounds = array<i64: 16, 8>}, {pipeline_mode = #tpu.pipeline_mode<synchronous>, transform_indices = @transform_16, window_bounds = array<i64: 1, 8>}, {pipeline_mode = #tpu.pipeline_mode<synchronous>, transform_indices = @transform_17, window_bounds = array<i64: 8, 1>}, {pipeline_mode = #tpu.pipeline_mode<synchronous>, transform_indices = @transform_18, window_bounds = array<i64: 1, 1>}, {transform_indices = @transform_19, window_bounds = array<i64: 1, 1, 1>}]} {
    %c0 = arith.constant 0 : index
    %c0_0 = arith.constant 0 : index
    %c0_1 = arith.constant 0 : index
    %c0_2 = arith.constant 0 : index
    %0 = vector.load %arg1[%c0, %c0_0, %c0_1, %c0_2] : memref<1x16x16x4xf32, #tpu.memory_space<vmem>>, vector<1x16x16x4xf32>
    %1 = vector.shape_cast %0 : vector<1x16x16x4xf32> to vector<16x16x4xf32>
    %cst = arith.constant 0.000000e+00 : f32
    %2 = vector.broadcast %cst : f32 to vector<18x18x32xf32>
    %c0_3 = arith.constant 0 : index
    %c0_4 = arith.constant 0 : index
    %c0_5 = arith.constant 0 : index
    %3 = vector.load %arg21[%c0_3, %c0_4, %c0_5] : memref<18x18x32xf32, #tpu.memory_space<vmem>>, vector<18x18x32xf32>
    tpu.vector_store %arg21[%c0_3, %c0_4, %c0_5], %2 {strides = array<i32>} : memref<18x18x32xf32, #tpu.memory_space<vmem>>, vector<18x18x32xf32>,
    %c1 = arith.constant 1 : index
    %c1_6 = arith.constant 1 : index
    %c0_7 = arith.constant 0 : index
    %4 = vector.load %arg21[%c1, %c1_6, %c0_7] : memref<18x18x32xf32, #tpu.memory_space<vmem>>, vector<16x16x4xf32>
    tpu.vector_store %arg21[%c1, %c1_6, %c0_7], %1 {strides = array<i32>} : memref<18x18x32xf32, #tpu.memory_space<vmem>>, vector<16x16x4xf32>,
    %c0_8 = arith.constant 0 : index
    %c0_9 = arith.constant 0 : index
    %c0_10 = arith.constant 0 : index
    %5 = vector.load %arg21[%c0_8, %c0_9, %c0_10] : memref<18x18x32xf32, #tpu.memory_space<vmem>>, vector<16x16x4xf32>
    %6 = vector.shape_cast %5 : vector<16x16x4xf32> to vector<256x4xf32>
    %c0_11 = arith.constant 0 : index
    %c1_12 = arith.constant 1 : index
    %c0_13 = arith.constant 0 : index
    %7 = vector.load %arg21[%c0_11, %c1_12, %c0_13] : memref<18x18x32xf32, #tpu.memory_space<vmem>>, vector<16x16x4xf32>
    %8 = vector.shape_cast %7 : vector<16x16x4xf32> to vector<256x4xf32>
    %c0_14 = arith.constant 0 : index
    %c2 = arith.constant 2 : index
    %c0_15 = arith.constant 0 : index
    %9 = vector.load %arg21[%c0_14, %c2, %c0_15] : memref<18x18x32xf32, #tpu.memory_space<vmem>>, vector<16x16x4xf32>
    %10 = vector.shape_cast %9 : vector<16x16x4xf32> to vector<256x4xf32>
    %c1_16 = arith.constant 1 : index
    %c0_17 = arith.constant 0 : index
    %c0_18 = arith.constant 0 : index
    %11 = vector.load %arg21[%c1_16, %c0_17, %c0_18] : memref<18x18x32xf32, #tpu.memory_space<vmem>>, vector<16x16x4xf32>
    %12 = vector.shape_cast %11 : vector<16x16x4xf32> to vector<256x4xf32>
    %c1_19 = arith.constant 1 : index
    %c1_20 = arith.constant 1 : index
    %c0_21 = arith.constant 0 : index
    %13 = vector.load %arg21[%c1_19, %c1_20, %c0_21] : memref<18x18x32xf32, #tpu.memory_space<vmem>>, vector<16x16x4xf32>
    %14 = vector.shape_cast %13 : vector<16x16x4xf32> to vector<256x4xf32>
    %c1_22 = arith.constant 1 : index
    %c2_23 = arith.constant 2 : index
    %c0_24 = arith.constant 0 : index
    %15 = vector.load %arg21[%c1_22, %c2_23, %c0_24] : memref<18x18x32xf32, #tpu.memory_space<vmem>>, vector<16x16x4xf32>
    %16 = vector.shape_cast %15 : vector<16x16x4xf32> to vector<256x4xf32>
    %c2_25 = arith.constant 2 : index
    %c0_26 = arith.constant 0 : index
    %c0_27 = arith.constant 0 : index
    %17 = vector.load %arg21[%c2_25, %c0_26, %c0_27] : memref<18x18x32xf32, #tpu.memory_space<vmem>>, vector<16x16x4xf32>
    %18 = vector.shape_cast %17 : vector<16x16x4xf32> to vector<256x4xf32>
    %c2_28 = arith.constant 2 : index
    %c1_29 = arith.constant 1 : index
    %c0_30 = arith.constant 0 : index
    %19 = vector.load %arg21[%c2_28, %c1_29, %c0_30] : memref<18x18x32xf32, #tpu.memory_space<vmem>>, vector<16x16x4xf32>
    %20 = vector.shape_cast %19 : vector<16x16x4xf32> to vector<256x4xf32>
    %c2_31 = arith.constant 2 : index
    %c2_32 = arith.constant 2 : index
    %c0_33 = arith.constant 0 : index
    %21 = vector.load %arg21[%c2_31, %c2_32, %c0_33] : memref<18x18x32xf32, #tpu.memory_space<vmem>>, vector<16x16x4xf32>
    %22 = vector.shape_cast %21 : vector<16x16x4xf32> to vector<256x4xf32>
    %23 = tpu.concatenate %6, %8, %10, %12, %14, %16, %18, %20, %22 in 1 : vector<256x4xf32>, vector<256x4xf32>, vector<256x4xf32>, vector<256x4xf32>, vector<256x4xf32>, vector<256x4xf32>, vector<256x4xf32>, vector<256x4xf32>, vector<256x4xf32> -> vector<256x36xf32>
    %24 = arith.truncf %23 : vector<256x36xf32> to vector<256x36xbf16>
    %c0_34 = arith.constant 0 : index
    %c0_35 = arith.constant 0 : index
    %25 = vector.load %arg2[%c0_34, %c0_35] : memref<36x8xbf16, #tpu.memory_space<vmem>>, vector<36x8xbf16>
    %cst_36 = arith.constant dense<0.000000e+00> : vector<256x8xf32>
    %26 = tpu.matmul %24, %25, %cst_36 {dimension_numbers = #tpu.dot_dimension_numbers<[1], [0], [0], [1], [0, 0, 1, 1], [], []>} : vector<256x36xbf16>, vector<36x8xbf16>, vector<256x8xf32> -> vector<256x8xf32>
    %c0_37 = arith.constant 0 : index
    %c0_38 = arith.constant 0 : index
    %27 = vector.load %arg3[%c0_37, %c0_38] : memref<1x8xf32, #tpu.memory_space<vmem>>, vector<1x8xf32>
    %28 = vector.broadcast %27 : vector<1x8xf32> to vector<256x8xf32>
    %29 = arith.addf %26, %28 : vector<256x8xf32>
    %cst_39 = arith.constant 2.000000e-01 : f32
    %30 = vector.broadcast %cst_39 : f32 to vector<256x8xf32>
    %31 = arith.mulf %30, %29 : vector<256x8xf32>
    %32 = arith.maximumf %29, %31 : vector<256x8xf32>
    %33 = vector.shape_cast %32 : vector<256x8xf32> to vector<16x16x8xf32>
    %cst_40 = arith.constant 0.000000e+00 : f32
    %34 = vector.broadcast %cst_40 : f32 to vector<18x18x32xf32>
    %c0_41 = arith.constant 0 : index
    %c0_42 = arith.constant 0 : index
    %c0_43 = arith.constant 0 : index
    %35 = vector.load %arg21[%c0_41, %c0_42, %c0_43] : memref<18x18x32xf32, #tpu.memory_space<vmem>>, vector<18x18x32xf32>
    tpu.vector_store %arg21[%c0_41, %c0_42, %c0_43], %34 {strides = array<i32>} : memref<18x18x32xf32, #tpu.memory_space<vmem>>, vector<18x18x32xf32>,
    %c1_44 = arith.constant 1 : index
    %c1_45 = arith.constant 1 : index
    %c0_46 = arith.constant 0 : index
    %36 = vector.load %arg21[%c1_44, %c1_45, %c0_46] : memref<18x18x32xf32, #tpu.memory_space<vmem>>, vector<16x16x8xf32>
    tpu.vector_store %arg21[%c1_44, %c1_45, %c0_46], %33 {strides = array<i32>} : memref<18x18x32xf32, #tpu.memory_space<vmem>>, vector<16x16x8xf32>,
    %c0_47 = arith.constant 0 : index
    %c0_48 = arith.constant 0 : index
    %c0_49 = arith.constant 0 : index
    %37 = vector.load %arg21[%c0_47, %c0_48, %c0_49] : memref<18x18x32xf32, #tpu.memory_space<vmem>>, vector<18x18x8xf32>
    %38 = vector.shape_cast %37 : vector<18x18x8xf32> to vector<9x2x18x8xf32>
    %39 = vector.extract_strided_slice %38 {offsets = [0, 0, 0, 0], sizes = [9, 1, 18, 8], strides = [1, 1, 1, 1]} : vector<9x2x18x8xf32> to vector<9x1x18x8xf32>
    %40 = vector.shape_cast %39 : vector<9x1x18x8xf32> to vector<9x18x8xf32>
    %41 = vector.shape_cast %40 : vector<9x18x8xf32> to vector<9x9x2x8xf32>
    %42 = vector.extract_strided_slice %41 {offsets = [0, 0, 0, 0], sizes = [9, 9, 1, 8], strides = [1, 1, 1, 1]} : vector<9x9x2x8xf32> to vector<9x9x1x8xf32>
    %43 = vector.shape_cast %42 : vector<9x9x1x8xf32> to vector<9x9x8xf32>
    %44 = vector.extract_strided_slice %41 {offsets = [0, 0, 1, 0], sizes = [9, 9, 1, 8], strides = [1, 1, 1, 1]} : vector<9x9x2x8xf32> to vector<9x9x1x8xf32>
    %45 = vector.shape_cast %44 : vector<9x9x1x8xf32> to vector<9x9x8xf32>
    %46 = vector.extract_strided_slice %38 {offsets = [0, 1, 0, 0], sizes = [9, 1, 18, 8], strides = [1, 1, 1, 1]} : vector<9x2x18x8xf32> to vector<9x1x18x8xf32>
    %47 = vector.shape_cast %46 : vector<9x1x18x8xf32> to vector<9x18x8xf32>
    %48 = vector.shape_cast %47 : vector<9x18x8xf32> to vector<9x9x2x8xf32>
    %49 = vector.extract_strided_slice %48 {offsets = [0, 0, 0, 0], sizes = [9, 9, 1, 8], strides = [1, 1, 1, 1]} : vector<9x9x2x8xf32> to vector<9x9x1x8xf32>
    %50 = vector.shape_cast %49 : vector<9x9x1x8xf32> to vector<9x9x8xf32>
    %51 = vector.extract_strided_slice %48 {offsets = [0, 0, 1, 0], sizes = [9, 9, 1, 8], strides = [1, 1, 1, 1]} : vector<9x9x2x8xf32> to vector<9x9x1x8xf32>
    %52 = vector.shape_cast %51 : vector<9x9x1x8xf32> to vector<9x9x8xf32>
    %53 = vector.extract_strided_slice %43 {offsets = [0, 0, 0], sizes = [8, 8, 8], strides = [1, 1, 1]} : vector<9x9x8xf32> to vector<8x8x8xf32>
    %54 = vector.shape_cast %53 : vector<8x8x8xf32> to vector<64x8xf32>
    %55 = vector.extract_strided_slice %45 {offsets = [0, 0, 0], sizes = [8, 8, 8], strides = [1, 1, 1]} : vector<9x9x8xf32> to vector<8x8x8xf32>
    %56 = vector.shape_cast %55 : vector<8x8x8xf32> to vector<64x8xf32>
    %57 = vector.extract_strided_slice %43 {offsets = [0, 1, 0], sizes = [8, 8, 8], strides = [1, 1, 1]} : vector<9x9x8xf32> to vector<8x8x8xf32>
    %58 = vector.shape_cast %57 : vector<8x8x8xf32> to vector<64x8xf32>
    %59 = vector.extract_strided_slice %50 {offsets = [0, 0, 0], sizes = [8, 8, 8], strides = [1, 1, 1]} : vector<9x9x8xf32> to vector<8x8x8xf32>
    %60 = vector.shape_cast %59 : vector<8x8x8xf32> to vector<64x8xf32>
    %61 = vector.extract_strided_slice %52 {offsets = [0, 0, 0], sizes = [8, 8, 8], strides = [1, 1, 1]} : vector<9x9x8xf32> to vector<8x8x8xf32>
    %62 = vector.shape_cast %61 : vector<8x8x8xf32> to vector<64x8xf32>
    %63 = vector.extract_strided_slice %50 {offsets = [0, 1, 0], sizes = [8, 8, 8], strides = [1, 1, 1]} : vector<9x9x8xf32> to vector<8x8x8xf32>
    %64 = vector.shape_cast %63 : vector<8x8x8xf32> to vector<64x8xf32>
    %65 = vector.extract_strided_slice %43 {offsets = [1, 0, 0], sizes = [8, 8, 8], strides = [1, 1, 1]} : vector<9x9x8xf32> to vector<8x8x8xf32>
    %66 = vector.shape_cast %65 : vector<8x8x8xf32> to vector<64x8xf32>
    %67 = vector.extract_strided_slice %45 {offsets = [1, 0, 0], sizes = [8, 8, 8], strides = [1, 1, 1]} : vector<9x9x8xf32> to vector<8x8x8xf32>
    %68 = vector.shape_cast %67 : vector<8x8x8xf32> to vector<64x8xf32>
    %69 = vector.extract_strided_slice %43 {offsets = [1, 1, 0], sizes = [8, 8, 8], strides = [1, 1, 1]} : vector<9x9x8xf32> to vector<8x8x8xf32>
    %70 = vector.shape_cast %69 : vector<8x8x8xf32> to vector<64x8xf32>
    %71 = tpu.concatenate %54, %56, %58, %60, %62, %64, %66, %68, %70 in 1 : vector<64x8xf32>, vector<64x8xf32>, vector<64x8xf32>, vector<64x8xf32>, vector<64x8xf32>, vector<64x8xf32>, vector<64x8xf32>, vector<64x8xf32>, vector<64x8xf32> -> vector<64x72xf32>
    %72 = arith.truncf %71 : vector<64x72xf32> to vector<64x72xbf16>
    %c0_50 = arith.constant 0 : index
    %c0_51 = arith.constant 0 : index
    %73 = vector.load %arg4[%c0_50, %c0_51] : memref<72x8xbf16, #tpu.memory_space<vmem>>, vector<72x8xbf16>
    %cst_52 = arith.constant dense<0.000000e+00> : vector<64x8xf32>
    %74 = tpu.matmul %72, %73, %cst_52 {dimension_numbers = #tpu.dot_dimension_numbers<[1], [0], [0], [1], [0, 0, 1, 1], [], []>} : vector<64x72xbf16>, vector<72x8xbf16>, vector<64x8xf32> -> vector<64x8xf32>
    %c0_53 = arith.constant 0 : index
    %c0_54 = arith.constant 0 : index
    %75 = vector.load %arg5[%c0_53, %c0_54] : memref<1x8xf32, #tpu.memory_space<vmem>>, vector<1x8xf32>
    %76 = vector.broadcast %75 : vector<1x8xf32> to vector<64x8xf32>
    %77 = arith.addf %74, %76 : vector<64x8xf32>
    %cst_55 = arith.constant 2.000000e-01 : f32
    %78 = vector.broadcast %cst_55 : f32 to vector<64x8xf32>
    %79 = arith.mulf %78, %77 : vector<64x8xf32>
    %80 = arith.maximumf %77, %79 : vector<64x8xf32>
    %81 = vector.shape_cast %80 : vector<64x8xf32> to vector<8x8x8xf32>
    %cst_56 = arith.constant 0.000000e+00 : f32
    %82 = vector.broadcast %cst_56 : f32 to vector<18x18x32xf32>
    %c0_57 = arith.constant 0 : index
    %c0_58 = arith.constant 0 : index
    %c0_59 = arith.constant 0 : index
    %83 = vector.load %arg21[%c0_57, %c0_58, %c0_59] : memref<18x18x32xf32, #tpu.memory_space<vmem>>, vector<18x18x32xf32>
    tpu.vector_store %arg21[%c0_57, %c0_58, %c0_59], %82 {strides = array<i32>} : memref<18x18x32xf32, #tpu.memory_space<vmem>>, vector<18x18x32xf32>,
    %c1_60 = arith.constant 1 : index
    %c1_61 = arith.constant 1 : index
    %c0_62 = arith.constant 0 : index
    %84 = vector.load %arg21[%c1_60, %c1_61, %c0_62] : memref<18x18x32xf32, #tpu.memory_space<vmem>>, vector<8x8x8xf32>
    tpu.vector_store %arg21[%c1_60, %c1_61, %c0_62], %81 {strides = array<i32>} : memref<18x18x32xf32, #tpu.memory_space<vmem>>, vector<8x8x8xf32>,
    %c0_63 = arith.constant 0 : index
    %c0_64 = arith.constant 0 : index
    %c0_65 = arith.constant 0 : index
    %85 = vector.load %arg21[%c0_63, %c0_64, %c0_65] : memref<18x18x32xf32, #tpu.memory_space<vmem>>, vector<8x8x8xf32>
    %86 = vector.shape_cast %85 : vector<8x8x8xf32> to vector<64x8xf32>
    %c0_66 = arith.constant 0 : index
    %c1_67 = arith.constant 1 : index
    %c0_68 = arith.constant 0 : index
    %87 = vector.load %arg21[%c0_66, %c1_67, %c0_68] : memref<18x18x32xf32, #tpu.memory_space<vmem>>, vector<8x8x8xf32>
    %88 = vector.shape_cast %87 : vector<8x8x8xf32> to vector<64x8xf32>
    %c0_69 = arith.constant 0 : index
    %c2_70 = arith.constant 2 : index
    %c0_71 = arith.constant 0 : index
    %89 = vector.load %arg21[%c0_69, %c2_70, %c0_71] : memref<18x18x32xf32, #tpu.memory_space<vmem>>, vector<8x8x8xf32>
    %90 = vector.shape_cast %89 : vector<8x8x8xf32> to vector<64x8xf32>
    %c1_72 = arith.constant 1 : index
    %c0_73 = arith.constant 0 : index
    %c0_74 = arith.constant 0 : index
    %91 = vector.load %arg21[%c1_72, %c0_73, %c0_74] : memref<18x18x32xf32, #tpu.memory_space<vmem>>, vector<8x8x8xf32>
    %92 = vector.shape_cast %91 : vector<8x8x8xf32> to vector<64x8xf32>
    %c1_75 = arith.constant 1 : index
    %c1_76 = arith.constant 1 : index
    %c0_77 = arith.constant 0 : index
    %93 = vector.load %arg21[%c1_75, %c1_76, %c0_77] : memref<18x18x32xf32, #tpu.memory_space<vmem>>, vector<8x8x8xf32>
    %94 = vector.shape_cast %93 : vector<8x8x8xf32> to vector<64x8xf32>
    %c1_78 = arith.constant 1 : index
    %c2_79 = arith.constant 2 : index
    %c0_80 = arith.constant 0 : index
    %95 = vector.load %arg21[%c1_78, %c2_79, %c0_80] : memref<18x18x32xf32, #tpu.memory_space<vmem>>, vector<8x8x8xf32>
    %96 = vector.shape_cast %95 : vector<8x8x8xf32> to vector<64x8xf32>
    %c2_81 = arith.constant 2 : index
    %c0_82 = arith.constant 0 : index
    %c0_83 = arith.constant 0 : index
    %97 = vector.load %arg21[%c2_81, %c0_82, %c0_83] : memref<18x18x32xf32, #tpu.memory_space<vmem>>, vector<8x8x8xf32>
    %98 = vector.shape_cast %97 : vector<8x8x8xf32> to vector<64x8xf32>
    %c2_84 = arith.constant 2 : index
    %c1_85 = arith.constant 1 : index
    %c0_86 = arith.constant 0 : index
    %99 = vector.load %arg21[%c2_84, %c1_85, %c0_86] : memref<18x18x32xf32, #tpu.memory_space<vmem>>, vector<8x8x8xf32>
    %100 = vector.shape_cast %99 : vector<8x8x8xf32> to vector<64x8xf32>
    %c2_87 = arith.constant 2 : index
    %c2_88 = arith.constant 2 : index
    %c0_89 = arith.constant 0 : index
    %101 = vector.load %arg21[%c2_87, %c2_88, %c0_89] : memref<18x18x32xf32, #tpu.memory_space<vmem>>, vector<8x8x8xf32>
    %102 = vector.shape_cast %101 : vector<8x8x8xf32> to vector<64x8xf32>
    %103 = tpu.concatenate %86, %88, %90, %92, %94, %96, %98, %100, %102 in 1 : vector<64x8xf32>, vector<64x8xf32>, vector<64x8xf32>, vector<64x8xf32>, vector<64x8xf32>, vector<64x8xf32>, vector<64x8xf32>, vector<64x8xf32>, vector<64x8xf32> -> vector<64x72xf32>
    %104 = arith.truncf %103 : vector<64x72xf32> to vector<64x72xbf16>
    %c0_90 = arith.constant 0 : index
    %c0_91 = arith.constant 0 : index
    %105 = vector.load %arg6[%c0_90, %c0_91] : memref<72x16xbf16, #tpu.memory_space<vmem>>, vector<72x16xbf16>
    %cst_92 = arith.constant dense<0.000000e+00> : vector<64x16xf32>
    %106 = tpu.matmul %104, %105, %cst_92 {dimension_numbers = #tpu.dot_dimension_numbers<[1], [0], [0], [1], [0, 0, 1, 1], [], []>} : vector<64x72xbf16>, vector<72x16xbf16>, vector<64x16xf32> -> vector<64x16xf32>
    %c0_93 = arith.constant 0 : index
    %c0_94 = arith.constant 0 : index
    %107 = vector.load %arg7[%c0_93, %c0_94] : memref<1x16xf32, #tpu.memory_space<vmem>>, vector<1x16xf32>
    %108 = vector.broadcast %107 : vector<1x16xf32> to vector<64x16xf32>
    %109 = arith.addf %106, %108 : vector<64x16xf32>
    %cst_95 = arith.constant 2.000000e-01 : f32
    %110 = vector.broadcast %cst_95 : f32 to vector<64x16xf32>
    %111 = arith.mulf %110, %109 : vector<64x16xf32>
    %112 = arith.maximumf %109, %111 : vector<64x16xf32>
    %113 = vector.shape_cast %112 : vector<64x16xf32> to vector<8x8x16xf32>
    %cst_96 = arith.constant 0.000000e+00 : f32
    %114 = vector.broadcast %cst_96 : f32 to vector<18x18x32xf32>
    %c0_97 = arith.constant 0 : index
    %c0_98 = arith.constant 0 : index
    %c0_99 = arith.constant 0 : index
    %115 = vector.load %arg21[%c0_97, %c0_98, %c0_99] : memref<18x18x32xf32, #tpu.memory_space<vmem>>, vector<18x18x32xf32>
    tpu.vector_store %arg21[%c0_97, %c0_98, %c0_99], %114 {strides = array<i32>} : memref<18x18x32xf32, #tpu.memory_space<vmem>>, vector<18x18x32xf32>,
    %c1_100 = arith.constant 1 : index
    %c1_101 = arith.constant 1 : index
    %c0_102 = arith.constant 0 : index
    %116 = vector.load %arg21[%c1_100, %c1_101, %c0_102] : memref<18x18x32xf32, #tpu.memory_space<vmem>>, vector<8x8x16xf32>
    tpu.vector_store %arg21[%c1_100, %c1_101, %c0_102], %113 {strides = array<i32>} : memref<18x18x32xf32, #tpu.memory_space<vmem>>, vector<8x8x16xf32>,
    %c0_103 = arith.constant 0 : index
    %c0_104 = arith.constant 0 : index
    %c0_105 = arith.constant 0 : index
    %117 = vector.load %arg21[%c0_103, %c0_104, %c0_105] : memref<18x18x32xf32, #tpu.memory_space<vmem>>, vector<10x10x16xf32>
    %118 = vector.shape_cast %117 : vector<10x10x16xf32> to vector<5x2x10x16xf32>
    %119 = vector.extract_strided_slice %118 {offsets = [0, 0, 0, 0], sizes = [5, 1, 10, 16], strides = [1, 1, 1, 1]} : vector<5x2x10x16xf32> to vector<5x1x10x16xf32>
    %120 = vector.shape_cast %119 : vector<5x1x10x16xf32> to vector<5x10x16xf32>
    %121 = vector.shape_cast %120 : vector<5x10x16xf32> to vector<5x5x2x16xf32>
    %122 = vector.extract_strided_slice %121 {offsets = [0, 0, 0, 0], sizes = [5, 5, 1, 16], strides = [1, 1, 1, 1]} : vector<5x5x2x16xf32> to vector<5x5x1x16xf32>
    %123 = vector.shape_cast %122 : vector<5x5x1x16xf32> to vector<5x5x16xf32>
    %124 = vector.extract_strided_slice %121 {offsets = [0, 0, 1, 0], sizes = [5, 5, 1, 16], strides = [1, 1, 1, 1]} : vector<5x5x2x16xf32> to vector<5x5x1x16xf32>
    %125 = vector.shape_cast %124 : vector<5x5x1x16xf32> to vector<5x5x16xf32>
    %126 = vector.extract_strided_slice %118 {offsets = [0, 1, 0, 0], sizes = [5, 1, 10, 16], strides = [1, 1, 1, 1]} : vector<5x2x10x16xf32> to vector<5x1x10x16xf32>
    %127 = vector.shape_cast %126 : vector<5x1x10x16xf32> to vector<5x10x16xf32>
    %128 = vector.shape_cast %127 : vector<5x10x16xf32> to vector<5x5x2x16xf32>
    %129 = vector.extract_strided_slice %128 {offsets = [0, 0, 0, 0], sizes = [5, 5, 1, 16], strides = [1, 1, 1, 1]} : vector<5x5x2x16xf32> to vector<5x5x1x16xf32>
    %130 = vector.shape_cast %129 : vector<5x5x1x16xf32> to vector<5x5x16xf32>
    %131 = vector.extract_strided_slice %128 {offsets = [0, 0, 1, 0], sizes = [5, 5, 1, 16], strides = [1, 1, 1, 1]} : vector<5x5x2x16xf32> to vector<5x5x1x16xf32>
    %132 = vector.shape_cast %131 : vector<5x5x1x16xf32> to vector<5x5x16xf32>
    %133 = vector.extract_strided_slice %123 {offsets = [0, 0, 0], sizes = [4, 4, 16], strides = [1, 1, 1]} : vector<5x5x16xf32> to vector<4x4x16xf32>
    %134 = vector.shape_cast %133 : vector<4x4x16xf32> to vector<16x16xf32>
    %135 = vector.extract_strided_slice %125 {offsets = [0, 0, 0], sizes = [4, 4, 16], strides = [1, 1, 1]} : vector<5x5x16xf32> to vector<4x4x16xf32>
    %136 = vector.shape_cast %135 : vector<4x4x16xf32> to vector<16x16xf32>
    %137 = vector.extract_strided_slice %123 {offsets = [0, 1, 0], sizes = [4, 4, 16], strides = [1, 1, 1]} : vector<5x5x16xf32> to vector<4x4x16xf32>
    %138 = vector.shape_cast %137 : vector<4x4x16xf32> to vector<16x16xf32>
    %139 = vector.extract_strided_slice %130 {offsets = [0, 0, 0], sizes = [4, 4, 16], strides = [1, 1, 1]} : vector<5x5x16xf32> to vector<4x4x16xf32>
    %140 = vector.shape_cast %139 : vector<4x4x16xf32> to vector<16x16xf32>
    %141 = vector.extract_strided_slice %132 {offsets = [0, 0, 0], sizes = [4, 4, 16], strides = [1, 1, 1]} : vector<5x5x16xf32> to vector<4x4x16xf32>
    %142 = vector.shape_cast %141 : vector<4x4x16xf32> to vector<16x16xf32>
    %143 = vector.extract_strided_slice %130 {offsets = [0, 1, 0], sizes = [4, 4, 16], strides = [1, 1, 1]} : vector<5x5x16xf32> to vector<4x4x16xf32>
    %144 = vector.shape_cast %143 : vector<4x4x16xf32> to vector<16x16xf32>
    %145 = vector.extract_strided_slice %123 {offsets = [1, 0, 0], sizes = [4, 4, 16], strides = [1, 1, 1]} : vector<5x5x16xf32> to vector<4x4x16xf32>
    %146 = vector.shape_cast %145 : vector<4x4x16xf32> to vector<16x16xf32>
    %147 = vector.extract_strided_slice %125 {offsets = [1, 0, 0], sizes = [4, 4, 16], strides = [1, 1, 1]} : vector<5x5x16xf32> to vector<4x4x16xf32>
    %148 = vector.shape_cast %147 : vector<4x4x16xf32> to vector<16x16xf32>
    %149 = vector.extract_strided_slice %123 {offsets = [1, 1, 0], sizes = [4, 4, 16], strides = [1, 1, 1]} : vector<5x5x16xf32> to vector<4x4x16xf32>
    %150 = vector.shape_cast %149 : vector<4x4x16xf32> to vector<16x16xf32>
    %151 = tpu.concatenate %134, %136, %138, %140, %142, %144, %146, %148, %150 in 1 : vector<16x16xf32>, vector<16x16xf32>, vector<16x16xf32>, vector<16x16xf32>, vector<16x16xf32>, vector<16x16xf32>, vector<16x16xf32>, vector<16x16xf32>, vector<16x16xf32> -> vector<16x144xf32>
    %152 = arith.truncf %151 : vector<16x144xf32> to vector<16x144xbf16>
    %c0_106 = arith.constant 0 : index
    %c0_107 = arith.constant 0 : index
    %153 = vector.load %arg8[%c0_106, %c0_107] : memref<144x16xbf16, #tpu.memory_space<vmem>>, vector<144x16xbf16>
    %cst_108 = arith.constant dense<0.000000e+00> : vector<16x16xf32>
    %154 = tpu.matmul %152, %153, %cst_108 {dimension_numbers = #tpu.dot_dimension_numbers<[1], [0], [0], [1], [0, 0, 1, 1], [], []>} : vector<16x144xbf16>, vector<144x16xbf16>, vector<16x16xf32> -> vector<16x16xf32>
    %c0_109 = arith.constant 0 : index
    %c0_110 = arith.constant 0 : index
    %155 = vector.load %arg9[%c0_109, %c0_110] : memref<1x16xf32, #tpu.memory_space<vmem>>, vector<1x16xf32>
    %156 = vector.broadcast %155 : vector<1x16xf32> to vector<16x16xf32>
    %157 = arith.addf %154, %156 : vector<16x16xf32>
    %cst_111 = arith.constant 2.000000e-01 : f32
    %158 = vector.broadcast %cst_111 : f32 to vector<16x16xf32>
    %159 = arith.mulf %158, %157 : vector<16x16xf32>
    %160 = arith.maximumf %157, %159 : vector<16x16xf32>
    %161 = vector.shape_cast %160 : vector<16x16xf32> to vector<4x4x16xf32>
    %cst_112 = arith.constant 0.000000e+00 : f32
    %162 = vector.broadcast %cst_112 : f32 to vector<18x18x32xf32>
    %c0_113 = arith.constant 0 : index
    %c0_114 = arith.constant 0 : index
    %c0_115 = arith.constant 0 : index
    %163 = vector.load %arg21[%c0_113, %c0_114, %c0_115] : memref<18x18x32xf32, #tpu.memory_space<vmem>>, vector<18x18x32xf32>
    tpu.vector_store %arg21[%c0_113, %c0_114, %c0_115], %162 {strides = array<i32>} : memref<18x18x32xf32, #tpu.memory_space<vmem>>, vector<18x18x32xf32>,
    %c1_116 = arith.constant 1 : index
    %c1_117 = arith.constant 1 : index
    %c0_118 = arith.constant 0 : index
    %164 = vector.load %arg21[%c1_116, %c1_117, %c0_118] : memref<18x18x32xf32, #tpu.memory_space<vmem>>, vector<4x4x16xf32>
    tpu.vector_store %arg21[%c1_116, %c1_117, %c0_118], %161 {strides = array<i32>} : memref<18x18x32xf32, #tpu.memory_space<vmem>>, vector<4x4x16xf32>,
    %c0_119 = arith.constant 0 : index
    %c0_120 = arith.constant 0 : index
    %c0_121 = arith.constant 0 : index
    %165 = vector.load %arg21[%c0_119, %c0_120, %c0_121] : memref<18x18x32xf32, #tpu.memory_space<vmem>>, vector<4x4x16xf32>
    %166 = vector.shape_cast %165 : vector<4x4x16xf32> to vector<16x16xf32>
    %c0_122 = arith.constant 0 : index
    %c1_123 = arith.constant 1 : index
    %c0_124 = arith.constant 0 : index
    %167 = vector.load %arg21[%c0_122, %c1_123, %c0_124] : memref<18x18x32xf32, #tpu.memory_space<vmem>>, vector<4x4x16xf32>
    %168 = vector.shape_cast %167 : vector<4x4x16xf32> to vector<16x16xf32>
    %c0_125 = arith.constant 0 : index
    %c2_126 = arith.constant 2 : index
    %c0_127 = arith.constant 0 : index
    %169 = vector.load %arg21[%c0_125, %c2_126, %c0_127] : memref<18x18x32xf32, #tpu.memory_space<vmem>>, vector<4x4x16xf32>
    %170 = vector.shape_cast %169 : vector<4x4x16xf32> to vector<16x16xf32>
    %c1_128 = arith.constant 1 : index
    %c0_129 = arith.constant 0 : index
    %c0_130 = arith.constant 0 : index
    %171 = vector.load %arg21[%c1_128, %c0_129, %c0_130] : memref<18x18x32xf32, #tpu.memory_space<vmem>>, vector<4x4x16xf32>
    %172 = vector.shape_cast %171 : vector<4x4x16xf32> to vector<16x16xf32>
    %c1_131 = arith.constant 1 : index
    %c1_132 = arith.constant 1 : index
    %c0_133 = arith.constant 0 : index
    %173 = vector.load %arg21[%c1_131, %c1_132, %c0_133] : memref<18x18x32xf32, #tpu.memory_space<vmem>>, vector<4x4x16xf32>
    %174 = vector.shape_cast %173 : vector<4x4x16xf32> to vector<16x16xf32>
    %c1_134 = arith.constant 1 : index
    %c2_135 = arith.constant 2 : index
    %c0_136 = arith.constant 0 : index
    %175 = vector.load %arg21[%c1_134, %c2_135, %c0_136] : memref<18x18x32xf32, #tpu.memory_space<vmem>>, vector<4x4x16xf32>
    %176 = vector.shape_cast %175 : vector<4x4x16xf32> to vector<16x16xf32>
    %c2_137 = arith.constant 2 : index
    %c0_138 = arith.constant 0 : index
    %c0_139 = arith.constant 0 : index
    %177 = vector.load %arg21[%c2_137, %c0_138, %c0_139] : memref<18x18x32xf32, #tpu.memory_space<vmem>>, vector<4x4x16xf32>
    %178 = vector.shape_cast %177 : vector<4x4x16xf32> to vector<16x16xf32>
    %c2_140 = arith.constant 2 : index
    %c1_141 = arith.constant 1 : index
    %c0_142 = arith.constant 0 : index
    %179 = vector.load %arg21[%c2_140, %c1_141, %c0_142] : memref<18x18x32xf32, #tpu.memory_space<vmem>>, vector<4x4x16xf32>
    %180 = vector.shape_cast %179 : vector<4x4x16xf32> to vector<16x16xf32>
    %c2_143 = arith.constant 2 : index
    %c2_144 = arith.constant 2 : index
    %c0_145 = arith.constant 0 : index
    %181 = vector.load %arg21[%c2_143, %c2_144, %c0_145] : memref<18x18x32xf32, #tpu.memory_space<vmem>>, vector<4x4x16xf32>
    %182 = vector.shape_cast %181 : vector<4x4x16xf32> to vector<16x16xf32>
    %183 = tpu.concatenate %166, %168, %170, %172, %174, %176, %178, %180, %182 in 1 : vector<16x16xf32>, vector<16x16xf32>, vector<16x16xf32>, vector<16x16xf32>, vector<16x16xf32>, vector<16x16xf32>, vector<16x16xf32>, vector<16x16xf32>, vector<16x16xf32> -> vector<16x144xf32>
    %184 = arith.truncf %183 : vector<16x144xf32> to vector<16x144xbf16>
    %c0_146 = arith.constant 0 : index
    %c0_147 = arith.constant 0 : index
    %185 = vector.load %arg10[%c0_146, %c0_147] : memref<144x32xbf16, #tpu.memory_space<vmem>>, vector<144x32xbf16>
    %cst_148 = arith.constant dense<0.000000e+00> : vector<16x32xf32>
    %186 = tpu.matmul %184, %185, %cst_148 {dimension_numbers = #tpu.dot_dimension_numbers<[1], [0], [0], [1], [0, 0, 1, 1], [], []>} : vector<16x144xbf16>, vector<144x32xbf16>, vector<16x32xf32> -> vector<16x32xf32>
    %c0_149 = arith.constant 0 : index
    %c0_150 = arith.constant 0 : index
    %187 = vector.load %arg11[%c0_149, %c0_150] : memref<1x32xf32, #tpu.memory_space<vmem>>, vector<1x32xf32>
    %188 = vector.broadcast %187 : vector<1x32xf32> to vector<16x32xf32>
    %189 = arith.addf %186, %188 : vector<16x32xf32>
    %cst_151 = arith.constant 2.000000e-01 : f32
    %190 = vector.broadcast %cst_151 : f32 to vector<16x32xf32>
    %191 = arith.mulf %190, %189 : vector<16x32xf32>
    %192 = arith.maximumf %189, %191 : vector<16x32xf32>
    %193 = vector.shape_cast %192 : vector<16x32xf32> to vector<4x4x32xf32>
    %cst_152 = arith.constant 0.000000e+00 : f32
    %194 = vector.broadcast %cst_152 : f32 to vector<18x18x32xf32>
    %c0_153 = arith.constant 0 : index
    %c0_154 = arith.constant 0 : index
    %c0_155 = arith.constant 0 : index
    %195 = vector.load %arg21[%c0_153, %c0_154, %c0_155] : memref<18x18x32xf32, #tpu.memory_space<vmem>>, vector<18x18x32xf32>
    tpu.vector_store %arg21[%c0_153, %c0_154, %c0_155], %194 {strides = array<i32>} : memref<18x18x32xf32, #tpu.memory_space<vmem>>, vector<18x18x32xf32>,
    %c1_156 = arith.constant 1 : index
    %c1_157 = arith.constant 1 : index
    %c0_158 = arith.constant 0 : index
    %196 = vector.load %arg21[%c1_156, %c1_157, %c0_158] : memref<18x18x32xf32, #tpu.memory_space<vmem>>, vector<4x4x32xf32>
    tpu.vector_store %arg21[%c1_156, %c1_157, %c0_158], %193 {strides = array<i32>} : memref<18x18x32xf32, #tpu.memory_space<vmem>>, vector<4x4x32xf32>,
    %c0_159 = arith.constant 0 : index
    %c0_160 = arith.constant 0 : index
    %c0_161 = arith.constant 0 : index
    %197 = vector.load %arg21[%c0_159, %c0_160, %c0_161] : memref<18x18x32xf32, #tpu.memory_space<vmem>>, vector<6x6x32xf32>
    %198 = vector.shape_cast %197 : vector<6x6x32xf32> to vector<3x2x6x32xf32>
    %199 = vector.extract_strided_slice %198 {offsets = [0, 0, 0, 0], sizes = [3, 1, 6, 32], strides = [1, 1, 1, 1]} : vector<3x2x6x32xf32> to vector<3x1x6x32xf32>
    %200 = vector.shape_cast %199 : vector<3x1x6x32xf32> to vector<3x6x32xf32>
    %201 = vector.shape_cast %200 : vector<3x6x32xf32> to vector<3x3x2x32xf32>
    %202 = vector.extract_strided_slice %201 {offsets = [0, 0, 0, 0], sizes = [3, 3, 1, 32], strides = [1, 1, 1, 1]} : vector<3x3x2x32xf32> to vector<3x3x1x32xf32>
    %203 = vector.shape_cast %202 : vector<3x3x1x32xf32> to vector<3x3x32xf32>
    %204 = vector.extract_strided_slice %201 {offsets = [0, 0, 1, 0], sizes = [3, 3, 1, 32], strides = [1, 1, 1, 1]} : vector<3x3x2x32xf32> to vector<3x3x1x32xf32>
    %205 = vector.shape_cast %204 : vector<3x3x1x32xf32> to vector<3x3x32xf32>
    %206 = vector.extract_strided_slice %198 {offsets = [0, 1, 0, 0], sizes = [3, 1, 6, 32], strides = [1, 1, 1, 1]} : vector<3x2x6x32xf32> to vector<3x1x6x32xf32>
    %207 = vector.shape_cast %206 : vector<3x1x6x32xf32> to vector<3x6x32xf32>
    %208 = vector.shape_cast %207 : vector<3x6x32xf32> to vector<3x3x2x32xf32>
    %209 = vector.extract_strided_slice %208 {offsets = [0, 0, 0, 0], sizes = [3, 3, 1, 32], strides = [1, 1, 1, 1]} : vector<3x3x2x32xf32> to vector<3x3x1x32xf32>
    %210 = vector.shape_cast %209 : vector<3x3x1x32xf32> to vector<3x3x32xf32>
    %211 = vector.extract_strided_slice %208 {offsets = [0, 0, 1, 0], sizes = [3, 3, 1, 32], strides = [1, 1, 1, 1]} : vector<3x3x2x32xf32> to vector<3x3x1x32xf32>
    %212 = vector.shape_cast %211 : vector<3x3x1x32xf32> to vector<3x3x32xf32>
    %213 = vector.extract_strided_slice %203 {offsets = [0, 0, 0], sizes = [2, 2, 32], strides = [1, 1, 1]} : vector<3x3x32xf32> to vector<2x2x32xf32>
    %214 = vector.shape_cast %213 : vector<2x2x32xf32> to vector<4x32xf32>
    %215 = vector.extract_strided_slice %205 {offsets = [0, 0, 0], sizes = [2, 2, 32], strides = [1, 1, 1]} : vector<3x3x32xf32> to vector<2x2x32xf32>
    %216 = vector.shape_cast %215 : vector<2x2x32xf32> to vector<4x32xf32>
    %217 = vector.extract_strided_slice %203 {offsets = [0, 1, 0], sizes = [2, 2, 32], strides = [1, 1, 1]} : vector<3x3x32xf32> to vector<2x2x32xf32>
    %218 = vector.shape_cast %217 : vector<2x2x32xf32> to vector<4x32xf32>
    %219 = vector.extract_strided_slice %210 {offsets = [0, 0, 0], sizes = [2, 2, 32], strides = [1, 1, 1]} : vector<3x3x32xf32> to vector<2x2x32xf32>
    %220 = vector.shape_cast %219 : vector<2x2x32xf32> to vector<4x32xf32>
    %221 = vector.extract_strided_slice %212 {offsets = [0, 0, 0], sizes = [2, 2, 32], strides = [1, 1, 1]} : vector<3x3x32xf32> to vector<2x2x32xf32>
    %222 = vector.shape_cast %221 : vector<2x2x32xf32> to vector<4x32xf32>
    %223 = vector.extract_strided_slice %210 {offsets = [0, 1, 0], sizes = [2, 2, 32], strides = [1, 1, 1]} : vector<3x3x32xf32> to vector<2x2x32xf32>
    %224 = vector.shape_cast %223 : vector<2x2x32xf32> to vector<4x32xf32>
    %225 = vector.extract_strided_slice %203 {offsets = [1, 0, 0], sizes = [2, 2, 32], strides = [1, 1, 1]} : vector<3x3x32xf32> to vector<2x2x32xf32>
    %226 = vector.shape_cast %225 : vector<2x2x32xf32> to vector<4x32xf32>
    %227 = vector.extract_strided_slice %205 {offsets = [1, 0, 0], sizes = [2, 2, 32], strides = [1, 1, 1]} : vector<3x3x32xf32> to vector<2x2x32xf32>
    %228 = vector.shape_cast %227 : vector<2x2x32xf32> to vector<4x32xf32>
    %229 = vector.extract_strided_slice %203 {offsets = [1, 1, 0], sizes = [2, 2, 32], strides = [1, 1, 1]} : vector<3x3x32xf32> to vector<2x2x32xf32>
    %230 = vector.shape_cast %229 : vector<2x2x32xf32> to vector<4x32xf32>
    %231 = tpu.concatenate %214, %216, %218, %220, %222, %224, %226, %228, %230 in 1 : vector<4x32xf32>, vector<4x32xf32>, vector<4x32xf32>, vector<4x32xf32>, vector<4x32xf32>, vector<4x32xf32>, vector<4x32xf32>, vector<4x32xf32>, vector<4x32xf32> -> vector<4x288xf32>
    %232 = arith.truncf %231 : vector<4x288xf32> to vector<4x288xbf16>
    %c0_162 = arith.constant 0 : index
    %c0_163 = arith.constant 0 : index
    %233 = vector.load %arg12[%c0_162, %c0_163] : memref<288x32xbf16, #tpu.memory_space<vmem>>, vector<288x32xbf16>
    %cst_164 = arith.constant dense<0.000000e+00> : vector<4x32xf32>
    %234 = tpu.matmul %232, %233, %cst_164 {dimension_numbers = #tpu.dot_dimension_numbers<[1], [0], [0], [1], [0, 0, 1, 1], [], []>} : vector<4x288xbf16>, vector<288x32xbf16>, vector<4x32xf32> -> vector<4x32xf32>
    %c0_165 = arith.constant 0 : index
    %c0_166 = arith.constant 0 : index
    %235 = vector.load %arg13[%c0_165, %c0_166] : memref<1x32xf32, #tpu.memory_space<vmem>>, vector<1x32xf32>
    %236 = vector.broadcast %235 : vector<1x32xf32> to vector<4x32xf32>
    %237 = arith.addf %234, %236 : vector<4x32xf32>
    %cst_167 = arith.constant 2.000000e-01 : f32
    %238 = vector.broadcast %cst_167 : f32 to vector<4x32xf32>
    %239 = arith.mulf %238, %237 : vector<4x32xf32>
    %240 = arith.maximumf %237, %239 : vector<4x32xf32>
    %241 = vector.shape_cast %240 : vector<4x32xf32> to vector<2x2x32xf32>
    %242 = vector.shape_cast %241 : vector<2x2x32xf32> to vector<4x32xf32>
    %cst_168 = arith.constant dense<0.000000e+00> : vector<32xf32>
    %243 = vector.multi_reduction <add>, %242, %cst_168 [0] : vector<4x32xf32> to vector<32xf32>
    %244 = vector.shape_cast %243 : vector<32xf32> to vector<1x32xf32>
    %cst_169 = arith.constant 2.500000e-01 : f32
    %245 = vector.broadcast %cst_169 : f32 to vector<1x32xf32>
    %246 = arith.mulf %244, %245 : vector<1x32xf32>
    %c0_170 = arith.constant 0 : index
    %c0_171 = arith.constant 0 : index
    %247 = vector.load %arg14[%c0_170, %c0_171] : memref<32x16xf32, #tpu.memory_space<vmem>>, vector<32x16xf32>
    %cst_172 = arith.constant dense<0.000000e+00> : vector<1x16xf32>
    %248 = tpu.matmul %246, %247, %cst_172 {dimension_numbers = #tpu.dot_dimension_numbers<[1], [0], [0], [1], [0, 0, 1, 1], [], []>} : vector<1x32xf32>, vector<32x16xf32>, vector<1x16xf32> -> vector<1x16xf32>
    %c0_173 = arith.constant 0 : index
    %c0_174 = arith.constant 0 : index
    %249 = vector.load %arg15[%c0_173, %c0_174] : memref<1x16xf32, #tpu.memory_space<vmem>>, vector<1x16xf32>
    %250 = arith.addf %248, %249 : vector<1x16xf32>
    %cst_175 = arith.constant 2.000000e-01 : f32
    %251 = vector.broadcast %cst_175 : f32 to vector<1x16xf32>
    %252 = arith.mulf %251, %250 : vector<1x16xf32>
    %253 = arith.maximumf %250, %252 : vector<1x16xf32>
    %c0_176 = arith.constant 0 : index
    %c0_177 = arith.constant 0 : index
    %254 = vector.load %arg16[%c0_176, %c0_177] : memref<16x8xf32, #tpu.memory_space<vmem>>, vector<16x8xf32>
    %cst_178 = arith.constant dense<0.000000e+00> : vector<1x8xf32>
    %255 = tpu.matmul %253, %254, %cst_178 {dimension_numbers = #tpu.dot_dimension_numbers<[1], [0], [0], [1], [0, 0, 1, 1], [], []>} : vector<1x16xf32>, vector<16x8xf32>, vector<1x8xf32> -> vector<1x8xf32>
    %c0_179 = arith.constant 0 : index
    %c0_180 = arith.constant 0 : index
    %256 = vector.load %arg17[%c0_179, %c0_180] : memref<1x8xf32, #tpu.memory_space<vmem>>, vector<1x8xf32>
    %257 = arith.addf %255, %256 : vector<1x8xf32>
    %cst_181 = arith.constant 2.000000e-01 : f32
    %258 = vector.broadcast %cst_181 : f32 to vector<1x8xf32>
    %259 = arith.mulf %258, %257 : vector<1x8xf32>
    %260 = arith.maximumf %257, %259 : vector<1x8xf32>
    %c0_182 = arith.constant 0 : index
    %c0_183 = arith.constant 0 : index
    %261 = vector.load %arg18[%c0_182, %c0_183] : memref<8x1xf32, #tpu.memory_space<vmem>>, vector<8x1xf32>
    %cst_184 = arith.constant dense<0.000000e+00> : vector<1x1xf32>
    %262 = tpu.matmul %260, %261, %cst_184 {dimension_numbers = #tpu.dot_dimension_numbers<[1], [0], [0], [1], [0, 0, 1, 1], [], []>} : vector<1x8xf32>, vector<8x1xf32>, vector<1x1xf32> -> vector<1x1xf32>
    %c0_185 = arith.constant 0 : index
    %c0_186 = arith.constant 0 : index
    %263 = vector.load %arg19[%c0_185, %c0_186] : memref<1x1xf32, #tpu.memory_space<vmem>>, vector<1x1xf32>
    %264 = arith.addf %262, %263 : vector<1x1xf32>
    %265 = vector.shape_cast %264 : vector<1x1xf32> to vector<1x1x1xf32>
    %c0_187 = arith.constant 0 : index
    %c0_188 = arith.constant 0 : index
    %c0_189 = arith.constant 0 : index
    %266 = vector.load %arg20[%c0_187, %c0_188, %c0_189] : memref<1x1x1xf32, #tpu.memory_space<vmem>>, vector<1x1x1xf32>
    tpu.vector_store %arg20[%c0_187, %c0_188, %c0_189], %265 {strides = array<i32>} : memref<1x1x1xf32, #tpu.memory_space<vmem>>, vector<1x1x1xf32>,
    return
  }
  func.func @transform_0(%arg0: i32) -> (i32, i32, i32, i32) {
    %c0_i32 = arith.constant 0 : i32
    %c0_i32_0 = arith.constant 0 : i32
    %c0_i32_1 = arith.constant 0 : i32
    %c0_i32_2 = arith.constant 0 : i32
    return %arg0, %c0_i32, %c0_i32_0, %c0_i32_1 : i32, i32, i32, i32
  }
  func.func @transform_1(%arg0: i32) -> (i32, i32) {
    %c0_i32 = arith.constant 0 : i32
    %c0_i32_0 = arith.constant 0 : i32
    %c0_i32_1 = arith.constant 0 : i32
    return %c0_i32, %c0_i32_0 : i32, i32
  }
  func.func @transform_2(%arg0: i32) -> (i32, i32) {
    %c0_i32 = arith.constant 0 : i32
    %c0_i32_0 = arith.constant 0 : i32
    %c0_i32_1 = arith.constant 0 : i32
    return %c0_i32, %c0_i32_0 : i32, i32
  }
  func.func @transform_3(%arg0: i32) -> (i32, i32) {
    %c0_i32 = arith.constant 0 : i32
    %c0_i32_0 = arith.constant 0 : i32
    %c0_i32_1 = arith.constant 0 : i32
    return %c0_i32, %c0_i32_0 : i32, i32
  }
  func.func @transform_4(%arg0: i32) -> (i32, i32) {
    %c0_i32 = arith.constant 0 : i32
    %c0_i32_0 = arith.constant 0 : i32
    %c0_i32_1 = arith.constant 0 : i32
    return %c0_i32, %c0_i32_0 : i32, i32
  }
  func.func @transform_5(%arg0: i32) -> (i32, i32) {
    %c0_i32 = arith.constant 0 : i32
    %c0_i32_0 = arith.constant 0 : i32
    %c0_i32_1 = arith.constant 0 : i32
    return %c0_i32, %c0_i32_0 : i32, i32
  }
  func.func @transform_6(%arg0: i32) -> (i32, i32) {
    %c0_i32 = arith.constant 0 : i32
    %c0_i32_0 = arith.constant 0 : i32
    %c0_i32_1 = arith.constant 0 : i32
    return %c0_i32, %c0_i32_0 : i32, i32
  }
  func.func @transform_7(%arg0: i32) -> (i32, i32) {
    %c0_i32 = arith.constant 0 : i32
    %c0_i32_0 = arith.constant 0 : i32
    %c0_i32_1 = arith.constant 0 : i32
    return %c0_i32, %c0_i32_0 : i32, i32
  }
  func.func @transform_8(%arg0: i32) -> (i32, i32) {
    %c0_i32 = arith.constant 0 : i32
    %c0_i32_0 = arith.constant 0 : i32
    %c0_i32_1 = arith.constant 0 : i32
    return %c0_i32, %c0_i32_0 : i32, i32
  }
  func.func @transform_9(%arg0: i32) -> (i32, i32) {
    %c0_i32 = arith.constant 0 : i32
    %c0_i32_0 = arith.constant 0 : i32
    %c0_i32_1 = arith.constant 0 : i32
    return %c0_i32, %c0_i32_0 : i32, i32
  }
  func.func @transform_10(%arg0: i32) -> (i32, i32) {
    %c0_i32 = arith.constant 0 : i32
    %c0_i32_0 = arith.constant 0 : i32
    %c0_i32_1 = arith.constant 0 : i32
    return %c0_i32, %c0_i32_0 : i32, i32
  }
  func.func @transform_11(%arg0: i32) -> (i32, i32) {
    %c0_i32 = arith.constant 0 : i32
    %c0_i32_0 = arith.constant 0 : i32
    %c0_i32_1 = arith.constant 0 : i32
    return %c0_i32, %c0_i32_0 : i32, i32
  }
  func.func @transform_12(%arg0: i32) -> (i32, i32) {
    %c0_i32 = arith.constant 0 : i32
    %c0_i32_0 = arith.constant 0 : i32
    %c0_i32_1 = arith.constant 0 : i32
    return %c0_i32, %c0_i32_0 : i32, i32
  }
  func.func @transform_13(%arg0: i32) -> (i32, i32) {
    %c0_i32 = arith.constant 0 : i32
    %c0_i32_0 = arith.constant 0 : i32
    %c0_i32_1 = arith.constant 0 : i32
    return %c0_i32, %c0_i32_0 : i32, i32
  }
  func.func @transform_14(%arg0: i32) -> (i32, i32) {
    %c0_i32 = arith.constant 0 : i32
    %c0_i32_0 = arith.constant 0 : i32
    %c0_i32_1 = arith.constant 0 : i32
    return %c0_i32, %c0_i32_0 : i32, i32
  }
  func.func @transform_15(%arg0: i32) -> (i32, i32) {
    %c0_i32 = arith.constant 0 : i32
    %c0_i32_0 = arith.constant 0 : i32
    %c0_i32_1 = arith.constant 0 : i32
    return %c0_i32, %c0_i32_0 : i32, i32
  }
  func.func @transform_16(%arg0: i32) -> (i32, i32) {
    %c0_i32 = arith.constant 0 : i32
    %c0_i32_0 = arith.constant 0 : i32
    %c0_i32_1 = arith.constant 0 : i32
    return %c0_i32, %c0_i32_0 : i32, i32
  }
  func.func @transform_17(%arg0: i32) -> (i32, i32) {
    %c0_i32 = arith.constant 0 : i32
    %c0_i32_0 = arith.constant 0 : i32
    %c0_i32_1 = arith.constant 0 : i32
    return %c0_i32, %c0_i32_0 : i32, i32
  }
  func.func @transform_18(%arg0: i32) -> (i32, i32) {
    %c0_i32 = arith.constant 0 : i32
    %c0_i32_0 = arith.constant 0 : i32
    %c0_i32_1 = arith.constant 0 : i32
    return %c0_i32, %c0_i32_0 : i32, i32
  }
  func.func @transform_19(%arg0: i32) -> (i32, i32, i32) {
    %c0_i32 = arith.constant 0 : i32
    %c0_i32_0 = arith.constant 0 : i32
    %c0_i32_1 = arith.constant 0 : i32
    return %arg0, %c0_i32, %c0_i32_0 : i32, i32, i32
  }
}

</mosaic_0001>

<llo_original>
// kernel: tpu_custom_call.1
$region0: #{tpu_custom_call.1}
  #allocation0 [shape = 'u32[]', space=smem, size = 0x4, offset = 0x4, fixed_abs, tag = 'smem constant byte address 0x4 - core index']
  #allocation1 [shape = 'u32[144,128]{1,0:T(1,128)}', space=vmem, size = 0x12000, scoped, tag = 'internal scratch']
  #allocation2 [shape = 'f32[18,18,32]{2,1,0:T(8,128)}', space=vmem, size = 0x36000, scoped, tag = 'scratch operand']
  #allocation3 [shape = 'f32[1,1]{1,0:T(1,128)S(1)}', space=vmem, size = 0x200, scoped, tag = 'scoped memory for tpu_custom_call.1']
  %s0 = inlined_call_operand.vmem [shape: f32[2,16,16,4], index: 0, kind: input, shape index: {}]
  %s1 = inlined_call_operand.vmem [shape: bf16[36,8], index: 1, kind: input, shape index: {}]
  %s2 = inlined_call_operand.vmem [shape: f32[1,8], index: 2, kind: input, shape index: {}]
  %s3 = inlined_call_operand.vmem [shape: bf16[72,8], index: 3, kind: input, shape index: {}]
  %s4 = inlined_call_operand.vmem [shape: f32[1,8], index: 4, kind: input, shape index: {}]
  %s5 = inlined_call_operand.vmem [shape: bf16[72,16], index: 5, kind: input, shape index: {}]
  %s6 = inlined_call_operand.vmem [shape: f32[1,16], index: 6, kind: input, shape index: {}]
  %s7 = inlined_call_operand.vmem [shape: bf16[144,16], index: 7, kind: input, shape index: {}]
  %s8 = inlined_call_operand.vmem [shape: f32[1,16], index: 8, kind: input, shape index: {}]
  %s9 = inlined_call_operand.vmem [shape: bf16[144,32], index: 9, kind: input, shape index: {}]
  %s10 = inlined_call_operand.vmem [shape: f32[1,32], index: 10, kind: input, shape index: {}]
  %s11 = inlined_call_operand.vmem [shape: bf16[288,32], index: 11, kind: input, shape index: {}]
  %s12 = inlined_call_operand.vmem [shape: f32[1,32], index: 12, kind: input, shape index: {}]
  %s13 = inlined_call_operand.vmem [shape: f32[32,16], index: 13, kind: input, shape index: {}]
  %s14 = inlined_call_operand.vmem [shape: f32[1,16], index: 14, kind: input, shape index: {}]
  %s15 = inlined_call_operand.vmem [shape: f32[16,8], index: 15, kind: input, shape index: {}]
  %s16 = inlined_call_operand.vmem [shape: f32[1,8], index: 16, kind: input, shape index: {}]
  %s17 = inlined_call_operand.vmem [shape: f32[8,1], index: 17, kind: input, shape index: {}]
  %s18 = inlined_call_operand.<no memory space> [shape: f32[1,1], index: 18, kind: input, shape index: {}]
  %s19 = inlined_call_operand.vmem [shape: f32[2,1,1], index: 19, kind: output, shape index: {}]
  %s20 = sld [smem:[#allocation0]]
  $region109: #{tpu_custom_call.1} parent=0
    _
  %s22 = ssub.s32 1, %s20
  %s23 = scalar_select 0, %s22, %s20
  %v24 = vstv %s18
  %25 = vst [vmem:[#allocation3] sm:$0x1] %v24
  loop: start=0, step=1, limit=4
  $region2: #{tpu_custom_call.1} parent=0 // loop_pre_header
    _
  $region3: #{tpu_custom_call.1} parent=0 // loop_header
    %s27 = sphi 0, %s31
    %p28 = scmp.ge.s32.totalorder %s27, 4
    %s37 = sphi 0, %s39
    %s40 = sphi 0, %s37
    %s41 = sphi 0, %s40
    %s57 = sphi 0, %s41
    %s61 = sphi 0, %s61
    %s63 = sphi 0, %s61
    %s64 = sphi 0, %s63
    %s78 = sphi 0, %s64
    %s82 = sphi 0, %s82
    %s84 = sphi 0, %s82
    %s85 = sphi 0, %s84
    %s99 = sphi 0, %s85
    %s103 = sphi 0, %s103
    %s105 = sphi 0, %s103
    %s106 = sphi 0, %s105
    %s120 = sphi 0, %s106
    %s124 = sphi 0, %s124
    %s126 = sphi 0, %s124
    %s127 = sphi 0, %s126
    %s141 = sphi 0, %s127
    %s145 = sphi 0, %s145
    %s147 = sphi 0, %s145
    %s148 = sphi 0, %s147
    %s162 = sphi 0, %s148
    %s166 = sphi 0, %s166
    %s168 = sphi 0, %s166
    %s169 = sphi 0, %s168
    %s183 = sphi 0, %s169
    %s187 = sphi 0, %s187
    %s189 = sphi 0, %s187
    %s190 = sphi 0, %s189
    %s204 = sphi 0, %s190
    %s208 = sphi 0, %s208
    %s210 = sphi 0, %s208
    %s211 = sphi 0, %s210
    %s225 = sphi 0, %s211
    %s229 = sphi 0, %s229
    %s231 = sphi 0, %s229
    %s232 = sphi 0, %s231
    %s246 = sphi 0, %s232
    %s250 = sphi 0, %s250
    %s252 = sphi 0, %s250
    %s253 = sphi 0, %s252
    %s267 = sphi 0, %s253
    %s271 = sphi 0, %s271
    %s273 = sphi 0, %s271
    %s274 = sphi 0, %s273
    %s288 = sphi 0, %s274
    %s292 = sphi 0, %s292
    %s294 = sphi 0, %s292
    %s295 = sphi 0, %s294
    %s309 = sphi 0, %s295
    %s313 = sphi 0, %s313
    %s315 = sphi 0, %s313
    %s316 = sphi 0, %s315
    %s330 = sphi 0, %s316
    %s334 = sphi 0, %s334
    %s336 = sphi 0, %s334
    %s337 = sphi 0, %s336
    %s351 = sphi 0, %s337
    %s355 = sphi 0, %s355
    %s357 = sphi 0, %s355
    %s358 = sphi 0, %s357
    %s372 = sphi 0, %s358
    %s376 = sphi 0, %s376
    %s378 = sphi 0, %s376
    %s379 = sphi 0, %s378
    %s393 = sphi 0, %s379
    %s397 = sphi 0, %s397
    %s399 = sphi 0, %s397
    %s400 = sphi 0, %s399
    %s414 = sphi 0, %s400
    %s418 = sphi 0, %s418
    %s420 = sphi 0, %s418
    %s421 = sphi 0, %s420
    %s435 = sphi 0, %s421
    %s441 = sphi 0, %s443
    %s444 = sphi 0, %s441
    %s445 = sphi 0, %s444
    %s461 = sphi 0, %s445
  $region4: #{tpu_custom_call.1} parent=0 // loop_header_branch
    %30 = sbr.rel (%p28) target = $region8
  $region5: #{tpu_custom_call.1} parent=0 // loop_body
    %s32 = ssub.s32 %s27, 1
    %s33 = ssub.s32 %s27, 2
    %s34 = sadd.s32 %s27, 1
    %s35 = ssub.s32 %s27, %s34
    %p36 = scmp.eq.s32.totalorder %s35, 0
    %s38 = sadd.s32 %s37, 1
    %s39 = scalar_select %p36, %s37, %s38
    %p42 = pneg %p36
    %p43 = scmp.eq.s32.totalorder %s27, 1
    %p44 = por %p42, %p43
    %p45 = scmp.ne.s32.totalorder %s37, %s40
    %p46 = scmp.eq.s32.totalorder %s27, 0
    %p47 = por %p45, %p46
    %p48 = scmp.ne.s32.totalorder %s37, %s40
    %p49 = scmp.eq.s32.totalorder %s32, 1
    %p50 = por %p48, %p49
    %p51 = scmp.ne.s32.totalorder %s40, %s41
    %p52 = scmp.eq.s32.totalorder %s32, 0
    %p53 = por %p51, %p52
    %p54 = scmp.ne.s32.totalorder %s40, %s41
    %p55 = scmp.eq.s32.totalorder %s33, 1
    %p56 = por %p54, %p55
    %p58 = scmp.ne.s32.totalorder %s41, %s57
    %p59 = scmp.eq.s32.totalorder %s33, 0
    %p60 = por %p58, %p59
    %s62 = sadd.s32 %s61, 1
    %p65 = scmp.eq.s32.totalorder %s27, 1
    %p66 = scmp.ne.s32.totalorder %s61, %s63
    %p67 = scmp.eq.s32.totalorder %s27, 0
    %p68 = por %p66, %p67
    %p69 = scmp.ne.s32.totalorder %s61, %s63
    %p70 = scmp.eq.s32.totalorder %s32, 1
    %p71 = por %p69, %p70
    %p72 = scmp.ne.s32.totalorder %s63, %s64
    %p73 = scmp.eq.s32.totalorder %s32, 0
    %p74 = por %p72, %p73
    %p75 = scmp.ne.s32.totalorder %s63, %s64
    %p76 = scmp.eq.s32.totalorder %s33, 1
    %p77 = por %p75, %p76
    %p79 = scmp.ne.s32.totalorder %s64, %s78
    %p80 = scmp.eq.s32.totalorder %s33, 0
    %p81 = por %p79, %p80
    %s83 = sadd.s32 %s82, 1
    %p86 = scmp.eq.s32.totalorder %s27, 1
    %p87 = scmp.ne.s32.totalorder %s82, %s84
    %p88 = scmp.eq.s32.totalorder %s27, 0
    %p89 = por %p87, %p88
    %p90 = scmp.ne.s32.totalorder %s82, %s84
    %p91 = scmp.eq.s32.totalorder %s32, 1
    %p92 = por %p90, %p91
    %p93 = scmp.ne.s32.totalorder %s84, %s85
    %p94 = scmp.eq.s32.totalorder %s32, 0
    %p95 = por %p93, %p94
    %p96 = scmp.ne.s32.totalorder %s84, %s85
    %p97 = scmp.eq.s32.totalorder %s33, 1
    %p98 = por %p96, %p97
    %p100 = scmp.ne.s32.totalorder %s85, %s99
    %p101 = scmp.eq.s32.totalorder %s33, 0
    %p102 = por %p100, %p101
    %s104 = sadd.s32 %s103, 1
    %p107 = scmp.eq.s32.totalorder %s27, 1
    %p108 = scmp.ne.s32.totalorder %s103, %s105
    %p109 = scmp.eq.s32.totalorder %s27, 0
    %p110 = por %p108, %p109
    %p111 = scmp.ne.s32.totalorder %s103, %s105
    %p112 = scmp.eq.s32.totalorder %s32, 1
    %p113 = por %p111, %p112
    %p114 = scmp.ne.s32.totalorder %s105, %s106
    %p115 = scmp.eq.s32.totalorder %s32, 0
    %p116 = por %p114, %p115
    %p117 = scmp.ne.s32.totalorder %s105, %s106
    %p118 = scmp.eq.s32.totalorder %s33, 1
    %p119 = por %p117, %p118
    %p121 = scmp.ne.s32.totalorder %s106, %s120
    %p122 = scmp.eq.s32.totalorder %s33, 0
    %p123 = por %p121, %p122
    %s125 = sadd.s32 %s124, 1
    %p128 = scmp.eq.s32.totalorder %s27, 1
    %p129 = scmp.ne.s32.totalorder %s124, %s126
    %p130 = scmp.eq.s32.totalorder %s27, 0
    %p131 = por %p129, %p130
    %p132 = scmp.ne.s32.totalorder %s124, %s126
    %p133 = scmp.eq.s32.totalorder %s32, 1
    %p134 = por %p132, %p133
    %p135 = scmp.ne.s32.totalorder %s126, %s127
    %p136 = scmp.eq.s32.totalorder %s32, 0
    %p137 = por %p135, %p136
    %p138 = scmp.ne.s32.totalorder %s126, %s127
    %p139 = scmp.eq.s32.totalorder %s33, 1
    %p140 = por %p138, %p139
    %p142 = scmp.ne.s32.totalorder %s127, %s141
    %p143 = scmp.eq.s32.totalorder %s33, 0
    %p144 = por %p142, %p143
    %s146 = sadd.s32 %s145, 1
    %p149 = scmp.eq.s32.totalorder %s27, 1
    %p150 = scmp.ne.s32.totalorder %s145, %s147
    %p151 = scmp.eq.s32.totalorder %s27, 0
    %p152 = por %p150, %p151
    %p153 = scmp.ne.s32.totalorder %s145, %s147
    %p154 = scmp.eq.s32.totalorder %s32, 1
    %p155 = por %p153, %p154
    %p156 = scmp.ne.s32.totalorder %s147, %s148
    %p157 = scmp.eq.s32.totalorder %s32, 0
    %p158 = por %p156, %p157
    %p159 = scmp.ne.s32.totalorder %s147, %s148
    %p160 = scmp.eq.s32.totalorder %s33, 1
    %p161 = por %p159, %p160
    %p163 = scmp.ne.s32.totalorder %s148, %s162
    %p164 = scmp.eq.s32.totalorder %s33, 0
    %p165 = por %p163, %p164
    %s167 = sadd.s32 %s166, 1
    %p170 = scmp.eq.s32.totalorder %s27, 1
    %p171 = scmp.ne.s32.totalorder %s166, %s168
    %p172 = scmp.eq.s32.totalorder %s27, 0
    %p173 = por %p171, %p172
    %p174 = scmp.ne.s32.totalorder %s166, %s168
    %p175 = scmp.eq.s32.totalorder %s32, 1
    %p176 = por %p174, %p175
    %p177 = scmp.ne.s32.totalorder %s168, %s169
    %p178 = scmp.eq.s32.totalorder %s32, 0
    %p179 = por %p177, %p178
    %p180 = scmp.ne.s32.totalorder %s168, %s169
    %p181 = scmp.eq.s32.totalorder %s33, 1
    %p182 = por %p180, %p181
    %p184 = scmp.ne.s32.totalorder %s169, %s183
    %p185 = scmp.eq.s32.totalorder %s33, 0
    %p186 = por %p184, %p185
    %s188 = sadd.s32 %s187, 1
    %p191 = scmp.eq.s32.totalorder %s27, 1
    %p192 = scmp.ne.s32.totalorder %s187, %s189
    %p193 = scmp.eq.s32.totalorder %s27, 0
    %p194 = por %p192, %p193
    %p195 = scmp.ne.s32.totalorder %s187, %s189
    %p196 = scmp.eq.s32.totalorder %s32, 1
    %p197 = por %p195, %p196
    %p198 = scmp.ne.s32.totalorder %s189, %s190
    %p199 = scmp.eq.s32.totalorder %s32, 0
    %p200 = por %p198, %p199
    %p201 = scmp.ne.s32.totalorder %s189, %s190
    %p202 = scmp.eq.s32.totalorder %s33, 1
    %p203 = por %p201, %p202
    %p205 = scmp.ne.s32.totalorder %s190, %s204
    %p206 = scmp.eq.s32.totalorder %s33, 0
    %p207 = por %p205, %p206
    %s209 = sadd.s32 %s208, 1
    %p212 = scmp.eq.s32.totalorder %s27, 1
    %p213 = scmp.ne.s32.totalorder %s208, %s210
    %p214 = scmp.eq.s32.totalorder %s27, 0
    %p215 = por %p213, %p214
    %p216 = scmp.ne.s32.totalorder %s208, %s210
    %p217 = scmp.eq.s32.totalorder %s32, 1
    %p218 = por %p216, %p217
    %p219 = scmp.ne.s32.totalorder %s210, %s211
    %p220 = scmp.eq.s32.totalorder %s32, 0
    %p221 = por %p219, %p220
    %p222 = scmp.ne.s32.totalorder %s210, %s211
    %p223 = scmp.eq.s32.totalorder %s33, 1
    %p224 = por %p222, %p223
    %p226 = scmp.ne.s32.totalorder %s211, %s225
    %p227 = scmp.eq.s32.totalorder %s33, 0
    %p228 = por %p226, %p227
    %s230 = sadd.s32 %s229, 1
    %p233 = scmp.eq.s32.totalorder %s27, 1
    %p234 = scmp.ne.s32.totalorder %s229, %s231
    %p235 = scmp.eq.s32.totalorder %s27, 0
    %p236 = por %p234, %p235
    %p237 = scmp.ne.s32.totalorder %s229, %s231
    %p238 = scmp.eq.s32.totalorder %s32, 1
    %p239 = por %p237, %p238
    %p240 = scmp.ne.s32.totalorder %s231, %s232
    %p241 = scmp.eq.s32.totalorder %s32, 0
    %p242 = por %p240, %p241
    %p243 = scmp.ne.s32.totalorder %s231, %s232
    %p244 = scmp.eq.s32.totalorder %s33, 1
    %p245 = por %p243, %p244
    %p247 = scmp.ne.s32.totalorder %s232, %s246
    %p248 = scmp.eq.s32.totalorder %s33, 0
    %p249 = por %p247, %p248
    %s251 = sadd.s32 %s250, 1
    %p254 = scmp.eq.s32.totalorder %s27, 1
    %p255 = scmp.ne.s32.totalorder %s250, %s252
    %p256 = scmp.eq.s32.totalorder %s27, 0
    %p257 = por %p255, %p256
    %p258 = scmp.ne.s32.totalorder %s250, %s252
    %p259 = scmp.eq.s32.totalorder %s32, 1
    %p260 = por %p258, %p259
    %p261 = scmp.ne.s32.totalorder %s252, %s253
    %p262 = scmp.eq.s32.totalorder %s32, 0
    %p263 = por %p261, %p262
    %p264 = scmp.ne.s32.totalorder %s252, %s253
    %p265 = scmp.eq.s32.totalorder %s33, 1
    %p266 = por %p264, %p265
    %p268 = scmp.ne.s32.totalorder %s253, %s267
    %p269 = scmp.eq.s32.totalorder %s33, 0
    %p270 = por %p268, %p269
    %s272 = sadd.s32 %s271, 1
    %p275 = scmp.eq.s32.totalorder %s27, 1
    %p276 = scmp.ne.s32.totalorder %s271, %s273
    %p277 = scmp.eq.s32.totalorder %s27, 0
    %p278 = por %p276, %p277
    %p279 = scmp.ne.s32.totalorder %s271, %s273
    %p280 = scmp.eq.s32.totalorder %s32, 1
    %p281 = por %p279, %p280
    %p282 = scmp.ne.s32.totalorder %s273, %s274
    %p283 = scmp.eq.s32.totalorder %s32, 0
    %p284 = por %p282, %p283
    %p285 = scmp.ne.s32.totalorder %s273, %s274
    %p286 = scmp.eq.s32.totalorder %s33, 1
    %p287 = por %p285, %p286
    %p289 = scmp.ne.s32.totalorder %s274, %s288
    %p290 = scmp.eq.s32.totalorder %s33, 0
    %p291 = por %p289, %p290
    %s293 = sadd.s32 %s292, 1
    %p296 = scmp.eq.s32.totalorder %s27, 1
    %p297 = scmp.ne.s32.totalorder %s292, %s294
    %p298 = scmp.eq.s32.totalorder %s27, 0
    %p299 = por %p297, %p298
    %p300 = scmp.ne.s32.totalorder %s292, %s294
    %p301 = scmp.eq.s32.totalorder %s32, 1
    %p302 = por %p300, %p301
    %p303 = scmp.ne.s32.totalorder %s294, %s295
    %p304 = scmp.eq.s32.totalorder %s32, 0
    %p305 = por %p303, %p304
    %p306 = scmp.ne.s32.totalorder %s294, %s295
    %p307 = scmp.eq.s32.totalorder %s33, 1
    %p308 = por %p306, %p307
    %p310 = scmp.ne.s32.totalorder %s295, %s309
    %p311 = scmp.eq.s32.totalorder %s33, 0
    %p312 = por %p310, %p311
    %s314 = sadd.s32 %s313, 1
    %p317 = scmp.eq.s32.totalorder %s27, 1
    %p318 = scmp.ne.s32.totalorder %s313, %s315
    %p319 = scmp.eq.s32.totalorder %s27, 0
    %p320 = por %p318, %p319
    %p321 = scmp.ne.s32.totalorder %s313, %s315
    %p322 = scmp.eq.s32.totalorder %s32, 1
    %p323 = por %p321, %p322
    %p324 = scmp.ne.s32.totalorder %s315, %s316
    %p325 = scmp.eq.s32.totalorder %s32, 0
    %p326 = por %p324, %p325
    %p327 = scmp.ne.s32.totalorder %s315, %s316
    %p328 = scmp.eq.s32.totalorder %s33, 1
    %p329 = por %p327, %p328
    %p331 = scmp.ne.s32.totalorder %s316, %s330
    %p332 = scmp.eq.s32.totalorder %s33, 0
    %p333 = por %p331, %p332
    %s335 = sadd.s32 %s334, 1
    %p338 = scmp.eq.s32.totalorder %s27, 1
    %p339 = scmp.ne.s32.totalorder %s334, %s336
    %p340 = scmp.eq.s32.totalorder %s27, 0
    %p341 = por %p339, %p340
    %p342 = scmp.ne.s32.totalorder %s334, %s336
    %p343 = scmp.eq.s32.totalorder %s32, 1
    %p344 = por %p342, %p343
    %p345 = scmp.ne.s32.totalorder %s336, %s337
    %p346 = scmp.eq.s32.totalorder %s32, 0
    %p347 = por %p345, %p346
    %p348 = scmp.ne.s32.totalorder %s336, %s337
    %p349 = scmp.eq.s32.totalorder %s33, 1
    %p350 = por %p348, %p349
    %p352 = scmp.ne.s32.totalorder %s337, %s351
    %p353 = scmp.eq.s32.totalorder %s33, 0
    %p354 = por %p352, %p353
    %s356 = sadd.s32 %s355, 1
    %p359 = scmp.eq.s32.totalorder %s27, 1
    %p360 = scmp.ne.s32.totalorder %s355, %s357
    %p361 = scmp.eq.s32.totalorder %s27, 0
    %p362 = por %p360, %p361
    %p363 = scmp.ne.s32.totalorder %s355, %s357
    %p364 = scmp.eq.s32.totalorder %s32, 1
    %p365 = por %p363, %p364
    %p366 = scmp.ne.s32.totalorder %s357, %s358
    %p367 = scmp.eq.s32.totalorder %s32, 0
    %p368 = por %p366, %p367
    %p369 = scmp.ne.s32.totalorder %s357, %s358
    %p370 = scmp.eq.s32.totalorder %s33, 1
    %p371 = por %p369, %p370
    %p373 = scmp.ne.s32.totalorder %s358, %s372
    %p374 = scmp.eq.s32.totalorder %s33, 0
    %p375 = por %p373, %p374
    %s377 = sadd.s32 %s376, 1
    %p380 = scmp.eq.s32.totalorder %s27, 1
    %p381 = scmp.ne.s32.totalorder %s376, %s378
    %p382 = scmp.eq.s32.totalorder %s27, 0
    %p383 = por %p381, %p382
    %p384 = scmp.ne.s32.totalorder %s376, %s378
    %p385 = scmp.eq.s32.totalorder %s32, 1
    %p386 = por %p384, %p385
    %p387 = scmp.ne.s32.totalorder %s378, %s379
    %p388 = scmp.eq.s32.totalorder %s32, 0
    %p389 = por %p387, %p388
    %p390 = scmp.ne.s32.totalorder %s378, %s379
    %p391 = scmp.eq.s32.totalorder %s33, 1
    %p392 = por %p390, %p391
    %p394 = scmp.ne.s32.totalorder %s379, %s393
    %p395 = scmp.eq.s32.totalorder %s33, 0
    %p396 = por %p394, %p395
    %s398 = sadd.s32 %s397, 1
    %p401 = scmp.eq.s32.totalorder %s27, 1
    %p402 = scmp.ne.s32.totalorder %s397, %s399
    %p403 = scmp.eq.s32.totalorder %s27, 0
    %p404 = por %p402, %p403
    %p405 = scmp.ne.s32.totalorder %s397, %s399
    %p406 = scmp.eq.s32.totalorder %s32, 1
    %p407 = por %p405, %p406
    %p408 = scmp.ne.s32.totalorder %s399, %s400
    %p409 = scmp.eq.s32.totalorder %s32, 0
    %p410 = por %p408, %p409
    %p411 = scmp.ne.s32.totalorder %s399, %s400
    %p412 = scmp.eq.s32.totalorder %s33, 1
    %p413 = por %p411, %p412
    %p415 = scmp.ne.s32.totalorder %s400, %s414
    %p416 = scmp.eq.s32.totalorder %s33, 0
    %p417 = por %p415, %p416
    %s419 = sadd.s32 %s418, 1
    %p422 = scmp.eq.s32.totalorder %s27, 1
    %p423 = scmp.ne.s32.totalorder %s418, %s420
    %p424 = scmp.eq.s32.totalorder %s27, 0
    %p425 = por %p423, %p424
    %p426 = scmp.ne.s32.totalorder %s418, %s420
    %p427 = scmp.eq.s32.totalorder %s32, 1
    %p428 = por %p426, %p427
    %p429 = scmp.ne.s32.totalorder %s420, %s421
    %p430 = scmp.eq.s32.totalorder %s32, 0
    %p431 = por %p429, %p430
    %p432 = scmp.ne.s32.totalorder %s420, %s421
    %p433 = scmp.eq.s32.totalorder %s33, 1
    %p434 = por %p432, %p433
    %p436 = scmp.ne.s32.totalorder %s421, %s435
    %p437 = scmp.eq.s32.totalorder %s33, 0
    %p438 = por %p436, %p437
    %s439 = ssub.s32 %s27, %s34
    %p440 = scmp.eq.s32.totalorder %s439, 0
    %s442 = sadd.s32 %s441, 1
    %s443 = scalar_select %p440, %s441, %s442
    %p446 = pneg %p440
    %p447 = scmp.eq.s32.totalorder %s27, 1
    %p448 = por %p446, %p447
    %p449 = scmp.ne.s32.totalorder %s441, %s444
    %p450 = scmp.eq.s32.totalorder %s27, 0
    %p451 = por %p449, %p450
    %p452 = scmp.ne.s32.totalorder %s441, %s444
    %p453 = scmp.eq.s32.totalorder %s32, 1
    %p454 = por %p452, %p453
    %p455 = scmp.ne.s32.totalorder %s444, %s445
    %p456 = scmp.eq.s32.totalorder %s32, 0
    %p457 = por %p455, %p456
    %p458 = scmp.ne.s32.totalorder %s444, %s445
    %p459 = scmp.eq.s32.totalorder %s33, 1
    %p460 = por %p458, %p459
    %p462 = scmp.ne.s32.totalorder %s445, %s461
    %p463 = scmp.eq.s32.totalorder %s33, 0
    %p464 = por %p462, %p463
    %p465 = scmp.le.s32.totalorder 1, %s27
    %p466 = scmp.lt.s32.totalorder %s27, 3
    %p467 = pnand %p465, %p466
    %p468 = pneg %p467
    // Predicated region
    $region9: #{tpu_custom_call.1} parent=5 // pred_check
      _
    $region10: #{tpu_custom_call.1} parent=5 // pred_check_branch
      %470 = sbr.rel (%p467) target = $region12
    $region11: #{tpu_custom_call.1} parent=5 // pred_region
      %s471 = ssub.s32 %s27, 1
      // Predicated region
      $region13: #{tpu_custom_call.1} parent=11 // pred_check
        %p472 = pneg %p74
      $region14: #{tpu_custom_call.1} parent=11 // pred_check_branch
        %474 = sbr.rel (%p472) target = $region16
      $region15: #{tpu_custom_call.1} parent=11 // pred_region
        _
      $region16: #{tpu_custom_call.1} parent=11 // pred_fallthru
        _
      // Predicated region
      $region17: #{tpu_custom_call.1} parent=11 // pred_check
        %p475 = pneg %p95
      $region18: #{tpu_custom_call.1} parent=11 // pred_check_branch
        %477 = sbr.rel (%p475) target = $region20
      $region19: #{tpu_custom_call.1} parent=11 // pred_region
        _
      $region20: #{tpu_custom_call.1} parent=11 // pred_fallthru
        _
      // Predicated region
      $region21: #{tpu_custom_call.1} parent=11 // pred_check
        %p478 = pneg %p116
      $region22: #{tpu_custom_call.1} parent=11 // pred_check_branch
        %480 = sbr.rel (%p478) target = $region24
      $region23: #{tpu_custom_call.1} parent=11 // pred_region
        _
      $region24: #{tpu_custom_call.1} parent=11 // pred_fallthru
        _
      // Predicated region
      $region25: #{tpu_custom_call.1} parent=11 // pred_check
        %p481 = pneg %p137
      $region26: #{tpu_custom_call.1} parent=11 // pred_check_branch
        %483 = sbr.rel (%p481) target = $region28
      $region27: #{tpu_custom_call.1} parent=11 // pred_region
        _
      $region28: #{tpu_custom_call.1} parent=11 // pred_fallthru
        _
      // Predicated region
      $region29: #{tpu_custom_call.1} parent=11 // pred_check
        %p484 = pneg %p158
      $region30: #{tpu_custom_call.1} parent=11 // pred_check_branch
        %486 = sbr.rel (%p484) target = $region32
      $region31: #{tpu_custom_call.1} parent=11 // pred_region
        _
      $region32: #{tpu_custom_call.1} parent=11 // pred_fallthru
        _
      // Predicated region
      $region33: #{tpu_custom_call.1} parent=11 // pred_check
        %p487 = pneg %p179
      $region34: #{tpu_custom_call.1} parent=11 // pred_check_branch
        %489 = sbr.rel (%p487) target = $region36
      $region35: #{tpu_custom_call.1} parent=11 // pred_region
        _
      $region36: #{tpu_custom_call.1} parent=11 // pred_fallthru
        _
      // Predicated region
      $region37: #{tpu_custom_call.1} parent=11 // pred_check
        %p490 = pneg %p200
      $region38: #{tpu_custom_call.1} parent=11 // pred_check_branch
        %492 = sbr.rel (%p490) target = $region40
      $region39: #{tpu_custom_call.1} parent=11 // pred_region
        _
      $region40: #{tpu_custom_call.1} parent=11 // pred_fallthru
        _
      // Predicated region
      $region41: #{tpu_custom_call.1} parent=11 // pred_check
        %p493 = pneg %p221
      $region42: #{tpu_custom_call.1} parent=11 // pred_check_branch
        %495 = sbr.rel (%p493) target = $region44
      $region43: #{tpu_custom_call.1} parent=11 // pred_region
        _
      $region44: #{tpu_custom_call.1} parent=11 // pred_fallthru
        _
      // Predicated region
      $region45: #{tpu_custom_call.1} parent=11 // pred_check
        %p496 = pneg %p242
      $region46: #{tpu_custom_call.1} parent=11 // pred_check_branch
        %498 = sbr.rel (%p496) target = $region48
      $region47: #{tpu_custom_call.1} parent=11 // pred_region
        _
      $region48: #{tpu_custom_call.1} parent=11 // pred_fallthru
        _
      // Predicated region
      $region49: #{tpu_custom_call.1} parent=11 // pred_check
        %p499 = pneg %p263
      $region50: #{tpu_custom_call.1} parent=11 // pred_check_branch
        %501 = sbr.rel (%p499) target = $region52
      $region51: #{tpu_custom_call.1} parent=11 // pred_region
        _
      $region52: #{tpu_custom_call.1} parent=11 // pred_fallthru
        _
      // Predicated region
      $region53: #{tpu_custom_call.1} parent=11 // pred_check
        %p502 = pneg %p284
      $region54: #{tpu_custom_call.1} parent=11 // pred_check_branch
        %504 = sbr.rel (%p502) target = $region56
      $region55: #{tpu_custom_call.1} parent=11 // pred_region
        _
      $region56: #{tpu_custom_call.1} parent=11 // pred_fallthru
        _
      // Predicated region
      $region57: #{tpu_custom_call.1} parent=11 // pred_check
        %p505 = pneg %p305
      $region58: #{tpu_custom_call.1} parent=11 // pred_check_branch
        %507 = sbr.rel (%p505) target = $region60
      $region59: #{tpu_custom_call.1} parent=11 // pred_region
        _
      $region60: #{tpu_custom_call.1} parent=11 // pred_fallthru
        _
      // Predicated region
      $region61: #{tpu_custom_call.1} parent=11 // pred_check
        %p508 = pneg %p326
      $region62: #{tpu_custom_call.1} parent=11 // pred_check_branch
        %510 = sbr.rel (%p508) target = $region64
      $region63: #{tpu_custom_call.1} parent=11 // pred_region
        _
      $region64: #{tpu_custom_call.1} parent=11 // pred_fallthru
        _
      // Predicated region
      $region65: #{tpu_custom_call.1} parent=11 // pred_check
        %p511 = pneg %p347
      $region66: #{tpu_custom_call.1} parent=11 // pred_check_branch
        %513 = sbr.rel (%p511) target = $region68
      $region67: #{tpu_custom_call.1} parent=11 // pred_region
        _
      $region68: #{tpu_custom_call.1} parent=11 // pred_fallthru
        _
      // Predicated region
      $region69: #{tpu_custom_call.1} parent=11 // pred_check
        %p514 = pneg %p368
      $region70: #{tpu_custom_call.1} parent=11 // pred_check_branch
        %516 = sbr.rel (%p514) target = $region72
      $region71: #{tpu_custom_call.1} parent=11 // pred_region
        _
      $region72: #{tpu_custom_call.1} parent=11 // pred_fallthru
        _
      // Predicated region
      $region73: #{tpu_custom_call.1} parent=11 // pred_check
        %p517 = pneg %p389
      $region74: #{tpu_custom_call.1} parent=11 // pred_check_branch
        %519 = sbr.rel (%p517) target = $region76
      $region75: #{tpu_custom_call.1} parent=11 // pred_region
        _
      $region76: #{tpu_custom_call.1} parent=11 // pred_fallthru
        _
      // Predicated region
      $region77: #{tpu_custom_call.1} parent=11 // pred_check
        %p520 = pneg %p410
      $region78: #{tpu_custom_call.1} parent=11 // pred_check_branch
        %522 = sbr.rel (%p520) target = $region80
      $region79: #{tpu_custom_call.1} parent=11 // pred_region
        _
      $region80: #{tpu_custom_call.1} parent=11 // pred_fallthru
        _
      // Predicated region
      $region81: #{tpu_custom_call.1} parent=11 // pred_check
        %p523 = pneg %p431
      $region82: #{tpu_custom_call.1} parent=11 // pred_check_branch
        %525 = sbr.rel (%p523) target = $region84
      $region83: #{tpu_custom_call.1} parent=11 // pred_region
        _
      $region84: #{tpu_custom_call.1} parent=11 // pred_fallthru
        _
    $region12: #{tpu_custom_call.1} parent=5 // pred_fallthru
      _
    %p526 = scmp.lt.s32.totalorder %s27, 2
    // Predicated region
    $region85: #{tpu_custom_call.1} parent=5 // pred_check
      %p527 = pneg %p526
    $region86: #{tpu_custom_call.1} parent=5 // pred_check_branch
      %529 = sbr.rel (%p527) target = $region88
    $region87: #{tpu_custom_call.1} parent=5 // pred_region
      // Predicated region
      $region89: #{tpu_custom_call.1} parent=87 // pred_check
        %p530 = pneg %p47
      $region90: #{tpu_custom_call.1} parent=87 // pred_check_branch
        %532 = sbr.rel (%p530) target = $region92
      $region91: #{tpu_custom_call.1} parent=87 // pred_region
        %p533 = scmp.lt.s32.totalorder %s27, 1
        %s534 = scalar_select %p533, %s27, 1
        %s535 = smul.addr %s534, 32
        %s536 = smul.addr %s535, 8
        %s537 = scalar_lea.vmem %s0, %s536
      $region92: #{tpu_custom_call.1} parent=87 // pred_fallthru
        _
    $region88: #{tpu_custom_call.1} parent=5 // pred_fallthru
      _
    %p538 = scmp.le.s32.totalorder 1, %s27
    %p539 = scmp.lt.s32.totalorder %s27, 3
    %p540 = pnand %p538, %p539
    %p541 = pneg %p540
    // Predicated region
    $region93: #{tpu_custom_call.1} parent=5 // pred_check
      _
    $region94: #{tpu_custom_call.1} parent=5 // pred_check_branch
      %543 = sbr.rel (%p540) target = $region96
    $region95: #{tpu_custom_call.1} parent=5 // pred_region
      %s544 = ssub.s32 %s27, 1
      %p545 = scmp.lt.s32.totalorder %s32, 1
      %s546 = scalar_select %p545, %s32, 1
      %s547 = smul.addr %s546, 32
      %s548 = smul.addr %s547, 8
      %s549 = scalar_lea.vmem %s0, %s548
      %p550 = pneg %p53
      %p551 = pneg %p50
      %p552 = pneg %p74
      %p553 = pneg %p71
      %p554 = pneg %p95
      %p555 = pneg %p92
      %p556 = pneg %p116
      %p557 = pneg %p113
      %p558 = pneg %p137
      %p559 = pneg %p134
      %p560 = pneg %p158
      %p561 = pneg %p155
      %p562 = pneg %p179
      %p563 = pneg %p176
      %p564 = pneg %p200
      %p565 = pneg %p197
      %p566 = pneg %p221
      %p567 = pneg %p218
      %p568 = pneg %p242
      %p569 = pneg %p239
      %p570 = pneg %p263
      %p571 = pneg %p260
      %p572 = pneg %p284
      %p573 = pneg %p281
      %p574 = pneg %p305
      %p575 = pneg %p302
      %p576 = pneg %p326
      %p577 = pneg %p323
      %p578 = pneg %p347
      %p579 = pneg %p344
      %p580 = pneg %p368
      %p581 = pneg %p365
      %p582 = pneg %p389
      %p583 = pneg %p386
      %p584 = pneg %p410
      %p585 = pneg %p407
      %p586 = pneg %p431
      %p587 = pneg %p428
      %p588 = pneg %p457
      %p589 = pneg %p454
      %p590 = scmp.lt.s32.totalorder %s32, 1
      %s591 = scalar_select %p590, %s32, 1
      %s592 = scalar_lea.vmem %s19, %s591
      %p593 = scmp.lt.s32.totalorder %s32, 1
      %s594 = scalar_select %p593, %s32, 1
      %s595 = smul.addr %s594, 32
      %s596 = smul.addr %s595, 8
      %s597 = scalar_lea.vmem %s0, %s596
      %p598 = scmp.lt.s32.totalorder %s32, 1
      %s599 = scalar_select %p598, %s32, 1
      %s600 = scalar_lea.vmem %s19, %s599
      %v602 = vld [vmem:[%s597] sm:$0xff]
      %v603 = vld [vmem:[%s597 + $0x8] sm:$0xff]
      %v604 = vld [vmem:[%s597 + $0x10] sm:$0xff]
      %v605 = vld [vmem:[%s597 + $0x18] sm:$0xff]
      %v606 = vld [vmem:[%s597 + $0x20] sm:$0xff]
      %v607 = vld [vmem:[%s597 + $0x28] sm:$0xff]
      %v608 = vld [vmem:[%s597 + $0x30] sm:$0xff]
      %v609 = vld [vmem:[%s597 + $0x38] sm:$0xff]
      %v610 = vld [vmem:[%s597 + $0x40] sm:$0xff]
      %v611 = vld [vmem:[%s597 + $0x48] sm:$0xff]
      %v612 = vld [vmem:[%s597 + $0x50] sm:$0xff]
      %v613 = vld [vmem:[%s597 + $0x58] sm:$0xff]
      %v614 = vld [vmem:[%s597 + $0x60] sm:$0xff]
      %v615 = vld [vmem:[%s597 + $0x68] sm:$0xff]
      %v616 = vld [vmem:[%s597 + $0x70] sm:$0xff]
      %v617 = vld [vmem:[%s597 + $0x78] sm:$0xff]
      %v618 = vld [vmem:[%s597 + $0x80] sm:$0xff]
      %v619 = vld [vmem:[%s597 + $0x88] sm:$0xff]
      %v620 = vld [vmem:[%s597 + $0x90] sm:$0xff]
      %v621 = vld [vmem:[%s597 + $0x98] sm:$0xff]
      %v622 = vld [vmem:[%s597 + $0xa0] sm:$0xff]
      %v623 = vld [vmem:[%s597 + $0xa8] sm:$0xff]
      %v624 = vld [vmem:[%s597 + $0xb0] sm:$0xff]
      %v625 = vld [vmem:[%s597 + $0xb8] sm:$0xff]
      %v626 = vld [vmem:[%s597 + $0xc0] sm:$0xff]
      %v627 = vld [vmem:[%s597 + $0xc8] sm:$0xff]
      %v628 = vld [vmem:[%s597 + $0xd0] sm:$0xff]
      %v629 = vld [vmem:[%s597 + $0xd8] sm:$0xff]
      %v630 = vld [vmem:[%s597 + $0xe0] sm:$0xff]
      %v631 = vld [vmem:[%s597 + $0xe8] sm:$0xff]
      %v632 = vld [vmem:[%s597 + $0xf0] sm:$0xff]
      %v633 = vld [vmem:[%s597 + $0xf8] sm:$0xff]
      %vm634 = vcmask 261120
      %635 = vst.msk [vmem:[#allocation2] sm:$0xff] %vm634, 0.0
      %636 = vst.msk [vmem:[#allocation2 + $0x8] sm:$0xff] %vm634, 0.0
      %vm637 = vcmask 254976
      %638 = vst.msk [vmem:[#allocation2 + $0x10] sm:$0x3] %vm637, 0.0
      %639 = vst.msk [vmem:[#allocation2 + $0x18] sm:$0xff] %vm634, 0.0
      %640 = vst.msk [vmem:[#allocation2 + $0x20] sm:$0xff] %vm634, 0.0
      %641 = vst.msk [vmem:[#allocation2 + $0x28] sm:$0x3] %vm637, 0.0
      %642 = vst.msk [vmem:[#allocation2 + $0x30] sm:$0xff] %vm634, 0.0
      %643 = vst.msk [vmem:[#allocation2 + $0x38] sm:$0xff] %vm634, 0.0
      %644 = vst.msk [vmem:[#allocation2 + $0x40] sm:$0x3] %vm637, 0.0
      %645 = vst.msk [vmem:[#allocation2 + $0x48] sm:$0xff] %vm634, 0.0
      %646 = vst.msk [vmem:[#allocation2 + $0x50] sm:$0xff] %vm634, 0.0
      %647 = vst.msk [vmem:[#allocation2 + $0x58] sm:$0x3] %vm637, 0.0
      %648 = vst.msk [vmem:[#allocation2 + $0x60] sm:$0xff] %vm634, 0.0
      %649 = vst.msk [vmem:[#allocation2 + $0x68] sm:$0xff] %vm634, 0.0
      %650 = vst.msk [vmem:[#allocation2 + $0x70] sm:$0x3] %vm637, 0.0
      %651 = vst.msk [vmem:[#allocation2 + $0x78] sm:$0xff] %vm634, 0.0
      %652 = vst.msk [vmem:[#allocation2 + $0x80] sm:$0xff] %vm634, 0.0
      %653 = vst.msk [vmem:[#allocation2 + $0x88] sm:$0x3] %vm637, 0.0
      %654 = vst.msk [vmem:[#allocation2 + $0x90] sm:$0xff] %vm634, 0.0
      %655 = vst.msk [vmem:[#allocation2 + $0x98] sm:$0xff] %vm634, 0.0
      %656 = vst.msk [vmem:[#allocation2 + $0xa0] sm:$0x3] %vm637, 0.0
      %657 = vst.msk [vmem:[#allocation2 + $0xa8] sm:$0xff] %vm634, 0.0
      %658 = vst.msk [vmem:[#allocation2 + $0xb0] sm:$0xff] %vm634, 0.0
      %659 = vst.msk [vmem:[#allocation2 + $0xb8] sm:$0x3] %vm637, 0.0
      %660 = vst.msk [vmem:[#allocation2 + $0xc0] sm:$0xff] %vm634, 0.0
      %661 = vst.msk [vmem:[#allocation2 + $0xc8] sm:$0xff] %vm634, 0.0
      %662 = vst.msk [vmem:[#allocation2 + $0xd0] sm:$0x3] %vm637, 0.0
      %663 = vst.msk [vmem:[#allocation2 + $0xd8] sm:$0xff] %vm634, 0.0
      %664 = vst.msk [vmem:[#allocation2 + $0xe0] sm:$0xff] %vm634, 0.0
      %665 = vst.msk [vmem:[#allocation2 + $0xe8] sm:$0x3] %vm637, 0.0
      %666 = vst.msk [vmem:[#allocation2 + $0xf0] sm:$0xff] %vm634, 0.0
      %667 = vst.msk [vmem:[#allocation2 + $0xf8] sm:$0xff] %vm634, 0.0
      %668 = vst.msk [vmem:[#allocation2 + $0x100] sm:$0x3] %vm637, 0.0
      %669 = vst.msk [vmem:[#allocation2 + $0x108] sm:$0xff] %vm634, 0.0
      %670 = vst.msk [vmem:[#allocation2 + $0x110] sm:$0xff] %vm634, 0.0
      %671 = vst.msk [vmem:[#allocation2 + $0x118] sm:$0x3] %vm637, 0.0
      %672 = vst.msk [vmem:[#allocation2 + $0x120] sm:$0xff] %vm634, 0.0
      %673 = vst.msk [vmem:[#allocation2 + $0x128] sm:$0xff] %vm634, 0.0
      %674 = vst.msk [vmem:[#allocation2 + $0x130] sm:$0x3] %vm637, 0.0
      %675 = vst.msk [vmem:[#allocation2 + $0x138] sm:$0xff] %vm634, 0.0
      %676 = vst.msk [vmem:[#allocation2 + $0x140] sm:$0xff] %vm634, 0.0
      %677 = vst.msk [vmem:[#allocation2 + $0x148] sm:$0x3] %vm637, 0.0
      %678 = vst.msk [vmem:[#allocation2 + $0x150] sm:$0xff] %vm634, 0.0
      %679 = vst.msk [vmem:[#allocation2 + $0x158] sm:$0xff] %vm634, 0.0
      %680 = vst.msk [vmem:[#allocation2 + $0x160] sm:$0x3] %vm637, 0.0
      %681 = vst.msk [vmem:[#allocation2 + $0x168] sm:$0xff] %vm634, 0.0
      %682 = vst.msk [vmem:[#allocation2 + $0x170] sm:$0xff] %vm634, 0.0
      %683 = vst.msk [vmem:[#allocation2 + $0x178] sm:$0x3] %vm637, 0.0
      %684 = vst.msk [vmem:[#allocation2 + $0x180] sm:$0xff] %vm634, 0.0
      %685 = vst.msk [vmem:[#allocation2 + $0x188] sm:$0xff] %vm634, 0.0
      %686 = vst.msk [vmem:[#allocation2 + $0x190] sm:$0x3] %vm637, 0.0
      %687 = vst.msk [vmem:[#allocation2 + $0x198] sm:$0xff] %vm634, 0.0
      %688 = vst.msk [vmem:[#allocation2 + $0x1a0] sm:$0xff] %vm634, 0.0
      %689 = vst.msk [vmem:[#allocation2 + $0x1a8] sm:$0x3] %vm637, 0.0
      %s690 = scalar_lea.vmem [#allocation2], 24
      %vm691 = vcmask 31744
      %692 = vst.msk [vmem:[%s690 + $0x1] sm:$0xff] %vm691, %v602
      %693 = vst.msk [vmem:[%s690 + $0x9] sm:$0xff] %vm691, %v603
      %694 = vst.msk [vmem:[%s690 + $0x19] sm:$0xff] %vm691, %v604
      %695 = vst.msk [vmem:[%s690 + $0x21] sm:$0xff] %vm691, %v605
      %696 = vst.msk [vmem:[%s690 + $0x31] sm:$0xff] %vm691, %v606
      %697 = vst.msk [vmem:[%s690 + $0x39] sm:$0xff] %vm691, %v607
      %698 = vst.msk [vmem:[%s690 + $0x49] sm:$0xff] %vm691, %v608
      %699 = vst.msk [vmem:[%s690 + $0x51] sm:$0xff] %vm691, %v609
      %700 = vst.msk [vmem:[%s690 + $0x61] sm:$0xff] %vm691, %v610
      %701 = vst.msk [vmem:[%s690 + $0x69] sm:$0xff] %vm691, %v611
      %702 = vst.msk [vmem:[%s690 + $0x79] sm:$0xff] %vm691, %v612
      %703 = vst.msk [vmem:[%s690 + $0x81] sm:$0xff] %vm691, %v613
      %704 = vst.msk [vmem:[%s690 + $0x91] sm:$0xff] %vm691, %v614
      %705 = vst.msk [vmem:[%s690 + $0x99] sm:$0xff] %vm691, %v615
      %706 = vst.msk [vmem:[%s690 + $0xa9] sm:$0xff] %vm691, %v616
      %707 = vst.msk [vmem:[%s690 + $0xb1] sm:$0xff] %vm691, %v617
      %708 = vst.msk [vmem:[%s690 + $0xc1] sm:$0xff] %vm691, %v618
      %709 = vst.msk [vmem:[%s690 + $0xc9] sm:$0xff] %vm691, %v619
      %710 = vst.msk [vmem:[%s690 + $0xd9] sm:$0xff] %vm691, %v620
      %711 = vst.msk [vmem:[%s690 + $0xe1] sm:$0xff] %vm691, %v621
      %712 = vst.msk [vmem:[%s690 + $0xf1] sm:$0xff] %vm691, %v622
      %713 = vst.msk [vmem:[%s690 + $0xf9] sm:$0xff] %vm691, %v623
      %714 = vst.msk [vmem:[%s690 + $0x109] sm:$0xff] %vm691, %v624
      %715 = vst.msk [vmem:[%s690 + $0x111] sm:$0xff] %vm691, %v625
      %716 = vst.msk [vmem:[%s690 + $0x121] sm:$0xff] %vm691, %v626
      %717 = vst.msk [vmem:[%s690 + $0x129] sm:$0xff] %vm691, %v627
      %718 = vst.msk [vmem:[%s690 + $0x139] sm:$0xff] %vm691, %v628
      %719 = vst.msk [vmem:[%s690 + $0x141] sm:$0xff] %vm691, %v629
      %720 = vst.msk [vmem:[%s690 + $0x151] sm:$0xff] %vm691, %v630
      %721 = vst.msk [vmem:[%s690 + $0x159] sm:$0xff] %vm691, %v631
      %722 = vst.msk [vmem:[%s690 + $0x169] sm:$0xff] %vm691, %v632
      %723 = vst.msk [vmem:[%s690 + $0x171] sm:$0xff] %vm691, %v633
      %v724 = vld [vmem:[#allocation2] sm:$0xff]
      %v725 = vld [vmem:[#allocation2 + $0x8] sm:$0xff]
      %v726 = vld [vmem:[#allocation2 + $0x18] sm:$0xff]
      %v727 = vld [vmem:[#allocation2 + $0x20] sm:$0xff]
      %v728 = vld [vmem:[#allocation2 + $0x30] sm:$0xff]
      %v729 = vld [vmem:[#allocation2 + $0x38] sm:$0xff]
      %v730 = vld [vmem:[#allocation2 + $0x48] sm:$0xff]
      %v731 = vld [vmem:[#allocation2 + $0x50] sm:$0xff]
      %v732 = vld [vmem:[#allocation2 + $0x60] sm:$0xff]
      %v733 = vld [vmem:[#allocation2 + $0x68] sm:$0xff]
      %v734 = vld [vmem:[#allocation2 + $0x78] sm:$0xff]
      %v735 = vld [vmem:[#allocation2 + $0x80] sm:$0xff]
      %v736 = vld [vmem:[#allocation2 + $0x90] sm:$0xff]
      %v737 = vld [vmem:[#allocation2 + $0x98] sm:$0xff]
      %v738 = vld [vmem:[#allocation2 + $0xa8] sm:$0xff]
      %v739 = vld [vmem:[#allocation2 + $0xb0] sm:$0xff]
      %v740 = vld [vmem:[#allocation2 + $0xc0] sm:$0xff]
      %v741 = vld [vmem:[#allocation2 + $0xc8] sm:$0xff]
      %v742 = vld [vmem:[#allocation2 + $0xd8] sm:$0xff]
      %v743 = vld [vmem:[#allocation2 + $0xe0] sm:$0xff]
      %v744 = vld [vmem:[#allocation2 + $0xf0] sm:$0xff]
      %v745 = vld [vmem:[#allocation2 + $0xf8] sm:$0xff]
      %v746 = vld [vmem:[#allocation2 + $0x108] sm:$0xff]
      %v747 = vld [vmem:[#allocation2 + $0x110] sm:$0xff]
      %v748 = vld [vmem:[#allocation2 + $0x120] sm:$0xff]
      %v749 = vld [vmem:[#allocation2 + $0x128] sm:$0xff]
      %v750 = vld [vmem:[#allocation2 + $0x138] sm:$0xff]
      %v751 = vld [vmem:[#allocation2 + $0x140] sm:$0xff]
      %v752 = vld [vmem:[#allocation2 + $0x150] sm:$0xff]
      %v753 = vld [vmem:[#allocation2 + $0x158] sm:$0xff]
      %v754 = vld [vmem:[#allocation2 + $0x168] sm:$0xff]
      %v755 = vld [vmem:[#allocation2 + $0x170] sm:$0xff]
      %v756 = vld [vmem:[#allocation2 + $0x1] sm:$0xff]
      %v757 = vld [vmem:[#allocation2 + $0x9] sm:$0xff]
      %v758 = vld [vmem:[#allocation2 + $0x19] sm:$0xff]
      %v759 = vld [vmem:[#allocation2 + $0x21] sm:$0xff]
      %v760 = vld [vmem:[#allocation2 + $0x31] sm:$0xff]
      %v761 = vld [vmem:[#allocation2 + $0x39] sm:$0xff]
      %v762 = vld [vmem:[#allocation2 + $0x49] sm:$0xff]
      %v763 = vld [vmem:[#allocation2 + $0x51] sm:$0xff]
      %v764 = vld [vmem:[#allocation2 + $0x61] sm:$0xff]
      %v765 = vld [vmem:[#allocation2 + $0x69] sm:$0xff]
      %v766 = vld [vmem:[#allocation2 + $0x79] sm:$0xff]
      %v767 = vld [vmem:[#allocation2 + $0x81] sm:$0xff]
      %v768 = vld [vmem:[#allocation2 + $0x91] sm:$0xff]
      %v769 = vld [vmem:[#allocation2 + $0x99] sm:$0xff]
      %v770 = vld [vmem:[#allocation2 + $0xa9] sm:$0xff]
      %v771 = vld [vmem:[#allocation2 + $0xb1] sm:$0xff]
      %v772 = vld [vmem:[#allocation2 + $0xc1] sm:$0xff]
      %v773 = vld [vmem:[#allocation2 + $0xc9] sm:$0xff]
      %v774 = vld [vmem:[#allocation2 + $0xd9] sm:$0xff]
      %v775 = vld [vmem:[#allocation2 + $0xe1] sm:$0xff]
      %v776 = vld [vmem:[#allocation2 + $0xf1] sm:$0xff]
      %v777 = vld [vmem:[#allocation2 + $0xf9] sm:$0xff]
      %v778 = vld [vmem:[#allocation2 + $0x109] sm:$0xff]
      %v779 = vld [vmem:[#allocation2 + $0x111] sm:$0xff]
      %v780 = vld [vmem:[#allocation2 + $0x121] sm:$0xff]
      %v781 = vld [vmem:[#allocation2 + $0x129] sm:$0xff]
      %v782 = vld [vmem:[#allocation2 + $0x139] sm:$0xff]
      %v783 = vld [vmem:[#allocation2 + $0x141] sm:$0xff]
      %v784 = vld [vmem:[#allocation2 + $0x151] sm:$0xff]
      %v785 = vld [vmem:[#allocation2 + $0x159] sm:$0xff]
      %v786 = vld [vmem:[#allocation2 + $0x169] sm:$0xff]
      %v787 = vld [vmem:[#allocation2 + $0x171] sm:$0xff]
      %v788 = vld [vmem:[#allocation2 + $0x2] sm:$0xff]
      %v789 = vld [vmem:[#allocation2 + $0xa] sm:$0xff]
      %v790 = vld [vmem:[#allocation2 + $0x1a] sm:$0xff]
      %v791 = vld [vmem:[#allocation2 + $0x22] sm:$0xff]
      %v792 = vld [vmem:[#allocation2 + $0x32] sm:$0xff]
      %v793 = vld [vmem:[#allocation2 + $0x3a] sm:$0xff]
      %v794 = vld [vmem:[#allocation2 + $0x4a] sm:$0xff]
      %v795 = vld [vmem:[#allocation2 + $0x52] sm:$0xff]
      %v796 = vld [vmem:[#allocation2 + $0x62] sm:$0xff]
      %v797 = vld [vmem:[#allocation2 + $0x6a] sm:$0xff]
      %v798 = vld [vmem:[#allocation2 + $0x7a] sm:$0xff]
      %v799 = vld [vmem:[#allocation2 + $0x82] sm:$0xff]
      %v800 = vld [vmem:[#allocation2 + $0x92] sm:$0xff]
      %v801 = vld [vmem:[#allocation2 + $0x9a] sm:$0xff]
      %v802 = vld [vmem:[#allocation2 + $0xaa] sm:$0xff]
      %v803 = vld [vmem:[#allocation2 + $0xb2] sm:$0xff]
      %v804 = vld [vmem:[#allocation2 + $0xc2] sm:$0xff]
      %v805 = vld [vmem:[#allocation2 + $0xca] sm:$0xff]
      %v806 = vld [vmem:[#allocation2 + $0xda] sm:$0xff]
      %v807 = vld [vmem:[#allocation2 + $0xe2] sm:$0xff]
      %v808 = vld [vmem:[#allocation2 + $0xf2] sm:$0xff]
      %v809 = vld [vmem:[#allocation2 + $0xfa] sm:$0xff]
      %v810 = vld [vmem:[#allocation2 + $0x10a] sm:$0xff]
      %v811 = vld [vmem:[#allocation2 + $0x112] sm:$0xff]
      %v812 = vld [vmem:[#allocation2 + $0x122] sm:$0xff]
      %v813 = vld [vmem:[#allocation2 + $0x12a] sm:$0xff]
      %v814 = vld [vmem:[#allocation2 + $0x13a] sm:$0xff]
      %v815 = vld [vmem:[#allocation2 + $0x142] sm:$0xff]
      %v816 = vld [vmem:[#allocation2 + $0x152] sm:$0xff]
      %v817 = vld [vmem:[#allocation2 + $0x15a] sm:$0xff]
      %v818 = vld [vmem:[#allocation2 + $0x16a] sm:$0xff]
      %v819 = vld [vmem:[#allocation2 + $0x172] sm:$0xff]
      %v820 = vld [vmem:[%s690] sm:$0xff]
      %v821 = vld [vmem:[%s690 + $0x8] sm:$0xff]
      %v822 = vld [vmem:[%s690 + $0x18] sm:$0xff]
      %v823 = vld [vmem:[%s690 + $0x20] sm:$0xff]
      %v824 = vld [vmem:[%s690 + $0x30] sm:$0xff]
      %v825 = vld [vmem:[%s690 + $0x38] sm:$0xff]
      %v826 = vld [vmem:[%s690 + $0x48] sm:$0xff]
      %v827 = vld [vmem:[%s690 + $0x50] sm:$0xff]
      %v828 = vld [vmem:[%s690 + $0x60] sm:$0xff]
      %v829 = vld [vmem:[%s690 + $0x68] sm:$0xff]
      %v830 = vld [vmem:[%s690 + $0x78] sm:$0xff]
      %v831 = vld [vmem:[%s690 + $0x80] sm:$0xff]
      %v832 = vld [vmem:[%s690 + $0x90] sm:$0xff]
      %v833 = vld [vmem:[%s690 + $0x98] sm:$0xff]
      %v834 = vld [vmem:[%s690 + $0xa8] sm:$0xff]
      %v835 = vld [vmem:[%s690 + $0xb0] sm:$0xff]
      %v836 = vld [vmem:[%s690 + $0xc0] sm:$0xff]
      %v837 = vld [vmem:[%s690 + $0xc8] sm:$0xff]
      %v838 = vld [vmem:[%s690 + $0xd8] sm:$0xff]
      %v839 = vld [vmem:[%s690 + $0xe0] sm:$0xff]
      %v840 = vld [vmem:[%s690 + $0xf0] sm:$0xff]
      %v841 = vld [vmem:[%s690 + $0xf8] sm:$0xff]
      %v842 = vld [vmem:[%s690 + $0x108] sm:$0xff]
      %v843 = vld [vmem:[%s690 + $0x110] sm:$0xff]
      %v844 = vld [vmem:[%s690 + $0x120] sm:$0xff]
      %v845 = vld [vmem:[%s690 + $0x128] sm:$0xff]
      %v846 = vld [vmem:[%s690 + $0x138] sm:$0xff]
      %v847 = vld [vmem:[%s690 + $0x140] sm:$0xff]
      %v848 = vld [vmem:[%s690 + $0x150] sm:$0xff]
      %v849 = vld [vmem:[%s690 + $0x158] sm:$0xff]
      %v850 = vld [vmem:[%s690 + $0x168] sm:$0xff]
      %v851 = vld [vmem:[%s690 + $0x170] sm:$0xff]
      %v852 = vld [vmem:[%s690 + $0x1] sm:$0xff]
      %v853 = vld [vmem:[%s690 + $0x9] sm:$0xff]
      %v854 = vld [vmem:[%s690 + $0x19] sm:$0xff]
      %v855 = vld [vmem:[%s690 + $0x21] sm:$0xff]
      %v856 = vld [vmem:[%s690 + $0x31] sm:$0xff]
      %v857 = vld [vmem:[%s690 + $0x39] sm:$0xff]
      %v858 = vld [vmem:[%s690 + $0x49] sm:$0xff]
      %v859 = vld [vmem:[%s690 + $0x51] sm:$0xff]
      %v860 = vld [vmem:[%s690 + $0x61] sm:$0xff]
      %v861 = vld [vmem:[%s690 + $0x69] sm:$0xff]
      %v862 = vld [vmem:[%s690 + $0x79] sm:$0xff]
      %v863 = vld [vmem:[%s690 + $0x81] sm:$0xff]
      %v864 = vld [vmem:[%s690 + $0x91] sm:$0xff]
      %v865 = vld [vmem:[%s690 + $0x99] sm:$0xff]
      %v866 = vld [vmem:[%s690 + $0xa9] sm:$0xff]
      %v867 = vld [vmem:[%s690 + $0xb1] sm:$0xff]
      %v868 = vld [vmem:[%s690 + $0xc1] sm:$0xff]
      %v869 = vld [vmem:[%s690 + $0xc9] sm:$0xff]
      %v870 = vld [vmem:[%s690 + $0xd9] sm:$0xff]
      %v871 = vld [vmem:[%s690 + $0xe1] sm:$0xff]
      %v872 = vld [vmem:[%s690 + $0xf1] sm:$0xff]
      %v873 = vld [vmem:[%s690 + $0xf9] sm:$0xff]
      %v874 = vld [vmem:[%s690 + $0x109] sm:$0xff]
      %v875 = vld [vmem:[%s690 + $0x111] sm:$0xff]
      %v876 = vld [vmem:[%s690 + $0x121] sm:$0xff]
      %v877 = vld [vmem:[%s690 + $0x129] sm:$0xff]
      %v878 = vld [vmem:[%s690 + $0x139] sm:$0xff]
      %v879 = vld [vmem:[%s690 + $0x141] sm:$0xff]
      %v880 = vld [vmem:[%s690 + $0x151] sm:$0xff]
      %v881 = vld [vmem:[%s690 + $0x159] sm:$0xff]
      %v882 = vld [vmem:[%s690 + $0x169] sm:$0xff]
      %v883 = vld [vmem:[%s690 + $0x171] sm:$0xff]
      %v884 = vld [vmem:[%s690 + $0x2] sm:$0xff]
      %v885 = vld [vmem:[%s690 + $0xa] sm:$0xff]
      %v886 = vld [vmem:[%s690 + $0x1a] sm:$0xff]
      %v887 = vld [vmem:[%s690 + $0x22] sm:$0xff]
      %v888 = vld [vmem:[%s690 + $0x32] sm:$0xff]
      %v889 = vld [vmem:[%s690 + $0x3a] sm:$0xff]
      %v890 = vld [vmem:[%s690 + $0x4a] sm:$0xff]
      %v891 = vld [vmem:[%s690 + $0x52] sm:$0xff]
      %v892 = vld [vmem:[%s690 + $0x62] sm:$0xff]
      %v893 = vld [vmem:[%s690 + $0x6a] sm:$0xff]
      %v894 = vld [vmem:[%s690 + $0x7a] sm:$0xff]
      %v895 = vld [vmem:[%s690 + $0x82] sm:$0xff]
      %v896 = vld [vmem:[%s690 + $0x92] sm:$0xff]
      %v897 = vld [vmem:[%s690 + $0x9a] sm:$0xff]
      %v898 = vld [vmem:[%s690 + $0xaa] sm:$0xff]
      %v899 = vld [vmem:[%s690 + $0xb2] sm:$0xff]
      %v900 = vld [vmem:[%s690 + $0xc2] sm:$0xff]
      %v901 = vld [vmem:[%s690 + $0xca] sm:$0xff]
      %v902 = vld [vmem:[%s690 + $0xda] sm:$0xff]
      %v903 = vld [vmem:[%s690 + $0xe2] sm:$0xff]
      %v904 = vld [vmem:[%s690 + $0xf2] sm:$0xff]
      %v905 = vld [vmem:[%s690 + $0xfa] sm:$0xff]
      %v906 = vld [vmem:[%s690 + $0x10a] sm:$0xff]
      %v907 = vld [vmem:[%s690 + $0x112] sm:$0xff]
      %v908 = vld [vmem:[%s690 + $0x122] sm:$0xff]
      %v909 = vld [vmem:[%s690 + $0x12a] sm:$0xff]
      %v910 = vld [vmem:[%s690 + $0x13a] sm:$0xff]
      %v911 = vld [vmem:[%s690 + $0x142] sm:$0xff]
      %v912 = vld [vmem:[%s690 + $0x152] sm:$0xff]
      %v913 = vld [vmem:[%s690 + $0x15a] sm:$0xff]
      %v914 = vld [vmem:[%s690 + $0x16a] sm:$0xff]
      %v915 = vld [vmem:[%s690 + $0x172] sm:$0xff]
      %s916 = scalar_lea.vmem [#allocation2], 48
      %v917 = vld [vmem:[%s916] sm:$0xff]
      %v918 = vld [vmem:[%s916 + $0x8] sm:$0xff]
      %v919 = vld [vmem:[%s916 + $0x18] sm:$0xff]
      %v920 = vld [vmem:[%s916 + $0x20] sm:$0xff]
      %v921 = vld [vmem:[%s916 + $0x30] sm:$0xff]
      %v922 = vld [vmem:[%s916 + $0x38] sm:$0xff]
      %v923 = vld [vmem:[%s916 + $0x48] sm:$0xff]
      %v924 = vld [vmem:[%s916 + $0x50] sm:$0xff]
      %v925 = vld [vmem:[%s916 + $0x60] sm:$0xff]
      %v926 = vld [vmem:[%s916 + $0x68] sm:$0xff]
      %v927 = vld [vmem:[%s916 + $0x78] sm:$0xff]
      %v928 = vld [vmem:[%s916 + $0x80] sm:$0xff]
      %v929 = vld [vmem:[%s916 + $0x90] sm:$0xff]
      %v930 = vld [vmem:[%s916 + $0x98] sm:$0xff]
      %v931 = vld [vmem:[%s916 + $0xa8] sm:$0xff]
      %v932 = vld [vmem:[%s916 + $0xb0] sm:$0xff]
      %v933 = vld [vmem:[%s916 + $0xc0] sm:$0xff]
      %v934 = vld [vmem:[%s916 + $0xc8] sm:$0xff]
      %v935 = vld [vmem:[%s916 + $0xd8] sm:$0xff]
      %v936 = vld [vmem:[%s916 + $0xe0] sm:$0xff]
      %v937 = vld [vmem:[%s916 + $0xf0] sm:$0xff]
      %v938 = vld [vmem:[%s916 + $0xf8] sm:$0xff]
      %v939 = vld [vmem:[%s916 + $0x108] sm:$0xff]
      %v940 = vld [vmem:[%s916 + $0x110] sm:$0xff]
      %v941 = vld [vmem:[%s916 + $0x120] sm:$0xff]
      %v942 = vld [vmem:[%s916 + $0x128] sm:$0xff]
      %v943 = vld [vmem:[%s916 + $0x138] sm:$0xff]
      %v944 = vld [vmem:[%s916 + $0x140] sm:$0xff]
      %v945 = vld [vmem:[%s916 + $0x150] sm:$0xff]
      %v946 = vld [vmem:[%s916 + $0x158] sm:$0xff]
      %v947 = vld [vmem:[%s916 + $0x168] sm:$0xff]
      %v948 = vld [vmem:[%s916 + $0x170] sm:$0xff]
      %v949 = vld [vmem:[%s916 + $0x1] sm:$0xff]
      %v950 = vld [vmem:[%s916 + $0x9] sm:$0xff]
      %v951 = vld [vmem:[%s916 + $0x19] sm:$0xff]
      %v952 = vld [vmem:[%s916 + $0x21] sm:$0xff]
      %v953 = vld [vmem:[%s916 + $0x31] sm:$0xff]
      %v954 = vld [vmem:[%s916 + $0x39] sm:$0xff]
      %v955 = vld [vmem:[%s916 + $0x49] sm:$0xff]
      %v956 = vld [vmem:[%s916 + $0x51] sm:$0xff]
      %v957 = vld [vmem:[%s916 + $0x61] sm:$0xff]
      %v958 = vld [vmem:[%s916 + $0x69] sm:$0xff]
      %v959 = vld [vmem:[%s916 + $0x79] sm:$0xff]
      %v960 = vld [vmem:[%s916 + $0x81] sm:$0xff]
      %v961 = vld [vmem:[%s916 + $0x91] sm:$0xff]
      %v962 = vld [vmem:[%s916 + $0x99] sm:$0xff]
      %v963 = vld [vmem:[%s916 + $0xa9] sm:$0xff]
      %v964 = vld [vmem:[%s916 + $0xb1] sm:$0xff]
      %v965 = vld [vmem:[%s916 + $0xc1] sm:$0xff]
      %v966 = vld [vmem:[%s916 + $0xc9] sm:$0xff]
      %v967 = vld [vmem:[%s916 + $0xd9] sm:$0xff]
      %v968 = vld [vmem:[%s916 + $0xe1] sm:$0xff]
      %v969 = vld [vmem:[%s916 + $0xf1] sm:$0xff]
      %v970 = vld [vmem:[%s916 + $0xf9] sm:$0xff]
      %v971 = vld [vmem:[%s916 + $0x109] sm:$0xff]
      %v972 = vld [vmem:[%s916 + $0x111] sm:$0xff]
      %v973 = vld [vmem:[%s916 + $0x121] sm:$0xff]
      %v974 = vld [vmem:[%s916 + $0x129] sm:$0xff]
      %v975 = vld [vmem:[%s916 + $0x139] sm:$0xff]
      %v976 = vld [vmem:[%s916 + $0x141] sm:$0xff]
      %v977 = vld [vmem:[%s916 + $0x151] sm:$0xff]
      %v978 = vld [vmem:[%s916 + $0x159] sm:$0xff]
      %v979 = vld [vmem:[%s916 + $0x169] sm:$0xff]
      %v980 = vld [vmem:[%s916 + $0x171] sm:$0xff]
      %v981 = vld [vmem:[%s916 + $0x2] sm:$0xff]
      %v982 = vld [vmem:[%s916 + $0xa] sm:$0xff]
      %v983 = vld [vmem:[%s916 + $0x1a] sm:$0xff]
      %v984 = vld [vmem:[%s916 + $0x22] sm:$0xff]
      %v985 = vld [vmem:[%s916 + $0x32] sm:$0xff]
      %v986 = vld [vmem:[%s916 + $0x3a] sm:$0xff]
      %v987 = vld [vmem:[%s916 + $0x4a] sm:$0xff]
      %v988 = vld [vmem:[%s916 + $0x52] sm:$0xff]
      %v989 = vld [vmem:[%s916 + $0x62] sm:$0xff]
      %v990 = vld [vmem:[%s916 + $0x6a] sm:$0xff]
      %v991 = vld [vmem:[%s916 + $0x7a] sm:$0xff]
      %v992 = vld [vmem:[%s916 + $0x82] sm:$0xff]
      %v993 = vld [vmem:[%s916 + $0x92] sm:$0xff]
      %v994 = vld [vmem:[%s916 + $0x9a] sm:$0xff]
      %v995 = vld [vmem:[%s916 + $0xaa] sm:$0xff]
      %v996 = vld [vmem:[%s916 + $0xb2] sm:$0xff]
      %v997 = vld [vmem:[%s916 + $0xc2] sm:$0xff]
      %v998 = vld [vmem:[%s916 + $0xca] sm:$0xff]
      %v999 = vld [vmem:[%s916 + $0xda] sm:$0xff]
      %v1000 = vld [vmem:[%s916 + $0xe2] sm:$0xff]
      %v1001 = vld [vmem:[%s916 + $0xf2] sm:$0xff]
      %v1002 = vld [vmem:[%s916 + $0xfa] sm:$0xff]
      %v1003 = vld [vmem:[%s916 + $0x10a] sm:$0xff]
      %v1004 = vld [vmem:[%s916 + $0x112] sm:$0xff]
      %v1005 = vld [vmem:[%s916 + $0x122] sm:$0xff]
      %v1006 = vld [vmem:[%s916 + $0x12a] sm:$0xff]
      %v1007 = vld [vmem:[%s916 + $0x13a] sm:$0xff]
      %v1008 = vld [vmem:[%s916 + $0x142] sm:$0xff]
      %v1009 = vld [vmem:[%s916 + $0x152] sm:$0xff]
      %v1010 = vld [vmem:[%s916 + $0x15a] sm:$0xff]
      %v1011 = vld [vmem:[%s916 + $0x16a] sm:$0xff]
      %v1012 = vld [vmem:[%s916 + $0x172] sm:$0xff]
      %1045 = vrot.lane.b32.xlu0 %v756, 4
      %v1046 = vpop.permute.xlu0 %1045
      %1047 = vrot.lane.b32.xlu0 %v757, 4
      %v1048 = vpop.permute.xlu0 %1047
      %1049 = vrot.lane.b32.xlu0 %v758, 4
      %v1050 = vpop.permute.xlu0 %1049
      %1051 = vrot.lane.b32.xlu0 %v759, 4
      %v1052 = vpop.permute.xlu0 %1051
      %1053 = vrot.lane.b32.xlu0 %v760, 4
      %v1054 = vpop.permute.xlu0 %1053
      %1055 = vrot.lane.b32.xlu0 %v761, 4
      %v1056 = vpop.permute.xlu0 %1055
      %1057 = vrot.lane.b32.xlu0 %v762, 4
      %v1058 = vpop.permute.xlu0 %1057
      %1059 = vrot.lane.b32.xlu0 %v763, 4
      %v1060 = vpop.permute.xlu0 %1059
      %1061 = vrot.lane.b32.xlu0 %v764, 4
      %v1062 = vpop.permute.xlu0 %1061
      %1063 = vrot.lane.b32.xlu0 %v765, 4
      %v1064 = vpop.permute.xlu0 %1063
      %1065 = vrot.lane.b32.xlu0 %v766, 4
      %v1066 = vpop.permute.xlu0 %1065
      %1067 = vrot.lane.b32.xlu0 %v767, 4
      %v1068 = vpop.permute.xlu0 %1067
      %1069 = vrot.lane.b32.xlu0 %v768, 4
      %v1070 = vpop.permute.xlu0 %1069
      %1071 = vrot.lane.b32.xlu0 %v769, 4
      %v1072 = vpop.permute.xlu0 %1071
      %1073 = vrot.lane.b32.xlu0 %v770, 4
      %v1074 = vpop.permute.xlu0 %1073
      %1075 = vrot.lane.b32.xlu0 %v771, 4
      %v1076 = vpop.permute.xlu0 %1075
      %1077 = vrot.lane.b32.xlu0 %v772, 4
      %v1078 = vpop.permute.xlu0 %1077
      %1079 = vrot.lane.b32.xlu0 %v773, 4
      %v1080 = vpop.permute.xlu0 %1079
      %1081 = vrot.lane.b32.xlu0 %v774, 4
      %v1082 = vpop.permute.xlu0 %1081
      %1083 = vrot.lane.b32.xlu0 %v775, 4
      %v1084 = vpop.permute.xlu0 %1083
      %1085 = vrot.lane.b32.xlu0 %v776, 4
      %v1086 = vpop.permute.xlu0 %1085
      %1087 = vrot.lane.b32.xlu0 %v777, 4
      %v1088 = vpop.permute.xlu0 %1087
      %1089 = vrot.lane.b32.xlu0 %v778, 4
      %v1090 = vpop.permute.xlu0 %1089
      %1091 = vrot.lane.b32.xlu0 %v779, 4
      %v1092 = vpop.permute.xlu0 %1091
      %1093 = vrot.lane.b32.xlu0 %v780, 4
      %v1094 = vpop.permute.xlu0 %1093
      %1095 = vrot.lane.b32.xlu0 %v781, 4
      %v1096 = vpop.permute.xlu0 %1095
      %1097 = vrot.lane.b32.xlu0 %v782, 4
      %v1098 = vpop.permute.xlu0 %1097
      %1099 = vrot.lane.b32.xlu0 %v783, 4
      %v1100 = vpop.permute.xlu0 %1099
      %1101 = vrot.lane.b32.xlu0 %v784, 4
      %v1102 = vpop.permute.xlu0 %1101
      %1103 = vrot.lane.b32.xlu0 %v785, 4
      %v1104 = vpop.permute.xlu0 %1103
      %1105 = vrot.lane.b32.xlu0 %v786, 4
      %v1106 = vpop.permute.xlu0 %1105
      %1107 = vrot.lane.b32.xlu0 %v787, 4
      %v1108 = vpop.permute.xlu0 %1107
      %1173 = vrot.lane.b32.xlu0 %v788, 8
      %v1174 = vpop.permute.xlu0 %1173
      %1175 = vrot.lane.b32.xlu0 %v789, 8
      %v1176 = vpop.permute.xlu0 %1175
      %1177 = vrot.lane.b32.xlu0 %v790, 8
      %v1178 = vpop.permute.xlu0 %1177
      %1179 = vrot.lane.b32.xlu0 %v791, 8
      %v1180 = vpop.permute.xlu0 %1179
      %1181 = vrot.lane.b32.xlu0 %v792, 8
      %v1182 = vpop.permute.xlu0 %1181
      %1183 = vrot.lane.b32.xlu0 %v793, 8
      %v1184 = vpop.permute.xlu0 %1183
      %1185 = vrot.lane.b32.xlu0 %v794, 8
      %v1186 = vpop.permute.xlu0 %1185
      %1187 = vrot.lane.b32.xlu0 %v795, 8
      %v1188 = vpop.permute.xlu0 %1187
      %1189 = vrot.lane.b32.xlu0 %v796, 8
      %v1190 = vpop.permute.xlu0 %1189
      %1191 = vrot.lane.b32.xlu0 %v797, 8
      %v1192 = vpop.permute.xlu0 %1191
      %1193 = vrot.lane.b32.xlu0 %v798, 8
      %v1194 = vpop.permute.xlu0 %1193
      %1195 = vrot.lane.b32.xlu0 %v799, 8
      %v1196 = vpop.permute.xlu0 %1195
      %1197 = vrot.lane.b32.xlu0 %v800, 8
      %v1198 = vpop.permute.xlu0 %1197
      %1199 = vrot.lane.b32.xlu0 %v801, 8
      %v1200 = vpop.permute.xlu0 %1199
      %1201 = vrot.lane.b32.xlu0 %v802, 8
      %v1202 = vpop.permute.xlu0 %1201
      %1203 = vrot.lane.b32.xlu0 %v803, 8
      %v1204 = vpop.permute.xlu0 %1203
      %1205 = vrot.lane.b32.xlu0 %v804, 8
      %v1206 = vpop.permute.xlu0 %1205
      %1207 = vrot.lane.b32.xlu0 %v805, 8
      %v1208 = vpop.permute.xlu0 %1207
      %1209 = vrot.lane.b32.xlu0 %v806, 8
      %v1210 = vpop.permute.xlu0 %1209
      %1211 = vrot.lane.b32.xlu0 %v807, 8
      %v1212 = vpop.permute.xlu0 %1211
      %1213 = vrot.lane.b32.xlu0 %v808, 8
      %v1214 = vpop.permute.xlu0 %1213
      %1215 = vrot.lane.b32.xlu0 %v809, 8
      %v1216 = vpop.permute.xlu0 %1215
      %1217 = vrot.lane.b32.xlu0 %v810, 8
      %v1218 = vpop.permute.xlu0 %1217
      %1219 = vrot.lane.b32.xlu0 %v811, 8
      %v1220 = vpop.permute.xlu0 %1219
      %1221 = vrot.lane.b32.xlu0 %v812, 8
      %v1222 = vpop.permute.xlu0 %1221
      %1223 = vrot.lane.b32.xlu0 %v813, 8
      %v1224 = vpop.permute.xlu0 %1223
      %1225 = vrot.lane.b32.xlu0 %v814, 8
      %v1226 = vpop.permute.xlu0 %1225
      %1227 = vrot.lane.b32.xlu0 %v815, 8
      %v1228 = vpop.permute.xlu0 %1227
      %1229 = vrot.lane.b32.xlu0 %v816, 8
      %v1230 = vpop.permute.xlu0 %1229
      %1231 = vrot.lane.b32.xlu0 %v817, 8
      %v1232 = vpop.permute.xlu0 %1231
      %1233 = vrot.lane.b32.xlu0 %v818, 8
      %v1234 = vpop.permute.xlu0 %1233
      %1235 = vrot.lane.b32.xlu0 %v819, 8
      %v1236 = vpop.permute.xlu0 %1235
      %1301 = vrot.lane.b32.xlu0 %v820, 12
      %v1302 = vpop.permute.xlu0 %1301
      %1303 = vrot.lane.b32.xlu0 %v821, 12
      %v1304 = vpop.permute.xlu0 %1303
      %1305 = vrot.lane.b32.xlu0 %v822, 12
      %v1306 = vpop.permute.xlu0 %1305
      %1307 = vrot.lane.b32.xlu0 %v823, 12
      %v1308 = vpop.permute.xlu0 %1307
      %1309 = vrot.lane.b32.xlu0 %v824, 12
      %v1310 = vpop.permute.xlu0 %1309
      %1311 = vrot.lane.b32.xlu0 %v825, 12
      %v1312 = vpop.permute.xlu0 %1311
      %1313 = vrot.lane.b32.xlu0 %v826, 12
      %v1314 = vpop.permute.xlu0 %1313
      %1315 = vrot.lane.b32.xlu0 %v827, 12
      %v1316 = vpop.permute.xlu0 %1315
      %1317 = vrot.lane.b32.xlu0 %v828, 12
      %v1318 = vpop.permute.xlu0 %1317
      %1319 = vrot.lane.b32.xlu0 %v829, 12
      %v1320 = vpop.permute.xlu0 %1319
      %1321 = vrot.lane.b32.xlu0 %v830, 12
      %v1322 = vpop.permute.xlu0 %1321
      %1323 = vrot.lane.b32.xlu0 %v831, 12
      %v1324 = vpop.permute.xlu0 %1323
      %1325 = vrot.lane.b32.xlu0 %v832, 12
      %v1326 = vpop.permute.xlu0 %1325
      %1327 = vrot.lane.b32.xlu0 %v833, 12
      %v1328 = vpop.permute.xlu0 %1327
      %1329 = vrot.lane.b32.xlu0 %v834, 12
      %v1330 = vpop.permute.xlu0 %1329
      %1331 = vrot.lane.b32.xlu0 %v835, 12
      %v1332 = vpop.permute.xlu0 %1331
      %1333 = vrot.lane.b32.xlu0 %v836, 12
      %v1334 = vpop.permute.xlu0 %1333
      %1335 = vrot.lane.b32.xlu0 %v837, 12
      %v1336 = vpop.permute.xlu0 %1335
      %1337 = vrot.lane.b32.xlu0 %v838, 12
      %v1338 = vpop.permute.xlu0 %1337
      %1339 = vrot.lane.b32.xlu0 %v839, 12
      %v1340 = vpop.permute.xlu0 %1339
      %1341 = vrot.lane.b32.xlu0 %v840, 12
      %v1342 = vpop.permute.xlu0 %1341
      %1343 = vrot.lane.b32.xlu0 %v841, 12
      %v1344 = vpop.permute.xlu0 %1343
      %1345 = vrot.lane.b32.xlu0 %v842, 12
      %v1346 = vpop.permute.xlu0 %1345
      %1347 = vrot.lane.b32.xlu0 %v843, 12
      %v1348 = vpop.permute.xlu0 %1347
      %1349 = vrot.lane.b32.xlu0 %v844, 12
      %v1350 = vpop.permute.xlu0 %1349
      %1351 = vrot.lane.b32.xlu0 %v845, 12
      %v1352 = vpop.permute.xlu0 %1351
      %1353 = vrot.lane.b32.xlu0 %v846, 12
      %v1354 = vpop.permute.xlu0 %1353
      %1355 = vrot.lane.b32.xlu0 %v847, 12
      %v1356 = vpop.permute.xlu0 %1355
      %1357 = vrot.lane.b32.xlu0 %v848, 12
      %v1358 = vpop.permute.xlu0 %1357
      %1359 = vrot.lane.b32.xlu0 %v849, 12
      %v1360 = vpop.permute.xlu0 %1359
      %1361 = vrot.lane.b32.xlu0 %v850, 12
      %v1362 = vpop.permute.xlu0 %1361
      %1363 = vrot.lane.b32.xlu0 %v851, 12
      %v1364 = vpop.permute.xlu0 %1363
      %1429 = vrot.lane.b32.xlu0 %v852, 16
      %v1430 = vpop.permute.xlu0 %1429
      %1431 = vrot.lane.b32.xlu0 %v853, 16
      %v1432 = vpop.permute.xlu0 %1431
      %1433 = vrot.lane.b32.xlu0 %v854, 16
      %v1434 = vpop.permute.xlu0 %1433
      %1435 = vrot.lane.b32.xlu0 %v855, 16
      %v1436 = vpop.permute.xlu0 %1435
      %1437 = vrot.lane.b32.xlu0 %v856, 16
      %v1438 = vpop.permute.xlu0 %1437
      %1439 = vrot.lane.b32.xlu0 %v857, 16
      %v1440 = vpop.permute.xlu0 %1439
      %1441 = vrot.lane.b32.xlu0 %v858, 16
      %v1442 = vpop.permute.xlu0 %1441
      %1443 = vrot.lane.b32.xlu0 %v859, 16
      %v1444 = vpop.permute.xlu0 %1443
      %1445 = vrot.lane.b32.xlu0 %v860, 16
      %v1446 = vpop.permute.xlu0 %1445
      %1447 = vrot.lane.b32.xlu0 %v861, 16
      %v1448 = vpop.permute.xlu0 %1447
      %1449 = vrot.lane.b32.xlu0 %v862, 16
      %v1450 = vpop.permute.xlu0 %1449
      %1451 = vrot.lane.b32.xlu0 %v863, 16
      %v1452 = vpop.permute.xlu0 %1451
      %1453 = vrot.lane.b32.xlu0 %v864, 16
      %v1454 = vpop.permute.xlu0 %1453
      %1455 = vrot.lane.b32.xlu0 %v865, 16
      %v1456 = vpop.permute.xlu0 %1455
      %1457 = vrot.lane.b32.xlu0 %v866, 16
      %v1458 = vpop.permute.xlu0 %1457
      %1459 = vrot.lane.b32.xlu0 %v867, 16
      %v1460 = vpop.permute.xlu0 %1459
      %1461 = vrot.lane.b32.xlu0 %v868, 16
      %v1462 = vpop.permute.xlu0 %1461
      %1463 = vrot.lane.b32.xlu0 %v869, 16
      %v1464 = vpop.permute.xlu0 %1463
      %1465 = vrot.lane.b32.xlu0 %v870, 16
      %v1466 = vpop.permute.xlu0 %1465
      %1467 = vrot.lane.b32.xlu0 %v871, 16
      %v1468 = vpop.permute.xlu0 %1467
      %1469 = vrot.lane.b32.xlu0 %v872, 16
      %v1470 = vpop.permute.xlu0 %1469
      %1471 = vrot.lane.b32.xlu0 %v873, 16
      %v1472 = vpop.permute.xlu0 %1471
      %1473 = vrot.lane.b32.xlu0 %v874, 16
      %v1474 = vpop.permute.xlu0 %1473
      %1475 = vrot.lane.b32.xlu0 %v875, 16
      %v1476 = vpop.permute.xlu0 %1475
      %1477 = vrot.lane.b32.xlu0 %v876, 16
      %v1478 = vpop.permute.xlu0 %1477
      %1479 = vrot.lane.b32.xlu0 %v877, 16
      %v1480 = vpop.permute.xlu0 %1479
      %1481 = vrot.lane.b32.xlu0 %v878, 16
      %v1482 = vpop.permute.xlu0 %1481
      %1483 = vrot.lane.b32.xlu0 %v879, 16
      %v1484 = vpop.permute.xlu0 %1483
      %1485 = vrot.lane.b32.xlu0 %v880, 16
      %v1486 = vpop.permute.xlu0 %1485
      %1487 = vrot.lane.b32.xlu0 %v881, 16
      %v1488 = vpop.permute.xlu0 %1487
      %1489 = vrot.lane.b32.xlu0 %v882, 16
      %v1490 = vpop.permute.xlu0 %1489
      %1491 = vrot.lane.b32.xlu0 %v883, 16
      %v1492 = vpop.permute.xlu0 %1491
      %1557 = vrot.lane.b32.xlu0 %v884, 20
      %v1558 = vpop.permute.xlu0 %1557
      %1559 = vrot.lane.b32.xlu0 %v885, 20
      %v1560 = vpop.permute.xlu0 %1559
      %1561 = vrot.lane.b32.xlu0 %v886, 20
      %v1562 = vpop.permute.xlu0 %1561
      %1563 = vrot.lane.b32.xlu0 %v887, 20
      %v1564 = vpop.permute.xlu0 %1563
      %1565 = vrot.lane.b32.xlu0 %v888, 20
      %v1566 = vpop.permute.xlu0 %1565
      %1567 = vrot.lane.b32.xlu0 %v889, 20
      %v1568 = vpop.permute.xlu0 %1567
      %1569 = vrot.lane.b32.xlu0 %v890, 20
      %v1570 = vpop.permute.xlu0 %1569
      %1571 = vrot.lane.b32.xlu0 %v891, 20
      %v1572 = vpop.permute.xlu0 %1571
      %1573 = vrot.lane.b32.xlu0 %v892, 20
      %v1574 = vpop.permute.xlu0 %1573
      %1575 = vrot.lane.b32.xlu0 %v893, 20
      %v1576 = vpop.permute.xlu0 %1575
      %1577 = vrot.lane.b32.xlu0 %v894, 20
      %v1578 = vpop.permute.xlu0 %1577
      %1579 = vrot.lane.b32.xlu0 %v895, 20
      %v1580 = vpop.permute.xlu0 %1579
      %1581 = vrot.lane.b32.xlu0 %v896, 20
      %v1582 = vpop.permute.xlu0 %1581
      %1583 = vrot.lane.b32.xlu0 %v897, 20
      %v1584 = vpop.permute.xlu0 %1583
      %1585 = vrot.lane.b32.xlu0 %v898, 20
      %v1586 = vpop.permute.xlu0 %1585
      %1587 = vrot.lane.b32.xlu0 %v899, 20
      %v1588 = vpop.permute.xlu0 %1587
      %1589 = vrot.lane.b32.xlu0 %v900, 20
      %v1590 = vpop.permute.xlu0 %1589
      %1591 = vrot.lane.b32.xlu0 %v901, 20
      %v1592 = vpop.permute.xlu0 %1591
      %1593 = vrot.lane.b32.xlu0 %v902, 20
      %v1594 = vpop.permute.xlu0 %1593
      %1595 = vrot.lane.b32.xlu0 %v903, 20
      %v1596 = vpop.permute.xlu0 %1595
      %1597 = vrot.lane.b32.xlu0 %v904, 20
      %v1598 = vpop.permute.xlu0 %1597
      %1599 = vrot.lane.b32.xlu0 %v905, 20
      %v1600 = vpop.permute.xlu0 %1599
      %1601 = vrot.lane.b32.xlu0 %v906, 20
      %v1602 = vpop.permute.xlu0 %1601
      %1603 = vrot.lane.b32.xlu0 %v907, 20
      %v1604 = vpop.permute.xlu0 %1603
      %1605 = vrot.lane.b32.xlu0 %v908, 20
      %v1606 = vpop.permute.xlu0 %1605
      %1607 = vrot.lane.b32.xlu0 %v909, 20
      %v1608 = vpop.permute.xlu0 %1607
      %1609 = vrot.lane.b32.xlu0 %v910, 20
      %v1610 = vpop.permute.xlu0 %1609
      %1611 = vrot.lane.b32.xlu0 %v911, 20
      %v1612 = vpop.permute.xlu0 %1611
      %1613 = vrot.lane.b32.xlu0 %v912, 20
      %v1614 = vpop.permute.xlu0 %1613
      %1615 = vrot.lane.b32.xlu0 %v913, 20
      %v1616 = vpop.permute.xlu0 %1615
      %1617 = vrot.lane.b32.xlu0 %v914, 20
      %v1618 = vpop.permute.xlu0 %1617
      %1619 = vrot.lane.b32.xlu0 %v915, 20
      %v1620 = vpop.permute.xlu0 %1619
      %1685 = vrot.lane.b32.xlu0 %v917, 24
      %v1686 = vpop.permute.xlu0 %1685
      %1687 = vrot.lane.b32.xlu0 %v918, 24
      %v1688 = vpop.permute.xlu0 %1687
      %1689 = vrot.lane.b32.xlu0 %v919, 24
      %v1690 = vpop.permute.xlu0 %1689
      %1691 = vrot.lane.b32.xlu0 %v920, 24
      %v1692 = vpop.permute.xlu0 %1691
      %1693 = vrot.lane.b32.xlu0 %v921, 24
      %v1694 = vpop.permute.xlu0 %1693
      %1695 = vrot.lane.b32.xlu0 %v922, 24
      %v1696 = vpop.permute.xlu0 %1695
      %1697 = vrot.lane.b32.xlu0 %v923, 24
      %v1698 = vpop.permute.xlu0 %1697
      %1699 = vrot.lane.b32.xlu0 %v924, 24
      %v1700 = vpop.permute.xlu0 %1699
      %1701 = vrot.lane.b32.xlu0 %v925, 24
      %v1702 = vpop.permute.xlu0 %1701
      %1703 = vrot.lane.b32.xlu0 %v926, 24
      %v1704 = vpop.permute.xlu0 %1703
      %1705 = vrot.lane.b32.xlu0 %v927, 24
      %v1706 = vpop.permute.xlu0 %1705
      %1707 = vrot.lane.b32.xlu0 %v928, 24
      %v1708 = vpop.permute.xlu0 %1707
      %1709 = vrot.lane.b32.xlu0 %v929, 24
      %v1710 = vpop.permute.xlu0 %1709
      %1711 = vrot.lane.b32.xlu0 %v930, 24
      %v1712 = vpop.permute.xlu0 %1711
      %1713 = vrot.lane.b32.xlu0 %v931, 24
      %v1714 = vpop.permute.xlu0 %1713
      %1715 = vrot.lane.b32.xlu0 %v932, 24
      %v1716 = vpop.permute.xlu0 %1715
      %1717 = vrot.lane.b32.xlu0 %v933, 24
      %v1718 = vpop.permute.xlu0 %1717
      %1719 = vrot.lane.b32.xlu0 %v934, 24
      %v1720 = vpop.permute.xlu0 %1719
      %1721 = vrot.lane.b32.xlu0 %v935, 24
      %v1722 = vpop.permute.xlu0 %1721
      %1723 = vrot.lane.b32.xlu0 %v936, 24
      %v1724 = vpop.permute.xlu0 %1723
      %1725 = vrot.lane.b32.xlu0 %v937, 24
      %v1726 = vpop.permute.xlu0 %1725
      %1727 = vrot.lane.b32.xlu0 %v938, 24
      %v1728 = vpop.permute.xlu0 %1727
      %1729 = vrot.lane.b32.xlu0 %v939, 24
      %v1730 = vpop.permute.xlu0 %1729
      %1731 = vrot.lane.b32.xlu0 %v940, 24
      %v1732 = vpop.permute.xlu0 %1731
      %1733 = vrot.lane.b32.xlu0 %v941, 24
      %v1734 = vpop.permute.xlu0 %1733
      %1735 = vrot.lane.b32.xlu0 %v942, 24
      %v1736 = vpop.permute.xlu0 %1735
      %1737 = vrot.lane.b32.xlu0 %v943, 24
      %v1738 = vpop.permute.xlu0 %1737
      %1739 = vrot.lane.b32.xlu0 %v944, 24
      %v1740 = vpop.permute.xlu0 %1739
      %1741 = vrot.lane.b32.xlu0 %v945, 24
      %v1742 = vpop.permute.xlu0 %1741
      %1743 = vrot.lane.b32.xlu0 %v946, 24
      %v1744 = vpop.permute.xlu0 %1743
      %1745 = vrot.lane.b32.xlu0 %v947, 24
      %v1746 = vpop.permute.xlu0 %1745
      %1747 = vrot.lane.b32.xlu0 %v948, 24
      %v1748 = vpop.permute.xlu0 %1747
      %1813 = vrot.lane.b32.xlu0 %v949, 28
      %v1814 = vpop.permute.xlu0 %1813
      %1815 = vrot.lane.b32.xlu0 %v950, 28
      %v1816 = vpop.permute.xlu0 %1815
      %1817 = vrot.lane.b32.xlu0 %v951, 28
      %v1818 = vpop.permute.xlu0 %1817
      %1819 = vrot.lane.b32.xlu0 %v952, 28
      %v1820 = vpop.permute.xlu0 %1819
      %1821 = vrot.lane.b32.xlu0 %v953, 28
      %v1822 = vpop.permute.xlu0 %1821
      %1823 = vrot.lane.b32.xlu0 %v954, 28
      %v1824 = vpop.permute.xlu0 %1823
      %1825 = vrot.lane.b32.xlu0 %v955, 28
      %v1826 = vpop.permute.xlu0 %1825
      %1827 = vrot.lane.b32.xlu0 %v956, 28
      %v1828 = vpop.permute.xlu0 %1827
      %1829 = vrot.lane.b32.xlu0 %v957, 28
      %v1830 = vpop.permute.xlu0 %1829
      %1831 = vrot.lane.b32.xlu0 %v958, 28
      %v1832 = vpop.permute.xlu0 %1831
      %1833 = vrot.lane.b32.xlu0 %v959, 28
      %v1834 = vpop.permute.xlu0 %1833
      %1835 = vrot.lane.b32.xlu0 %v960, 28
      %v1836 = vpop.permute.xlu0 %1835
      %1837 = vrot.lane.b32.xlu0 %v961, 28
      %v1838 = vpop.permute.xlu0 %1837
      %1839 = vrot.lane.b32.xlu0 %v962, 28
      %v1840 = vpop.permute.xlu0 %1839
      %1841 = vrot.lane.b32.xlu0 %v963, 28
      %v1842 = vpop.permute.xlu0 %1841
      %1843 = vrot.lane.b32.xlu0 %v964, 28
      %v1844 = vpop.permute.xlu0 %1843
      %1845 = vrot.lane.b32.xlu0 %v965, 28
      %v1846 = vpop.permute.xlu0 %1845
      %1847 = vrot.lane.b32.xlu0 %v966, 28
      %v1848 = vpop.permute.xlu0 %1847
      %1849 = vrot.lane.b32.xlu0 %v967, 28
      %v1850 = vpop.permute.xlu0 %1849
      %1851 = vrot.lane.b32.xlu0 %v968, 28
      %v1852 = vpop.permute.xlu0 %1851
      %1853 = vrot.lane.b32.xlu0 %v969, 28
      %v1854 = vpop.permute.xlu0 %1853
      %1855 = vrot.lane.b32.xlu0 %v970, 28
      %v1856 = vpop.permute.xlu0 %1855
      %1857 = vrot.lane.b32.xlu0 %v971, 28
      %v1858 = vpop.permute.xlu0 %1857
      %1859 = vrot.lane.b32.xlu0 %v972, 28
      %v1860 = vpop.permute.xlu0 %1859
      %1861 = vrot.lane.b32.xlu0 %v973, 28
      %v1862 = vpop.permute.xlu0 %1861
      %1863 = vrot.lane.b32.xlu0 %v974, 28
      %v1864 = vpop.permute.xlu0 %1863
      %1865 = vrot.lane.b32.xlu0 %v975, 28
      %v1866 = vpop.permute.xlu0 %1865
      %1867 = vrot.lane.b32.xlu0 %v976, 28
      %v1868 = vpop.permute.xlu0 %1867
      %1869 = vrot.lane.b32.xlu0 %v977, 28
      %v1870 = vpop.permute.xlu0 %1869
      %1871 = vrot.lane.b32.xlu0 %v978, 28
      %v1872 = vpop.permute.xlu0 %1871
      %1873 = vrot.lane.b32.xlu0 %v979, 28
      %v1874 = vpop.permute.xlu0 %1873
      %1875 = vrot.lane.b32.xlu0 %v980, 28
      %v1876 = vpop.permute.xlu0 %1875
      %1941 = vrot.lane.b32.xlu0 %v981, 32
      %v1942 = vpop.permute.xlu0 %1941
      %1943 = vrot.lane.b32.xlu0 %v982, 32
      %v1944 = vpop.permute.xlu0 %1943
      %1945 = vrot.lane.b32.xlu0 %v983, 32
      %v1946 = vpop.permute.xlu0 %1945
      %1947 = vrot.lane.b32.xlu0 %v984, 32
      %v1948 = vpop.permute.xlu0 %1947
      %1949 = vrot.lane.b32.xlu0 %v985, 32
      %v1950 = vpop.permute.xlu0 %1949
      %1951 = vrot.lane.b32.xlu0 %v986, 32
      %v1952 = vpop.permute.xlu0 %1951
      %1953 = vrot.lane.b32.xlu0 %v987, 32
      %v1954 = vpop.permute.xlu0 %1953
      %1955 = vrot.lane.b32.xlu0 %v988, 32
      %v1956 = vpop.permute.xlu0 %1955
      %1957 = vrot.lane.b32.xlu0 %v989, 32
      %v1958 = vpop.permute.xlu0 %1957
      %1959 = vrot.lane.b32.xlu0 %v990, 32
      %v1960 = vpop.permute.xlu0 %1959
      %1961 = vrot.lane.b32.xlu0 %v991, 32
      %v1962 = vpop.permute.xlu0 %1961
      %1963 = vrot.lane.b32.xlu0 %v992, 32
      %v1964 = vpop.permute.xlu0 %1963
      %1965 = vrot.lane.b32.xlu0 %v993, 32
      %v1966 = vpop.permute.xlu0 %1965
      %1967 = vrot.lane.b32.xlu0 %v994, 32
      %v1968 = vpop.permute.xlu0 %1967
      %1969 = vrot.lane.b32.xlu0 %v995, 32
      %v1970 = vpop.permute.xlu0 %1969
      %1971 = vrot.lane.b32.xlu0 %v996, 32
      %v1972 = vpop.permute.xlu0 %1971
      %1973 = vrot.lane.b32.xlu0 %v997, 32
      %v1974 = vpop.permute.xlu0 %1973
      %1975 = vrot.lane.b32.xlu0 %v998, 32
      %v1976 = vpop.permute.xlu0 %1975
      %1977 = vrot.lane.b32.xlu0 %v999, 32
      %v1978 = vpop.permute.xlu0 %1977
      %1979 = vrot.lane.b32.xlu0 %v1000, 32
      %v1980 = vpop.permute.xlu0 %1979
      %1981 = vrot.lane.b32.xlu0 %v1001, 32
      %v1982 = vpop.permute.xlu0 %1981
      %1983 = vrot.lane.b32.xlu0 %v1002, 32
      %v1984 = vpop.permute.xlu0 %1983
      %1985 = vrot.lane.b32.xlu0 %v1003, 32
      %v1986 = vpop.permute.xlu0 %1985
      %1987 = vrot.lane.b32.xlu0 %v1004, 32
      %v1988 = vpop.permute.xlu0 %1987
      %1989 = vrot.lane.b32.xlu0 %v1005, 32
      %v1990 = vpop.permute.xlu0 %1989
      %1991 = vrot.lane.b32.xlu0 %v1006, 32
      %v1992 = vpop.permute.xlu0 %1991
      %1993 = vrot.lane.b32.xlu0 %v1007, 32
      %v1994 = vpop.permute.xlu0 %1993
      %1995 = vrot.lane.b32.xlu0 %v1008, 32
      %v1996 = vpop.permute.xlu0 %1995
      %1997 = vrot.lane.b32.xlu0 %v1009, 32
      %v1998 = vpop.permute.xlu0 %1997
      %1999 = vrot.lane.b32.xlu0 %v1010, 32
      %v2000 = vpop.permute.xlu0 %1999
      %2001 = vrot.lane.b32.xlu0 %v1011, 32
      %v2002 = vpop.permute.xlu0 %2001
      %2003 = vrot.lane.b32.xlu0 %v1012, 32
      %v2004 = vpop.permute.xlu0 %2003
      %v2037 = vsel %vm691, %v724, %v1046
      %v2038 = vsel %vm691, %v725, %v1048
      %v2039 = vsel %vm691, %v726, %v1050
      %v2040 = vsel %vm691, %v727, %v1052
      %v2041 = vsel %vm691, %v728, %v1054
      %v2042 = vsel %vm691, %v729, %v1056
      %v2043 = vsel %vm691, %v730, %v1058
      %v2044 = vsel %vm691, %v731, %v1060
      %v2045 = vsel %vm691, %v732, %v1062
      %v2046 = vsel %vm691, %v733, %v1064
      %v2047 = vsel %vm691, %v734, %v1066
      %v2048 = vsel %vm691, %v735, %v1068
      %v2049 = vsel %vm691, %v736, %v1070
      %v2050 = vsel %vm691, %v737, %v1072
      %v2051 = vsel %vm691, %v738, %v1074
      %v2052 = vsel %vm691, %v739, %v1076
      %v2053 = vsel %vm691, %v740, %v1078
      %v2054 = vsel %vm691, %v741, %v1080
      %v2055 = vsel %vm691, %v742, %v1082
      %v2056 = vsel %vm691, %v743, %v1084
      %v2057 = vsel %vm691, %v744, %v1086
      %v2058 = vsel %vm691, %v745, %v1088
      %v2059 = vsel %vm691, %v746, %v1090
      %v2060 = vsel %vm691, %v747, %v1092
      %v2061 = vsel %vm691, %v748, %v1094
      %v2062 = vsel %vm691, %v749, %v1096
      %v2063 = vsel %vm691, %v750, %v1098
      %v2064 = vsel %vm691, %v751, %v1100
      %v2065 = vsel %vm691, %v752, %v1102
      %v2066 = vsel %vm691, %v753, %v1104
      %v2067 = vsel %vm691, %v754, %v1106
      %v2068 = vsel %vm691, %v755, %v1108
      %vm2069 = vcmask 64512
      %v2070 = vsel %vm2069, %v2037, %v1174
      %v2071 = vsel %vm2069, %v2038, %v1176
      %v2072 = vsel %vm2069, %v2039, %v1178
      %v2073 = vsel %vm2069, %v2040, %v1180
      %v2074 = vsel %vm2069, %v2041, %v1182
      %v2075 = vsel %vm2069, %v2042, %v1184
      %v2076 = vsel %vm2069, %v2043, %v1186
      %v2077 = vsel %vm2069, %v2044, %v1188
      %v2078 = vsel %vm2069, %v2045, %v1190
      %v2079 = vsel %vm2069, %v2046, %v1192
      %v2080 = vsel %vm2069, %v2047, %v1194
      %v2081 = vsel %vm2069, %v2048, %v1196
      %v2082 = vsel %vm2069, %v2049, %v1198
      %v2083 = vsel %vm2069, %v2050, %v1200
      %v2084 = vsel %vm2069, %v2051, %v1202
      %v2085 = vsel %vm2069, %v2052, %v1204
      %v2086 = vsel %vm2069, %v2053, %v1206
      %v2087 = vsel %vm2069, %v2054, %v1208
      %v2088 = vsel %vm2069, %v2055, %v1210
      %v2089 = vsel %vm2069, %v2056, %v1212
      %v2090 = vsel %vm2069, %v2057, %v1214
      %v2091 = vsel %vm2069, %v2058, %v1216
      %v2092 = vsel %vm2069, %v2059, %v1218
      %v2093 = vsel %vm2069, %v2060, %v1220
      %v2094 = vsel %vm2069, %v2061, %v1222
      %v2095 = vsel %vm2069, %v2062, %v1224
      %v2096 = vsel %vm2069, %v2063, %v1226
      %v2097 = vsel %vm2069, %v2064, %v1228
      %v2098 = vsel %vm2069, %v2065, %v1230
      %v2099 = vsel %vm2069, %v2066, %v1232
      %v2100 = vsel %vm2069, %v2067, %v1234
      %v2101 = vsel %vm2069, %v2068, %v1236
      %vm2102 = vcmask 97280
      %v2103 = vsel %vm2102, %v2070, %v1302
      %v2104 = vsel %vm2102, %v2071, %v1304
      %v2105 = vsel %vm2102, %v2072, %v1306
      %v2106 = vsel %vm2102, %v2073, %v1308
      %v2107 = vsel %vm2102, %v2074, %v1310
      %v2108 = vsel %vm2102, %v2075, %v1312
      %v2109 = vsel %vm2102, %v2076, %v1314
      %v2110 = vsel %vm2102, %v2077, %v1316
      %v2111 = vsel %vm2102, %v2078, %v1318
      %v2112 = vsel %vm2102, %v2079, %v1320
      %v2113 = vsel %vm2102, %v2080, %v1322
      %v2114 = vsel %vm2102, %v2081, %v1324
      %v2115 = vsel %vm2102, %v2082, %v1326
      %v2116 = vsel %vm2102, %v2083, %v1328
      %v2117 = vsel %vm2102, %v2084, %v1330
      %v2118 = vsel %vm2102, %v2085, %v1332
      %v2119 = vsel %vm2102, %v2086, %v1334
      %v2120 = vsel %vm2102, %v2087, %v1336
      %v2121 = vsel %vm2102, %v2088, %v1338
      %v2122 = vsel %vm2102, %v2089, %v1340
      %v2123 = vsel %vm2102, %v2090, %v1342
      %v2124 = vsel %vm2102, %v2091, %v1344
      %v2125 = vsel %vm2102, %v2092, %v1346
      %v2126 = vsel %vm2102, %v2093, %v1348
      %v2127 = vsel %vm2102, %v2094, %v1350
      %v2128 = vsel %vm2102, %v2095, %v1352
      %v2129 = vsel %vm2102, %v2096, %v1354
      %v2130 = vsel %vm2102, %v2097, %v1356
      %v2131 = vsel %vm2102, %v2098, %v1358
      %v2132 = vsel %vm2102, %v2099, %v1360
      %v2133 = vsel %vm2102, %v2100, %v1362
      %v2134 = vsel %vm2102, %v2101, %v1364
      %vm2135 = vcmask 130048
      %v2136 = vsel %vm2135, %v2103, %v1430
      %v2137 = vsel %vm2135, %v2104, %v1432
      %v2138 = vsel %vm2135, %v2105, %v1434
      %v2139 = vsel %vm2135, %v2106, %v1436
      %v2140 = vsel %vm2135, %v2107, %v1438
      %v2141 = vsel %vm2135, %v2108, %v1440
      %v2142 = vsel %vm2135, %v2109, %v1442
      %v2143 = vsel %vm2135, %v2110, %v1444
      %v2144 = vsel %vm2135, %v2111, %v1446
      %v2145 = vsel %vm2135, %v2112, %v1448
      %v2146 = vsel %vm2135, %v2113, %v1450
      %v2147 = vsel %vm2135, %v2114, %v1452
      %v2148 = vsel %vm2135, %v2115, %v1454
      %v2149 = vsel %vm2135, %v2116, %v1456
      %v2150 = vsel %vm2135, %v2117, %v1458
      %v2151 = vsel %vm2135, %v2118, %v1460
      %v2152 = vsel %vm2135, %v2119, %v1462
      %v2153 = vsel %vm2135, %v2120, %v1464
      %v2154 = vsel %vm2135, %v2121, %v1466
      %v2155 = vsel %vm2135, %v2122, %v1468
      %v2156 = vsel %vm2135, %v2123, %v1470
      %v2157 = vsel %vm2135, %v2124, %v1472
      %v2158 = vsel %vm2135, %v2125, %v1474
      %v2159 = vsel %vm2135, %v2126, %v1476
      %v2160 = vsel %vm2135, %v2127, %v1478
      %v2161 = vsel %vm2135, %v2128, %v1480
      %v2162 = vsel %vm2135, %v2129, %v1482
      %v2163 = vsel %vm2135, %v2130, %v1484
      %v2164 = vsel %vm2135, %v2131, %v1486
      %v2165 = vsel %vm2135, %v2132, %v1488
      %v2166 = vsel %vm2135, %v2133, %v1490
      %v2167 = vsel %vm2135, %v2134, %v1492
      %vm2168 = vcmask 162816
      %v2169 = vsel %vm2168, %v2136, %v1558
      %v2170 = vsel %vm2168, %v2137, %v1560
      %v2171 = vsel %vm2168, %v2138, %v1562
      %v2172 = vsel %vm2168, %v2139, %v1564
      %v2173 = vsel %vm2168, %v2140, %v1566
      %v2174 = vsel %vm2168, %v2141, %v1568
      %v2175 = vsel %vm2168, %v2142, %v1570
      %v2176 = vsel %vm2168, %v2143, %v1572
      %v2177 = vsel %vm2168, %v2144, %v1574
      %v2178 = vsel %vm2168, %v2145, %v1576
      %v2179 = vsel %vm2168, %v2146, %v1578
      %v2180 = vsel %vm2168, %v2147, %v1580
      %v2181 = vsel %vm2168, %v2148, %v1582
      %v2182 = vsel %vm2168, %v2149, %v1584
      %v2183 = vsel %vm2168, %v2150, %v1586
      %v2184 = vsel %vm2168, %v2151, %v1588
      %v2185 = vsel %vm2168, %v2152, %v1590
      %v2186 = vsel %vm2168, %v2153, %v1592
      %v2187 = vsel %vm2168, %v2154, %v1594
      %v2188 = vsel %vm2168, %v2155, %v1596
      %v2189 = vsel %vm2168, %v2156, %v1598
      %v2190 = vsel %vm2168, %v2157, %v1600
      %v2191 = vsel %vm2168, %v2158, %v1602
      %v2192 = vsel %vm2168, %v2159, %v1604
      %v2193 = vsel %vm2168, %v2160, %v1606
      %v2194 = vsel %vm2168, %v2161, %v1608
      %v2195 = vsel %vm2168, %v2162, %v1610
      %v2196 = vsel %vm2168, %v2163, %v1612
      %v2197 = vsel %vm2168, %v2164, %v1614
      %v2198 = vsel %vm2168, %v2165, %v1616
      %v2199 = vsel %vm2168, %v2166, %v1618
      %v2200 = vsel %vm2168, %v2167, %v1620
      %vm2201 = vcmask 195584
      %v2202 = vsel %vm2201, %v2169, %v1686
      %v2203 = vsel %vm2201, %v2170, %v1688
      %v2204 = vsel %vm2201, %v2171, %v1690
      %v2205 = vsel %vm2201, %v2172, %v1692
      %v2206 = vsel %vm2201, %v2173, %v1694
      %v2207 = vsel %vm2201, %v2174, %v1696
      %v2208 = vsel %vm2201, %v2175, %v1698
      %v2209 = vsel %vm2201, %v2176, %v1700
      %v2210 = vsel %vm2201, %v2177, %v1702
      %v2211 = vsel %vm2201, %v2178, %v1704
      %v2212 = vsel %vm2201, %v2179, %v1706
      %v2213 = vsel %vm2201, %v2180, %v1708
      %v2214 = vsel %vm2201, %v2181, %v1710
      %v2215 = vsel %vm2201, %v2182, %v1712
      %v2216 = vsel %vm2201, %v2183, %v1714
      %v2217 = vsel %vm2201, %v2184, %v1716
      %v2218 = vsel %vm2201, %v2185, %v1718
      %v2219 = vsel %vm2201, %v2186, %v1720
      %v2220 = vsel %vm2201, %v2187, %v1722
      %v2221 = vsel %vm2201, %v2188, %v1724
      %v2222 = vsel %vm2201, %v2189, %v1726
      %v2223 = vsel %vm2201, %v2190, %v1728
      %v2224 = vsel %vm2201, %v2191, %v1730
      %v2225 = vsel %vm2201, %v2192, %v1732
      %v2226 = vsel %vm2201, %v2193, %v1734
      %v2227 = vsel %vm2201, %v2194, %v1736
      %v2228 = vsel %vm2201, %v2195, %v1738
      %v2229 = vsel %vm2201, %v2196, %v1740
      %v2230 = vsel %vm2201, %v2197, %v1742
      %v2231 = vsel %vm2201, %v2198, %v1744
      %v2232 = vsel %vm2201, %v2199, %v1746
      %v2233 = vsel %vm2201, %v2200, %v1748
      %vm2234 = vcmask 228352
      %v2235 = vsel %vm2234, %v2202, %v1814
      %v2236 = vsel %vm2234, %v2203, %v1816
      %v2237 = vsel %vm2234, %v2204, %v1818
      %v2238 = vsel %vm2234, %v2205, %v1820
      %v2239 = vsel %vm2234, %v2206, %v1822
      %v2240 = vsel %vm2234, %v2207, %v1824
      %v2241 = vsel %vm2234, %v2208, %v1826
      %v2242 = vsel %vm2234, %v2209, %v1828
      %v2243 = vsel %vm2234, %v2210, %v1830
      %v2244 = vsel %vm2234, %v2211, %v1832
      %v2245 = vsel %vm2234, %v2212, %v1834
      %v2246 = vsel %vm2234, %v2213, %v1836
      %v2247 = vsel %vm2234, %v2214, %v1838
      %v2248 = vsel %vm2234, %v2215, %v1840
      %v2249 = vsel %vm2234, %v2216, %v1842
      %v2250 = vsel %vm2234, %v2217, %v1844
      %v2251 = vsel %vm2234, %v2218, %v1846
      %v2252 = vsel %vm2234, %v2219, %v1848
      %v2253 = vsel %vm2234, %v2220, %v1850
      %v2254 = vsel %vm2234, %v2221, %v1852
      %v2255 = vsel %vm2234, %v2222, %v1854
      %v2256 = vsel %vm2234, %v2223, %v1856
      %v2257 = vsel %vm2234, %v2224, %v1858
      %v2258 = vsel %vm2234, %v2225, %v1860
      %v2259 = vsel %vm2234, %v2226, %v1862
      %v2260 = vsel %vm2234, %v2227, %v1864
      %v2261 = vsel %vm2234, %v2228, %v1866
      %v2262 = vsel %vm2234, %v2229, %v1868
      %v2263 = vsel %vm2234, %v2230, %v1870
      %v2264 = vsel %vm2234, %v2231, %v1872
      %v2265 = vsel %vm2234, %v2232, %v1874
      %v2266 = vsel %vm2234, %v2233, %v1876
      %v2267 = vsel %vm634, %v2235, %v1942
      %v2268 = vsel %vm634, %v2236, %v1944
      %v2269 = vsel %vm634, %v2237, %v1946
      %v2270 = vsel %vm634, %v2238, %v1948
      %v2271 = vsel %vm634, %v2239, %v1950
      %v2272 = vsel %vm634, %v2240, %v1952
      %v2273 = vsel %vm634, %v2241, %v1954
      %v2274 = vsel %vm634, %v2242, %v1956
      %v2275 = vsel %vm634, %v2243, %v1958
      %v2276 = vsel %vm634, %v2244, %v1960
      %v2277 = vsel %vm634, %v2245, %v1962
      %v2278 = vsel %vm634, %v2246, %v1964
      %v2279 = vsel %vm634, %v2247, %v1966
      %v2280 = vsel %vm634, %v2248, %v1968
      %v2281 = vsel %vm634, %v2249, %v1970
      %v2282 = vsel %vm634, %v2250, %v1972
      %v2283 = vsel %vm634, %v2251, %v1974
      %v2284 = vsel %vm634, %v2252, %v1976
      %v2285 = vsel %vm634, %v2253, %v1978
      %v2286 = vsel %vm634, %v2254, %v1980
      %v2287 = vsel %vm634, %v2255, %v1982
      %v2288 = vsel %vm634, %v2256, %v1984
      %v2289 = vsel %vm634, %v2257, %v1986
      %v2290 = vsel %vm634, %v2258, %v1988
      %v2291 = vsel %vm634, %v2259, %v1990
      %v2292 = vsel %vm634, %v2260, %v1992
      %v2293 = vsel %vm634, %v2261, %v1994
      %v2294 = vsel %vm634, %v2262, %v1996
      %v2295 = vsel %vm634, %v2263, %v1998
      %v2296 = vsel %vm634, %v2264, %v2000
      %v2297 = vsel %vm634, %v2265, %v2002
      %v2298 = vsel %vm634, %v2266, %v2004
      %v2299 = vpack.c.bf16 %v2268, %v2267
      %v2300 = vpack.c.bf16 %v2270, %v2269
      %v2301 = vpack.c.bf16 %v2272, %v2271
      %v2302 = vpack.c.bf16 %v2274, %v2273
      %v2303 = vpack.c.bf16 %v2276, %v2275
      %v2304 = vpack.c.bf16 %v2278, %v2277
      %v2305 = vpack.c.bf16 %v2280, %v2279
      %v2306 = vpack.c.bf16 %v2282, %v2281
      %v2307 = vpack.c.bf16 %v2284, %v2283
      %v2308 = vpack.c.bf16 %v2286, %v2285
      %v2309 = vpack.c.bf16 %v2288, %v2287
      %v2310 = vpack.c.bf16 %v2290, %v2289
      %v2311 = vpack.c.bf16 %v2292, %v2291
      %v2312 = vpack.c.bf16 %v2294, %v2293
      %v2313 = vpack.c.bf16 %v2296, %v2295
      %v2314 = vpack.c.bf16 %v2298, %v2297
      %v2315 = vld [vmem:[%s1] sm:$0xf]
      %v2316 = vld [vmem:[%s1 + $0x4] sm:$0xf]
      %v2317 = vld [vmem:[%s1 + $0x8] sm:$0xf]
      %v2318 = vld [vmem:[%s1 + $0xc] sm:$0xf]
      %v2319 = vld [vmem:[%s1 + $0x10] sm:$0x3]
      %v2320 = vld [vmem:[%s2] sm:$0x1]
      %v2322 = vlaneseq
      %v2323 = vshrl.u32 %v2322, 7
      %v2324 = vsub.s32 0, %v2323
      %v2325 = vrot.slane %v2320, %v2324
      %v2332 = vunpack.c.l.b16 %v2315
      %v2333 = vunpack.c.l.b16 %v2316
      %v2334 = vunpack.c.l.b16 %v2317
      %v2335 = vunpack.c.l.b16 %v2318
      %v2336 = vunpack.c.l.b16 %v2319
      %v2337 = vpack.c.b16 %v2333, %v2332
      %v2338 = vpack.c.b16 %v2335, %v2334
      %v2339 = vpack.c.b16 %v2336, %v2336
      %vm2342 = vcmask 293888
      %v2344 = vsel %vm2342, %v2299, 0
      %v2347 = vsel %vm2342, %v2300, 0
      %v2350 = vsel %vm2342, %v2301, 0
      %v2353 = vsel %vm2342, %v2302, 0
      %v2356 = vsel %vm2342, %v2303, 0
      %v2359 = vsel %vm2342, %v2304, 0
      %v2362 = vsel %vm2342, %v2305, 0
      %v2365 = vsel %vm2342, %v2306, 0
      %v2368 = vsel %vm2342, %v2307, 0
      %v2371 = vsel %vm2342, %v2308, 0
      %v2374 = vsel %vm2342, %v2309, 0
      %v2377 = vsel %vm2342, %v2310, 0
      %v2380 = vsel %vm2342, %v2311, 0
      %v2383 = vsel %vm2342, %v2312, 0
      %v2386 = vsel %vm2342, %v2313, 0
      %v2389 = vsel %vm2342, %v2314, 0
      %vm2391 = vcmask 1041408
      %v2393 = vsel %vm2391, %v2339, 0
      %2395 = vmatprep.subr.bf16.mxu0 0
      %2396 = vmatpush1.bf16.msra.mxu0 %v2337
      %2397 = vmatprep.subr.bf16.mxu0 0
      %2398 = vmatpush1.bf16.msra.mxu0 %v2338
      %2399 = vmatprep.subr.bf16.mxu0 0
      %2400 = vmatpush1.bf16.msra.mxu0 %v2393
      %2401 = vmatprep.subr.bf16.mxu0 0
      %2402 = vmatpush1.bf16.msra.mxu0 0
      %2403 = vmatprep.subr.bf16.mxu0 0
      %2404 = vmatpush1.bf16.msra.mxu0 0
      %2405 = vmatprep.subr.bf16.mxu0 0
      %2406 = vmatpush1.bf16.msra.mxu0 0
      %2407 = vmatprep.subr.bf16.mxu0 0
      %2408 = vmatpush1.bf16.msra.mxu0 0
      %2409 = vmatprep.subr.bf16.mxu0 0
      %2410 = vmatpush1.bf16.msra.mxu0 0
      %2411 = vmatprep.subr.bf16.mxu0 0
      %2412 = vmatpush1.bf16.msra.mxu0 0
      %2413 = vmatprep.subr.bf16.mxu0 0
      %2414 = vmatpush1.bf16.msra.mxu0 0
      %2415 = vmatprep.subr.bf16.mxu0 0
      %2416 = vmatpush1.bf16.msra.mxu0 0
      %2417 = vmatprep.subr.bf16.mxu0 0
      %2418 = vmatpush1.bf16.msra.mxu0 0
      %2419 = vmatprep.subr.bf16.mxu0 0
      %2420 = vmatpush1.bf16.msra.mxu0 0
      %2421 = vmatprep.subr.bf16.mxu0 0
      %2422 = vmatpush1.bf16.msra.mxu0 0
      %2423 = vmatprep.subr.bf16.mxu0 0
      %2424 = vmatpush1.bf16.msra.mxu0 0
      %2425 = vmatprep.subr.bf16.mxu0 0
      %2426 = vmatpush1.bf16.msra.mxu0 0
      %2427 = vmatprep.mubr.bf16.mxu0 0
      %2428 = vmatmul.mubr.bf16.gmra.mrb[0].mxu0 %v2344
      %v2429 = vpop.f32.mrb[0].mxu0
      %v2430 = vadd.f32 %v2325, %v2429
      %v2431 = vpop.f32.mrb[0].mxu0
      %v2432 = vpop.f32.mrb[0].mxu0
      %v2433 = vadd.f32 %v2325, %v2432
      %v2434 = vpop.f32.mrb[0].mxu0
      %2435 = vmatprep.mubr.bf16.mxu0 0
      %2436 = vmatmul.mubr.bf16.gmra.mrb[0].mxu0 %v2347
      %v2437 = vpop.f32.mrb[0].mxu0
      %v2438 = vadd.f32 %v2325, %v2437
      %v2439 = vpop.f32.mrb[0].mxu0
      %v2440 = vpop.f32.mrb[0].mxu0
      %v2441 = vadd.f32 %v2325, %v2440
      %v2442 = vpop.f32.mrb[0].mxu0
      %2443 = vmatprep.mubr.bf16.mxu0 0
      %2444 = vmatmul.mubr.bf16.gmra.mrb[0].mxu0 %v2350
      %v2445 = vpop.f32.mrb[0].mxu0
      %v2446 = vadd.f32 %v2325, %v2445
      %v2447 = vpop.f32.mrb[0].mxu0
      %v2448 = vpop.f32.mrb[0].mxu0
      %v2449 = vadd.f32 %v2325, %v2448
      %v2450 = vpop.f32.mrb[0].mxu0
      %2451 = vmatprep.mubr.bf16.mxu0 0
      %2452 = vmatmul.mubr.bf16.gmra.mrb[0].mxu0 %v2353
      %v2453 = vpop.f32.mrb[0].mxu0
      %v2454 = vadd.f32 %v2325, %v2453
      %v2455 = vpop.f32.mrb[0].mxu0
      %v2456 = vpop.f32.mrb[0].mxu0
      %v2457 = vadd.f32 %v2325, %v2456
      %v2458 = vpop.f32.mrb[0].mxu0
      %2459 = vmatprep.mubr.bf16.mxu0 0
      %2460 = vmatmul.mubr.bf16.gmra.mrb[0].mxu0 %v2356
      %v2461 = vpop.f32.mrb[0].mxu0
      %v2462 = vadd.f32 %v2325, %v2461
      %v2463 = vpop.f32.mrb[0].mxu0
      %v2464 = vpop.f32.mrb[0].mxu0
      %v2465 = vadd.f32 %v2325, %v2464
      %v2466 = vpop.f32.mrb[0].mxu0
      %2467 = vmatprep.mubr.bf16.mxu0 0
      %2468 = vmatmul.mubr.bf16.gmra.mrb[0].mxu0 %v2359
      %v2469 = vpop.f32.mrb[0].mxu0
      %v2470 = vadd.f32 %v2325, %v2469
      %v2471 = vpop.f32.mrb[0].mxu0
      %v2472 = vpop.f32.mrb[0].mxu0
      %v2473 = vadd.f32 %v2325, %v2472
      %v2474 = vpop.f32.mrb[0].mxu0
      %2475 = vmatprep.mubr.bf16.mxu0 0
      %2476 = vmatmul.mubr.bf16.gmra.mrb[0].mxu0 %v2362
      %v2477 = vpop.f32.mrb[0].mxu0
      %v2478 = vadd.f32 %v2325, %v2477
      %v2479 = vpop.f32.mrb[0].mxu0
      %v2480 = vpop.f32.mrb[0].mxu0
      %v2481 = vadd.f32 %v2325, %v2480
      %v2482 = vpop.f32.mrb[0].mxu0
      %2483 = vmatprep.mubr.bf16.mxu0 0
      %2484 = vmatmul.mubr.bf16.gmra.mrb[0].mxu0 %v2365
      %v2485 = vpop.f32.mrb[0].mxu0
      %v2486 = vadd.f32 %v2325, %v2485
      %v2487 = vpop.f32.mrb[0].mxu0
      %v2488 = vpop.f32.mrb[0].mxu0
      %v2489 = vadd.f32 %v2325, %v2488
      %v2490 = vpop.f32.mrb[0].mxu0
      %2491 = vmatprep.mubr.bf16.mxu0 0
      %2492 = vmatmul.mubr.bf16.gmra.mrb[0].mxu0 %v2368
      %v2493 = vpop.f32.mrb[0].mxu0
      %v2494 = vadd.f32 %v2325, %v2493
      %v2495 = vpop.f32.mrb[0].mxu0
      %v2496 = vpop.f32.mrb[0].mxu0
      %v2497 = vadd.f32 %v2325, %v2496
      %v2498 = vpop.f32.mrb[0].mxu0
      %2499 = vmatprep.mubr.bf16.mxu0 0
      %2500 = vmatmul.mubr.bf16.gmra.mrb[0].mxu0 %v2371
      %v2501 = vpop.f32.mrb[0].mxu0
      %v2502 = vadd.f32 %v2325, %v2501
      %v2503 = vpop.f32.mrb[0].mxu0
      %v2504 = vpop.f32.mrb[0].mxu0
      %v2505 = vadd.f32 %v2325, %v2504
      %v2506 = vpop.f32.mrb[0].mxu0
      %2507 = vmatprep.mubr.bf16.mxu0 0
      %2508 = vmatmul.mubr.bf16.gmra.mrb[0].mxu0 %v2374
      %v2509 = vpop.f32.mrb[0].mxu0
      %v2510 = vadd.f32 %v2325, %v2509
      %v2511 = vpop.f32.mrb[0].mxu0
      %v2512 = vpop.f32.mrb[0].mxu0
      %v2513 = vadd.f32 %v2325, %v2512
      %v2514 = vpop.f32.mrb[0].mxu0
      %2515 = vmatprep.mubr.bf16.mxu0 0
      %2516 = vmatmul.mubr.bf16.gmra.mrb[0].mxu0 %v2377
      %v2517 = vpop.f32.mrb[0].mxu0
      %v2518 = vadd.f32 %v2325, %v2517
      %v2519 = vpop.f32.mrb[0].mxu0
      %v2520 = vpop.f32.mrb[0].mxu0
      %v2521 = vadd.f32 %v2325, %v2520
      %v2522 = vpop.f32.mrb[0].mxu0
      %2523 = vmatprep.mubr.bf16.mxu0 0
      %2524 = vmatmul.mubr.bf16.gmra.mrb[0].mxu0 %v2380
      %v2525 = vpop.f32.mrb[0].mxu0
      %v2526 = vadd.f32 %v2325, %v2525
      %v2527 = vpop.f32.mrb[0].mxu0
      %v2528 = vpop.f32.mrb[0].mxu0
      %v2529 = vadd.f32 %v2325, %v2528
      %v2530 = vpop.f32.mrb[0].mxu0
      %2531 = vmatprep.mubr.bf16.mxu0 0
      %2532 = vmatmul.mubr.bf16.gmra.mrb[0].mxu0 %v2383
      %v2533 = vpop.f32.mrb[0].mxu0
      %v2534 = vadd.f32 %v2325, %v2533
      %v2535 = vpop.f32.mrb[0].mxu0
      %v2536 = vpop.f32.mrb[0].mxu0
      %v2537 = vadd.f32 %v2325, %v2536
      %v2538 = vpop.f32.mrb[0].mxu0
      %2539 = vmatprep.mubr.bf16.mxu0 0
      %2540 = vmatmul.mubr.bf16.gmra.mrb[0].mxu0 %v2386
      %v2541 = vpop.f32.mrb[0].mxu0
      %v2542 = vadd.f32 %v2325, %v2541
      %v2543 = vpop.f32.mrb[0].mxu0
      %v2544 = vpop.f32.mrb[0].mxu0
      %v2545 = vadd.f32 %v2325, %v2544
      %v2546 = vpop.f32.mrb[0].mxu0
      %2547 = vmatprep.mubr.bf16.mxu0 0
      %2548 = vmatmul.mubr.bf16.gmra.mrb[0].mxu0 %v2389
      %v2549 = vpop.f32.mrb[0].mxu0
      %v2550 = vadd.f32 %v2325, %v2549
      %v2551 = vpop.f32.mrb[0].mxu0
      %v2552 = vpop.f32.mrb[0].mxu0
      %v2553 = vadd.f32 %v2325, %v2552
      %v2554 = vpop.f32.mrb[0].mxu0
      %2555 = vdwg.mxu0
      %v2556 = vmul.f32 %v2430, 0.2
      %v2557 = vmul.f32 %v2433, 0.2
      %v2558 = vmul.f32 %v2438, 0.2
      %v2559 = vmul.f32 %v2441, 0.2
      %v2560 = vmul.f32 %v2446, 0.2
      %v2561 = vmul.f32 %v2449, 0.2
      %v2562 = vmul.f32 %v2454, 0.2
      %v2563 = vmul.f32 %v2457, 0.2
      %v2564 = vmul.f32 %v2462, 0.2
      %v2565 = vmul.f32 %v2465, 0.2
      %v2566 = vmul.f32 %v2470, 0.2
      %v2567 = vmul.f32 %v2473, 0.2
      %v2568 = vmul.f32 %v2478, 0.2
      %v2569 = vmul.f32 %v2481, 0.2
      %v2570 = vmul.f32 %v2486, 0.2
      %v2571 = vmul.f32 %v2489, 0.2
      %v2572 = vmul.f32 %v2494, 0.2
      %v2573 = vmul.f32 %v2497, 0.2
      %v2574 = vmul.f32 %v2502, 0.2
      %v2575 = vmul.f32 %v2505, 0.2
      %v2576 = vmul.f32 %v2510, 0.2
      %v2577 = vmul.f32 %v2513, 0.2
      %v2578 = vmul.f32 %v2518, 0.2
      %v2579 = vmul.f32 %v2521, 0.2
      %v2580 = vmul.f32 %v2526, 0.2
      %v2581 = vmul.f32 %v2529, 0.2
      %v2582 = vmul.f32 %v2534, 0.2
      %v2583 = vmul.f32 %v2537, 0.2
      %v2584 = vmul.f32 %v2542, 0.2
      %v2585 = vmul.f32 %v2545, 0.2
      %v2586 = vmul.f32 %v2550, 0.2
      %v2587 = vmul.f32 %v2553, 0.2
      %v2588 = vmax.f32 %v2430, %v2556
      %v2589 = vmax.f32 %v2433, %v2557
      %v2590 = vmax.f32 %v2438, %v2558
      %v2591 = vmax.f32 %v2441, %v2559
      %v2592 = vmax.f32 %v2446, %v2560
      %v2593 = vmax.f32 %v2449, %v2561
      %v2594 = vmax.f32 %v2454, %v2562
      %v2595 = vmax.f32 %v2457, %v2563
      %v2596 = vmax.f32 %v2462, %v2564
      %v2597 = vmax.f32 %v2465, %v2565
      %v2598 = vmax.f32 %v2470, %v2566
      %v2599 = vmax.f32 %v2473, %v2567
      %v2600 = vmax.f32 %v2478, %v2568
      %v2601 = vmax.f32 %v2481, %v2569
      %v2602 = vmax.f32 %v2486, %v2570
      %v2603 = vmax.f32 %v2489, %v2571
      %v2604 = vmax.f32 %v2494, %v2572
      %v2605 = vmax.f32 %v2497, %v2573
      %v2606 = vmax.f32 %v2502, %v2574
      %v2607 = vmax.f32 %v2505, %v2575
      %v2608 = vmax.f32 %v2510, %v2576
      %v2609 = vmax.f32 %v2513, %v2577
      %v2610 = vmax.f32 %v2518, %v2578
      %v2611 = vmax.f32 %v2521, %v2579
      %v2612 = vmax.f32 %v2526, %v2580
      %v2613 = vmax.f32 %v2529, %v2581
      %v2614 = vmax.f32 %v2534, %v2582
      %v2615 = vmax.f32 %v2537, %v2583
      %v2616 = vmax.f32 %v2542, %v2584
      %v2617 = vmax.f32 %v2545, %v2585
      %v2618 = vmax.f32 %v2550, %v2586
      %v2619 = vmax.f32 %v2553, %v2587
      %2620 = vst.msk [vmem:[#allocation2] sm:$0xff] %vm634, 0.0
      %2621 = vst.msk [vmem:[#allocation2 + $0x8] sm:$0xff] %vm634, 0.0
      %2622 = vst.msk [vmem:[#allocation2 + $0x10] sm:$0x3] %vm637, 0.0
      %2623 = vst.msk [vmem:[#allocation2 + $0x18] sm:$0xff] %vm634, 0.0
      %2624 = vst.msk [vmem:[#allocation2 + $0x20] sm:$0xff] %vm634, 0.0
      %2625 = vst.msk [vmem:[#allocation2 + $0x28] sm:$0x3] %vm637, 0.0
      %2626 = vst.msk [vmem:[#allocation2 + $0x30] sm:$0xff] %vm634, 0.0
      %2627 = vst.msk [vmem:[#allocation2 + $0x38] sm:$0xff] %vm634, 0.0
      %2628 = vst.msk [vmem:[#allocation2 + $0x40] sm:$0x3] %vm637, 0.0
      %2629 = vst.msk [vmem:[#allocation2 + $0x48] sm:$0xff] %vm634, 0.0
      %2630 = vst.msk [vmem:[#allocation2 + $0x50] sm:$0xff] %vm634, 0.0
      %2631 = vst.msk [vmem:[#allocation2 + $0x58] sm:$0x3] %vm637, 0.0
      %2632 = vst.msk [vmem:[#allocation2 + $0x60] sm:$0xff] %vm634, 0.0
      %2633 = vst.msk [vmem:[#allocation2 + $0x68] sm:$0xff] %vm634, 0.0
      %2634 = vst.msk [vmem:[#allocation2 + $0x70] sm:$0x3] %vm637, 0.0
      %2635 = vst.msk [vmem:[#allocation2 + $0x78] sm:$0xff] %vm634, 0.0
      %2636 = vst.msk [vmem:[#allocation2 + $0x80] sm:$0xff] %vm634, 0.0
      %2637 = vst.msk [vmem:[#allocation2 + $0x88] sm:$0x3] %vm637, 0.0
      %2638 = vst.msk [vmem:[#allocation2 + $0x90] sm:$0xff] %vm634, 0.0
      %2639 = vst.msk [vmem:[#allocation2 + $0x98] sm:$0xff] %vm634, 0.0
      %2640 = vst.msk [vmem:[#allocation2 + $0xa0] sm:$0x3] %vm637, 0.0
      %2641 = vst.msk [vmem:[#allocation2 + $0xa8] sm:$0xff] %vm634, 0.0
      %2642 = vst.msk [vmem:[#allocation2 + $0xb0] sm:$0xff] %vm634, 0.0
      %2643 = vst.msk [vmem:[#allocation2 + $0xb8] sm:$0x3] %vm637, 0.0
      %2644 = vst.msk [vmem:[#allocation2 + $0xc0] sm:$0xff] %vm634, 0.0
      %2645 = vst.msk [vmem:[#allocation2 + $0xc8] sm:$0xff] %vm634, 0.0
      %2646 = vst.msk [vmem:[#allocation2 + $0xd0] sm:$0x3] %vm637, 0.0
      %2647 = vst.msk [vmem:[#allocation2 + $0xd8] sm:$0xff] %vm634, 0.0
      %2648 = vst.msk [vmem:[#allocation2 + $0xe0] sm:$0xff] %vm634, 0.0
      %2649 = vst.msk [vmem:[#allocation2 + $0xe8] sm:$0x3] %vm637, 0.0
      %2650 = vst.msk [vmem:[#allocation2 + $0xf0] sm:$0xff] %vm634, 0.0
      %2651 = vst.msk [vmem:[#allocation2 + $0xf8] sm:$0xff] %vm634, 0.0
      %2652 = vst.msk [vmem:[#allocation2 + $0x100] sm:$0x3] %vm637, 0.0
      %2653 = vst.msk [vmem:[#allocation2 + $0x108] sm:$0xff] %vm634, 0.0
      %2654 = vst.msk [vmem:[#allocation2 + $0x110] sm:$0xff] %vm634, 0.0
      %2655 = vst.msk [vmem:[#allocation2 + $0x118] sm:$0x3] %vm637, 0.0
      %2656 = vst.msk [vmem:[#allocation2 + $0x120] sm:$0xff] %vm634, 0.0
      %2657 = vst.msk [vmem:[#allocation2 + $0x128] sm:$0xff] %vm634, 0.0
      %2658 = vst.msk [vmem:[#allocation2 + $0x130] sm:$0x3] %vm637, 0.0
      %2659 = vst.msk [vmem:[#allocation2 + $0x138] sm:$0xff] %vm634, 0.0
      %2660 = vst.msk [vmem:[#allocation2 + $0x140] sm:$0xff] %vm634, 0.0
      %2661 = vst.msk [vmem:[#allocation2 + $0x148] sm:$0x3] %vm637, 0.0
      %2662 = vst.msk [vmem:[#allocation2 + $0x150] sm:$0xff] %vm634, 0.0
      %2663 = vst.msk [vmem:[#allocation2 + $0x158] sm:$0xff] %vm634, 0.0
      %2664 = vst.msk [vmem:[#allocation2 + $0x160] sm:$0x3] %vm637, 0.0
      %2665 = vst.msk [vmem:[#allocation2 + $0x168] sm:$0xff] %vm634, 0.0
      %2666 = vst.msk [vmem:[#allocation2 + $0x170] sm:$0xff] %vm634, 0.0
      %2667 = vst.msk [vmem:[#allocation2 + $0x178] sm:$0x3] %vm637, 0.0
      %2668 = vst.msk [vmem:[#allocation2 + $0x180] sm:$0xff] %vm634, 0.0
      %2669 = vst.msk [vmem:[#allocation2 + $0x188] sm:$0xff] %vm634, 0.0
      %2670 = vst.msk [vmem:[#allocation2 + $0x190] sm:$0x3] %vm637, 0.0
      %2671 = vst.msk [vmem:[#allocation2 + $0x198] sm:$0xff] %vm634, 0.0
      %2672 = vst.msk [vmem:[#allocation2 + $0x1a0] sm:$0xff] %vm634, 0.0
      %2673 = vst.msk [vmem:[#allocation2 + $0x1a8] sm:$0x3] %vm637, 0.0
      %2674 = vst.msk [vmem:[%s690 + $0x1] sm:$0xff] %vm2069, %v2588
      %2675 = vst.msk [vmem:[%s690 + $0x9] sm:$0xff] %vm2069, %v2589
      %2676 = vst.msk [vmem:[%s690 + $0x19] sm:$0xff] %vm2069, %v2590
      %2677 = vst.msk [vmem:[%s690 + $0x21] sm:$0xff] %vm2069, %v2591
      %2678 = vst.msk [vmem:[%s690 + $0x31] sm:$0xff] %vm2069, %v2592
      %2679 = vst.msk [vmem:[%s690 + $0x39] sm:$0xff] %vm2069, %v2593
      %2680 = vst.msk [vmem:[%s690 + $0x49] sm:$0xff] %vm2069, %v2594
      %2681 = vst.msk [vmem:[%s690 + $0x51] sm:$0xff] %vm2069, %v2595
      %2682 = vst.msk [vmem:[%s690 + $0x61] sm:$0xff] %vm2069, %v2596
      %2683 = vst.msk [vmem:[%s690 + $0x69] sm:$0xff] %vm2069, %v2597
      %2684 = vst.msk [vmem:[%s690 + $0x79] sm:$0xff] %vm2069, %v2598
      %2685 = vst.msk [vmem:[%s690 + $0x81] sm:$0xff] %vm2069, %v2599
      %2686 = vst.msk [vmem:[%s690 + $0x91] sm:$0xff] %vm2069, %v2600
      %2687 = vst.msk [vmem:[%s690 + $0x99] sm:$0xff] %vm2069, %v2601
      %2688 = vst.msk [vmem:[%s690 + $0xa9] sm:$0xff] %vm2069, %v2602
      %2689 = vst.msk [vmem:[%s690 + $0xb1] sm:$0xff] %vm2069, %v2603
      %2690 = vst.msk [vmem:[%s690 + $0xc1] sm:$0xff] %vm2069, %v2604
      %2691 = vst.msk [vmem:[%s690 + $0xc9] sm:$0xff] %vm2069, %v2605
      %2692 = vst.msk [vmem:[%s690 + $0xd9] sm:$0xff] %vm2069, %v2606
      %2693 = vst.msk [vmem:[%s690 + $0xe1] sm:$0xff] %vm2069, %v2607
      %2694 = vst.msk [vmem:[%s690 + $0xf1] sm:$0xff] %vm2069, %v2608
      %2695 = vst.msk [vmem:[%s690 + $0xf9] sm:$0xff] %vm2069, %v2609
      %2696 = vst.msk [vmem:[%s690 + $0x109] sm:$0xff] %vm2069, %v2610
      %2697 = vst.msk [vmem:[%s690 + $0x111] sm:$0xff] %vm2069, %v2611
      %2698 = vst.msk [vmem:[%s690 + $0x121] sm:$0xff] %vm2069, %v2612
      %2699 = vst.msk [vmem:[%s690 + $0x129] sm:$0xff] %vm2069, %v2613
      %2700 = vst.msk [vmem:[%s690 + $0x139] sm:$0xff] %vm2069, %v2614
      %2701 = vst.msk [vmem:[%s690 + $0x141] sm:$0xff] %vm2069, %v2615
      %2702 = vst.msk [vmem:[%s690 + $0x151] sm:$0xff] %vm2069, %v2616
      %2703 = vst.msk [vmem:[%s690 + $0x159] sm:$0xff] %vm2069, %v2617
      %2704 = vst.msk [vmem:[%s690 + $0x169] sm:$0xff] %vm2069, %v2618
      %2705 = vst.msk [vmem:[%s690 + $0x171] sm:$0xff] %vm2069, %v2619
      %v2706 = vld [vmem:[#allocation2] sm:$0xff]
      %v2707 = vld [vmem:[#allocation2 + $0x8] sm:$0xff]
      %v2708 = vld [vmem:[#allocation2 + $0x10] sm:$0x3]
      %v2709 = vld [vmem:[#allocation2 + $0x18] sm:$0xff]
      %v2710 = vld [vmem:[#allocation2 + $0x20] sm:$0xff]
      %v2711 = vld [vmem:[#allocation2 + $0x28] sm:$0x3]
      %v2712 = vld [vmem:[#allocation2 + $0x30] sm:$0xff]
      %v2713 = vld [vmem:[#allocation2 + $0x38] sm:$0xff]
      %v2714 = vld [vmem:[#allocation2 + $0x40] sm:$0x3]
      %v2715 = vld [vmem:[#allocation2 + $0x48] sm:$0xff]
      %v2716 = vld [vmem:[#allocation2 + $0x50] sm:$0xff]
      %v2717 = vld [vmem:[#allocation2 + $0x58] sm:$0x3]
      %v2718 = vld [vmem:[#allocation2 + $0x60] sm:$0xff]
      %v2719 = vld [vmem:[#allocation2 + $0x68] sm:$0xff]
      %v2720 = vld [vmem:[#allocation2 + $0x70] sm:$0x3]
      %v2721 = vld [vmem:[#allocation2 + $0x78] sm:$0xff]
      %v2722 = vld [vmem:[#allocation2 + $0x80] sm:$0xff]
      %v2723 = vld [vmem:[#allocation2 + $0x88] sm:$0x3]
      %v2724 = vld [vmem:[#allocation2 + $0x90] sm:$0xff]
      %v2725 = vld [vmem:[#allocation2 + $0x98] sm:$0xff]
      %v2726 = vld [vmem:[#allocation2 + $0xa0] sm:$0x3]
      %v2727 = vld [vmem:[#allocation2 + $0xa8] sm:$0xff]
      %v2728 = vld [vmem:[#allocation2 + $0xb0] sm:$0xff]
      %v2729 = vld [vmem:[#allocation2 + $0xb8] sm:$0x3]
      %v2730 = vld [vmem:[#allocation2 + $0xc0] sm:$0xff]
      %v2731 = vld [vmem:[#allocation2 + $0xc8] sm:$0xff]
      %v2732 = vld [vmem:[#allocation2 + $0xd0] sm:$0x3]
      %v2733 = vld [vmem:[#allocation2 + $0xd8] sm:$0xff]
      %v2734 = vld [vmem:[#allocation2 + $0xe0] sm:$0xff]
      %v2735 = vld [vmem:[#allocation2 + $0xe8] sm:$0x3]
      %v2736 = vld [vmem:[#allocation2 + $0xf0] sm:$0xff]
      %v2737 = vld [vmem:[#allocation2 + $0xf8] sm:$0xff]
      %v2738 = vld [vmem:[#allocation2 + $0x100] sm:$0x3]
      %v2739 = vld [vmem:[#allocation2 + $0x108] sm:$0xff]
      %v2740 = vld [vmem:[#allocation2 + $0x110] sm:$0xff]
      %v2741 = vld [vmem:[#allocation2 + $0x118] sm:$0x3]
      %v2742 = vld [vmem:[#allocation2 + $0x120] sm:$0xff]
      %v2743 = vld [vmem:[#allocation2 + $0x128] sm:$0xff]
      %v2744 = vld [vmem:[#allocation2 + $0x130] sm:$0x3]
      %v2745 = vld [vmem:[#allocation2 + $0x138] sm:$0xff]
      %v2746 = vld [vmem:[#allocation2 + $0x140] sm:$0xff]
      %v2747 = vld [vmem:[#allocation2 + $0x148] sm:$0x3]
      %v2748 = vld [vmem:[#allocation2 + $0x150] sm:$0xff]
      %v2749 = vld [vmem:[#allocation2 + $0x158] sm:$0xff]
      %v2750 = vld [vmem:[#allocation2 + $0x160] sm:$0x3]
      %v2751 = vld [vmem:[#allocation2 + $0x168] sm:$0xff]
      %v2752 = vld [vmem:[#allocation2 + $0x170] sm:$0xff]
      %v2753 = vld [vmem:[#allocation2 + $0x178] sm:$0x3]
      %v2754 = vld [vmem:[#allocation2 + $0x180] sm:$0xff]
      %v2755 = vld [vmem:[#allocation2 + $0x188] sm:$0xff]
      %v2756 = vld [vmem:[#allocation2 + $0x190] sm:$0x3]
      %v2784 = vcombine.high %v2706, %v2706
      %v2786 = vunpack.c.l.s4 1983009808
      %v2787 = vunpack.c.0.s8 %v2786
      %v2788 = vlaneseq
      %v2789 = vshrl.u32 %v2788, 7
      %v2790 = vsub.s32 %v2787, %v2789
      %v2791 = vrot.slane %v2706, %v2790
      %v2793 = vunpack.c.l.s4 1983009808
      %v2794 = vunpack.c.0.s8 %v2793
      %v2795 = vlaneseq
      %v2796 = vshrl.u32 %v2795, 7
      %v2797 = vsub.s32 %v2794, %v2796
      %v2798 = vrot.slane %v2784, %v2797
      %v2799 = vcombine.high %v2791, %v2791
      %v2800 = vcombine.high %v2798, %v2798
      %v2801 = vcombine.high %v2707, %v2707
      %v2803 = vunpack.c.l.s4 1983009808
      %v2804 = vunpack.c.0.s8 %v2803
      %v2805 = vlaneseq
      %v2806 = vshrl.u32 %v2805, 7
      %v2807 = vsub.s32 %v2804, %v2806
      %v2808 = vrot.slane %v2707, %v2807
      %v2810 = vunpack.c.l.s4 1983009808
      %v2811 = vunpack.c.0.s8 %v2810
      %v2812 = vlaneseq
      %v2813 = vshrl.u32 %v2812, 7
      %v2814 = vsub.s32 %v2811, %v2813
      %v2815 = vrot.slane %v2801, %v2814
      %v2816 = vcombine.high %v2808, %v2808
      %v2817 = vcombine.high %v2815, %v2815
      %v2819 = vunpack.c.l.s4 1983009808
      %v2820 = vunpack.c.0.s8 %v2819
      %v2821 = vlaneseq
      %v2822 = vshrl.u32 %v2821, 7
      %v2823 = vsub.s32 %v2820, %v2822
      %v2824 = vrot.slane %v2708, %v2823
      %v2825 = vcombine.high %v2712, %v2712
      %v2827 = vunpack.c.l.s4 1983009808
      %v2828 = vunpack.c.0.s8 %v2827
      %v2829 = vlaneseq
      %v2830 = vshrl.u32 %v2829, 7
      %v2831 = vsub.s32 %v2828, %v2830
      %v2832 = vrot.slane %v2712, %v2831
      %v2834 = vunpack.c.l.s4 1983009808
      %v2835 = vunpack.c.0.s8 %v2834
      %v2836 = vlaneseq
      %v2837 = vshrl.u32 %v2836, 7
      %v2838 = vsub.s32 %v2835, %v2837
      %v2839 = vrot.slane %v2825, %v2838
      %v2840 = vcombine.high %v2832, %v2832
      %v2841 = vcombine.high %v2839, %v2839
      %v2842 = vcombine.high %v2713, %v2713
      %v2844 = vunpack.c.l.s4 1983009808
      %v2845 = vunpack.c.0.s8 %v2844
      %v2846 = vlaneseq
      %v2847 = vshrl.u32 %v2846, 7
      %v2848 = vsub.s32 %v2845, %v2847
      %v2849 = vrot.slane %v2713, %v2848
      %v2851 = vunpack.c.l.s4 1983009808
      %v2852 = vunpack.c.0.s8 %v2851
      %v2853 = vlaneseq
      %v2854 = vshrl.u32 %v2853, 7
      %v2855 = vsub.s32 %v2852, %v2854
      %v2856 = vrot.slane %v2842, %v2855
      %v2857 = vcombine.high %v2849, %v2849
      %v2858 = vcombine.high %v2856, %v2856
      %v2860 = vunpack.c.l.s4 1983009808
      %v2861 = vunpack.c.0.s8 %v2860
      %v2862 = vlaneseq
      %v2863 = vshrl.u32 %v2862, 7
      %v2864 = vsub.s32 %v2861, %v2863
      %v2865 = vrot.slane %v2714, %v2864
      %v2866 = vcombine.high %v2718, %v2718
      %v2868 = vunpack.c.l.s4 1983009808
      %v2869 = vunpack.c.0.s8 %v2868
      %v2870 = vlaneseq
      %v2871 = vshrl.u32 %v2870, 7
      %v2872 = vsub.s32 %v2869, %v2871
      %v2873 = vrot.slane %v2718, %v2872
      %v2875 = vunpack.c.l.s4 1983009808
      %v2876 = vunpack.c.0.s8 %v2875
      %v2877 = vlaneseq
      %v2878 = vshrl.u32 %v2877, 7
      %v2879 = vsub.s32 %v2876, %v2878
      %v2880 = vrot.slane %v2866, %v2879
      %v2881 = vcombine.high %v2873, %v2873
      %v2882 = vcombine.high %v2880, %v2880
      %v2883 = vcombine.high %v2719, %v2719
      %v2885 = vunpack.c.l.s4 1983009808
      %v2886 = vunpack.c.0.s8 %v2885
      %v2887 = vlaneseq
      %v2888 = vshrl.u32 %v2887, 7
      %v2889 = vsub.s32 %v2886, %v2888
      %v2890 = vrot.slane %v2719, %v2889
      %v2892 = vunpack.c.l.s4 1983009808
      %v2893 = vunpack.c.0.s8 %v2892
      %v2894 = vlaneseq
      %v2895 = vshrl.u32 %v2894, 7
      %v2896 = vsub.s32 %v2893, %v2895
      %v2897 = vrot.slane %v2883, %v2896
      %v2898 = vcombine.high %v2890, %v2890
      %v2899 = vcombine.high %v2897, %v2897
      %v2901 = vunpack.c.l.s4 1983009808
      %v2902 = vunpack.c.0.s8 %v2901
      %v2903 = vlaneseq
      %v2904 = vshrl.u32 %v2903, 7
      %v2905 = vsub.s32 %v2902, %v2904
      %v2906 = vrot.slane %v2720, %v2905
      %v2907 = vcombine.high %v2724, %v2724
      %v2909 = vunpack.c.l.s4 1983009808
      %v2910 = vunpack.c.0.s8 %v2909
      %v2911 = vlaneseq
      %v2912 = vshrl.u32 %v2911, 7
      %v2913 = vsub.s32 %v2910, %v2912
      %v2914 = vrot.slane %v2724, %v2913
      %v2916 = vunpack.c.l.s4 1983009808
      %v2917 = vunpack.c.0.s8 %v2916
      %v2918 = vlaneseq
      %v2919 = vshrl.u32 %v2918, 7
      %v2920 = vsub.s32 %v2917, %v2919
      %v2921 = vrot.slane %v2907, %v2920
      %v2922 = vcombine.high %v2914, %v2914
      %v2923 = vcombine.high %v2921, %v2921
      %v2924 = vcombine.high %v2725, %v2725
      %v2926 = vunpack.c.l.s4 1983009808
      %v2927 = vunpack.c.0.s8 %v2926
      %v2928 = vlaneseq
      %v2929 = vshrl.u32 %v2928, 7
      %v2930 = vsub.s32 %v2927, %v2929
      %v2931 = vrot.slane %v2725, %v2930
      %v2933 = vunpack.c.l.s4 1983009808
      %v2934 = vunpack.c.0.s8 %v2933
      %v2935 = vlaneseq
      %v2936 = vshrl.u32 %v2935, 7
      %v2937 = vsub.s32 %v2934, %v2936
      %v2938 = vrot.slane %v2924, %v2937
      %v2939 = vcombine.high %v2931, %v2931
      %v2940 = vcombine.high %v2938, %v2938
      %v2942 = vunpack.c.l.s4 1983009808
      %v2943 = vunpack.c.0.s8 %v2942
      %v2944 = vlaneseq
      %v2945 = vshrl.u32 %v2944, 7
      %v2946 = vsub.s32 %v2943, %v2945
      %v2947 = vrot.slane %v2726, %v2946
      %v2948 = vcombine.high %v2730, %v2730
      %v2950 = vunpack.c.l.s4 1983009808
      %v2951 = vunpack.c.0.s8 %v2950
      %v2952 = vlaneseq
      %v2953 = vshrl.u32 %v2952, 7
      %v2954 = vsub.s32 %v2951, %v2953
      %v2955 = vrot.slane %v2730, %v2954
      %v2957 = vunpack.c.l.s4 1983009808
      %v2958 = vunpack.c.0.s8 %v2957
      %v2959 = vlaneseq
      %v2960 = vshrl.u32 %v2959, 7
      %v2961 = vsub.s32 %v2958, %v2960
      %v2962 = vrot.slane %v2948, %v2961
      %v2963 = vcombine.high %v2955, %v2955
      %v2964 = vcombine.high %v2962, %v2962
      %v2965 = vcombine.high %v2731, %v2731
      %v2967 = vunpack.c.l.s4 1983009808
      %v2968 = vunpack.c.0.s8 %v2967
      %v2969 = vlaneseq
      %v2970 = vshrl.u32 %v2969, 7
      %v2971 = vsub.s32 %v2968, %v2970
      %v2972 = vrot.slane %v2731, %v2971
      %v2974 = vunpack.c.l.s4 1983009808
      %v2975 = vunpack.c.0.s8 %v2974
      %v2976 = vlaneseq
      %v2977 = vshrl.u32 %v2976, 7
      %v2978 = vsub.s32 %v2975, %v2977
      %v2979 = vrot.slane %v2965, %v2978
      %v2980 = vcombine.high %v2972, %v2972
      %v2981 = vcombine.high %v2979, %v2979
      %v2983 = vunpack.c.l.s4 1983009808
      %v2984 = vunpack.c.0.s8 %v2983
      %v2985 = vlaneseq
      %v2986 = vshrl.u32 %v2985, 7
      %v2987 = vsub.s32 %v2984, %v2986
      %v2988 = vrot.slane %v2732, %v2987
      %v2989 = vcombine.high %v2736, %v2736
      %v2991 = vunpack.c.l.s4 1983009808
      %v2992 = vunpack.c.0.s8 %v2991
      %v2993 = vlaneseq
      %v2994 = vshrl.u32 %v2993, 7
      %v2995 = vsub.s32 %v2992, %v2994
      %v2996 = vrot.slane %v2736, %v2995
      %v2998 = vunpack.c.l.s4 1983009808
      %v2999 = vunpack.c.0.s8 %v2998
      %v3000 = vlaneseq
      %v3001 = vshrl.u32 %v3000, 7
      %v3002 = vsub.s32 %v2999, %v3001
      %v3003 = vrot.slane %v2989, %v3002
      %v3004 = vcombine.high %v2996, %v2996
      %v3005 = vcombine.high %v3003, %v3003
      %v3006 = vcombine.high %v2737, %v2737
      %v3008 = vunpack.c.l.s4 1983009808
      %v3009 = vunpack.c.0.s8 %v3008
      %v3010 = vlaneseq
      %v3011 = vshrl.u32 %v3010, 7
      %v3012 = vsub.s32 %v3009, %v3011
      %v3013 = vrot.slane %v2737, %v3012
      %v3015 = vunpack.c.l.s4 1983009808
      %v3016 = vunpack.c.0.s8 %v3015
      %v3017 = vlaneseq
      %v3018 = vshrl.u32 %v3017, 7
      %v3019 = vsub.s32 %v3016, %v3018
      %v3020 = vrot.slane %v3006, %v3019
      %v3021 = vcombine.high %v3013, %v3013
      %v3022 = vcombine.high %v3020, %v3020
      %v3024 = vunpack.c.l.s4 1983009808
      %v3025 = vunpack.c.0.s8 %v3024
      %v3026 = vlaneseq
      %v3027 = vshrl.u32 %v3026, 7
      %v3028 = vsub.s32 %v3025, %v3027
      %v3029 = vrot.slane %v2738, %v3028
      %v3030 = vcombine.high %v2742, %v2742
      %v3032 = vunpack.c.l.s4 1983009808
      %v3033 = vunpack.c.0.s8 %v3032
      %v3034 = vlaneseq
      %v3035 = vshrl.u32 %v3034, 7
      %v3036 = vsub.s32 %v3033, %v3035
      %v3037 = vrot.slane %v2742, %v3036
      %v3039 = vunpack.c.l.s4 1983009808
      %v3040 = vunpack.c.0.s8 %v3039
      %v3041 = vlaneseq
      %v3042 = vshrl.u32 %v3041, 7
      %v3043 = vsub.s32 %v3040, %v3042
      %v3044 = vrot.slane %v3030, %v3043
      %v3045 = vcombine.high %v3037, %v3037
      %v3046 = vcombine.high %v3044, %v3044
      %v3047 = vcombine.high %v2743, %v2743
      %v3049 = vunpack.c.l.s4 1983009808
      %v3050 = vunpack.c.0.s8 %v3049
      %v3051 = vlaneseq
      %v3052 = vshrl.u32 %v3051, 7
      %v3053 = vsub.s32 %v3050, %v3052
      %v3054 = vrot.slane %v2743, %v3053
      %v3056 = vunpack.c.l.s4 1983009808
      %v3057 = vunpack.c.0.s8 %v3056
      %v3058 = vlaneseq
      %v3059 = vshrl.u32 %v3058, 7
      %v3060 = vsub.s32 %v3057, %v3059
      %v3061 = vrot.slane %v3047, %v3060
      %v3062 = vcombine.high %v3054, %v3054
      %v3063 = vcombine.high %v3061, %v3061
      %v3065 = vunpack.c.l.s4 1983009808
      %v3066 = vunpack.c.0.s8 %v3065
      %v3067 = vlaneseq
      %v3068 = vshrl.u32 %v3067, 7
      %v3069 = vsub.s32 %v3066, %v3068
      %v3070 = vrot.slane %v2744, %v3069
      %v3071 = vcombine.high %v2748, %v2748
      %v3073 = vunpack.c.l.s4 1983009808
      %v3074 = vunpack.c.0.s8 %v3073
      %v3075 = vlaneseq
      %v3076 = vshrl.u32 %v3075, 7
      %v3077 = vsub.s32 %v3074, %v3076
      %v3078 = vrot.slane %v2748, %v3077
      %v3080 = vunpack.c.l.s4 1983009808
      %v3081 = vunpack.c.0.s8 %v3080
      %v3082 = vlaneseq
      %v3083 = vshrl.u32 %v3082, 7
      %v3084 = vsub.s32 %v3081, %v3083
      %v3085 = vrot.slane %v3071, %v3084
      %v3086 = vcombine.high %v3078, %v3078
      %v3087 = vcombine.high %v3085, %v3085
      %v3088 = vcombine.high %v2749, %v2749
      %v3090 = vunpack.c.l.s4 1983009808
      %v3091 = vunpack.c.0.s8 %v3090
      %v3092 = vlaneseq
      %v3093 = vshrl.u32 %v3092, 7
      %v3094 = vsub.s32 %v3091, %v3093
      %v3095 = vrot.slane %v2749, %v3094
      %v3097 = vunpack.c.l.s4 1983009808
      %v3098 = vunpack.c.0.s8 %v3097
      %v3099 = vlaneseq
      %v3100 = vshrl.u32 %v3099, 7
      %v3101 = vsub.s32 %v3098, %v3100
      %v3102 = vrot.slane %v3088, %v3101
      %v3103 = vcombine.high %v3095, %v3095
      %v3104 = vcombine.high %v3102, %v3102
      %v3106 = vunpack.c.l.s4 1983009808
      %v3107 = vunpack.c.0.s8 %v3106
      %v3108 = vlaneseq
      %v3109 = vshrl.u32 %v3108, 7
      %v3110 = vsub.s32 %v3107, %v3109
      %v3111 = vrot.slane %v2750, %v3110
      %v3112 = vcombine.high %v2754, %v2754
      %v3114 = vunpack.c.l.s4 1983009808
      %v3115 = vunpack.c.0.s8 %v3114
      %v3116 = vlaneseq
      %v3117 = vshrl.u32 %v3116, 7
      %v3118 = vsub.s32 %v3115, %v3117
      %v3119 = vrot.slane %v2754, %v3118
      %v3121 = vunpack.c.l.s4 1983009808
      %v3122 = vunpack.c.0.s8 %v3121
      %v3123 = vlaneseq
      %v3124 = vshrl.u32 %v3123, 7
      %v3125 = vsub.s32 %v3122, %v3124
      %v3126 = vrot.slane %v3112, %v3125
      %v3127 = vcombine.high %v3119, %v3119
      %v3128 = vcombine.high %v3126, %v3126
      %v3129 = vcombine.high %v2755, %v2755
      %v3131 = vunpack.c.l.s4 1983009808
      %v3132 = vunpack.c.0.s8 %v3131
      %v3133 = vlaneseq
      %v3134 = vshrl.u32 %v3133, 7
      %v3135 = vsub.s32 %v3132, %v3134
      %v3136 = vrot.slane %v2755, %v3135
      %v3138 = vunpack.c.l.s4 1983009808
      %v3139 = vunpack.c.0.s8 %v3138
      %v3140 = vlaneseq
      %v3141 = vshrl.u32 %v3140, 7
      %v3142 = vsub.s32 %v3139, %v3141
      %v3143 = vrot.slane %v3129, %v3142
      %v3144 = vcombine.high %v3136, %v3136
      %v3145 = vcombine.high %v3143, %v3143
      %v3147 = vunpack.c.l.s4 1983009808
      %v3148 = vunpack.c.0.s8 %v3147
      %v3149 = vlaneseq
      %v3150 = vshrl.u32 %v3149, 7
      %v3151 = vsub.s32 %v3148, %v3150
      %v3152 = vrot.slane %v2756, %v3151
      %v3177 = vcombine.high %v2709, %v2709
      %v3179 = vunpack.c.l.s4 1983009808
      %v3180 = vunpack.c.0.s8 %v3179
      %v3181 = vlaneseq
      %v3182 = vshrl.u32 %v3181, 7
      %v3183 = vsub.s32 %v3180, %v3182
      %v3184 = vrot.slane %v2709, %v3183
      %v3186 = vunpack.c.l.s4 1983009808
      %v3187 = vunpack.c.0.s8 %v3186
      %v3188 = vlaneseq
      %v3189 = vshrl.u32 %v3188, 7
      %v3190 = vsub.s32 %v3187, %v3189
      %v3191 = vrot.slane %v3177, %v3190
      %v3192 = vcombine.high %v3184, %v3184
      %v3193 = vcombine.high %v3191, %v3191
      %v3194 = vcombine.high %v2710, %v2710
      %v3196 = vunpack.c.l.s4 1983009808
      %v3197 = vunpack.c.0.s8 %v3196
      %v3198 = vlaneseq
      %v3199 = vshrl.u32 %v3198, 7
      %v3200 = vsub.s32 %v3197, %v3199
      %v3201 = vrot.slane %v2710, %v3200
      %v3203 = vunpack.c.l.s4 1983009808
      %v3204 = vunpack.c.0.s8 %v3203
      %v3205 = vlaneseq
      %v3206 = vshrl.u32 %v3205, 7
      %v3207 = vsub.s32 %v3204, %v3206
      %v3208 = vrot.slane %v3194, %v3207
      %v3209 = vcombine.high %v3201, %v3201
      %v3210 = vcombine.high %v3208, %v3208
      %v3212 = vunpack.c.l.s4 1983009808
      %v3213 = vunpack.c.0.s8 %v3212
      %v3214 = vlaneseq
      %v3215 = vshrl.u32 %v3214, 7
      %v3216 = vsub.s32 %v3213, %v3215
      %v3217 = vrot.slane %v2711, %v3216
      %v3218 = vcombine.high %v2715, %v2715
      %v3220 = vunpack.c.l.s4 1983009808
      %v3221 = vunpack.c.0.s8 %v3220
      %v3222 = vlaneseq
      %v3223 = vshrl.u32 %v3222, 7
      %v3224 = vsub.s32 %v3221, %v3223
      %v3225 = vrot.slane %v2715, %v3224
      %v3227 = vunpack.c.l.s4 1983009808
      %v3228 = vunpack.c.0.s8 %v3227
      %v3229 = vlaneseq
      %v3230 = vshrl.u32 %v3229, 7
      %v3231 = vsub.s32 %v3228, %v3230
      %v3232 = vrot.slane %v3218, %v3231
      %v3233 = vcombine.high %v3225, %v3225
      %v3234 = vcombine.high %v3232, %v3232
      %v3235 = vcombine.high %v2716, %v2716
      %v3237 = vunpack.c.l.s4 1983009808
      %v3238 = vunpack.c.0.s8 %v3237
      %v3239 = vlaneseq
      %v3240 = vshrl.u32 %v3239, 7
      %v3241 = vsub.s32 %v3238, %v3240
      %v3242 = vrot.slane %v2716, %v3241
      %v3244 = vunpack.c.l.s4 1983009808
      %v3245 = vunpack.c.0.s8 %v3244
      %v3246 = vlaneseq
      %v3247 = vshrl.u32 %v3246, 7
      %v3248 = vsub.s32 %v3245, %v3247
      %v3249 = vrot.slane %v3235, %v3248
      %v3250 = vcombine.high %v3242, %v3242
      %v3251 = vcombine.high %v3249, %v3249
      %v3253 = vunpack.c.l.s4 1983009808
      %v3254 = vunpack.c.0.s8 %v3253
      %v3255 = vlaneseq
      %v3256 = vshrl.u32 %v3255, 7
      %v3257 = vsub.s32 %v3254, %v3256
      %v3258 = vrot.slane %v2717, %v3257
      %v3259 = vcombine.high %v2721, %v2721
      %v3261 = vunpack.c.l.s4 1983009808
      %v3262 = vunpack.c.0.s8 %v3261
      %v3263 = vlaneseq
      %v3264 = vshrl.u32 %v3263, 7
      %v3265 = vsub.s32 %v3262, %v3264
      %v3266 = vrot.slane %v2721, %v3265
      %v3268 = vunpack.c.l.s4 1983009808
      %v3269 = vunpack.c.0.s8 %v3268
      %v3270 = vlaneseq
      %v3271 = vshrl.u32 %v3270, 7
      %v3272 = vsub.s32 %v3269, %v3271
      %v3273 = vrot.slane %v3259, %v3272
      %v3274 = vcombine.high %v3266, %v3266
      %v3275 = vcombine.high %v3273, %v3273
      %v3276 = vcombine.high %v2722, %v2722
      %v3278 = vunpack.c.l.s4 1983009808
      %v3279 = vunpack.c.0.s8 %v3278
      %v3280 = vlaneseq
      %v3281 = vshrl.u32 %v3280, 7
      %v3282 = vsub.s32 %v3279, %v3281
      %v3283 = vrot.slane %v2722, %v3282
      %v3285 = vunpack.c.l.s4 1983009808
      %v3286 = vunpack.c.0.s8 %v3285
      %v3287 = vlaneseq
      %v3288 = vshrl.u32 %v3287, 7
      %v3289 = vsub.s32 %v3286, %v3288
      %v3290 = vrot.slane %v3276, %v3289
      %v3291 = vcombine.high %v3283, %v3283
      %v3292 = vcombine.high %v3290, %v3290
      %v3294 = vunpack.c.l.s4 1983009808
      %v3295 = vunpack.c.0.s8 %v3294
      %v3296 = vlaneseq
      %v3297 = vshrl.u32 %v3296, 7
      %v3298 = vsub.s32 %v3295, %v3297
      %v3299 = vrot.slane %v2723, %v3298
      %v3300 = vcombine.high %v2727, %v2727
      %v3302 = vunpack.c.l.s4 1983009808
      %v3303 = vunpack.c.0.s8 %v3302
      %v3304 = vlaneseq
      %v3305 = vshrl.u32 %v3304, 7
      %v3306 = vsub.s32 %v3303, %v3305
      %v3307 = vrot.slane %v2727, %v3306
      %v3309 = vunpack.c.l.s4 1983009808
      %v3310 = vunpack.c.0.s8 %v3309
      %v3311 = vlaneseq
      %v3312 = vshrl.u32 %v3311, 7
      %v3313 = vsub.s32 %v3310, %v3312
      %v3314 = vrot.slane %v3300, %v3313
      %v3315 = vcombine.high %v3307, %v3307
      %v3316 = vcombine.high %v3314, %v3314
      %v3317 = vcombine.high %v2728, %v2728
      %v3319 = vunpack.c.l.s4 1983009808
      %v3320 = vunpack.c.0.s8 %v3319
      %v3321 = vlaneseq
      %v3322 = vshrl.u32 %v3321, 7
      %v3323 = vsub.s32 %v3320, %v3322
      %v3324 = vrot.slane %v2728, %v3323
      %v3326 = vunpack.c.l.s4 1983009808
      %v3327 = vunpack.c.0.s8 %v3326
      %v3328 = vlaneseq
      %v3329 = vshrl.u32 %v3328, 7
      %v3330 = vsub.s32 %v3327, %v3329
      %v3331 = vrot.slane %v3317, %v3330
      %v3332 = vcombine.high %v3324, %v3324
      %v3333 = vcombine.high %v3331, %v3331
      %v3335 = vunpack.c.l.s4 1983009808
      %v3336 = vunpack.c.0.s8 %v3335
      %v3337 = vlaneseq
      %v3338 = vshrl.u32 %v3337, 7
      %v3339 = vsub.s32 %v3336, %v3338
      %v3340 = vrot.slane %v2729, %v3339
      %v3341 = vcombine.high %v2733, %v2733
      %v3343 = vunpack.c.l.s4 1983009808
      %v3344 = vunpack.c.0.s8 %v3343
      %v3345 = vlaneseq
      %v3346 = vshrl.u32 %v3345, 7
      %v3347 = vsub.s32 %v3344, %v3346
      %v3348 = vrot.slane %v2733, %v3347
      %v3350 = vunpack.c.l.s4 1983009808
      %v3351 = vunpack.c.0.s8 %v3350
      %v3352 = vlaneseq
      %v3353 = vshrl.u32 %v3352, 7
      %v3354 = vsub.s32 %v3351, %v3353
      %v3355 = vrot.slane %v3341, %v3354
      %v3356 = vcombine.high %v3348, %v3348
      %v3357 = vcombine.high %v3355, %v3355
      %v3358 = vcombine.high %v2734, %v2734
      %v3360 = vunpack.c.l.s4 1983009808
      %v3361 = vunpack.c.0.s8 %v3360
      %v3362 = vlaneseq
      %v3363 = vshrl.u32 %v3362, 7
      %v3364 = vsub.s32 %v3361, %v3363
      %v3365 = vrot.slane %v2734, %v3364
      %v3367 = vunpack.c.l.s4 1983009808
      %v3368 = vunpack.c.0.s8 %v3367
      %v3369 = vlaneseq
      %v3370 = vshrl.u32 %v3369, 7
      %v3371 = vsub.s32 %v3368, %v3370
      %v3372 = vrot.slane %v3358, %v3371
      %v3373 = vcombine.high %v3365, %v3365
      %v3374 = vcombine.high %v3372, %v3372
      %v3376 = vunpack.c.l.s4 1983009808
      %v3377 = vunpack.c.0.s8 %v3376
      %v3378 = vlaneseq
      %v3379 = vshrl.u32 %v3378, 7
      %v3380 = vsub.s32 %v3377, %v3379
      %v3381 = vrot.slane %v2735, %v3380
      %v3382 = vcombine.high %v2739, %v2739
      %v3384 = vunpack.c.l.s4 1983009808
      %v3385 = vunpack.c.0.s8 %v3384
      %v3386 = vlaneseq
      %v3387 = vshrl.u32 %v3386, 7
      %v3388 = vsub.s32 %v3385, %v3387
      %v3389 = vrot.slane %v2739, %v3388
      %v3391 = vunpack.c.l.s4 1983009808
      %v3392 = vunpack.c.0.s8 %v3391
      %v3393 = vlaneseq
      %v3394 = vshrl.u32 %v3393, 7
      %v3395 = vsub.s32 %v3392, %v3394
      %v3396 = vrot.slane %v3382, %v3395
      %v3397 = vcombine.high %v3389, %v3389
      %v3398 = vcombine.high %v3396, %v3396
      %v3399 = vcombine.high %v2740, %v2740
      %v3401 = vunpack.c.l.s4 1983009808
      %v3402 = vunpack.c.0.s8 %v3401
      %v3403 = vlaneseq
      %v3404 = vshrl.u32 %v3403, 7
      %v3405 = vsub.s32 %v3402, %v3404
      %v3406 = vrot.slane %v2740, %v3405
      %v3408 = vunpack.c.l.s4 1983009808
      %v3409 = vunpack.c.0.s8 %v3408
      %v3410 = vlaneseq
      %v3411 = vshrl.u32 %v3410, 7
      %v3412 = vsub.s32 %v3409, %v3411
      %v3413 = vrot.slane %v3399, %v3412
      %v3414 = vcombine.high %v3406, %v3406
      %v3415 = vcombine.high %v3413, %v3413
      %v3417 = vunpack.c.l.s4 1983009808
      %v3418 = vunpack.c.0.s8 %v3417
      %v3419 = vlaneseq
      %v3420 = vshrl.u32 %v3419, 7
      %v3421 = vsub.s32 %v3418, %v3420
      %v3422 = vrot.slane %v2741, %v3421
      %v3423 = vcombine.high %v2745, %v2745
      %v3425 = vunpack.c.l.s4 1983009808
      %v3426 = vunpack.c.0.s8 %v3425
      %v3427 = vlaneseq
      %v3428 = vshrl.u32 %v3427, 7
      %v3429 = vsub.s32 %v3426, %v3428
      %v3430 = vrot.slane %v2745, %v3429
      %v3432 = vunpack.c.l.s4 1983009808
      %v3433 = vunpack.c.0.s8 %v3432
      %v3434 = vlaneseq
      %v3435 = vshrl.u32 %v3434, 7
      %v3436 = vsub.s32 %v3433, %v3435
      %v3437 = vrot.slane %v3423, %v3436
      %v3438 = vcombine.high %v3430, %v3430
      %v3439 = vcombine.high %v3437, %v3437
      %v3440 = vcombine.high %v2746, %v2746
      %v3442 = vunpack.c.l.s4 1983009808
      %v3443 = vunpack.c.0.s8 %v3442
      %v3444 = vlaneseq
      %v3445 = vshrl.u32 %v3444, 7
      %v3446 = vsub.s32 %v3443, %v3445
      %v3447 = vrot.slane %v2746, %v3446
      %v3449 = vunpack.c.l.s4 1983009808
      %v3450 = vunpack.c.0.s8 %v3449
      %v3451 = vlaneseq
      %v3452 = vshrl.u32 %v3451, 7
      %v3453 = vsub.s32 %v3450, %v3452
      %v3454 = vrot.slane %v3440, %v3453
      %v3455 = vcombine.high %v3447, %v3447
      %v3456 = vcombine.high %v3454, %v3454
      %v3458 = vunpack.c.l.s4 1983009808
      %v3459 = vunpack.c.0.s8 %v3458
      %v3460 = vlaneseq
      %v3461 = vshrl.u32 %v3460, 7
      %v3462 = vsub.s32 %v3459, %v3461
      %v3463 = vrot.slane %v2747, %v3462
      %v3464 = vcombine.high %v2751, %v2751
      %v3466 = vunpack.c.l.s4 1983009808
      %v3467 = vunpack.c.0.s8 %v3466
      %v3468 = vlaneseq
      %v3469 = vshrl.u32 %v3468, 7
      %v3470 = vsub.s32 %v3467, %v3469
      %v3471 = vrot.slane %v2751, %v3470
      %v3473 = vunpack.c.l.s4 1983009808
      %v3474 = vunpack.c.0.s8 %v3473
      %v3475 = vlaneseq
      %v3476 = vshrl.u32 %v3475, 7
      %v3477 = vsub.s32 %v3474, %v3476
      %v3478 = vrot.slane %v3464, %v3477
      %v3479 = vcombine.high %v3471, %v3471
      %v3480 = vcombine.high %v3478, %v3478
      %v3481 = vcombine.high %v2752, %v2752
      %v3483 = vunpack.c.l.s4 1983009808
      %v3484 = vunpack.c.0.s8 %v3483
      %v3485 = vlaneseq
      %v3486 = vshrl.u32 %v3485, 7
      %v3487 = vsub.s32 %v3484, %v3486
      %v3488 = vrot.slane %v2752, %v3487
      %v3490 = vunpack.c.l.s4 1983009808
      %v3491 = vunpack.c.0.s8 %v3490
      %v3492 = vlaneseq
      %v3493 = vshrl.u32 %v3492, 7
      %v3494 = vsub.s32 %v3491, %v3493
      %v3495 = vrot.slane %v3481, %v3494
      %v3496 = vcombine.high %v3488, %v3488
      %v3497 = vcombine.high %v3495, %v3495
      %v3499 = vunpack.c.l.s4 1983009808
      %v3500 = vunpack.c.0.s8 %v3499
      %v3501 = vlaneseq
      %v3502 = vshrl.u32 %v3501, 7
      %v3503 = vsub.s32 %v3500, %v3502
      %v3504 = vrot.slane %v2753, %v3503
      %v3505 = vlaneseq
      %v3506 = vshrl.u32 %v3505, 7
      %v3507 = vsub.s32 0, %v3506
      %v3508 = vrot.slane %v2791, %v3507
      %v3509 = vlaneseq
      %v3510 = vshrl.u32 %v3509, 7
      %v3511 = vsub.s32 0, %v3510
      %v3512 = vrot.slane %v2799, %v3511
      %v3513 = vlaneseq
      %v3514 = vshrl.u32 %v3513, 7
      %v3515 = vsub.s32 0, %v3514
      %v3516 = vrot.slane %v2798, %v3515
      %v3517 = vlaneseq
      %v3518 = vshrl.u32 %v3517, 7
      %v3519 = vsub.s32 0, %v3518
      %v3520 = vrot.slane %v2800, %v3519
      %v3521 = vlaneseq
      %v3522 = vshrl.u32 %v3521, 7
      %v3523 = vsub.s32 0, %v3522
      %v3524 = vrot.slane %v2808, %v3523
      %v3525 = vlaneseq
      %v3526 = vshrl.u32 %v3525, 7
      %v3527 = vsub.s32 0, %v3526
      %v3528 = vrot.slane %v2816, %v3527
      %v3529 = vlaneseq
      %v3530 = vshrl.u32 %v3529, 7
      %v3531 = vsub.s32 0, %v3530
      %v3532 = vrot.slane %v2815, %v3531
      %v3533 = vlaneseq
      %v3534 = vshrl.u32 %v3533, 7
      %v3535 = vsub.s32 0, %v3534
      %v3536 = vrot.slane %v2817, %v3535
      %v3537 = vlaneseq
      %v3538 = vshrl.u32 %v3537, 7
      %v3539 = vsub.s32 0, %v3538
      %v3540 = vrot.slane %v2832, %v3539
      %v3541 = vlaneseq
      %v3542 = vshrl.u32 %v3541, 7
      %v3543 = vsub.s32 0, %v3542
      %v3544 = vrot.slane %v2840, %v3543
      %v3545 = vlaneseq
      %v3546 = vshrl.u32 %v3545, 7
      %v3547 = vsub.s32 0, %v3546
      %v3548 = vrot.slane %v2839, %v3547
      %v3549 = vlaneseq
      %v3550 = vshrl.u32 %v3549, 7
      %v3551 = vsub.s32 0, %v3550
      %v3552 = vrot.slane %v2841, %v3551
      %v3553 = vlaneseq
      %v3554 = vshrl.u32 %v3553, 7
      %v3555 = vsub.s32 0, %v3554
      %v3556 = vrot.slane %v2849, %v3555
      %v3557 = vlaneseq
      %v3558 = vshrl.u32 %v3557, 7
      %v3559 = vsub.s32 0, %v3558
      %v3560 = vrot.slane %v2857, %v3559
      %v3561 = vlaneseq
      %v3562 = vshrl.u32 %v3561, 7
      %v3563 = vsub.s32 0, %v3562
      %v3564 = vrot.slane %v2856, %v3563
      %v3565 = vlaneseq
      %v3566 = vshrl.u32 %v3565, 7
      %v3567 = vsub.s32 0, %v3566
      %v3568 = vrot.slane %v2858, %v3567
      %v3569 = vlaneseq
      %v3570 = vshrl.u32 %v3569, 7
      %v3571 = vsub.s32 0, %v3570
      %v3572 = vrot.slane %v2873, %v3571
      %v3573 = vlaneseq
      %v3574 = vshrl.u32 %v3573, 7
      %v3575 = vsub.s32 0, %v3574
      %v3576 = vrot.slane %v2881, %v3575
      %v3577 = vlaneseq
      %v3578 = vshrl.u32 %v3577, 7
      %v3579 = vsub.s32 0, %v3578
      %v3580 = vrot.slane %v2880, %v3579
      %v3581 = vlaneseq
      %v3582 = vshrl.u32 %v3581, 7
      %v3583 = vsub.s32 0, %v3582
      %v3584 = vrot.slane %v2882, %v3583
      %v3585 = vlaneseq
      %v3586 = vshrl.u32 %v3585, 7
      %v3587 = vsub.s32 0, %v3586
      %v3588 = vrot.slane %v2890, %v3587
      %v3589 = vlaneseq
      %v3590 = vshrl.u32 %v3589, 7
      %v3591 = vsub.s32 0, %v3590
      %v3592 = vrot.slane %v2898, %v3591
      %v3593 = vlaneseq
      %v3594 = vshrl.u32 %v3593, 7
      %v3595 = vsub.s32 0, %v3594
      %v3596 = vrot.slane %v2897, %v3595
      %v3597 = vlaneseq
      %v3598 = vshrl.u32 %v3597, 7
      %v3599 = vsub.s32 0, %v3598
      %v3600 = vrot.slane %v2899, %v3599
      %v3601 = vlaneseq
      %v3602 = vshrl.u32 %v3601, 7
      %v3603 = vsub.s32 0, %v3602
      %v3604 = vrot.slane %v2914, %v3603
      %v3605 = vlaneseq
      %v3606 = vshrl.u32 %v3605, 7
      %v3607 = vsub.s32 0, %v3606
      %v3608 = vrot.slane %v2922, %v3607
      %v3609 = vlaneseq
      %v3610 = vshrl.u32 %v3609, 7
      %v3611 = vsub.s32 0, %v3610
      %v3612 = vrot.slane %v2921, %v3611
      %v3613 = vlaneseq
      %v3614 = vshrl.u32 %v3613, 7
      %v3615 = vsub.s32 0, %v3614
      %v3616 = vrot.slane %v2923, %v3615
      %v3617 = vlaneseq
      %v3618 = vshrl.u32 %v3617, 7
      %v3619 = vsub.s32 0, %v3618
      %v3620 = vrot.slane %v2931, %v3619
      %v3621 = vlaneseq
      %v3622 = vshrl.u32 %v3621, 7
      %v3623 = vsub.s32 0, %v3622
      %v3624 = vrot.slane %v2939, %v3623
      %v3625 = vlaneseq
      %v3626 = vshrl.u32 %v3625, 7
      %v3627 = vsub.s32 0, %v3626
      %v3628 = vrot.slane %v2938, %v3627
      %v3629 = vlaneseq
      %v3630 = vshrl.u32 %v3629, 7
      %v3631 = vsub.s32 0, %v3630
      %v3632 = vrot.slane %v2940, %v3631
      %v3633 = vlaneseq
      %v3634 = vshrl.u32 %v3633, 7
      %v3635 = vsub.s32 0, %v3634
      %v3636 = vrot.slane %v2955, %v3635
      %v3637 = vlaneseq
      %v3638 = vshrl.u32 %v3637, 7
      %v3639 = vsub.s32 0, %v3638
      %v3640 = vrot.slane %v2963, %v3639
      %v3641 = vlaneseq
      %v3642 = vshrl.u32 %v3641, 7
      %v3643 = vsub.s32 0, %v3642
      %v3644 = vrot.slane %v2962, %v3643
      %v3645 = vlaneseq
      %v3646 = vshrl.u32 %v3645, 7
      %v3647 = vsub.s32 0, %v3646
      %v3648 = vrot.slane %v2964, %v3647
      %v3649 = vlaneseq
      %v3650 = vshrl.u32 %v3649, 7
      %v3651 = vsub.s32 0, %v3650
      %v3652 = vrot.slane %v2972, %v3651
      %v3653 = vlaneseq
      %v3654 = vshrl.u32 %v3653, 7
      %v3655 = vsub.s32 0, %v3654
      %v3656 = vrot.slane %v2980, %v3655
      %v3657 = vlaneseq
      %v3658 = vshrl.u32 %v3657, 7
      %v3659 = vsub.s32 0, %v3658
      %v3660 = vrot.slane %v2979, %v3659
      %v3661 = vlaneseq
      %v3662 = vshrl.u32 %v3661, 7
      %v3663 = vsub.s32 0, %v3662
      %v3664 = vrot.slane %v2981, %v3663
      %v3665 = vlaneseq
      %v3666 = vshrl.u32 %v3665, 7
      %v3667 = vsub.s32 0, %v3666
      %v3668 = vrot.slane %v2996, %v3667
      %v3669 = vlaneseq
      %v3670 = vshrl.u32 %v3669, 7
      %v3671 = vsub.s32 0, %v3670
      %v3672 = vrot.slane %v3004, %v3671
      %v3673 = vlaneseq
      %v3674 = vshrl.u32 %v3673, 7
      %v3675 = vsub.s32 0, %v3674
      %v3676 = vrot.slane %v3003, %v3675
      %v3677 = vlaneseq
      %v3678 = vshrl.u32 %v3677, 7
      %v3679 = vsub.s32 0, %v3678
      %v3680 = vrot.slane %v3005, %v3679
      %v3681 = vlaneseq
      %v3682 = vshrl.u32 %v3681, 7
      %v3683 = vsub.s32 0, %v3682
      %v3684 = vrot.slane %v3013, %v3683
      %v3685 = vlaneseq
      %v3686 = vshrl.u32 %v3685, 7
      %v3687 = vsub.s32 0, %v3686
      %v3688 = vrot.slane %v3021, %v3687
      %v3689 = vlaneseq
      %v3690 = vshrl.u32 %v3689, 7
      %v3691 = vsub.s32 0, %v3690
      %v3692 = vrot.slane %v3020, %v3691
      %v3693 = vlaneseq
      %v3694 = vshrl.u32 %v3693, 7
      %v3695 = vsub.s32 0, %v3694
      %v3696 = vrot.slane %v3022, %v3695
      %v3697 = vlaneseq
      %v3698 = vshrl.u32 %v3697, 7
      %v3699 = vsub.s32 0, %v3698
      %v3700 = vrot.slane %v3037, %v3699
      %v3701 = vlaneseq
      %v3702 = vshrl.u32 %v3701, 7
      %v3703 = vsub.s32 0, %v3702
      %v3704 = vrot.slane %v3045, %v3703
      %v3705 = vlaneseq
      %v3706 = vshrl.u32 %v3705, 7
      %v3707 = vsub.s32 0, %v3706
      %v3708 = vrot.slane %v3044, %v3707
      %v3709 = vlaneseq
      %v3710 = vshrl.u32 %v3709, 7
      %v3711 = vsub.s32 0, %v3710
      %v3712 = vrot.slane %v3046, %v3711
      %v3713 = vlaneseq
      %v3714 = vshrl.u32 %v3713, 7
      %v3715 = vsub.s32 0, %v3714
      %v3716 = vrot.slane %v3054, %v3715
      %v3717 = vlaneseq
      %v3718 = vshrl.u32 %v3717, 7
      %v3719 = vsub.s32 0, %v3718
      %v3720 = vrot.slane %v3062, %v3719
      %v3721 = vlaneseq
      %v3722 = vshrl.u32 %v3721, 7
      %v3723 = vsub.s32 0, %v3722
      %v3724 = vrot.slane %v3061, %v3723
      %v3725 = vlaneseq
      %v3726 = vshrl.u32 %v3725, 7
      %v3727 = vsub.s32 0, %v3726
      %v3728 = vrot.slane %v3063, %v3727
      %v3729 = vlaneseq
      %v3730 = vshrl.u32 %v3729, 7
      %v3731 = vsub.s32 0, %v3730
      %v3732 = vrot.slane %v3078, %v3731
      %v3733 = vlaneseq
      %v3734 = vshrl.u32 %v3733, 7
      %v3735 = vsub.s32 0, %v3734
      %v3736 = vrot.slane %v3086, %v3735
      %v3737 = vlaneseq
      %v3738 = vshrl.u32 %v3737, 7
      %v3739 = vsub.s32 0, %v3738
      %v3740 = vrot.slane %v3085, %v3739
      %v3741 = vlaneseq
      %v3742 = vshrl.u32 %v3741, 7
      %v3743 = vsub.s32 0, %v3742
      %v3744 = vrot.slane %v3087, %v3743
      %v3745 = vlaneseq
      %v3746 = vshrl.u32 %v3745, 7
      %v3747 = vsub.s32 0, %v3746
      %v3748 = vrot.slane %v3095, %v3747
      %v3749 = vlaneseq
      %v3750 = vshrl.u32 %v3749, 7
      %v3751 = vsub.s32 0, %v3750
      %v3752 = vrot.slane %v3103, %v3751
      %v3753 = vlaneseq
      %v3754 = vshrl.u32 %v3753, 7
      %v3755 = vsub.s32 0, %v3754
      %v3756 = vrot.slane %v3102, %v3755
      %v3757 = vlaneseq
      %v3758 = vshrl.u32 %v3757, 7
      %v3759 = vsub.s32 0, %v3758
      %v3760 = vrot.slane %v3104, %v3759
      %vm3761 = vcmask 1041409
      %v3762 = vsel %vm3761, %v3512, %v3508
      %vm3763 = vcmask 1042434
      %v3764 = vsel %vm3763, %v3516, %v3762
      %vm3765 = vcmask 1043459
      %v3766 = vsel %vm3765, %v3520, %v3764
      %vm3767 = vcmask 1044484
      %v3768 = vsel %vm3767, %v3524, %v3766
      %vm3769 = vcmask 1045509
      %v3770 = vsel %vm3769, %v3528, %v3768
      %vm3771 = vcmask 1046534
      %v3772 = vsel %vm3771, %v3532, %v3770
      %vm3773 = vcmask 1047559
      %v3774 = vsel %vm3773, %v3536, %v3772
      %v3775 = vsel %vm3761, %v3544, %v3540
      %v3776 = vsel %vm3763, %v3548, %v3775
      %v3777 = vsel %vm3765, %v3552, %v3776
      %v3778 = vsel %vm3767, %v3556, %v3777
      %v3779 = vsel %vm3769, %v3560, %v3778
      %v3780 = vsel %vm3771, %v3564, %v3779
      %v3781 = vsel %vm3773, %v3568, %v3780
      %v3782 = vsel %vm3761, %v3576, %v3572
      %v3783 = vsel %vm3763, %v3580, %v3782
      %v3784 = vsel %vm3765, %v3584, %v3783
      %v3785 = vsel %vm3767, %v3588, %v3784
      %v3786 = vsel %vm3769, %v3592, %v3785
      %v3787 = vsel %vm3771, %v3596, %v3786
      %v3788 = vsel %vm3773, %v3600, %v3787
      %v3789 = vsel %vm3761, %v3608, %v3604
      %v3790 = vsel %vm3763, %v3612, %v3789
      %v3791 = vsel %vm3765, %v3616, %v3790
      %v3792 = vsel %vm3767, %v3620, %v3791
      %v3793 = vsel %vm3769, %v3624, %v3792
      %v3794 = vsel %vm3771, %v3628, %v3793
      %v3795 = vsel %vm3773, %v3632, %v3794
      %v3796 = vsel %vm3761, %v3640, %v3636
      %v3797 = vsel %vm3763, %v3644, %v3796
      %v3798 = vsel %vm3765, %v3648, %v3797
      %v3799 = vsel %vm3767, %v3652, %v3798
      %v3800 = vsel %vm3769, %v3656, %v3799
      %v3801 = vsel %vm3771, %v3660, %v3800
      %v3802 = vsel %vm3773, %v3664, %v3801
      %v3803 = vsel %vm3761, %v3672, %v3668
      %v3804 = vsel %vm3763, %v3676, %v3803
      %v3805 = vsel %vm3765, %v3680, %v3804
      %v3806 = vsel %vm3767, %v3684, %v3805
      %v3807 = vsel %vm3769, %v3688, %v3806
      %v3808 = vsel %vm3771, %v3692, %v3807
      %v3809 = vsel %vm3773, %v3696, %v3808
      %v3810 = vsel %vm3761, %v3704, %v3700
      %v3811 = vsel %vm3763, %v3708, %v3810
      %v3812 = vsel %vm3765, %v3712, %v3811
      %v3813 = vsel %vm3767, %v3716, %v3812
      %v3814 = vsel %vm3769, %v3720, %v3813
      %v3815 = vsel %vm3771, %v3724, %v3814
      %v3816 = vsel %vm3773, %v3728, %v3815
      %v3817 = vsel %vm3761, %v3736, %v3732
      %v3818 = vsel %vm3763, %v3740, %v3817
      %v3819 = vsel %vm3765, %v3744, %v3818
      %v3820 = vsel %vm3767, %v3748, %v3819
      %v3821 = vsel %vm3769, %v3752, %v3820
      %v3822 = vsel %vm3771, %v3756, %v3821
      %v3823 = vsel %vm3773, %v3760, %v3822
      %v3832 = vlaneseq
      %v3833 = vshrl.u32 %v3832, 7
      %v3834 = vsub.s32 1, %v3833
      %v3835 = vrot.slane %v2791, %v3834
      %v3836 = vlaneseq
      %v3837 = vshrl.u32 %v3836, 7
      %v3838 = vsub.s32 1, %v3837
      %v3839 = vrot.slane %v2799, %v3838
      %v3840 = vlaneseq
      %v3841 = vshrl.u32 %v3840, 7
      %v3842 = vsub.s32 1, %v3841
      %v3843 = vrot.slane %v2798, %v3842
      %v3844 = vlaneseq
      %v3845 = vshrl.u32 %v3844, 7
      %v3846 = vsub.s32 1, %v3845
      %v3847 = vrot.slane %v2800, %v3846
      %v3848 = vlaneseq
      %v3849 = vshrl.u32 %v3848, 7
      %v3850 = vsub.s32 1, %v3849
      %v3851 = vrot.slane %v2808, %v3850
      %v3852 = vlaneseq
      %v3853 = vshrl.u32 %v3852, 7
      %v3854 = vsub.s32 1, %v3853
      %v3855 = vrot.slane %v2816, %v3854
      %v3856 = vlaneseq
      %v3857 = vshrl.u32 %v3856, 7
      %v3858 = vsub.s32 1, %v3857
      %v3859 = vrot.slane %v2815, %v3858
      %v3860 = vlaneseq
      %v3861 = vshrl.u32 %v3860, 7
      %v3862 = vsub.s32 1, %v3861
      %v3863 = vrot.slane %v2817, %v3862
      %v3864 = vlaneseq
      %v3865 = vshrl.u32 %v3864, 7
      %v3866 = vsub.s32 1, %v3865
      %v3867 = vrot.slane %v2832, %v3866
      %v3868 = vlaneseq
      %v3869 = vshrl.u32 %v3868, 7
      %v3870 = vsub.s32 1, %v3869
      %v3871 = vrot.slane %v2840, %v3870
      %v3872 = vlaneseq
      %v3873 = vshrl.u32 %v3872, 7
      %v3874 = vsub.s32 1, %v3873
      %v3875 = vrot.slane %v2839, %v3874
      %v3876 = vlaneseq
      %v3877 = vshrl.u32 %v3876, 7
      %v3878 = vsub.s32 1, %v3877
      %v3879 = vrot.slane %v2841, %v3878
      %v3880 = vlaneseq
      %v3881 = vshrl.u32 %v3880, 7
      %v3882 = vsub.s32 1, %v3881
      %v3883 = vrot.slane %v2849, %v3882
      %v3884 = vlaneseq
      %v3885 = vshrl.u32 %v3884, 7
      %v3886 = vsub.s32 1, %v3885
      %v3887 = vrot.slane %v2857, %v3886
      %v3888 = vlaneseq
      %v3889 = vshrl.u32 %v3888, 7
      %v3890 = vsub.s32 1, %v3889
      %v3891 = vrot.slane %v2856, %v3890
      %v3892 = vlaneseq
      %v3893 = vshrl.u32 %v3892, 7
      %v3894 = vsub.s32 1, %v3893
      %v3895 = vrot.slane %v2858, %v3894
      %v3896 = vlaneseq
      %v3897 = vshrl.u32 %v3896, 7
      %v3898 = vsub.s32 1, %v3897
      %v3899 = vrot.slane %v2873, %v3898
      %v3900 = vlaneseq
      %v3901 = vshrl.u32 %v3900, 7
      %v3902 = vsub.s32 1, %v3901
      %v3903 = vrot.slane %v2881, %v3902
      %v3904 = vlaneseq
      %v3905 = vshrl.u32 %v3904, 7
      %v3906 = vsub.s32 1, %v3905
      %v3907 = vrot.slane %v2880, %v3906
      %v3908 = vlaneseq
      %v3909 = vshrl.u32 %v3908, 7
      %v3910 = vsub.s32 1, %v3909
      %v3911 = vrot.slane %v2882, %v3910
      %v3912 = vlaneseq
      %v3913 = vshrl.u32 %v3912, 7
      %v3914 = vsub.s32 1, %v3913
      %v3915 = vrot.slane %v2890, %v3914
      %v3916 = vlaneseq
      %v3917 = vshrl.u32 %v3916, 7
      %v3918 = vsub.s32 1, %v3917
      %v3919 = vrot.slane %v2898, %v3918
      %v3920 = vlaneseq
      %v3921 = vshrl.u32 %v3920, 7
      %v3922 = vsub.s32 1, %v3921
      %v3923 = vrot.slane %v2897, %v3922
      %v3924 = vlaneseq
      %v3925 = vshrl.u32 %v3924, 7
      %v3926 = vsub.s32 1, %v3925
      %v3927 = vrot.slane %v2899, %v3926
      %v3928 = vlaneseq
      %v3929 = vshrl.u32 %v3928, 7
      %v3930 = vsub.s32 1, %v3929
      %v3931 = vrot.slane %v2914, %v3930
      %v3932 = vlaneseq
      %v3933 = vshrl.u32 %v3932, 7
      %v3934 = vsub.s32 1, %v3933
      %v3935 = vrot.slane %v2922, %v3934
      %v3936 = vlaneseq
      %v3937 = vshrl.u32 %v3936, 7
      %v3938 = vsub.s32 1, %v3937
      %v3939 = vrot.slane %v2921, %v3938
      %v3940 = vlaneseq
      %v3941 = vshrl.u32 %v3940, 7
      %v3942 = vsub.s32 1, %v3941
      %v3943 = vrot.slane %v2923, %v3942
      %v3944 = vlaneseq
      %v3945 = vshrl.u32 %v3944, 7
      %v3946 = vsub.s32 1, %v3945
      %v3947 = vrot.slane %v2931, %v3946
      %v3948 = vlaneseq
      %v3949 = vshrl.u32 %v3948, 7
      %v3950 = vsub.s32 1, %v3949
      %v3951 = vrot.slane %v2939, %v3950
      %v3952 = vlaneseq
      %v3953 = vshrl.u32 %v3952, 7
      %v3954 = vsub.s32 1, %v3953
      %v3955 = vrot.slane %v2938, %v3954
      %v3956 = vlaneseq
      %v3957 = vshrl.u32 %v3956, 7
      %v3958 = vsub.s32 1, %v3957
      %v3959 = vrot.slane %v2940, %v3958
      %v3960 = vlaneseq
      %v3961 = vshrl.u32 %v3960, 7
      %v3962 = vsub.s32 1, %v3961
      %v3963 = vrot.slane %v2955, %v3962
      %v3964 = vlaneseq
      %v3965 = vshrl.u32 %v3964, 7
      %v3966 = vsub.s32 1, %v3965
      %v3967 = vrot.slane %v2963, %v3966
      %v3968 = vlaneseq
      %v3969 = vshrl.u32 %v3968, 7
      %v3970 = vsub.s32 1, %v3969
      %v3971 = vrot.slane %v2962, %v3970
      %v3972 = vlaneseq
      %v3973 = vshrl.u32 %v3972, 7
      %v3974 = vsub.s32 1, %v3973
      %v3975 = vrot.slane %v2964, %v3974
      %v3976 = vlaneseq
      %v3977 = vshrl.u32 %v3976, 7
      %v3978 = vsub.s32 1, %v3977
      %v3979 = vrot.slane %v2972, %v3978
      %v3980 = vlaneseq
      %v3981 = vshrl.u32 %v3980, 7
      %v3982 = vsub.s32 1, %v3981
      %v3983 = vrot.slane %v2980, %v3982
      %v3984 = vlaneseq
      %v3985 = vshrl.u32 %v3984, 7
      %v3986 = vsub.s32 1, %v3985
      %v3987 = vrot.slane %v2979, %v3986
      %v3988 = vlaneseq
      %v3989 = vshrl.u32 %v3988, 7
      %v3990 = vsub.s32 1, %v3989
      %v3991 = vrot.slane %v2981, %v3990
      %v3992 = vlaneseq
      %v3993 = vshrl.u32 %v3992, 7
      %v3994 = vsub.s32 1, %v3993
      %v3995 = vrot.slane %v2996, %v3994
      %v3996 = vlaneseq
      %v3997 = vshrl.u32 %v3996, 7
      %v3998 = vsub.s32 1, %v3997
      %v3999 = vrot.slane %v3004, %v3998
      %v4000 = vlaneseq
      %v4001 = vshrl.u32 %v4000, 7
      %v4002 = vsub.s32 1, %v4001
      %v4003 = vrot.slane %v3003, %v4002
      %v4004 = vlaneseq
      %v4005 = vshrl.u32 %v4004, 7
      %v4006 = vsub.s32 1, %v4005
      %v4007 = vrot.slane %v3005, %v4006
      %v4008 = vlaneseq
      %v4009 = vshrl.u32 %v4008, 7
      %v4010 = vsub.s32 1, %v4009
      %v4011 = vrot.slane %v3013, %v4010
      %v4012 = vlaneseq
      %v4013 = vshrl.u32 %v4012, 7
      %v4014 = vsub.s32 1, %v4013
      %v4015 = vrot.slane %v3021, %v4014
      %v4016 = vlaneseq
      %v4017 = vshrl.u32 %v4016, 7
      %v4018 = vsub.s32 1, %v4017
      %v4019 = vrot.slane %v3020, %v4018
      %v4020 = vlaneseq
      %v4021 = vshrl.u32 %v4020, 7
      %v4022 = vsub.s32 1, %v4021
      %v4023 = vrot.slane %v3022, %v4022
      %v4024 = vlaneseq
      %v4025 = vshrl.u32 %v4024, 7
      %v4026 = vsub.s32 1, %v4025
      %v4027 = vrot.slane %v3037, %v4026
      %v4028 = vlaneseq
      %v4029 = vshrl.u32 %v4028, 7
      %v4030 = vsub.s32 1, %v4029
      %v4031 = vrot.slane %v3045, %v4030
      %v4032 = vlaneseq
      %v4033 = vshrl.u32 %v4032, 7
      %v4034 = vsub.s32 1, %v4033
      %v4035 = vrot.slane %v3044, %v4034
      %v4036 = vlaneseq
      %v4037 = vshrl.u32 %v4036, 7
      %v4038 = vsub.s32 1, %v4037
      %v4039 = vrot.slane %v3046, %v4038
      %v4040 = vlaneseq
      %v4041 = vshrl.u32 %v4040, 7
      %v4042 = vsub.s32 1, %v4041
      %v4043 = vrot.slane %v3054, %v4042
      %v4044 = vlaneseq
      %v4045 = vshrl.u32 %v4044, 7
      %v4046 = vsub.s32 1, %v4045
      %v4047 = vrot.slane %v3062, %v4046
      %v4048 = vlaneseq
      %v4049 = vshrl.u32 %v4048, 7
      %v4050 = vsub.s32 1, %v4049
      %v4051 = vrot.slane %v3061, %v4050
      %v4052 = vlaneseq
      %v4053 = vshrl.u32 %v4052, 7
      %v4054 = vsub.s32 1, %v4053
      %v4055 = vrot.slane %v3063, %v4054
      %v4056 = vlaneseq
      %v4057 = vshrl.u32 %v4056, 7
      %v4058 = vsub.s32 1, %v4057
      %v4059 = vrot.slane %v3078, %v4058
      %v4060 = vlaneseq
      %v4061 = vshrl.u32 %v4060, 7
      %v4062 = vsub.s32 1, %v4061
      %v4063 = vrot.slane %v3086, %v4062
      %v4064 = vlaneseq
      %v4065 = vshrl.u32 %v4064, 7
      %v4066 = vsub.s32 1, %v4065
      %v4067 = vrot.slane %v3085, %v4066
      %v4068 = vlaneseq
      %v4069 = vshrl.u32 %v4068, 7
      %v4070 = vsub.s32 1, %v4069
      %v4071 = vrot.slane %v3087, %v4070
      %v4072 = vlaneseq
      %v4073 = vshrl.u32 %v4072, 7
      %v4074 = vsub.s32 1, %v4073
      %v4075 = vrot.slane %v3095, %v4074
      %v4076 = vlaneseq
      %v4077 = vshrl.u32 %v4076, 7
      %v4078 = vsub.s32 1, %v4077
      %v4079 = vrot.slane %v3103, %v4078
      %v4080 = vlaneseq
      %v4081 = vshrl.u32 %v4080, 7
      %v4082 = vsub.s32 1, %v4081
      %v4083 = vrot.slane %v3102, %v4082
      %v4084 = vlaneseq
      %v4085 = vshrl.u32 %v4084, 7
      %v4086 = vsub.s32 1, %v4085
      %v4087 = vrot.slane %v3104, %v4086
      %v4088 = vsel %vm3761, %v3839, %v3835
      %v4089 = vsel %vm3763, %v3843, %v4088
      %v4090 = vsel %vm3765, %v3847, %v4089
      %v4091 = vsel %vm3767, %v3851, %v4090
      %v4092 = vsel %vm3769, %v3855, %v4091
      %v4093 = vsel %vm3771, %v3859, %v4092
      %v4094 = vsel %vm3773, %v3863, %v4093
      %v4095 = vsel %vm3761, %v3871, %v3867
      %v4096 = vsel %vm3763, %v3875, %v4095
      %v4097 = vsel %vm3765, %v3879, %v4096
      %v4098 = vsel %vm3767, %v3883, %v4097
      %v4099 = vsel %vm3769, %v3887, %v4098
      %v4100 = vsel %vm3771, %v3891, %v4099
      %v4101 = vsel %vm3773, %v3895, %v4100
      %v4102 = vsel %vm3761, %v3903, %v3899
      %v4103 = vsel %vm3763, %v3907, %v4102
      %v4104 = vsel %vm3765, %v3911, %v4103
      %v4105 = vsel %vm3767, %v3915, %v4104
      %v4106 = vsel %vm3769, %v3919, %v4105
      %v4107 = vsel %vm3771, %v3923, %v4106
      %v4108 = vsel %vm3773, %v3927, %v4107
      %v4109 = vsel %vm3761, %v3935, %v3931
      %v4110 = vsel %vm3763, %v3939, %v4109
      %v4111 = vsel %vm3765, %v3943, %v4110
      %v4112 = vsel %vm3767, %v3947, %v4111
      %v4113 = vsel %vm3769, %v3951, %v4112
      %v4114 = vsel %vm3771, %v3955, %v4113
      %v4115 = vsel %vm3773, %v3959, %v4114
      %v4116 = vsel %vm3761, %v3967, %v3963
      %v4117 = vsel %vm3763, %v3971, %v4116
      %v4118 = vsel %vm3765, %v3975, %v4117
      %v4119 = vsel %vm3767, %v3979, %v4118
      %v4120 = vsel %vm3769, %v3983, %v4119
      %v4121 = vsel %vm3771, %v3987, %v4120
      %v4122 = vsel %vm3773, %v3991, %v4121
      %v4123 = vsel %vm3761, %v3999, %v3995
      %v4124 = vsel %vm3763, %v4003, %v4123
      %v4125 = vsel %vm3765, %v4007, %v4124
      %v4126 = vsel %vm3767, %v4011, %v4125
      %v4127 = vsel %vm3769, %v4015, %v4126
      %v4128 = vsel %vm3771, %v4019, %v4127
      %v4129 = vsel %vm3773, %v4023, %v4128
      %v4130 = vsel %vm3761, %v4031, %v4027
      %v4131 = vsel %vm3763, %v4035, %v4130
      %v4132 = vsel %vm3765, %v4039, %v4131
      %v4133 = vsel %vm3767, %v4043, %v4132
      %v4134 = vsel %vm3769, %v4047, %v4133
      %v4135 = vsel %vm3771, %v4051, %v4134
      %v4136 = vsel %vm3773, %v4055, %v4135
      %v4137 = vsel %vm3761, %v4063, %v4059
      %v4138 = vsel %vm3763, %v4067, %v4137
      %v4139 = vsel %vm3765, %v4071, %v4138
      %v4140 = vsel %vm3767, %v4075, %v4139
      %v4141 = vsel %vm3769, %v4079, %v4140
      %v4142 = vsel %vm3771, %v4083, %v4141
      %v4143 = vsel %vm3773, %v4087, %v4142
      %4144 = vrot.lane.b32.xlu0 %v4094, 8
      %v4145 = vpop.permute.xlu0 %4144
      %4146 = vrot.lane.b32.xlu0 %v4101, 8
      %v4147 = vpop.permute.xlu0 %4146
      %4148 = vrot.lane.b32.xlu0 %v4108, 8
      %v4149 = vpop.permute.xlu0 %4148
      %4150 = vrot.lane.b32.xlu0 %v4115, 8
      %v4151 = vpop.permute.xlu0 %4150
      %4152 = vrot.lane.b32.xlu0 %v4122, 8
      %v4153 = vpop.permute.xlu0 %4152
      %4154 = vrot.lane.b32.xlu0 %v4129, 8
      %v4155 = vpop.permute.xlu0 %4154
      %4156 = vrot.lane.b32.xlu0 %v4136, 8
      %v4157 = vpop.permute.xlu0 %4156
      %4158 = vrot.lane.b32.xlu0 %v4143, 8
      %v4159 = vpop.permute.xlu0 %4158
      %v4168 = vlaneseq
      %v4169 = vshrl.u32 %v4168, 7
      %v4170 = vsub.s32 0, %v4169
      %v4171 = vrot.slane %v2824, %v4170
      %v4172 = vlaneseq
      %v4173 = vshrl.u32 %v4172, 7
      %v4174 = vsub.s32 0, %v4173
      %v4175 = vrot.slane %v2865, %v4174
      %v4176 = vlaneseq
      %v4177 = vshrl.u32 %v4176, 7
      %v4178 = vsub.s32 0, %v4177
      %v4179 = vrot.slane %v2906, %v4178
      %v4180 = vlaneseq
      %v4181 = vshrl.u32 %v4180, 7
      %v4182 = vsub.s32 0, %v4181
      %v4183 = vrot.slane %v2947, %v4182
      %v4184 = vlaneseq
      %v4185 = vshrl.u32 %v4184, 7
      %v4186 = vsub.s32 0, %v4185
      %v4187 = vrot.slane %v2988, %v4186
      %v4188 = vlaneseq
      %v4189 = vshrl.u32 %v4188, 7
      %v4190 = vsub.s32 0, %v4189
      %v4191 = vrot.slane %v3029, %v4190
      %v4192 = vlaneseq
      %v4193 = vshrl.u32 %v4192, 7
      %v4194 = vsub.s32 0, %v4193
      %v4195 = vrot.slane %v3070, %v4194
      %v4196 = vlaneseq
      %v4197 = vshrl.u32 %v4196, 7
      %v4198 = vsub.s32 0, %v4197
      %v4199 = vrot.slane %v3111, %v4198
      %v4200 = vsel %vm3761, %v3516, %v3512
      %v4201 = vsel %vm3763, %v3520, %v4200
      %v4202 = vsel %vm3765, %v3524, %v4201
      %v4203 = vsel %vm3767, %v3528, %v4202
      %v4204 = vsel %vm3769, %v3532, %v4203
      %v4205 = vsel %vm3771, %v3536, %v4204
      %v4206 = vsel %vm3773, %v4171, %v4205
      %v4207 = vsel %vm3761, %v3548, %v3544
      %v4208 = vsel %vm3763, %v3552, %v4207
      %v4209 = vsel %vm3765, %v3556, %v4208
      %v4210 = vsel %vm3767, %v3560, %v4209
      %v4211 = vsel %vm3769, %v3564, %v4210
      %v4212 = vsel %vm3771, %v3568, %v4211
      %v4213 = vsel %vm3773, %v4175, %v4212
      %v4214 = vsel %vm3761, %v3580, %v3576
      %v4215 = vsel %vm3763, %v3584, %v4214
      %v4216 = vsel %vm3765, %v3588, %v4215
      %v4217 = vsel %vm3767, %v3592, %v4216
      %v4218 = vsel %vm3769, %v3596, %v4217
      %v4219 = vsel %vm3771, %v3600, %v4218
      %v4220 = vsel %vm3773, %v4179, %v4219
      %v4221 = vsel %vm3761, %v3612, %v3608
      %v4222 = vsel %vm3763, %v3616, %v4221
      %v4223 = vsel %vm3765, %v3620, %v4222
      %v4224 = vsel %vm3767, %v3624, %v4223
      %v4225 = vsel %vm3769, %v3628, %v4224
      %v4226 = vsel %vm3771, %v3632, %v4225
      %v4227 = vsel %vm3773, %v4183, %v4226
      %v4228 = vsel %vm3761, %v3644, %v3640
      %v4229 = vsel %vm3763, %v3648, %v4228
      %v4230 = vsel %vm3765, %v3652, %v4229
      %v4231 = vsel %vm3767, %v3656, %v4230
      %v4232 = vsel %vm3769, %v3660, %v4231
      %v4233 = vsel %vm3771, %v3664, %v4232
      %v4234 = vsel %vm3773, %v4187, %v4233
      %v4235 = vsel %vm3761, %v3676, %v3672
      %v4236 = vsel %vm3763, %v3680, %v4235
      %v4237 = vsel %vm3765, %v3684, %v4236
      %v4238 = vsel %vm3767, %v3688, %v4237
      %v4239 = vsel %vm3769, %v3692, %v4238
      %v4240 = vsel %vm3771, %v3696, %v4239
      %v4241 = vsel %vm3773, %v4191, %v4240
      %v4242 = vsel %vm3761, %v3708, %v3704
      %v4243 = vsel %vm3763, %v3712, %v4242
      %v4244 = vsel %vm3765, %v3716, %v4243
      %v4245 = vsel %vm3767, %v3720, %v4244
      %v4246 = vsel %vm3769, %v3724, %v4245
      %v4247 = vsel %vm3771, %v3728, %v4246
      %v4248 = vsel %vm3773, %v4195, %v4247
      %v4249 = vsel %vm3761, %v3740, %v3736
      %v4250 = vsel %vm3763, %v3744, %v4249
      %v4251 = vsel %vm3765, %v3748, %v4250
      %v4252 = vsel %vm3767, %v3752, %v4251
      %v4253 = vsel %vm3769, %v3756, %v4252
      %v4254 = vsel %vm3771, %v3760, %v4253
      %v4255 = vsel %vm3773, %v4199, %v4254
      %4256 = vrot.lane.b32.xlu0 %v4206, 16
      %v4257 = vpop.permute.xlu0 %4256
      %4258 = vrot.lane.b32.xlu0 %v4213, 16
      %v4259 = vpop.permute.xlu0 %4258
      %4260 = vrot.lane.b32.xlu0 %v4220, 16
      %v4261 = vpop.permute.xlu0 %4260
      %4262 = vrot.lane.b32.xlu0 %v4227, 16
      %v4263 = vpop.permute.xlu0 %4262
      %4264 = vrot.lane.b32.xlu0 %v4234, 16
      %v4265 = vpop.permute.xlu0 %4264
      %4266 = vrot.lane.b32.xlu0 %v4241, 16
      %v4267 = vpop.permute.xlu0 %4266
      %4268 = vrot.lane.b32.xlu0 %v4248, 16
      %v4269 = vpop.permute.xlu0 %4268
      %4270 = vrot.lane.b32.xlu0 %v4255, 16
      %v4271 = vpop.permute.xlu0 %4270
      %v4280 = vlaneseq
      %v4281 = vshrl.u32 %v4280, 7
      %v4282 = vsub.s32 0, %v4281
      %v4283 = vrot.slane %v3184, %v4282
      %v4284 = vlaneseq
      %v4285 = vshrl.u32 %v4284, 7
      %v4286 = vsub.s32 0, %v4285
      %v4287 = vrot.slane %v3192, %v4286
      %v4288 = vlaneseq
      %v4289 = vshrl.u32 %v4288, 7
      %v4290 = vsub.s32 0, %v4289
      %v4291 = vrot.slane %v3191, %v4290
      %v4292 = vlaneseq
      %v4293 = vshrl.u32 %v4292, 7
      %v4294 = vsub.s32 0, %v4293
      %v4295 = vrot.slane %v3193, %v4294
      %v4296 = vlaneseq
      %v4297 = vshrl.u32 %v4296, 7
      %v4298 = vsub.s32 0, %v4297
      %v4299 = vrot.slane %v3201, %v4298
      %v4300 = vlaneseq
      %v4301 = vshrl.u32 %v4300, 7
      %v4302 = vsub.s32 0, %v4301
      %v4303 = vrot.slane %v3209, %v4302
      %v4304 = vlaneseq
      %v4305 = vshrl.u32 %v4304, 7
      %v4306 = vsub.s32 0, %v4305
      %v4307 = vrot.slane %v3208, %v4306
      %v4308 = vlaneseq
      %v4309 = vshrl.u32 %v4308, 7
      %v4310 = vsub.s32 0, %v4309
      %v4311 = vrot.slane %v3210, %v4310
      %v4312 = vlaneseq
      %v4313 = vshrl.u32 %v4312, 7
      %v4314 = vsub.s32 0, %v4313
      %v4315 = vrot.slane %v3225, %v4314
      %v4316 = vlaneseq
      %v4317 = vshrl.u32 %v4316, 7
      %v4318 = vsub.s32 0, %v4317
      %v4319 = vrot.slane %v3233, %v4318
      %v4320 = vlaneseq
      %v4321 = vshrl.u32 %v4320, 7
      %v4322 = vsub.s32 0, %v4321
      %v4323 = vrot.slane %v3232, %v4322
      %v4324 = vlaneseq
      %v4325 = vshrl.u32 %v4324, 7
      %v4326 = vsub.s32 0, %v4325
      %v4327 = vrot.slane %v3234, %v4326
      %v4328 = vlaneseq
      %v4329 = vshrl.u32 %v4328, 7
      %v4330 = vsub.s32 0, %v4329
      %v4331 = vrot.slane %v3242, %v4330
      %v4332 = vlaneseq
      %v4333 = vshrl.u32 %v4332, 7
      %v4334 = vsub.s32 0, %v4333
      %v4335 = vrot.slane %v3250, %v4334
      %v4336 = vlaneseq
      %v4337 = vshrl.u32 %v4336, 7
      %v4338 = vsub.s32 0, %v4337
      %v4339 = vrot.slane %v3249, %v4338
      %v4340 = vlaneseq
      %v4341 = vshrl.u32 %v4340, 7
      %v4342 = vsub.s32 0, %v4341
      %v4343 = vrot.slane %v3251, %v4342
      %v4344 = vlaneseq
      %v4345 = vshrl.u32 %v4344, 7
      %v4346 = vsub.s32 0, %v4345
      %v4347 = vrot.slane %v3266, %v4346
      %v4348 = vlaneseq
      %v4349 = vshrl.u32 %v4348, 7
      %v4350 = vsub.s32 0, %v4349
      %v4351 = vrot.slane %v3274, %v4350
      %v4352 = vlaneseq
      %v4353 = vshrl.u32 %v4352, 7
      %v4354 = vsub.s32 0, %v4353
      %v4355 = vrot.slane %v3273, %v4354
      %v4356 = vlaneseq
      %v4357 = vshrl.u32 %v4356, 7
      %v4358 = vsub.s32 0, %v4357
      %v4359 = vrot.slane %v3275, %v4358
      %v4360 = vlaneseq
      %v4361 = vshrl.u32 %v4360, 7
      %v4362 = vsub.s32 0, %v4361
      %v4363 = vrot.slane %v3283, %v4362
      %v4364 = vlaneseq
      %v4365 = vshrl.u32 %v4364, 7
      %v4366 = vsub.s32 0, %v4365
      %v4367 = vrot.slane %v3291, %v4366
      %v4368 = vlaneseq
      %v4369 = vshrl.u32 %v4368, 7
      %v4370 = vsub.s32 0, %v4369
      %v4371 = vrot.slane %v3290, %v4370
      %v4372 = vlaneseq
      %v4373 = vshrl.u32 %v4372, 7
      %v4374 = vsub.s32 0, %v4373
      %v4375 = vrot.slane %v3292, %v4374
      %v4376 = vlaneseq
      %v4377 = vshrl.u32 %v4376, 7
      %v4378 = vsub.s32 0, %v4377
      %v4379 = vrot.slane %v3307, %v4378
      %v4380 = vlaneseq
      %v4381 = vshrl.u32 %v4380, 7
      %v4382 = vsub.s32 0, %v4381
      %v4383 = vrot.slane %v3315, %v4382
      %v4384 = vlaneseq
      %v4385 = vshrl.u32 %v4384, 7
      %v4386 = vsub.s32 0, %v4385
      %v4387 = vrot.slane %v3314, %v4386
      %v4388 = vlaneseq
      %v4389 = vshrl.u32 %v4388, 7
      %v4390 = vsub.s32 0, %v4389
      %v4391 = vrot.slane %v3316, %v4390
      %v4392 = vlaneseq
      %v4393 = vshrl.u32 %v4392, 7
      %v4394 = vsub.s32 0, %v4393
      %v4395 = vrot.slane %v3324, %v4394
      %v4396 = vlaneseq
      %v4397 = vshrl.u32 %v4396, 7
      %v4398 = vsub.s32 0, %v4397
      %v4399 = vrot.slane %v3332, %v4398
      %v4400 = vlaneseq
      %v4401 = vshrl.u32 %v4400, 7
      %v4402 = vsub.s32 0, %v4401
      %v4403 = vrot.slane %v3331, %v4402
      %v4404 = vlaneseq
      %v4405 = vshrl.u32 %v4404, 7
      %v4406 = vsub.s32 0, %v4405
      %v4407 = vrot.slane %v3333, %v4406
      %v4408 = vlaneseq
      %v4409 = vshrl.u32 %v4408, 7
      %v4410 = vsub.s32 0, %v4409
      %v4411 = vrot.slane %v3348, %v4410
      %v4412 = vlaneseq
      %v4413 = vshrl.u32 %v4412, 7
      %v4414 = vsub.s32 0, %v4413
      %v4415 = vrot.slane %v3356, %v4414
      %v4416 = vlaneseq
      %v4417 = vshrl.u32 %v4416, 7
      %v4418 = vsub.s32 0, %v4417
      %v4419 = vrot.slane %v3355, %v4418
      %v4420 = vlaneseq
      %v4421 = vshrl.u32 %v4420, 7
      %v4422 = vsub.s32 0, %v4421
      %v4423 = vrot.slane %v3357, %v4422
      %v4424 = vlaneseq
      %v4425 = vshrl.u32 %v4424, 7
      %v4426 = vsub.s32 0, %v4425
      %v4427 = vrot.slane %v3365, %v4426
      %v4428 = vlaneseq
      %v4429 = vshrl.u32 %v4428, 7
      %v4430 = vsub.s32 0, %v4429
      %v4431 = vrot.slane %v3373, %v4430
      %v4432 = vlaneseq
      %v4433 = vshrl.u32 %v4432, 7
      %v4434 = vsub.s32 0, %v4433
      %v4435 = vrot.slane %v3372, %v4434
      %v4436 = vlaneseq
      %v4437 = vshrl.u32 %v4436, 7
      %v4438 = vsub.s32 0, %v4437
      %v4439 = vrot.slane %v3374, %v4438
      %v4440 = vlaneseq
      %v4441 = vshrl.u32 %v4440, 7
      %v4442 = vsub.s32 0, %v4441
      %v4443 = vrot.slane %v3389, %v4442
      %v4444 = vlaneseq
      %v4445 = vshrl.u32 %v4444, 7
      %v4446 = vsub.s32 0, %v4445
      %v4447 = vrot.slane %v3397, %v4446
      %v4448 = vlaneseq
      %v4449 = vshrl.u32 %v4448, 7
      %v4450 = vsub.s32 0, %v4449
      %v4451 = vrot.slane %v3396, %v4450
      %v4452 = vlaneseq
      %v4453 = vshrl.u32 %v4452, 7
      %v4454 = vsub.s32 0, %v4453
      %v4455 = vrot.slane %v3398, %v4454
      %v4456 = vlaneseq
      %v4457 = vshrl.u32 %v4456, 7
      %v4458 = vsub.s32 0, %v4457
      %v4459 = vrot.slane %v3406, %v4458
      %v4460 = vlaneseq
      %v4461 = vshrl.u32 %v4460, 7
      %v4462 = vsub.s32 0, %v4461
      %v4463 = vrot.slane %v3414, %v4462
      %v4464 = vlaneseq
      %v4465 = vshrl.u32 %v4464, 7
      %v4466 = vsub.s32 0, %v4465
      %v4467 = vrot.slane %v3413, %v4466
      %v4468 = vlaneseq
      %v4469 = vshrl.u32 %v4468, 7
      %v4470 = vsub.s32 0, %v4469
      %v4471 = vrot.slane %v3415, %v4470
      %v4472 = vlaneseq
      %v4473 = vshrl.u32 %v4472, 7
      %v4474 = vsub.s32 0, %v4473
      %v4475 = vrot.slane %v3430, %v4474
      %v4476 = vlaneseq
      %v4477 = vshrl.u32 %v4476, 7
      %v4478 = vsub.s32 0, %v4477
      %v4479 = vrot.slane %v3438, %v4478
      %v4480 = vlaneseq
      %v4481 = vshrl.u32 %v4480, 7
      %v4482 = vsub.s32 0, %v4481
      %v4483 = vrot.slane %v3437, %v4482
      %v4484 = vlaneseq
      %v4485 = vshrl.u32 %v4484, 7
      %v4486 = vsub.s32 0, %v4485
      %v4487 = vrot.slane %v3439, %v4486
      %v4488 = vlaneseq
      %v4489 = vshrl.u32 %v4488, 7
      %v4490 = vsub.s32 0, %v4489
      %v4491 = vrot.slane %v3447, %v4490
      %v4492 = vlaneseq
      %v4493 = vshrl.u32 %v4492, 7
      %v4494 = vsub.s32 0, %v4493
      %v4495 = vrot.slane %v3455, %v4494
      %v4496 = vlaneseq
      %v4497 = vshrl.u32 %v4496, 7
      %v4498 = vsub.s32 0, %v4497
      %v4499 = vrot.slane %v3454, %v4498
      %v4500 = vlaneseq
      %v4501 = vshrl.u32 %v4500, 7
      %v4502 = vsub.s32 0, %v4501
      %v4503 = vrot.slane %v3456, %v4502
      %v4504 = vlaneseq
      %v4505 = vshrl.u32 %v4504, 7
      %v4506 = vsub.s32 0, %v4505
      %v4507 = vrot.slane %v3471, %v4506
      %v4508 = vlaneseq
      %v4509 = vshrl.u32 %v4508, 7
      %v4510 = vsub.s32 0, %v4509
      %v4511 = vrot.slane %v3479, %v4510
      %v4512 = vlaneseq
      %v4513 = vshrl.u32 %v4512, 7
      %v4514 = vsub.s32 0, %v4513
      %v4515 = vrot.slane %v3478, %v4514
      %v4516 = vlaneseq
      %v4517 = vshrl.u32 %v4516, 7
      %v4518 = vsub.s32 0, %v4517
      %v4519 = vrot.slane %v3480, %v4518
      %v4520 = vlaneseq
      %v4521 = vshrl.u32 %v4520, 7
      %v4522 = vsub.s32 0, %v4521
      %v4523 = vrot.slane %v3488, %v4522
      %v4524 = vlaneseq
      %v4525 = vshrl.u32 %v4524, 7
      %v4526 = vsub.s32 0, %v4525
      %v4527 = vrot.slane %v3496, %v4526
      %v4528 = vlaneseq
      %v4529 = vshrl.u32 %v4528, 7
      %v4530 = vsub.s32 0, %v4529
      %v4531 = vrot.slane %v3495, %v4530
      %v4532 = vlaneseq
      %v4533 = vshrl.u32 %v4532, 7
      %v4534 = vsub.s32 0, %v4533
      %v4535 = vrot.slane %v3497, %v4534
      %v4536 = vsel %vm3761, %v4287, %v4283
      %v4537 = vsel %vm3763, %v4291, %v4536
      %v4538 = vsel %vm3765, %v4295, %v4537
      %v4539 = vsel %vm3767, %v4299, %v4538
      %v4540 = vsel %vm3769, %v4303, %v4539
      %v4541 = vsel %vm3771, %v4307, %v4540
      %v4542 = vsel %vm3773, %v4311, %v4541
      %v4543 = vsel %vm3761, %v4319, %v4315
      %v4544 = vsel %vm3763, %v4323, %v4543
      %v4545 = vsel %vm3765, %v4327, %v4544
      %v4546 = vsel %vm3767, %v4331, %v4545
      %v4547 = vsel %vm3769, %v4335, %v4546
      %v4548 = vsel %vm3771, %v4339, %v4547
      %v4549 = vsel %vm3773, %v4343, %v4548
      %v4550 = vsel %vm3761, %v4351, %v4347
      %v4551 = vsel %vm3763, %v4355, %v4550
      %v4552 = vsel %vm3765, %v4359, %v4551
      %v4553 = vsel %vm3767, %v4363, %v4552
      %v4554 = vsel %vm3769, %v4367, %v4553
      %v4555 = vsel %vm3771, %v4371, %v4554
      %v4556 = vsel %vm3773, %v4375, %v4555
      %v4557 = vsel %vm3761, %v4383, %v4379
      %v4558 = vsel %vm3763, %v4387, %v4557
      %v4559 = vsel %vm3765, %v4391, %v4558
      %v4560 = vsel %vm3767, %v4395, %v4559
      %v4561 = vsel %vm3769, %v4399, %v4560
      %v4562 = vsel %vm3771, %v4403, %v4561
      %v4563 = vsel %vm3773, %v4407, %v4562
      %v4564 = vsel %vm3761, %v4415, %v4411
      %v4565 = vsel %vm3763, %v4419, %v4564
      %v4566 = vsel %vm3765, %v4423, %v4565
      %v4567 = vsel %vm3767, %v4427, %v4566
      %v4568 = vsel %vm3769, %v4431, %v4567
      %v4569 = vsel %vm3771, %v4435, %v4568
      %v4570 = vsel %vm3773, %v4439, %v4569
      %v4571 = vsel %vm3761, %v4447, %v4443
      %v4572 = vsel %vm3763, %v4451, %v4571
      %v4573 = vsel %vm3765, %v4455, %v4572
      %v4574 = vsel %vm3767, %v4459, %v4573
      %v4575 = vsel %vm3769, %v4463, %v4574
      %v4576 = vsel %vm3771, %v4467, %v4575
      %v4577 = vsel %vm3773, %v4471, %v4576
      %v4578 = vsel %vm3761, %v4479, %v4475
      %v4579 = vsel %vm3763, %v4483, %v4578
      %v4580 = vsel %vm3765, %v4487, %v4579
      %v4581 = vsel %vm3767, %v4491, %v4580
      %v4582 = vsel %vm3769, %v4495, %v4581
      %v4583 = vsel %vm3771, %v4499, %v4582
      %v4584 = vsel %vm3773, %v4503, %v4583
      %v4585 = vsel %vm3761, %v4511, %v4507
      %v4586 = vsel %vm3763, %v4515, %v4585
      %v4587 = vsel %vm3765, %v4519, %v4586
      %v4588 = vsel %vm3767, %v4523, %v4587
      %v4589 = vsel %vm3769, %v4527, %v4588
      %v4590 = vsel %vm3771, %v4531, %v4589
      %v4591 = vsel %vm3773, %v4535, %v4590
      %4592 = vrot.lane.b32.xlu0 %v4542, 24
      %v4593 = vpop.permute.xlu0 %4592
      %4594 = vrot.lane.b32.xlu0 %v4549, 24
      %v4595 = vpop.permute.xlu0 %4594
      %4596 = vrot.lane.b32.xlu0 %v4556, 24
      %v4597 = vpop.permute.xlu0 %4596
      %4598 = vrot.lane.b32.xlu0 %v4563, 24
      %v4599 = vpop.permute.xlu0 %4598
      %4600 = vrot.lane.b32.xlu0 %v4570, 24
      %v4601 = vpop.permute.xlu0 %4600
      %4602 = vrot.lane.b32.xlu0 %v4577, 24
      %v4603 = vpop.permute.xlu0 %4602
      %4604 = vrot.lane.b32.xlu0 %v4584, 24
      %v4605 = vpop.permute.xlu0 %4604
      %4606 = vrot.lane.b32.xlu0 %v4591, 24
      %v4607 = vpop.permute.xlu0 %4606
      %v4616 = vlaneseq
      %v4617 = vshrl.u32 %v4616, 7
      %v4618 = vsub.s32 1, %v4617
      %v4619 = vrot.slane %v3184, %v4618
      %v4620 = vlaneseq
      %v4621 = vshrl.u32 %v4620, 7
      %v4622 = vsub.s32 1, %v4621
      %v4623 = vrot.slane %v3192, %v4622
      %v4624 = vlaneseq
      %v4625 = vshrl.u32 %v4624, 7
      %v4626 = vsub.s32 1, %v4625
      %v4627 = vrot.slane %v3191, %v4626
      %v4628 = vlaneseq
      %v4629 = vshrl.u32 %v4628, 7
      %v4630 = vsub.s32 1, %v4629
      %v4631 = vrot.slane %v3193, %v4630
      %v4632 = vlaneseq
      %v4633 = vshrl.u32 %v4632, 7
      %v4634 = vsub.s32 1, %v4633
      %v4635 = vrot.slane %v3201, %v4634
      %v4636 = vlaneseq
      %v4637 = vshrl.u32 %v4636, 7
      %v4638 = vsub.s32 1, %v4637
      %v4639 = vrot.slane %v3209, %v4638
      %v4640 = vlaneseq
      %v4641 = vshrl.u32 %v4640, 7
      %v4642 = vsub.s32 1, %v4641
      %v4643 = vrot.slane %v3208, %v4642
      %v4644 = vlaneseq
      %v4645 = vshrl.u32 %v4644, 7
      %v4646 = vsub.s32 1, %v4645
      %v4647 = vrot.slane %v3210, %v4646
      %v4648 = vlaneseq
      %v4649 = vshrl.u32 %v4648, 7
      %v4650 = vsub.s32 1, %v4649
      %v4651 = vrot.slane %v3225, %v4650
      %v4652 = vlaneseq
      %v4653 = vshrl.u32 %v4652, 7
      %v4654 = vsub.s32 1, %v4653
      %v4655 = vrot.slane %v3233, %v4654
      %v4656 = vlaneseq
      %v4657 = vshrl.u32 %v4656, 7
      %v4658 = vsub.s32 1, %v4657
      %v4659 = vrot.slane %v3232, %v4658
      %v4660 = vlaneseq
      %v4661 = vshrl.u32 %v4660, 7
      %v4662 = vsub.s32 1, %v4661
      %v4663 = vrot.slane %v3234, %v4662
      %v4664 = vlaneseq
      %v4665 = vshrl.u32 %v4664, 7
      %v4666 = vsub.s32 1, %v4665
      %v4667 = vrot.slane %v3242, %v4666
      %v4668 = vlaneseq
      %v4669 = vshrl.u32 %v4668, 7
      %v4670 = vsub.s32 1, %v4669
      %v4671 = vrot.slane %v3250, %v4670
      %v4672 = vlaneseq
      %v4673 = vshrl.u32 %v4672, 7
      %v4674 = vsub.s32 1, %v4673
      %v4675 = vrot.slane %v3249, %v4674
      %v4676 = vlaneseq
      %v4677 = vshrl.u32 %v4676, 7
      %v4678 = vsub.s32 1, %v4677
      %v4679 = vrot.slane %v3251, %v4678
      %v4680 = vlaneseq
      %v4681 = vshrl.u32 %v4680, 7
      %v4682 = vsub.s32 1, %v4681
      %v4683 = vrot.slane %v3266, %v4682
      %v4684 = vlaneseq
      %v4685 = vshrl.u32 %v4684, 7
      %v4686 = vsub.s32 1, %v4685
      %v4687 = vrot.slane %v3274, %v4686
      %v4688 = vlaneseq
      %v4689 = vshrl.u32 %v4688, 7
      %v4690 = vsub.s32 1, %v4689
      %v4691 = vrot.slane %v3273, %v4690
      %v4692 = vlaneseq
      %v4693 = vshrl.u32 %v4692, 7
      %v4694 = vsub.s32 1, %v4693
      %v4695 = vrot.slane %v3275, %v4694
      %v4696 = vlaneseq
      %v4697 = vshrl.u32 %v4696, 7
      %v4698 = vsub.s32 1, %v4697
      %v4699 = vrot.slane %v3283, %v4698
      %v4700 = vlaneseq
      %v4701 = vshrl.u32 %v4700, 7
      %v4702 = vsub.s32 1, %v4701
      %v4703 = vrot.slane %v3291, %v4702
      %v4704 = vlaneseq
      %v4705 = vshrl.u32 %v4704, 7
      %v4706 = vsub.s32 1, %v4705
      %v4707 = vrot.slane %v3290, %v4706
      %v4708 = vlaneseq
      %v4709 = vshrl.u32 %v4708, 7
      %v4710 = vsub.s32 1, %v4709
      %v4711 = vrot.slane %v3292, %v4710
      %v4712 = vlaneseq
      %v4713 = vshrl.u32 %v4712, 7
      %v4714 = vsub.s32 1, %v4713
      %v4715 = vrot.slane %v3307, %v4714
      %v4716 = vlaneseq
      %v4717 = vshrl.u32 %v4716, 7
      %v4718 = vsub.s32 1, %v4717
      %v4719 = vrot.slane %v3315, %v4718
      %v4720 = vlaneseq
      %v4721 = vshrl.u32 %v4720, 7
      %v4722 = vsub.s32 1, %v4721
      %v4723 = vrot.slane %v3314, %v4722
      %v4724 = vlaneseq
      %v4725 = vshrl.u32 %v4724, 7
      %v4726 = vsub.s32 1, %v4725
      %v4727 = vrot.slane %v3316, %v4726
      %v4728 = vlaneseq
      %v4729 = vshrl.u32 %v4728, 7
      %v4730 = vsub.s32 1, %v4729
      %v4731 = vrot.slane %v3324, %v4730
      %v4732 = vlaneseq
      %v4733 = vshrl.u32 %v4732, 7
      %v4734 = vsub.s32 1, %v4733
      %v4735 = vrot.slane %v3332, %v4734
      %v4736 = vlaneseq
      %v4737 = vshrl.u32 %v4736, 7
      %v4738 = vsub.s32 1, %v4737
      %v4739 = vrot.slane %v3331, %v4738
      %v4740 = vlaneseq
      %v4741 = vshrl.u32 %v4740, 7
      %v4742 = vsub.s32 1, %v4741
      %v4743 = vrot.slane %v3333, %v4742
      %v4744 = vlaneseq
      %v4745 = vshrl.u32 %v4744, 7
      %v4746 = vsub.s32 1, %v4745
      %v4747 = vrot.slane %v3348, %v4746
      %v4748 = vlaneseq
      %v4749 = vshrl.u32 %v4748, 7
      %v4750 = vsub.s32 1, %v4749
      %v4751 = vrot.slane %v3356, %v4750
      %v4752 = vlaneseq
      %v4753 = vshrl.u32 %v4752, 7
      %v4754 = vsub.s32 1, %v4753
      %v4755 = vrot.slane %v3355, %v4754
      %v4756 = vlaneseq
      %v4757 = vshrl.u32 %v4756, 7
      %v4758 = vsub.s32 1, %v4757
      %v4759 = vrot.slane %v3357, %v4758
      %v4760 = vlaneseq
      %v4761 = vshrl.u32 %v4760, 7
      %v4762 = vsub.s32 1, %v4761
      %v4763 = vrot.slane %v3365, %v4762
      %v4764 = vlaneseq
      %v4765 = vshrl.u32 %v4764, 7
      %v4766 = vsub.s32 1, %v4765
      %v4767 = vrot.slane %v3373, %v4766
      %v4768 = vlaneseq
      %v4769 = vshrl.u32 %v4768, 7
      %v4770 = vsub.s32 1, %v4769
      %v4771 = vrot.slane %v3372, %v4770
      %v4772 = vlaneseq
      %v4773 = vshrl.u32 %v4772, 7
      %v4774 = vsub.s32 1, %v4773
      %v4775 = vrot.slane %v3374, %v4774
      %v4776 = vlaneseq
      %v4777 = vshrl.u32 %v4776, 7
      %v4778 = vsub.s32 1, %v4777
      %v4779 = vrot.slane %v3389, %v4778
      %v4780 = vlaneseq
      %v4781 = vshrl.u32 %v4780, 7
      %v4782 = vsub.s32 1, %v4781
      %v4783 = vrot.slane %v3397, %v4782
      %v4784 = vlaneseq
      %v4785 = vshrl.u32 %v4784, 7
      %v4786 = vsub.s32 1, %v4785
      %v4787 = vrot.slane %v3396, %v4786
      %v4788 = vlaneseq
      %v4789 = vshrl.u32 %v4788, 7
      %v4790 = vsub.s32 1, %v4789
      %v4791 = vrot.slane %v3398, %v4790
      %v4792 = vlaneseq
      %v4793 = vshrl.u32 %v4792, 7
      %v4794 = vsub.s32 1, %v4793
      %v4795 = vrot.slane %v3406, %v4794
      %v4796 = vlaneseq
      %v4797 = vshrl.u32 %v4796, 7
      %v4798 = vsub.s32 1, %v4797
      %v4799 = vrot.slane %v3414, %v4798
      %v4800 = vlaneseq
      %v4801 = vshrl.u32 %v4800, 7
      %v4802 = vsub.s32 1, %v4801
      %v4803 = vrot.slane %v3413, %v4802
      %v4804 = vlaneseq
      %v4805 = vshrl.u32 %v4804, 7
      %v4806 = vsub.s32 1, %v4805
      %v4807 = vrot.slane %v3415, %v4806
      %v4808 = vlaneseq
      %v4809 = vshrl.u32 %v4808, 7
      %v4810 = vsub.s32 1, %v4809
      %v4811 = vrot.slane %v3430, %v4810
      %v4812 = vlaneseq
      %v4813 = vshrl.u32 %v4812, 7
      %v4814 = vsub.s32 1, %v4813
      %v4815 = vrot.slane %v3438, %v4814
      %v4816 = vlaneseq
      %v4817 = vshrl.u32 %v4816, 7
      %v4818 = vsub.s32 1, %v4817
      %v4819 = vrot.slane %v3437, %v4818
      %v4820 = vlaneseq
      %v4821 = vshrl.u32 %v4820, 7
      %v4822 = vsub.s32 1, %v4821
      %v4823 = vrot.slane %v3439, %v4822
      %v4824 = vlaneseq
      %v4825 = vshrl.u32 %v4824, 7
      %v4826 = vsub.s32 1, %v4825
      %v4827 = vrot.slane %v3447, %v4826
      %v4828 = vlaneseq
      %v4829 = vshrl.u32 %v4828, 7
      %v4830 = vsub.s32 1, %v4829
      %v4831 = vrot.slane %v3455, %v4830
      %v4832 = vlaneseq
      %v4833 = vshrl.u32 %v4832, 7
      %v4834 = vsub.s32 1, %v4833
      %v4835 = vrot.slane %v3454, %v4834
      %v4836 = vlaneseq
      %v4837 = vshrl.u32 %v4836, 7
      %v4838 = vsub.s32 1, %v4837
      %v4839 = vrot.slane %v3456, %v4838
      %v4840 = vlaneseq
      %v4841 = vshrl.u32 %v4840, 7
      %v4842 = vsub.s32 1, %v4841
      %v4843 = vrot.slane %v3471, %v4842
      %v4844 = vlaneseq
      %v4845 = vshrl.u32 %v4844, 7
      %v4846 = vsub.s32 1, %v4845
      %v4847 = vrot.slane %v3479, %v4846
      %v4848 = vlaneseq
      %v4849 = vshrl.u32 %v4848, 7
      %v4850 = vsub.s32 1, %v4849
      %v4851 = vrot.slane %v3478, %v4850
      %v4852 = vlaneseq
      %v4853 = vshrl.u32 %v4852, 7
      %v4854 = vsub.s32 1, %v4853
      %v4855 = vrot.slane %v3480, %v4854
      %v4856 = vlaneseq
      %v4857 = vshrl.u32 %v4856, 7
      %v4858 = vsub.s32 1, %v4857
      %v4859 = vrot.slane %v3488, %v4858
      %v4860 = vlaneseq
      %v4861 = vshrl.u32 %v4860, 7
      %v4862 = vsub.s32 1, %v4861
      %v4863 = vrot.slane %v3496, %v4862
      %v4864 = vlaneseq
      %v4865 = vshrl.u32 %v4864, 7
      %v4866 = vsub.s32 1, %v4865
      %v4867 = vrot.slane %v3495, %v4866
      %v4868 = vlaneseq
      %v4869 = vshrl.u32 %v4868, 7
      %v4870 = vsub.s32 1, %v4869
      %v4871 = vrot.slane %v3497, %v4870
      %v4872 = vsel %vm3761, %v4623, %v4619
      %v4873 = vsel %vm3763, %v4627, %v4872
      %v4874 = vsel %vm3765, %v4631, %v4873
      %v4875 = vsel %vm3767, %v4635, %v4874
      %v4876 = vsel %vm3769, %v4639, %v4875
      %v4877 = vsel %vm3771, %v4643, %v4876
      %v4878 = vsel %vm3773, %v4647, %v4877
      %v4879 = vsel %vm3761, %v4655, %v4651
      %v4880 = vsel %vm3763, %v4659, %v4879
      %v4881 = vsel %vm3765, %v4663, %v4880
      %v4882 = vsel %vm3767, %v4667, %v4881
      %v4883 = vsel %vm3769, %v4671, %v4882
      %v4884 = vsel %vm3771, %v4675, %v4883
      %v4885 = vsel %vm3773, %v4679, %v4884
      %v4886 = vsel %vm3761, %v4687, %v4683
      %v4887 = vsel %vm3763, %v4691, %v4886
      %v4888 = vsel %vm3765, %v4695, %v4887
      %v4889 = vsel %vm3767, %v4699, %v4888
      %v4890 = vsel %vm3769, %v4703, %v4889
      %v4891 = vsel %vm3771, %v4707, %v4890
      %v4892 = vsel %vm3773, %v4711, %v4891
      %v4893 = vsel %vm3761, %v4719, %v4715
      %v4894 = vsel %vm3763, %v4723, %v4893
      %v4895 = vsel %vm3765, %v4727, %v4894
      %v4896 = vsel %vm3767, %v4731, %v4895
      %v4897 = vsel %vm3769, %v4735, %v4896
      %v4898 = vsel %vm3771, %v4739, %v4897
      %v4899 = vsel %vm3773, %v4743, %v4898
      %v4900 = vsel %vm3761, %v4751, %v4747
      %v4901 = vsel %vm3763, %v4755, %v4900
      %v4902 = vsel %vm3765, %v4759, %v4901
      %v4903 = vsel %vm3767, %v4763, %v4902
      %v4904 = vsel %vm3769, %v4767, %v4903
      %v4905 = vsel %vm3771, %v4771, %v4904
      %v4906 = vsel %vm3773, %v4775, %v4905
      %v4907 = vsel %vm3761, %v4783, %v4779
      %v4908 = vsel %vm3763, %v4787, %v4907
      %v4909 = vsel %vm3765, %v4791, %v4908
      %v4910 = vsel %vm3767, %v4795, %v4909
      %v4911 = vsel %vm3769, %v4799, %v4910
      %v4912 = vsel %vm3771, %v4803, %v4911
      %v4913 = vsel %vm3773, %v4807, %v4912
      %v4914 = vsel %vm3761, %v4815, %v4811
      %v4915 = vsel %vm3763, %v4819, %v4914
      %v4916 = vsel %vm3765, %v4823, %v4915
      %v4917 = vsel %vm3767, %v4827, %v4916
      %v4918 = vsel %vm3769, %v4831, %v4917
      %v4919 = vsel %vm3771, %v4835, %v4918
      %v4920 = vsel %vm3773, %v4839, %v4919
      %v4921 = vsel %vm3761, %v4847, %v4843
      %v4922 = vsel %vm3763, %v4851, %v4921
      %v4923 = vsel %vm3765, %v4855, %v4922
      %v4924 = vsel %vm3767, %v4859, %v4923
      %v4925 = vsel %vm3769, %v4863, %v4924
      %v4926 = vsel %vm3771, %v4867, %v4925
      %v4927 = vsel %vm3773, %v4871, %v4926
      %4928 = vrot.lane.b32.xlu0 %v4878, 32
      %v4929 = vpop.permute.xlu0 %4928
      %4930 = vrot.lane.b32.xlu0 %v4885, 32
      %v4931 = vpop.permute.xlu0 %4930
      %4932 = vrot.lane.b32.xlu0 %v4892, 32
      %v4933 = vpop.permute.xlu0 %4932
      %4934 = vrot.lane.b32.xlu0 %v4899, 32
      %v4935 = vpop.permute.xlu0 %4934
      %4936 = vrot.lane.b32.xlu0 %v4906, 32
      %v4937 = vpop.permute.xlu0 %4936
      %4938 = vrot.lane.b32.xlu0 %v4913, 32
      %v4939 = vpop.permute.xlu0 %4938
      %4940 = vrot.lane.b32.xlu0 %v4920, 32
      %v4941 = vpop.permute.xlu0 %4940
      %4942 = vrot.lane.b32.xlu0 %v4927, 32
      %v4943 = vpop.permute.xlu0 %4942
      %v4952 = vlaneseq
      %v4953 = vshrl.u32 %v4952, 7
      %v4954 = vsub.s32 0, %v4953
      %v4955 = vrot.slane %v3217, %v4954
      %v4956 = vlaneseq
      %v4957 = vshrl.u32 %v4956, 7
      %v4958 = vsub.s32 0, %v4957
      %v4959 = vrot.slane %v3258, %v4958
      %v4960 = vlaneseq
      %v4961 = vshrl.u32 %v4960, 7
      %v4962 = vsub.s32 0, %v4961
      %v4963 = vrot.slane %v3299, %v4962
      %v4964 = vlaneseq
      %v4965 = vshrl.u32 %v4964, 7
      %v4966 = vsub.s32 0, %v4965
      %v4967 = vrot.slane %v3340, %v4966
      %v4968 = vlaneseq
      %v4969 = vshrl.u32 %v4968, 7
      %v4970 = vsub.s32 0, %v4969
      %v4971 = vrot.slane %v3381, %v4970
      %v4972 = vlaneseq
      %v4973 = vshrl.u32 %v4972, 7
      %v4974 = vsub.s32 0, %v4973
      %v4975 = vrot.slane %v3422, %v4974
      %v4976 = vlaneseq
      %v4977 = vshrl.u32 %v4976, 7
      %v4978 = vsub.s32 0, %v4977
      %v4979 = vrot.slane %v3463, %v4978
      %v4980 = vlaneseq
      %v4981 = vshrl.u32 %v4980, 7
      %v4982 = vsub.s32 0, %v4981
      %v4983 = vrot.slane %v3504, %v4982
      %v4984 = vsel %vm3761, %v4291, %v4287
      %v4985 = vsel %vm3763, %v4295, %v4984
      %v4986 = vsel %vm3765, %v4299, %v4985
      %v4987 = vsel %vm3767, %v4303, %v4986
      %v4988 = vsel %vm3769, %v4307, %v4987
      %v4989 = vsel %vm3771, %v4311, %v4988
      %v4990 = vsel %vm3773, %v4955, %v4989
      %v4991 = vsel %vm3761, %v4323, %v4319
      %v4992 = vsel %vm3763, %v4327, %v4991
      %v4993 = vsel %vm3765, %v4331, %v4992
      %v4994 = vsel %vm3767, %v4335, %v4993
      %v4995 = vsel %vm3769, %v4339, %v4994
      %v4996 = vsel %vm3771, %v4343, %v4995
      %v4997 = vsel %vm3773, %v4959, %v4996
      %v4998 = vsel %vm3761, %v4355, %v4351
      %v4999 = vsel %vm3763, %v4359, %v4998
      %v5000 = vsel %vm3765, %v4363, %v4999
      %v5001 = vsel %vm3767, %v4367, %v5000
      %v5002 = vsel %vm3769, %v4371, %v5001
      %v5003 = vsel %vm3771, %v4375, %v5002
      %v5004 = vsel %vm3773, %v4963, %v5003
      %v5005 = vsel %vm3761, %v4387, %v4383
      %v5006 = vsel %vm3763, %v4391, %v5005
      %v5007 = vsel %vm3765, %v4395, %v5006
      %v5008 = vsel %vm3767, %v4399, %v5007
      %v5009 = vsel %vm3769, %v4403, %v5008
      %v5010 = vsel %vm3771, %v4407, %v5009
      %v5011 = vsel %vm3773, %v4967, %v5010
      %v5012 = vsel %vm3761, %v4419, %v4415
      %v5013 = vsel %vm3763, %v4423, %v5012
      %v5014 = vsel %vm3765, %v4427, %v5013
      %v5015 = vsel %vm3767, %v4431, %v5014
      %v5016 = vsel %vm3769, %v4435, %v5015
      %v5017 = vsel %vm3771, %v4439, %v5016
      %v5018 = vsel %vm3773, %v4971, %v5017
      %v5019 = vsel %vm3761, %v4451, %v4447
      %v5020 = vsel %vm3763, %v4455, %v5019
      %v5021 = vsel %vm3765, %v4459, %v5020
      %v5022 = vsel %vm3767, %v4463, %v5021
      %v5023 = vsel %vm3769, %v4467, %v5022
      %v5024 = vsel %vm3771, %v4471, %v5023
      %v5025 = vsel %vm3773, %v4975, %v5024
      %v5026 = vsel %vm3761, %v4483, %v4479
      %v5027 = vsel %vm3763, %v4487, %v5026
      %v5028 = vsel %vm3765, %v4491, %v5027
      %v5029 = vsel %vm3767, %v4495, %v5028
      %v5030 = vsel %vm3769, %v4499, %v5029
      %v5031 = vsel %vm3771, %v4503, %v5030
      %v5032 = vsel %vm3773, %v4979, %v5031
      %v5033 = vsel %vm3761, %v4515, %v4511
      %v5034 = vsel %vm3763, %v4519, %v5033
      %v5035 = vsel %vm3765, %v4523, %v5034
      %v5036 = vsel %vm3767, %v4527, %v5035
      %v5037 = vsel %vm3769, %v4531, %v5036
      %v5038 = vsel %vm3771, %v4535, %v5037
      %v5039 = vsel %vm3773, %v4983, %v5038
      %5040 = vrot.lane.b32.xlu0 %v4990, 40
      %v5041 = vpop.permute.xlu0 %5040
      %5042 = vrot.lane.b32.xlu0 %v4997, 40
      %v5043 = vpop.permute.xlu0 %5042
      %5044 = vrot.lane.b32.xlu0 %v5004, 40
      %v5045 = vpop.permute.xlu0 %5044
      %5046 = vrot.lane.b32.xlu0 %v5011, 40
      %v5047 = vpop.permute.xlu0 %5046
      %5048 = vrot.lane.b32.xlu0 %v5018, 40
      %v5049 = vpop.permute.xlu0 %5048
      %5050 = vrot.lane.b32.xlu0 %v5025, 40
      %v5051 = vpop.permute.xlu0 %5050
      %5052 = vrot.lane.b32.xlu0 %v5032, 40
      %v5053 = vpop.permute.xlu0 %5052
      %5054 = vrot.lane.b32.xlu0 %v5039, 40
      %v5055 = vpop.permute.xlu0 %5054
      %v5064 = vlaneseq
      %v5065 = vshrl.u32 %v5064, 7
      %v5066 = vsub.s32 0, %v5065
      %v5067 = vrot.slane %v3119, %v5066
      %v5068 = vlaneseq
      %v5069 = vshrl.u32 %v5068, 7
      %v5070 = vsub.s32 0, %v5069
      %v5071 = vrot.slane %v3127, %v5070
      %v5072 = vlaneseq
      %v5073 = vshrl.u32 %v5072, 7
      %v5074 = vsub.s32 0, %v5073
      %v5075 = vrot.slane %v3126, %v5074
      %v5076 = vlaneseq
      %v5077 = vshrl.u32 %v5076, 7
      %v5078 = vsub.s32 0, %v5077
      %v5079 = vrot.slane %v3128, %v5078
      %v5080 = vlaneseq
      %v5081 = vshrl.u32 %v5080, 7
      %v5082 = vsub.s32 0, %v5081
      %v5083 = vrot.slane %v3136, %v5082
      %v5084 = vlaneseq
      %v5085 = vshrl.u32 %v5084, 7
      %v5086 = vsub.s32 0, %v5085
      %v5087 = vrot.slane %v3144, %v5086
      %v5088 = vlaneseq
      %v5089 = vshrl.u32 %v5088, 7
      %v5090 = vsub.s32 0, %v5089
      %v5091 = vrot.slane %v3143, %v5090
      %v5092 = vlaneseq
      %v5093 = vshrl.u32 %v5092, 7
      %v5094 = vsub.s32 0, %v5093
      %v5095 = vrot.slane %v3145, %v5094
      %v5096 = vsel %vm3761, %v5071, %v5067
      %v5097 = vsel %vm3763, %v5075, %v5096
      %v5098 = vsel %vm3765, %v5079, %v5097
      %v5099 = vsel %vm3767, %v5083, %v5098
      %v5100 = vsel %vm3769, %v5087, %v5099
      %v5101 = vsel %vm3771, %v5091, %v5100
      %v5102 = vsel %vm3773, %v5095, %v5101
      %5103 = vrot.lane.b32.xlu0 %v3781, 48
      %v5104 = vpop.permute.xlu0 %5103
      %5105 = vrot.lane.b32.xlu0 %v3788, 48
      %v5106 = vpop.permute.xlu0 %5105
      %5107 = vrot.lane.b32.xlu0 %v3795, 48
      %v5108 = vpop.permute.xlu0 %5107
      %5109 = vrot.lane.b32.xlu0 %v3802, 48
      %v5110 = vpop.permute.xlu0 %5109
      %5111 = vrot.lane.b32.xlu0 %v3809, 48
      %v5112 = vpop.permute.xlu0 %5111
      %5113 = vrot.lane.b32.xlu0 %v3816, 48
      %v5114 = vpop.permute.xlu0 %5113
      %5115 = vrot.lane.b32.xlu0 %v3823, 48
      %v5116 = vpop.permute.xlu0 %5115
      %5117 = vrot.lane.b32.xlu0 %v5102, 48
      %v5118 = vpop.permute.xlu0 %5117
      %v5127 = vlaneseq
      %v5128 = vshrl.u32 %v5127, 7
      %v5129 = vsub.s32 1, %v5128
      %v5130 = vrot.slane %v3119, %v5129
      %v5131 = vlaneseq
      %v5132 = vshrl.u32 %v5131, 7
      %v5133 = vsub.s32 1, %v5132
      %v5134 = vrot.slane %v3127, %v5133
      %v5135 = vlaneseq
      %v5136 = vshrl.u32 %v5135, 7
      %v5137 = vsub.s32 1, %v5136
      %v5138 = vrot.slane %v3126, %v5137
      %v5139 = vlaneseq
      %v5140 = vshrl.u32 %v5139, 7
      %v5141 = vsub.s32 1, %v5140
      %v5142 = vrot.slane %v3128, %v5141
      %v5143 = vlaneseq
      %v5144 = vshrl.u32 %v5143, 7
      %v5145 = vsub.s32 1, %v5144
      %v5146 = vrot.slane %v3136, %v5145
      %v5147 = vlaneseq
      %v5148 = vshrl.u32 %v5147, 7
      %v5149 = vsub.s32 1, %v5148
      %v5150 = vrot.slane %v3144, %v5149
      %v5151 = vlaneseq
      %v5152 = vshrl.u32 %v5151, 7
      %v5153 = vsub.s32 1, %v5152
      %v5154 = vrot.slane %v3143, %v5153
      %v5155 = vlaneseq
      %v5156 = vshrl.u32 %v5155, 7
      %v5157 = vsub.s32 1, %v5156
      %v5158 = vrot.slane %v3145, %v5157
      %v5159 = vsel %vm3761, %v5134, %v5130
      %v5160 = vsel %vm3763, %v5138, %v5159
      %v5161 = vsel %vm3765, %v5142, %v5160
      %v5162 = vsel %vm3767, %v5146, %v5161
      %v5163 = vsel %vm3769, %v5150, %v5162
      %v5164 = vsel %vm3771, %v5154, %v5163
      %v5165 = vsel %vm3773, %v5158, %v5164
      %5166 = vrot.lane.b32.xlu0 %v4101, 56
      %v5167 = vpop.permute.xlu0 %5166
      %5168 = vrot.lane.b32.xlu0 %v4108, 56
      %v5169 = vpop.permute.xlu0 %5168
      %5170 = vrot.lane.b32.xlu0 %v4115, 56
      %v5171 = vpop.permute.xlu0 %5170
      %5172 = vrot.lane.b32.xlu0 %v4122, 56
      %v5173 = vpop.permute.xlu0 %5172
      %5174 = vrot.lane.b32.xlu0 %v4129, 56
      %v5175 = vpop.permute.xlu0 %5174
      %5176 = vrot.lane.b32.xlu0 %v4136, 56
      %v5177 = vpop.permute.xlu0 %5176
      %5178 = vrot.lane.b32.xlu0 %v4143, 56
      %v5179 = vpop.permute.xlu0 %5178
      %5180 = vrot.lane.b32.xlu0 %v5165, 56
      %v5181 = vpop.permute.xlu0 %5180
      %v5190 = vlaneseq
      %v5191 = vshrl.u32 %v5190, 7
      %v5192 = vsub.s32 0, %v5191
      %v5193 = vrot.slane %v3152, %v5192
      %v5194 = vsel %vm3761, %v5075, %v5071
      %v5195 = vsel %vm3763, %v5079, %v5194
      %v5196 = vsel %vm3765, %v5083, %v5195
      %v5197 = vsel %vm3767, %v5087, %v5196
      %v5198 = vsel %vm3769, %v5091, %v5197
      %v5199 = vsel %vm3771, %v5095, %v5198
      %v5200 = vsel %vm3773, %v5193, %v5199
      %5201 = vrot.lane.b32.xlu0 %v4213, 64
      %v5202 = vpop.permute.xlu0 %5201
      %5203 = vrot.lane.b32.xlu0 %v4220, 64
      %v5204 = vpop.permute.xlu0 %5203
      %5205 = vrot.lane.b32.xlu0 %v4227, 64
      %v5206 = vpop.permute.xlu0 %5205
      %5207 = vrot.lane.b32.xlu0 %v4234, 64
      %v5208 = vpop.permute.xlu0 %5207
      %5209 = vrot.lane.b32.xlu0 %v4241, 64
      %v5210 = vpop.permute.xlu0 %5209
      %5211 = vrot.lane.b32.xlu0 %v4248, 64
      %v5212 = vpop.permute.xlu0 %5211
      %5213 = vrot.lane.b32.xlu0 %v4255, 64
      %v5214 = vpop.permute.xlu0 %5213
      %5215 = vrot.lane.b32.xlu0 %v5200, 64
      %v5216 = vpop.permute.xlu0 %5215
      %v5225 = vsel %vm2069, %v3774, %v4145
      %v5226 = vsel %vm2069, %v3781, %v4147
      %v5227 = vsel %vm2069, %v3788, %v4149
      %v5228 = vsel %vm2069, %v3795, %v4151
      %v5229 = vsel %vm2069, %v3802, %v4153
      %v5230 = vsel %vm2069, %v3809, %v4155
      %v5231 = vsel %vm2069, %v3816, %v4157
      %v5232 = vsel %vm2069, %v3823, %v4159
      %v5233 = vsel %vm2135, %v5225, %v4257
      %v5234 = vsel %vm2135, %v5226, %v4259
      %v5235 = vsel %vm2135, %v5227, %v4261
      %v5236 = vsel %vm2135, %v5228, %v4263
      %v5237 = vsel %vm2135, %v5229, %v4265
      %v5238 = vsel %vm2135, %v5230, %v4267
      %v5239 = vsel %vm2135, %v5231, %v4269
      %v5240 = vsel %vm2135, %v5232, %v4271
      %v5241 = vsel %vm2201, %v5233, %v4593
      %v5242 = vsel %vm2201, %v5234, %v4595
      %v5243 = vsel %vm2201, %v5235, %v4597
      %v5244 = vsel %vm2201, %v5236, %v4599
      %v5245 = vsel %vm2201, %v5237, %v4601
      %v5246 = vsel %vm2201, %v5238, %v4603
      %v5247 = vsel %vm2201, %v5239, %v4605
      %v5248 = vsel %vm2201, %v5240, %v4607
      %v5249 = vsel %vm634, %v5241, %v4929
      %v5250 = vsel %vm634, %v5242, %v4931
      %v5251 = vsel %vm634, %v5243, %v4933
      %v5252 = vsel %vm634, %v5244, %v4935
      %v5253 = vsel %vm634, %v5245, %v4937
      %v5254 = vsel %vm634, %v5246, %v4939
      %v5255 = vsel %vm634, %v5247, %v4941
      %v5256 = vsel %vm634, %v5248, %v4943
      %vm5257 = vcmask 326656
      %v5258 = vsel %vm5257, %v5249, %v5041
      %v5259 = vsel %vm5257, %v5250, %v5043
      %v5260 = vsel %vm5257, %v5251, %v5045
      %v5261 = vsel %vm5257, %v5252, %v5047
      %v5262 = vsel %vm5257, %v5253, %v5049
      %v5263 = vsel %vm5257, %v5254, %v5051
      %v5264 = vsel %vm5257, %v5255, %v5053
      %v5265 = vsel %vm5257, %v5256, %v5055
      %vm5266 = vcmask 392192
      %v5267 = vsel %vm5266, %v5258, %v5104
      %v5268 = vsel %vm5266, %v5259, %v5106
      %v5269 = vsel %vm5266, %v5260, %v5108
      %v5270 = vsel %vm5266, %v5261, %v5110
      %v5271 = vsel %vm5266, %v5262, %v5112
      %v5272 = vsel %vm5266, %v5263, %v5114
      %v5273 = vsel %vm5266, %v5264, %v5116
      %v5274 = vsel %vm5266, %v5265, %v5118
      %vm5275 = vcmask 457728
      %v5276 = vsel %vm5275, %v5267, %v5167
      %v5277 = vsel %vm5275, %v5268, %v5169
      %v5278 = vsel %vm5275, %v5269, %v5171
      %v5279 = vsel %vm5275, %v5270, %v5173
      %v5280 = vsel %vm5275, %v5271, %v5175
      %v5281 = vsel %vm5275, %v5272, %v5177
      %v5282 = vsel %vm5275, %v5273, %v5179
      %v5283 = vsel %vm5275, %v5274, %v5181
      %vm5284 = vcmask 523264
      %v5285 = vsel %vm5284, %v5276, %v5202
      %v5286 = vsel %vm5284, %v5277, %v5204
      %v5287 = vsel %vm5284, %v5278, %v5206
      %v5288 = vsel %vm5284, %v5279, %v5208
      %v5289 = vsel %vm5284, %v5280, %v5210
      %v5290 = vsel %vm5284, %v5281, %v5212
      %v5291 = vsel %vm5284, %v5282, %v5214
      %v5292 = vsel %vm5284, %v5283, %v5216
      %v5293 = vpack.c.bf16 %v5286, %v5285
      %v5294 = vpack.c.bf16 %v5288, %v5287
      %v5295 = vpack.c.bf16 %v5290, %v5289
      %v5296 = vpack.c.bf16 %v5292, %v5291
      %v5297 = vld [vmem:[%s3] sm:$0xf]
      %v5298 = vld [vmem:[%s3 + $0x4] sm:$0xf]
      %v5299 = vld [vmem:[%s3 + $0x8] sm:$0xf]
      %v5300 = vld [vmem:[%s3 + $0xc] sm:$0xf]
      %v5301 = vld [vmem:[%s3 + $0x10] sm:$0xf]
      %v5302 = vld [vmem:[%s3 + $0x14] sm:$0xf]
      %v5303 = vld [vmem:[%s3 + $0x18] sm:$0xf]
      %v5304 = vld [vmem:[%s3 + $0x1c] sm:$0xf]
      %v5305 = vld [vmem:[%s3 + $0x20] sm:$0xf]
      %v5306 = vld [vmem:[%s4] sm:$0x1]
      %v5308 = vlaneseq
      %v5309 = vshrl.u32 %v5308, 7
      %v5310 = vsub.s32 0, %v5309
      %v5311 = vrot.slane %v5306, %v5310
      %v5322 = vunpack.c.l.b16 %v5297
      %v5323 = vunpack.c.l.b16 %v5298
      %v5324 = vunpack.c.l.b16 %v5299
      %v5325 = vunpack.c.l.b16 %v5300
      %v5326 = vunpack.c.l.b16 %v5301
      %v5327 = vunpack.c.l.b16 %v5302
      %v5328 = vunpack.c.l.b16 %v5303
      %v5329 = vunpack.c.l.b16 %v5304
      %v5330 = vunpack.c.l.b16 %v5305
      %v5331 = vpack.c.b16 %v5323, %v5322
      %v5332 = vpack.c.b16 %v5325, %v5324
      %v5333 = vpack.c.b16 %v5327, %v5326
      %v5334 = vpack.c.b16 %v5329, %v5328
      %v5335 = vpack.c.b16 %v5330, %v5330
      %vm5340 = vcmask 588800
      %v5342 = vsel %vm5340, %v5293, 0
      %v5345 = vsel %vm5340, %v5294, 0
      %v5348 = vsel %vm5340, %v5295, 0
      %v5351 = vsel %vm5340, %v5296, 0
      %vm5353 = vcmask 1043456
      %v5355 = vsel %vm5353, %v5335, 0
      %5357 = vmatprep.subr.bf16.mxu0 0
      %5358 = vmatpush1.bf16.msra.mxu0 %v5331
      %5359 = vmatprep.subr.bf16.mxu0 0
      %5360 = vmatpush1.bf16.msra.mxu0 %v5332
      %5361 = vmatprep.subr.bf16.mxu0 0
      %5362 = vmatpush1.bf16.msra.mxu0 %v5333
      %5363 = vmatprep.subr.bf16.mxu0 0
      %5364 = vmatpush1.bf16.msra.mxu0 %v5334
      %5365 = vmatprep.subr.bf16.mxu0 0
      %5366 = vmatpush1.bf16.msra.mxu0 %v5355
      %5367 = vmatprep.subr.bf16.mxu0 0
      %5368 = vmatpush1.bf16.msra.mxu0 0
      %5369 = vmatprep.subr.bf16.mxu0 0
      %5370 = vmatpush1.bf16.msra.mxu0 0
      %5371 = vmatprep.subr.bf16.mxu0 0
      %5372 = vmatpush1.bf16.msra.mxu0 0
      %5373 = vmatprep.subr.bf16.mxu0 0
      %5374 = vmatpush1.bf16.msra.mxu0 0
      %5375 = vmatprep.subr.bf16.mxu0 0
      %5376 = vmatpush1.bf16.msra.mxu0 0
      %5377 = vmatprep.subr.bf16.mxu0 0
      %5378 = vmatpush1.bf16.msra.mxu0 0
      %5379 = vmatprep.subr.bf16.mxu0 0
      %5380 = vmatpush1.bf16.msra.mxu0 0
      %5381 = vmatprep.subr.bf16.mxu0 0
      %5382 = vmatpush1.bf16.msra.mxu0 0
      %5383 = vmatprep.subr.bf16.mxu0 0
      %5384 = vmatpush1.bf16.msra.mxu0 0
      %5385 = vmatprep.subr.bf16.mxu0 0
      %5386 = vmatpush1.bf16.msra.mxu0 0
      %5387 = vmatprep.subr.bf16.mxu0 0
      %5388 = vmatpush1.bf16.msra.mxu0 0
      %5389 = vmatprep.mubr.bf16.mxu0 0
      %5390 = vmatmul.mubr.bf16.gmra.mrb[0].mxu0 %v5342
      %v5391 = vpop.f32.mrb[0].mxu0
      %v5392 = vadd.f32 %v5311, %v5391
      %v5393 = vpop.f32.mrb[0].mxu0
      %v5394 = vpop.f32.mrb[0].mxu0
      %v5395 = vadd.f32 %v5311, %v5394
      %v5396 = vpop.f32.mrb[0].mxu0
      %5397 = vmatprep.mubr.bf16.mxu0 0
      %5398 = vmatmul.mubr.bf16.gmra.mrb[0].mxu0 %v5345
      %v5399 = vpop.f32.mrb[0].mxu0
      %v5400 = vadd.f32 %v5311, %v5399
      %v5401 = vpop.f32.mrb[0].mxu0
      %v5402 = vpop.f32.mrb[0].mxu0
      %v5403 = vadd.f32 %v5311, %v5402
      %v5404 = vpop.f32.mrb[0].mxu0
      %5405 = vmatprep.mubr.bf16.mxu0 0
      %5406 = vmatmul.mubr.bf16.gmra.mrb[0].mxu0 %v5348
      %v5407 = vpop.f32.mrb[0].mxu0
      %v5408 = vadd.f32 %v5311, %v5407
      %v5409 = vpop.f32.mrb[0].mxu0
      %v5410 = vpop.f32.mrb[0].mxu0
      %v5411 = vadd.f32 %v5311, %v5410
      %v5412 = vpop.f32.mrb[0].mxu0
      %5413 = vmatprep.mubr.bf16.mxu0 0
      %5414 = vmatmul.mubr.bf16.gmra.mrb[0].mxu0 %v5351
      %v5415 = vpop.f32.mrb[0].mxu0
      %v5416 = vadd.f32 %v5311, %v5415
      %v5417 = vpop.f32.mrb[0].mxu0
      %v5418 = vpop.f32.mrb[0].mxu0
      %v5419 = vadd.f32 %v5311, %v5418
      %v5420 = vpop.f32.mrb[0].mxu0
      %5421 = vdwg.mxu0
      %v5422 = vmul.f32 %v5392, 0.2
      %v5423 = vmul.f32 %v5395, 0.2
      %v5424 = vmul.f32 %v5400, 0.2
      %v5425 = vmul.f32 %v5403, 0.2
      %v5426 = vmul.f32 %v5408, 0.2
      %v5427 = vmul.f32 %v5411, 0.2
      %v5428 = vmul.f32 %v5416, 0.2
      %v5429 = vmul.f32 %v5419, 0.2
      %v5430 = vmax.f32 %v5392, %v5422
      %v5431 = vmax.f32 %v5395, %v5423
      %v5432 = vmax.f32 %v5400, %v5424
      %v5433 = vmax.f32 %v5403, %v5425
      %v5434 = vmax.f32 %v5408, %v5426
      %v5435 = vmax.f32 %v5411, %v5427
      %v5436 = vmax.f32 %v5416, %v5428
      %v5437 = vmax.f32 %v5419, %v5429
      %5438 = vst.msk [vmem:[#allocation2] sm:$0xff] %vm634, 0.0
      %5439 = vst.msk [vmem:[#allocation2 + $0x8] sm:$0xff] %vm634, 0.0
      %5440 = vst.msk [vmem:[#allocation2 + $0x10] sm:$0x3] %vm637, 0.0
      %5441 = vst.msk [vmem:[#allocation2 + $0x18] sm:$0xff] %vm634, 0.0
      %5442 = vst.msk [vmem:[#allocation2 + $0x20] sm:$0xff] %vm634, 0.0
      %5443 = vst.msk [vmem:[#allocation2 + $0x28] sm:$0x3] %vm637, 0.0
      %5444 = vst.msk [vmem:[#allocation2 + $0x30] sm:$0xff] %vm634, 0.0
      %5445 = vst.msk [vmem:[#allocation2 + $0x38] sm:$0xff] %vm634, 0.0
      %5446 = vst.msk [vmem:[#allocation2 + $0x40] sm:$0x3] %vm637, 0.0
      %5447 = vst.msk [vmem:[#allocation2 + $0x48] sm:$0xff] %vm634, 0.0
      %5448 = vst.msk [vmem:[#allocation2 + $0x50] sm:$0xff] %vm634, 0.0
      %5449 = vst.msk [vmem:[#allocation2 + $0x58] sm:$0x3] %vm637, 0.0
      %5450 = vst.msk [vmem:[#allocation2 + $0x60] sm:$0xff] %vm634, 0.0
      %5451 = vst.msk [vmem:[#allocation2 + $0x68] sm:$0xff] %vm634, 0.0
      %5452 = vst.msk [vmem:[#allocation2 + $0x70] sm:$0x3] %vm637, 0.0
      %5453 = vst.msk [vmem:[#allocation2 + $0x78] sm:$0xff] %vm634, 0.0
      %5454 = vst.msk [vmem:[#allocation2 + $0x80] sm:$0xff] %vm634, 0.0
      %5455 = vst.msk [vmem:[#allocation2 + $0x88] sm:$0x3] %vm637, 0.0
      %5456 = vst.msk [vmem:[#allocation2 + $0x90] sm:$0xff] %vm634, 0.0
      %5457 = vst.msk [vmem:[#allocation2 + $0x98] sm:$0xff] %vm634, 0.0
      %5458 = vst.msk [vmem:[#allocation2 + $0xa0] sm:$0x3] %vm637, 0.0
      %5459 = vst.msk [vmem:[#allocation2 + $0xa8] sm:$0xff] %vm634, 0.0
      %5460 = vst.msk [vmem:[#allocation2 + $0xb0] sm:$0xff] %vm634, 0.0
      %5461 = vst.msk [vmem:[#allocation2 + $0xb8] sm:$0x3] %vm637, 0.0
      %5462 = vst.msk [vmem:[#allocation2 + $0xc0] sm:$0xff] %vm634, 0.0
      %5463 = vst.msk [vmem:[#allocation2 + $0xc8] sm:$0xff] %vm634, 0.0
      %5464 = vst.msk [vmem:[#allocation2 + $0xd0] sm:$0x3] %vm637, 0.0
      %5465 = vst.msk [vmem:[#allocation2 + $0xd8] sm:$0xff] %vm634, 0.0
      %5466 = vst.msk [vmem:[#allocation2 + $0xe0] sm:$0xff] %vm634, 0.0
      %5467 = vst.msk [vmem:[#allocation2 + $0xe8] sm:$0x3] %vm637, 0.0
      %5468 = vst.msk [vmem:[#allocation2 + $0xf0] sm:$0xff] %vm634, 0.0
      %5469 = vst.msk [vmem:[#allocation2 + $0xf8] sm:$0xff] %vm634, 0.0
      %5470 = vst.msk [vmem:[#allocation2 + $0x100] sm:$0x3] %vm637, 0.0
      %5471 = vst.msk [vmem:[#allocation2 + $0x108] sm:$0xff] %vm634, 0.0
      %5472 = vst.msk [vmem:[#allocation2 + $0x110] sm:$0xff] %vm634, 0.0
      %5473 = vst.msk [vmem:[#allocation2 + $0x118] sm:$0x3] %vm637, 0.0
      %5474 = vst.msk [vmem:[#allocation2 + $0x120] sm:$0xff] %vm634, 0.0
      %5475 = vst.msk [vmem:[#allocation2 + $0x128] sm:$0xff] %vm634, 0.0
      %5476 = vst.msk [vmem:[#allocation2 + $0x130] sm:$0x3] %vm637, 0.0
      %5477 = vst.msk [vmem:[#allocation2 + $0x138] sm:$0xff] %vm634, 0.0
      %5478 = vst.msk [vmem:[#allocation2 + $0x140] sm:$0xff] %vm634, 0.0
      %5479 = vst.msk [vmem:[#allocation2 + $0x148] sm:$0x3] %vm637, 0.0
      %5480 = vst.msk [vmem:[#allocation2 + $0x150] sm:$0xff] %vm634, 0.0
      %5481 = vst.msk [vmem:[#allocation2 + $0x158] sm:$0xff] %vm634, 0.0
      %5482 = vst.msk [vmem:[#allocation2 + $0x160] sm:$0x3] %vm637, 0.0
      %5483 = vst.msk [vmem:[#allocation2 + $0x168] sm:$0xff] %vm634, 0.0
      %5484 = vst.msk [vmem:[#allocation2 + $0x170] sm:$0xff] %vm634, 0.0
      %5485 = vst.msk [vmem:[#allocation2 + $0x178] sm:$0x3] %vm637, 0.0
      %5486 = vst.msk [vmem:[#allocation2 + $0x180] sm:$0xff] %vm634, 0.0
      %5487 = vst.msk [vmem:[#allocation2 + $0x188] sm:$0xff] %vm634, 0.0
      %5488 = vst.msk [vmem:[#allocation2 + $0x190] sm:$0x3] %vm637, 0.0
      %5489 = vst.msk [vmem:[#allocation2 + $0x198] sm:$0xff] %vm634, 0.0
      %5490 = vst.msk [vmem:[#allocation2 + $0x1a0] sm:$0xff] %vm634, 0.0
      %5491 = vst.msk [vmem:[#allocation2 + $0x1a8] sm:$0x3] %vm637, 0.0
      %5492 = vst.msk [vmem:[%s690 + $0x1] sm:$0xff] %vm2069, %v5430
      %5493 = vst.msk [vmem:[%s690 + $0x19] sm:$0xff] %vm2069, %v5431
      %5494 = vst.msk [vmem:[%s690 + $0x31] sm:$0xff] %vm2069, %v5432
      %5495 = vst.msk [vmem:[%s690 + $0x49] sm:$0xff] %vm2069, %v5433
      %5496 = vst.msk [vmem:[%s690 + $0x61] sm:$0xff] %vm2069, %v5434
      %5497 = vst.msk [vmem:[%s690 + $0x79] sm:$0xff] %vm2069, %v5435
      %5498 = vst.msk [vmem:[%s690 + $0x91] sm:$0xff] %vm2069, %v5436
      %5499 = vst.msk [vmem:[%s690 + $0xa9] sm:$0xff] %vm2069, %v5437
      %v5500 = vld [vmem:[#allocation2] sm:$0xff]
      %v5501 = vld [vmem:[#allocation2 + $0x18] sm:$0xff]
      %v5502 = vld [vmem:[#allocation2 + $0x30] sm:$0xff]
      %v5503 = vld [vmem:[#allocation2 + $0x48] sm:$0xff]
      %v5504 = vld [vmem:[#allocation2 + $0x60] sm:$0xff]
      %v5505 = vld [vmem:[#allocation2 + $0x78] sm:$0xff]
      %v5506 = vld [vmem:[#allocation2 + $0x90] sm:$0xff]
      %v5507 = vld [vmem:[#allocation2 + $0xa8] sm:$0xff]
      %v5508 = vld [vmem:[#allocation2 + $0x1] sm:$0xff]
      %v5509 = vld [vmem:[#allocation2 + $0x19] sm:$0xff]
      %v5510 = vld [vmem:[#allocation2 + $0x31] sm:$0xff]
      %v5511 = vld [vmem:[#allocation2 + $0x49] sm:$0xff]
      %v5512 = vld [vmem:[#allocation2 + $0x61] sm:$0xff]
      %v5513 = vld [vmem:[#allocation2 + $0x79] sm:$0xff]
      %v5514 = vld [vmem:[#allocation2 + $0x91] sm:$0xff]
      %v5515 = vld [vmem:[#allocation2 + $0xa9] sm:$0xff]
      %v5516 = vld [vmem:[#allocation2 + $0x2] sm:$0xff]
      %v5517 = vld [vmem:[#allocation2 + $0x1a] sm:$0xff]
      %v5518 = vld [vmem:[#allocation2 + $0x32] sm:$0xff]
      %v5519 = vld [vmem:[#allocation2 + $0x4a] sm:$0xff]
      %v5520 = vld [vmem:[#allocation2 + $0x62] sm:$0xff]
      %v5521 = vld [vmem:[#allocation2 + $0x7a] sm:$0xff]
      %v5522 = vld [vmem:[#allocation2 + $0x92] sm:$0xff]
      %v5523 = vld [vmem:[#allocation2 + $0xaa] sm:$0xff]
      %v5524 = vld [vmem:[%s690] sm:$0xff]
      %v5525 = vld [vmem:[%s690 + $0x18] sm:$0xff]
      %v5526 = vld [vmem:[%s690 + $0x30] sm:$0xff]
      %v5527 = vld [vmem:[%s690 + $0x48] sm:$0xff]
      %v5528 = vld [vmem:[%s690 + $0x60] sm:$0xff]
      %v5529 = vld [vmem:[%s690 + $0x78] sm:$0xff]
      %v5530 = vld [vmem:[%s690 + $0x90] sm:$0xff]
      %v5531 = vld [vmem:[%s690 + $0xa8] sm:$0xff]
      %v5532 = vld [vmem:[%s690 + $0x1] sm:$0xff]
      %v5533 = vld [vmem:[%s690 + $0x19] sm:$0xff]
      %v5534 = vld [vmem:[%s690 + $0x31] sm:$0xff]
      %v5535 = vld [vmem:[%s690 + $0x49] sm:$0xff]
      %v5536 = vld [vmem:[%s690 + $0x61] sm:$0xff]
      %v5537 = vld [vmem:[%s690 + $0x79] sm:$0xff]
      %v5538 = vld [vmem:[%s690 + $0x91] sm:$0xff]
      %v5539 = vld [vmem:[%s690 + $0xa9] sm:$0xff]
      %v5540 = vld [vmem:[%s690 + $0x2] sm:$0xff]
      %v5541 = vld [vmem:[%s690 + $0x1a] sm:$0xff]
      %v5542 = vld [vmem:[%s690 + $0x32] sm:$0xff]
      %v5543 = vld [vmem:[%s690 + $0x4a] sm:$0xff]
      %v5544 = vld [vmem:[%s690 + $0x62] sm:$0xff]
      %v5545 = vld [vmem:[%s690 + $0x7a] sm:$0xff]
      %v5546 = vld [vmem:[%s690 + $0x92] sm:$0xff]
      %v5547 = vld [vmem:[%s690 + $0xaa] sm:$0xff]
      %v5548 = vld [vmem:[%s916] sm:$0xff]
      %v5549 = vld [vmem:[%s916 + $0x18] sm:$0xff]
      %v5550 = vld [vmem:[%s916 + $0x30] sm:$0xff]
      %v5551 = vld [vmem:[%s916 + $0x48] sm:$0xff]
      %v5552 = vld [vmem:[%s916 + $0x60] sm:$0xff]
      %v5553 = vld [vmem:[%s916 + $0x78] sm:$0xff]
      %v5554 = vld [vmem:[%s916 + $0x90] sm:$0xff]
      %v5555 = vld [vmem:[%s916 + $0xa8] sm:$0xff]
      %v5556 = vld [vmem:[%s916 + $0x1] sm:$0xff]
      %v5557 = vld [vmem:[%s916 + $0x19] sm:$0xff]
      %v5558 = vld [vmem:[%s916 + $0x31] sm:$0xff]
      %v5559 = vld [vmem:[%s916 + $0x49] sm:$0xff]
      %v5560 = vld [vmem:[%s916 + $0x61] sm:$0xff]
      %v5561 = vld [vmem:[%s916 + $0x79] sm:$0xff]
      %v5562 = vld [vmem:[%s916 + $0x91] sm:$0xff]
      %v5563 = vld [vmem:[%s916 + $0xa9] sm:$0xff]
      %v5564 = vld [vmem:[%s916 + $0x2] sm:$0xff]
      %v5565 = vld [vmem:[%s916 + $0x1a] sm:$0xff]
      %v5566 = vld [vmem:[%s916 + $0x32] sm:$0xff]
      %v5567 = vld [vmem:[%s916 + $0x4a] sm:$0xff]
      %v5568 = vld [vmem:[%s916 + $0x62] sm:$0xff]
      %v5569 = vld [vmem:[%s916 + $0x7a] sm:$0xff]
      %v5570 = vld [vmem:[%s916 + $0x92] sm:$0xff]
      %v5571 = vld [vmem:[%s916 + $0xaa] sm:$0xff]
      %5580 = vrot.lane.b32.xlu0 %v5508, 8
      %v5581 = vpop.permute.xlu0 %5580
      %5582 = vrot.lane.b32.xlu0 %v5509, 8
      %v5583 = vpop.permute.xlu0 %5582
      %5584 = vrot.lane.b32.xlu0 %v5510, 8
      %v5585 = vpop.permute.xlu0 %5584
      %5586 = vrot.lane.b32.xlu0 %v5511, 8
      %v5587 = vpop.permute.xlu0 %5586
      %5588 = vrot.lane.b32.xlu0 %v5512, 8
      %v5589 = vpop.permute.xlu0 %5588
      %5590 = vrot.lane.b32.xlu0 %v5513, 8
      %v5591 = vpop.permute.xlu0 %5590
      %5592 = vrot.lane.b32.xlu0 %v5514, 8
      %v5593 = vpop.permute.xlu0 %5592
      %5594 = vrot.lane.b32.xlu0 %v5515, 8
      %v5595 = vpop.permute.xlu0 %5594
      %5612 = vrot.lane.b32.xlu0 %v5516, 16
      %v5613 = vpop.permute.xlu0 %5612
      %5614 = vrot.lane.b32.xlu0 %v5517, 16
      %v5615 = vpop.permute.xlu0 %5614
      %5616 = vrot.lane.b32.xlu0 %v5518, 16
      %v5617 = vpop.permute.xlu0 %5616
      %5618 = vrot.lane.b32.xlu0 %v5519, 16
      %v5619 = vpop.permute.xlu0 %5618
      %5620 = vrot.lane.b32.xlu0 %v5520, 16
      %v5621 = vpop.permute.xlu0 %5620
      %5622 = vrot.lane.b32.xlu0 %v5521, 16
      %v5623 = vpop.permute.xlu0 %5622
      %5624 = vrot.lane.b32.xlu0 %v5522, 16
      %v5625 = vpop.permute.xlu0 %5624
      %5626 = vrot.lane.b32.xlu0 %v5523, 16
      %v5627 = vpop.permute.xlu0 %5626
      %5644 = vrot.lane.b32.xlu0 %v5524, 24
      %v5645 = vpop.permute.xlu0 %5644
      %5646 = vrot.lane.b32.xlu0 %v5525, 24
      %v5647 = vpop.permute.xlu0 %5646
      %5648 = vrot.lane.b32.xlu0 %v5526, 24
      %v5649 = vpop.permute.xlu0 %5648
      %5650 = vrot.lane.b32.xlu0 %v5527, 24
      %v5651 = vpop.permute.xlu0 %5650
      %5652 = vrot.lane.b32.xlu0 %v5528, 24
      %v5653 = vpop.permute.xlu0 %5652
      %5654 = vrot.lane.b32.xlu0 %v5529, 24
      %v5655 = vpop.permute.xlu0 %5654
      %5656 = vrot.lane.b32.xlu0 %v5530, 24
      %v5657 = vpop.permute.xlu0 %5656
      %5658 = vrot.lane.b32.xlu0 %v5531, 24
      %v5659 = vpop.permute.xlu0 %5658
      %5676 = vrot.lane.b32.xlu0 %v5532, 32
      %v5677 = vpop.permute.xlu0 %5676
      %5678 = vrot.lane.b32.xlu0 %v5533, 32
      %v5679 = vpop.permute.xlu0 %5678
      %5680 = vrot.lane.b32.xlu0 %v5534, 32
      %v5681 = vpop.permute.xlu0 %5680
      %5682 = vrot.lane.b32.xlu0 %v5535, 32
      %v5683 = vpop.permute.xlu0 %5682
      %5684 = vrot.lane.b32.xlu0 %v5536, 32
      %v5685 = vpop.permute.xlu0 %5684
      %5686 = vrot.lane.b32.xlu0 %v5537, 32
      %v5687 = vpop.permute.xlu0 %5686
      %5688 = vrot.lane.b32.xlu0 %v5538, 32
      %v5689 = vpop.permute.xlu0 %5688
      %5690 = vrot.lane.b32.xlu0 %v5539, 32
      %v5691 = vpop.permute.xlu0 %5690
      %5708 = vrot.lane.b32.xlu0 %v5540, 40
      %v5709 = vpop.permute.xlu0 %5708
      %5710 = vrot.lane.b32.xlu0 %v5541, 40
      %v5711 = vpop.permute.xlu0 %5710
      %5712 = vrot.lane.b32.xlu0 %v5542, 40
      %v5713 = vpop.permute.xlu0 %5712
      %5714 = vrot.lane.b32.xlu0 %v5543, 40
      %v5715 = vpop.permute.xlu0 %5714
      %5716 = vrot.lane.b32.xlu0 %v5544, 40
      %v5717 = vpop.permute.xlu0 %5716
      %5718 = vrot.lane.b32.xlu0 %v5545, 40
      %v5719 = vpop.permute.xlu0 %5718
      %5720 = vrot.lane.b32.xlu0 %v5546, 40
      %v5721 = vpop.permute.xlu0 %5720
      %5722 = vrot.lane.b32.xlu0 %v5547, 40
      %v5723 = vpop.permute.xlu0 %5722
      %5740 = vrot.lane.b32.xlu0 %v5548, 48
      %v5741 = vpop.permute.xlu0 %5740
      %5742 = vrot.lane.b32.xlu0 %v5549, 48
      %v5743 = vpop.permute.xlu0 %5742
      %5744 = vrot.lane.b32.xlu0 %v5550, 48
      %v5745 = vpop.permute.xlu0 %5744
      %5746 = vrot.lane.b32.xlu0 %v5551, 48
      %v5747 = vpop.permute.xlu0 %5746
      %5748 = vrot.lane.b32.xlu0 %v5552, 48
      %v5749 = vpop.permute.xlu0 %5748
      %5750 = vrot.lane.b32.xlu0 %v5553, 48
      %v5751 = vpop.permute.xlu0 %5750
      %5752 = vrot.lane.b32.xlu0 %v5554, 48
      %v5753 = vpop.permute.xlu0 %5752
      %5754 = vrot.lane.b32.xlu0 %v5555, 48
      %v5755 = vpop.permute.xlu0 %5754
      %5772 = vrot.lane.b32.xlu0 %v5556, 56
      %v5773 = vpop.permute.xlu0 %5772
      %5774 = vrot.lane.b32.xlu0 %v5557, 56
      %v5775 = vpop.permute.xlu0 %5774
      %5776 = vrot.lane.b32.xlu0 %v5558, 56
      %v5777 = vpop.permute.xlu0 %5776
      %5778 = vrot.lane.b32.xlu0 %v5559, 56
      %v5779 = vpop.permute.xlu0 %5778
      %5780 = vrot.lane.b32.xlu0 %v5560, 56
      %v5781 = vpop.permute.xlu0 %5780
      %5782 = vrot.lane.b32.xlu0 %v5561, 56
      %v5783 = vpop.permute.xlu0 %5782
      %5784 = vrot.lane.b32.xlu0 %v5562, 56
      %v5785 = vpop.permute.xlu0 %5784
      %5786 = vrot.lane.b32.xlu0 %v5563, 56
      %v5787 = vpop.permute.xlu0 %5786
      %5804 = vrot.lane.b32.xlu0 %v5564, 64
      %v5805 = vpop.permute.xlu0 %5804
      %5806 = vrot.lane.b32.xlu0 %v5565, 64
      %v5807 = vpop.permute.xlu0 %5806
      %5808 = vrot.lane.b32.xlu0 %v5566, 64
      %v5809 = vpop.permute.xlu0 %5808
      %5810 = vrot.lane.b32.xlu0 %v5567, 64
      %v5811 = vpop.permute.xlu0 %5810
      %5812 = vrot.lane.b32.xlu0 %v5568, 64
      %v5813 = vpop.permute.xlu0 %5812
      %5814 = vrot.lane.b32.xlu0 %v5569, 64
      %v5815 = vpop.permute.xlu0 %5814
      %5816 = vrot.lane.b32.xlu0 %v5570, 64
      %v5817 = vpop.permute.xlu0 %5816
      %5818 = vrot.lane.b32.xlu0 %v5571, 64
      %v5819 = vpop.permute.xlu0 %5818
      %v5828 = vsel %vm2069, %v5500, %v5581
      %v5829 = vsel %vm2069, %v5501, %v5583
      %v5830 = vsel %vm2069, %v5502, %v5585
      %v5831 = vsel %vm2069, %v5503, %v5587
      %v5832 = vsel %vm2069, %v5504, %v5589
      %v5833 = vsel %vm2069, %v5505, %v5591
      %v5834 = vsel %vm2069, %v5506, %v5593
      %v5835 = vsel %vm2069, %v5507, %v5595
      %v5836 = vsel %vm2135, %v5828, %v5613
      %v5837 = vsel %vm2135, %v5829, %v5615
      %v5838 = vsel %vm2135, %v5830, %v5617
      %v5839 = vsel %vm2135, %v5831, %v5619
      %v5840 = vsel %vm2135, %v5832, %v5621
      %v5841 = vsel %vm2135, %v5833, %v5623
      %v5842 = vsel %vm2135, %v5834, %v5625
      %v5843 = vsel %vm2135, %v5835, %v5627
      %v5844 = vsel %vm2201, %v5836, %v5645
      %v5845 = vsel %vm2201, %v5837, %v5647
      %v5846 = vsel %vm2201, %v5838, %v5649
      %v5847 = vsel %vm2201, %v5839, %v5651
      %v5848 = vsel %vm2201, %v5840, %v5653
      %v5849 = vsel %vm2201, %v5841, %v5655
      %v5850 = vsel %vm2201, %v5842, %v5657
      %v5851 = vsel %vm2201, %v5843, %v5659
      %v5852 = vsel %vm634, %v5844, %v5677
      %v5853 = vsel %vm634, %v5845, %v5679
      %v5854 = vsel %vm634, %v5846, %v5681
      %v5855 = vsel %vm634, %v5847, %v5683
      %v5856 = vsel %vm634, %v5848, %v5685
      %v5857 = vsel %vm634, %v5849, %v5687
      %v5858 = vsel %vm634, %v5850, %v5689
      %v5859 = vsel %vm634, %v5851, %v5691
      %v5860 = vsel %vm5257, %v5852, %v5709
      %v5861 = vsel %vm5257, %v5853, %v5711
      %v5862 = vsel %vm5257, %v5854, %v5713
      %v5863 = vsel %vm5257, %v5855, %v5715
      %v5864 = vsel %vm5257, %v5856, %v5717
      %v5865 = vsel %vm5257, %v5857, %v5719
      %v5866 = vsel %vm5257, %v5858, %v5721
      %v5867 = vsel %vm5257, %v5859, %v5723
      %v5868 = vsel %vm5266, %v5860, %v5741
      %v5869 = vsel %vm5266, %v5861, %v5743
      %v5870 = vsel %vm5266, %v5862, %v5745
      %v5871 = vsel %vm5266, %v5863, %v5747
      %v5872 = vsel %vm5266, %v5864, %v5749
      %v5873 = vsel %vm5266, %v5865, %v5751
      %v5874 = vsel %vm5266, %v5866, %v5753
      %v5875 = vsel %vm5266, %v5867, %v5755
      %v5876 = vsel %vm5275, %v5868, %v5773
      %v5877 = vsel %vm5275, %v5869, %v5775
      %v5878 = vsel %vm5275, %v5870, %v5777
      %v5879 = vsel %vm5275, %v5871, %v5779
      %v5880 = vsel %vm5275, %v5872, %v5781
      %v5881 = vsel %vm5275, %v5873, %v5783
      %v5882 = vsel %vm5275, %v5874, %v5785
      %v5883 = vsel %vm5275, %v5875, %v5787
      %v5884 = vsel %vm5284, %v5876, %v5805
      %v5885 = vsel %vm5284, %v5877, %v5807
      %v5886 = vsel %vm5284, %v5878, %v5809
      %v5887 = vsel %vm5284, %v5879, %v5811
      %v5888 = vsel %vm5284, %v5880, %v5813
      %v5889 = vsel %vm5284, %v5881, %v5815
      %v5890 = vsel %vm5284, %v5882, %v5817
      %v5891 = vsel %vm5284, %v5883, %v5819
      %v5892 = vpack.c.bf16 %v5885, %v5884
      %v5893 = vpack.c.bf16 %v5887, %v5886
      %v5894 = vpack.c.bf16 %v5889, %v5888
      %v5895 = vpack.c.bf16 %v5891, %v5890
      %v5896 = vld [vmem:[%s5] sm:$0xf]
      %v5897 = vld [vmem:[%s5 + $0x4] sm:$0xf]
      %v5898 = vld [vmem:[%s5 + $0x8] sm:$0xf]
      %v5899 = vld [vmem:[%s5 + $0xc] sm:$0xf]
      %v5900 = vld [vmem:[%s5 + $0x10] sm:$0xf]
      %v5901 = vld [vmem:[%s5 + $0x14] sm:$0xf]
      %v5902 = vld [vmem:[%s5 + $0x18] sm:$0xf]
      %v5903 = vld [vmem:[%s5 + $0x1c] sm:$0xf]
      %v5904 = vld [vmem:[%s5 + $0x20] sm:$0xf]
      %v5905 = vld [vmem:[%s6] sm:$0x1]
      %v5907 = vlaneseq
      %v5908 = vshrl.u32 %v5907, 7
      %v5909 = vsub.s32 0, %v5908
      %v5910 = vrot.slane %v5905, %v5909
      %v5921 = vunpack.c.l.b16 %v5896
      %v5922 = vunpack.c.l.b16 %v5897
      %v5923 = vunpack.c.l.b16 %v5898
      %v5924 = vunpack.c.l.b16 %v5899
      %v5925 = vunpack.c.l.b16 %v5900
      %v5926 = vunpack.c.l.b16 %v5901
      %v5927 = vunpack.c.l.b16 %v5902
      %v5928 = vunpack.c.l.b16 %v5903
      %v5929 = vunpack.c.l.b16 %v5904
      %v5930 = vpack.c.b16 %v5922, %v5921
      %v5931 = vpack.c.b16 %v5924, %v5923
      %v5932 = vpack.c.b16 %v5926, %v5925
      %v5933 = vpack.c.b16 %v5928, %v5927
      %v5934 = vpack.c.b16 %v5929, %v5929
      %v5940 = vsel %vm5340, %v5892, 0
      %v5943 = vsel %vm5340, %v5893, 0
      %v5946 = vsel %vm5340, %v5894, 0
      %v5949 = vsel %vm5340, %v5895, 0
      %v5952 = vsel %vm5353, %v5934, 0
      %5954 = vmatprep.subr.bf16.mxu0 0
      %5955 = vmatpush1.bf16.msra.mxu0 %v5930
      %5956 = vmatprep.subr.bf16.mxu0 0
      %5957 = vmatpush1.bf16.msra.mxu0 %v5931
      %5958 = vmatprep.subr.bf16.mxu0 0
      %5959 = vmatpush1.bf16.msra.mxu0 %v5932
      %5960 = vmatprep.subr.bf16.mxu0 0
      %5961 = vmatpush1.bf16.msra.mxu0 %v5933
      %5962 = vmatprep.subr.bf16.mxu0 0
      %5963 = vmatpush1.bf16.msra.mxu0 %v5952
      %5964 = vmatprep.subr.bf16.mxu0 0
      %5965 = vmatpush1.bf16.msra.mxu0 0
      %5966 = vmatprep.subr.bf16.mxu0 0
      %5967 = vmatpush1.bf16.msra.mxu0 0
      %5968 = vmatprep.subr.bf16.mxu0 0
      %5969 = vmatpush1.bf16.msra.mxu0 0
      %5970 = vmatprep.subr.bf16.mxu0 0
      %5971 = vmatpush1.bf16.msra.mxu0 0
      %5972 = vmatprep.subr.bf16.mxu0 0
      %5973 = vmatpush1.bf16.msra.mxu0 0
      %5974 = vmatprep.subr.bf16.mxu0 0
      %5975 = vmatpush1.bf16.msra.mxu0 0
      %5976 = vmatprep.subr.bf16.mxu0 0
      %5977 = vmatpush1.bf16.msra.mxu0 0
      %5978 = vmatprep.subr.bf16.mxu0 0
      %5979 = vmatpush1.bf16.msra.mxu0 0
      %5980 = vmatprep.subr.bf16.mxu0 0
      %5981 = vmatpush1.bf16.msra.mxu0 0
      %5982 = vmatprep.subr.bf16.mxu0 0
      %5983 = vmatpush1.bf16.msra.mxu0 0
      %5984 = vmatprep.subr.bf16.mxu0 0
      %5985 = vmatpush1.bf16.msra.mxu0 0
      %5986 = vmatprep.mubr.bf16.mxu0 0
      %5987 = vmatmul.mubr.bf16.gmra.mrb[0].mxu0 %v5940
      %v5988 = vpop.f32.mrb[0].mxu0
      %v5989 = vadd.f32 %v5910, %v5988
      %v5990 = vpop.f32.mrb[0].mxu0
      %v5991 = vpop.f32.mrb[0].mxu0
      %v5992 = vadd.f32 %v5910, %v5991
      %v5993 = vpop.f32.mrb[0].mxu0
      %5994 = vmatprep.mubr.bf16.mxu0 0
      %5995 = vmatmul.mubr.bf16.gmra.mrb[0].mxu0 %v5943
      %v5996 = vpop.f32.mrb[0].mxu0
      %v5997 = vadd.f32 %v5910, %v5996
      %v5998 = vpop.f32.mrb[0].mxu0
      %v5999 = vpop.f32.mrb[0].mxu0
      %v6000 = vadd.f32 %v5910, %v5999
      %v6001 = vpop.f32.mrb[0].mxu0
      %6002 = vmatprep.mubr.bf16.mxu0 0
      %6003 = vmatmul.mubr.bf16.gmra.mrb[0].mxu0 %v5946
      %v6004 = vpop.f32.mrb[0].mxu0
      %v6005 = vadd.f32 %v5910, %v6004
      %v6006 = vpop.f32.mrb[0].mxu0
      %v6007 = vpop.f32.mrb[0].mxu0
      %v6008 = vadd.f32 %v5910, %v6007
      %v6009 = vpop.f32.mrb[0].mxu0
      %6010 = vmatprep.mubr.bf16.mxu0 0
      %6011 = vmatmul.mubr.bf16.gmra.mrb[0].mxu0 %v5949
      %v6012 = vpop.f32.mrb[0].mxu0
      %v6013 = vadd.f32 %v5910, %v6012
      %v6014 = vpop.f32.mrb[0].mxu0
      %v6015 = vpop.f32.mrb[0].mxu0
      %v6016 = vadd.f32 %v5910, %v6015
      %v6017 = vpop.f32.mrb[0].mxu0
      %6018 = vdwg.mxu0
      %v6019 = vmul.f32 %v5989, 0.2
      %v6020 = vmul.f32 %v5992, 0.2
      %v6021 = vmul.f32 %v5997, 0.2
      %v6022 = vmul.f32 %v6000, 0.2
      %v6023 = vmul.f32 %v6005, 0.2
      %v6024 = vmul.f32 %v6008, 0.2
      %v6025 = vmul.f32 %v6013, 0.2
      %v6026 = vmul.f32 %v6016, 0.2
      %v6027 = vmax.f32 %v5989, %v6019
      %v6028 = vmax.f32 %v5992, %v6020
      %v6029 = vmax.f32 %v5997, %v6021
      %v6030 = vmax.f32 %v6000, %v6022
      %v6031 = vmax.f32 %v6005, %v6023
      %v6032 = vmax.f32 %v6008, %v6024
      %v6033 = vmax.f32 %v6013, %v6025
      %v6034 = vmax.f32 %v6016, %v6026
      %6035 = vst.msk [vmem:[#allocation2] sm:$0xff] %vm634, 0.0
      %6036 = vst.msk [vmem:[#allocation2 + $0x8] sm:$0xff] %vm634, 0.0
      %6037 = vst.msk [vmem:[#allocation2 + $0x10] sm:$0x3] %vm637, 0.0
      %6038 = vst.msk [vmem:[#allocation2 + $0x18] sm:$0xff] %vm634, 0.0
      %6039 = vst.msk [vmem:[#allocation2 + $0x20] sm:$0xff] %vm634, 0.0
      %6040 = vst.msk [vmem:[#allocation2 + $0x28] sm:$0x3] %vm637, 0.0
      %6041 = vst.msk [vmem:[#allocation2 + $0x30] sm:$0xff] %vm634, 0.0
      %6042 = vst.msk [vmem:[#allocation2 + $0x38] sm:$0xff] %vm634, 0.0
      %6043 = vst.msk [vmem:[#allocation2 + $0x40] sm:$0x3] %vm637, 0.0
      %6044 = vst.msk [vmem:[#allocation2 + $0x48] sm:$0xff] %vm634, 0.0
      %6045 = vst.msk [vmem:[#allocation2 + $0x50] sm:$0xff] %vm634, 0.0
      %6046 = vst.msk [vmem:[#allocation2 + $0x58] sm:$0x3] %vm637, 0.0
      %6047 = vst.msk [vmem:[#allocation2 + $0x60] sm:$0xff] %vm634, 0.0
      %6048 = vst.msk [vmem:[#allocation2 + $0x68] sm:$0xff] %vm634, 0.0
      %6049 = vst.msk [vmem:[#allocation2 + $0x70] sm:$0x3] %vm637, 0.0
      %6050 = vst.msk [vmem:[#allocation2 + $0x78] sm:$0xff] %vm634, 0.0
      %6051 = vst.msk [vmem:[#allocation2 + $0x80] sm:$0xff] %vm634, 0.0
      %6052 = vst.msk [vmem:[#allocation2 + $0x88] sm:$0x3] %vm637, 0.0
      %6053 = vst.msk [vmem:[#allocation2 + $0x90] sm:$0xff] %vm634, 0.0
      %6054 = vst.msk [vmem:[#allocation2 + $0x98] sm:$0xff] %vm634, 0.0
      %6055 = vst.msk [vmem:[#allocation2 + $0xa0] sm:$0x3] %vm637, 0.0
      %6056 = vst.msk [vmem:[#allocation2 + $0xa8] sm:$0xff] %vm634, 0.0
      %6057 = vst.msk [vmem:[#allocation2 + $0xb0] sm:$0xff] %vm634, 0.0
      %6058 = vst.msk [vmem:[#allocation2 + $0xb8] sm:$0x3] %vm637, 0.0
      %6059 = vst.msk [vmem:[#allocation2 + $0xc0] sm:$0xff] %vm634, 0.0
      %6060 = vst.msk [vmem:[#allocation2 + $0xc8] sm:$0xff] %vm634, 0.0
      %6061 = vst.msk [vmem:[#allocation2 + $0xd0] sm:$0x3] %vm637, 0.0
      %6062 = vst.msk [vmem:[#allocation2 + $0xd8] sm:$0xff] %vm634, 0.0
      %6063 = vst.msk [vmem:[#allocation2 + $0xe0] sm:$0xff] %vm634, 0.0
      %6064 = vst.msk [vmem:[#allocation2 + $0xe8] sm:$0x3] %vm637, 0.0
      %6065 = vst.msk [vmem:[#allocation2 + $0xf0] sm:$0xff] %vm634, 0.0
      %6066 = vst.msk [vmem:[#allocation2 + $0xf8] sm:$0xff] %vm634, 0.0
      %6067 = vst.msk [vmem:[#allocation2 + $0x100] sm:$0x3] %vm637, 0.0
      %6068 = vst.msk [vmem:[#allocation2 + $0x108] sm:$0xff] %vm634, 0.0
      %6069 = vst.msk [vmem:[#allocation2 + $0x110] sm:$0xff] %vm634, 0.0
      %6070 = vst.msk [vmem:[#allocation2 + $0x118] sm:$0x3] %vm637, 0.0
      %6071 = vst.msk [vmem:[#allocation2 + $0x120] sm:$0xff] %vm634, 0.0
      %6072 = vst.msk [vmem:[#allocation2 + $0x128] sm:$0xff] %vm634, 0.0
      %6073 = vst.msk [vmem:[#allocation2 + $0x130] sm:$0x3] %vm637, 0.0
      %6074 = vst.msk [vmem:[#allocation2 + $0x138] sm:$0xff] %vm634, 0.0
      %6075 = vst.msk [vmem:[#allocation2 + $0x140] sm:$0xff] %vm634, 0.0
      %6076 = vst.msk [vmem:[#allocation2 + $0x148] sm:$0x3] %vm637, 0.0
      %6077 = vst.msk [vmem:[#allocation2 + $0x150] sm:$0xff] %vm634, 0.0
      %6078 = vst.msk [vmem:[#allocation2 + $0x158] sm:$0xff] %vm634, 0.0
      %6079 = vst.msk [vmem:[#allocation2 + $0x160] sm:$0x3] %vm637, 0.0
      %6080 = vst.msk [vmem:[#allocation2 + $0x168] sm:$0xff] %vm634, 0.0
      %6081 = vst.msk [vmem:[#allocation2 + $0x170] sm:$0xff] %vm634, 0.0
      %6082 = vst.msk [vmem:[#allocation2 + $0x178] sm:$0x3] %vm637, 0.0
      %6083 = vst.msk [vmem:[#allocation2 + $0x180] sm:$0xff] %vm634, 0.0
      %6084 = vst.msk [vmem:[#allocation2 + $0x188] sm:$0xff] %vm634, 0.0
      %6085 = vst.msk [vmem:[#allocation2 + $0x190] sm:$0x3] %vm637, 0.0
      %6086 = vst.msk [vmem:[#allocation2 + $0x198] sm:$0xff] %vm634, 0.0
      %6087 = vst.msk [vmem:[#allocation2 + $0x1a0] sm:$0xff] %vm634, 0.0
      %6088 = vst.msk [vmem:[#allocation2 + $0x1a8] sm:$0x3] %vm637, 0.0
      %6089 = vst.msk [vmem:[%s690 + $0x1] sm:$0xff] %vm2135, %v6027
      %6090 = vst.msk [vmem:[%s690 + $0x19] sm:$0xff] %vm2135, %v6028
      %6091 = vst.msk [vmem:[%s690 + $0x31] sm:$0xff] %vm2135, %v6029
      %6092 = vst.msk [vmem:[%s690 + $0x49] sm:$0xff] %vm2135, %v6030
      %6093 = vst.msk [vmem:[%s690 + $0x61] sm:$0xff] %vm2135, %v6031
      %6094 = vst.msk [vmem:[%s690 + $0x79] sm:$0xff] %vm2135, %v6032
      %6095 = vst.msk [vmem:[%s690 + $0x91] sm:$0xff] %vm2135, %v6033
      %6096 = vst.msk [vmem:[%s690 + $0xa9] sm:$0xff] %vm2135, %v6034
      %v6097 = vld [vmem:[#allocation2] sm:$0xff]
      %v6098 = vld [vmem:[#allocation2 + $0x8] sm:$0x3]
      %v6099 = vld [vmem:[#allocation2 + $0x18] sm:$0xff]
      %v6100 = vld [vmem:[#allocation2 + $0x20] sm:$0x3]
      %v6101 = vld [vmem:[#allocation2 + $0x30] sm:$0xff]
      %v6102 = vld [vmem:[#allocation2 + $0x38] sm:$0x3]
      %v6103 = vld [vmem:[#allocation2 + $0x48] sm:$0xff]
      %v6104 = vld [vmem:[#allocation2 + $0x50] sm:$0x3]
      %v6105 = vld [vmem:[#allocation2 + $0x60] sm:$0xff]
      %v6106 = vld [vmem:[#allocation2 + $0x68] sm:$0x3]
      %v6107 = vld [vmem:[#allocation2 + $0x78] sm:$0xff]
      %v6108 = vld [vmem:[#allocation2 + $0x80] sm:$0x3]
      %v6109 = vld [vmem:[#allocation2 + $0x90] sm:$0xff]
      %v6110 = vld [vmem:[#allocation2 + $0x98] sm:$0x3]
      %v6111 = vld [vmem:[#allocation2 + $0xa8] sm:$0xff]
      %v6112 = vld [vmem:[#allocation2 + $0xb0] sm:$0x3]
      %v6113 = vld [vmem:[#allocation2 + $0xc0] sm:$0xff]
      %v6114 = vld [vmem:[#allocation2 + $0xc8] sm:$0x3]
      %v6125 = vcombine.high %v6097, %v6097
      %v6127 = vunpack.c.l.s4 1983009808
      %v6128 = vunpack.c.0.s8 %v6127
      %v6129 = vlaneseq
      %v6130 = vshrl.u32 %v6129, 7
      %v6131 = vsub.s32 %v6128, %v6130
      %v6132 = vrot.slane %v6097, %v6131
      %v6134 = vunpack.c.l.s4 1983009808
      %v6135 = vunpack.c.0.s8 %v6134
      %v6136 = vlaneseq
      %v6137 = vshrl.u32 %v6136, 7
      %v6138 = vsub.s32 %v6135, %v6137
      %v6139 = vrot.slane %v6125, %v6138
      %v6140 = vcombine.high %v6132, %v6132
      %v6141 = vcombine.high %v6139, %v6139
      %v6143 = vunpack.c.l.s4 1983009808
      %v6144 = vunpack.c.0.s8 %v6143
      %v6145 = vlaneseq
      %v6146 = vshrl.u32 %v6145, 7
      %v6147 = vsub.s32 %v6144, %v6146
      %v6148 = vrot.slane %v6098, %v6147
      %v6149 = vcombine.high %v6101, %v6101
      %v6151 = vunpack.c.l.s4 1983009808
      %v6152 = vunpack.c.0.s8 %v6151
      %v6153 = vlaneseq
      %v6154 = vshrl.u32 %v6153, 7
      %v6155 = vsub.s32 %v6152, %v6154
      %v6156 = vrot.slane %v6101, %v6155
      %v6158 = vunpack.c.l.s4 1983009808
      %v6159 = vunpack.c.0.s8 %v6158
      %v6160 = vlaneseq
      %v6161 = vshrl.u32 %v6160, 7
      %v6162 = vsub.s32 %v6159, %v6161
      %v6163 = vrot.slane %v6149, %v6162
      %v6164 = vcombine.high %v6156, %v6156
      %v6165 = vcombine.high %v6163, %v6163
      %v6167 = vunpack.c.l.s4 1983009808
      %v6168 = vunpack.c.0.s8 %v6167
      %v6169 = vlaneseq
      %v6170 = vshrl.u32 %v6169, 7
      %v6171 = vsub.s32 %v6168, %v6170
      %v6172 = vrot.slane %v6102, %v6171
      %v6173 = vcombine.high %v6105, %v6105
      %v6175 = vunpack.c.l.s4 1983009808
      %v6176 = vunpack.c.0.s8 %v6175
      %v6177 = vlaneseq
      %v6178 = vshrl.u32 %v6177, 7
      %v6179 = vsub.s32 %v6176, %v6178
      %v6180 = vrot.slane %v6105, %v6179
      %v6182 = vunpack.c.l.s4 1983009808
      %v6183 = vunpack.c.0.s8 %v6182
      %v6184 = vlaneseq
      %v6185 = vshrl.u32 %v6184, 7
      %v6186 = vsub.s32 %v6183, %v6185
      %v6187 = vrot.slane %v6173, %v6186
      %v6188 = vcombine.high %v6180, %v6180
      %v6189 = vcombine.high %v6187, %v6187
      %v6191 = vunpack.c.l.s4 1983009808
      %v6192 = vunpack.c.0.s8 %v6191
      %v6193 = vlaneseq
      %v6194 = vshrl.u32 %v6193, 7
      %v6195 = vsub.s32 %v6192, %v6194
      %v6196 = vrot.slane %v6106, %v6195
      %v6197 = vcombine.high %v6109, %v6109
      %v6199 = vunpack.c.l.s4 1983009808
      %v6200 = vunpack.c.0.s8 %v6199
      %v6201 = vlaneseq
      %v6202 = vshrl.u32 %v6201, 7
      %v6203 = vsub.s32 %v6200, %v6202
      %v6204 = vrot.slane %v6109, %v6203
      %v6206 = vunpack.c.l.s4 1983009808
      %v6207 = vunpack.c.0.s8 %v6206
      %v6208 = vlaneseq
      %v6209 = vshrl.u32 %v6208, 7
      %v6210 = vsub.s32 %v6207, %v6209
      %v6211 = vrot.slane %v6197, %v6210
      %v6212 = vcombine.high %v6204, %v6204
      %v6213 = vcombine.high %v6211, %v6211
      %v6215 = vunpack.c.l.s4 1983009808
      %v6216 = vunpack.c.0.s8 %v6215
      %v6217 = vlaneseq
      %v6218 = vshrl.u32 %v6217, 7
      %v6219 = vsub.s32 %v6216, %v6218
      %v6220 = vrot.slane %v6110, %v6219
      %v6221 = vcombine.high %v6113, %v6113
      %v6223 = vunpack.c.l.s4 1983009808
      %v6224 = vunpack.c.0.s8 %v6223
      %v6225 = vlaneseq
      %v6226 = vshrl.u32 %v6225, 7
      %v6227 = vsub.s32 %v6224, %v6226
      %v6228 = vrot.slane %v6113, %v6227
      %v6230 = vunpack.c.l.s4 1983009808
      %v6231 = vunpack.c.0.s8 %v6230
      %v6232 = vlaneseq
      %v6233 = vshrl.u32 %v6232, 7
      %v6234 = vsub.s32 %v6231, %v6233
      %v6235 = vrot.slane %v6221, %v6234
      %v6236 = vcombine.high %v6228, %v6228
      %v6237 = vcombine.high %v6235, %v6235
      %v6239 = vunpack.c.l.s4 1983009808
      %v6240 = vunpack.c.0.s8 %v6239
      %v6241 = vlaneseq
      %v6242 = vshrl.u32 %v6241, 7
      %v6243 = vsub.s32 %v6240, %v6242
      %v6244 = vrot.slane %v6114, %v6243
      %v6253 = vcombine.high %v6099, %v6099
      %v6255 = vunpack.c.l.s4 1983009808
      %v6256 = vunpack.c.0.s8 %v6255
      %v6257 = vlaneseq
      %v6258 = vshrl.u32 %v6257, 7
      %v6259 = vsub.s32 %v6256, %v6258
      %v6260 = vrot.slane %v6099, %v6259
      %v6262 = vunpack.c.l.s4 1983009808
      %v6263 = vunpack.c.0.s8 %v6262
      %v6264 = vlaneseq
      %v6265 = vshrl.u32 %v6264, 7
      %v6266 = vsub.s32 %v6263, %v6265
      %v6267 = vrot.slane %v6253, %v6266
      %v6268 = vcombine.high %v6260, %v6260
      %v6269 = vcombine.high %v6267, %v6267
      %v6271 = vunpack.c.l.s4 1983009808
      %v6272 = vunpack.c.0.s8 %v6271
      %v6273 = vlaneseq
      %v6274 = vshrl.u32 %v6273, 7
      %v6275 = vsub.s32 %v6272, %v6274
      %v6276 = vrot.slane %v6100, %v6275
      %v6277 = vcombine.high %v6103, %v6103
      %v6279 = vunpack.c.l.s4 1983009808
      %v6280 = vunpack.c.0.s8 %v6279
      %v6281 = vlaneseq
      %v6282 = vshrl.u32 %v6281, 7
      %v6283 = vsub.s32 %v6280, %v6282
      %v6284 = vrot.slane %v6103, %v6283
      %v6286 = vunpack.c.l.s4 1983009808
      %v6287 = vunpack.c.0.s8 %v6286
      %v6288 = vlaneseq
      %v6289 = vshrl.u32 %v6288, 7
      %v6290 = vsub.s32 %v6287, %v6289
      %v6291 = vrot.slane %v6277, %v6290
      %v6292 = vcombine.high %v6284, %v6284
      %v6293 = vcombine.high %v6291, %v6291
      %v6295 = vunpack.c.l.s4 1983009808
      %v6296 = vunpack.c.0.s8 %v6295
      %v6297 = vlaneseq
      %v6298 = vshrl.u32 %v6297, 7
      %v6299 = vsub.s32 %v6296, %v6298
      %v6300 = vrot.slane %v6104, %v6299
      %v6301 = vcombine.high %v6107, %v6107
      %v6303 = vunpack.c.l.s4 1983009808
      %v6304 = vunpack.c.0.s8 %v6303
      %v6305 = vlaneseq
      %v6306 = vshrl.u32 %v6305, 7
      %v6307 = vsub.s32 %v6304, %v6306
      %v6308 = vrot.slane %v6107, %v6307
      %v6310 = vunpack.c.l.s4 1983009808
      %v6311 = vunpack.c.0.s8 %v6310
      %v6312 = vlaneseq
      %v6313 = vshrl.u32 %v6312, 7
      %v6314 = vsub.s32 %v6311, %v6313
      %v6315 = vrot.slane %v6301, %v6314
      %v6316 = vcombine.high %v6308, %v6308
      %v6317 = vcombine.high %v6315, %v6315
      %v6319 = vunpack.c.l.s4 1983009808
      %v6320 = vunpack.c.0.s8 %v6319
      %v6321 = vlaneseq
      %v6322 = vshrl.u32 %v6321, 7
      %v6323 = vsub.s32 %v6320, %v6322
      %v6324 = vrot.slane %v6108, %v6323
      %v6325 = vcombine.high %v6111, %v6111
      %v6327 = vunpack.c.l.s4 1983009808
      %v6328 = vunpack.c.0.s8 %v6327
      %v6329 = vlaneseq
      %v6330 = vshrl.u32 %v6329, 7
      %v6331 = vsub.s32 %v6328, %v6330
      %v6332 = vrot.slane %v6111, %v6331
      %v6334 = vunpack.c.l.s4 1983009808
      %v6335 = vunpack.c.0.s8 %v6334
      %v6336 = vlaneseq
      %v6337 = vshrl.u32 %v6336, 7
      %v6338 = vsub.s32 %v6335, %v6337
      %v6339 = vrot.slane %v6325, %v6338
      %v6340 = vcombine.high %v6332, %v6332
      %v6341 = vcombine.high %v6339, %v6339
      %v6343 = vunpack.c.l.s4 1983009808
      %v6344 = vunpack.c.0.s8 %v6343
      %v6345 = vlaneseq
      %v6346 = vshrl.u32 %v6345, 7
      %v6347 = vsub.s32 %v6344, %v6346
      %v6348 = vrot.slane %v6112, %v6347
      %v6349 = vlaneseq
      %v6350 = vshrl.u32 %v6349, 7
      %v6351 = vsub.s32 0, %v6350
      %v6352 = vrot.slane %v6132, %v6351
      %v6353 = vlaneseq
      %v6354 = vshrl.u32 %v6353, 7
      %v6355 = vsub.s32 0, %v6354
      %v6356 = vrot.slane %v6140, %v6355
      %v6357 = vlaneseq
      %v6358 = vshrl.u32 %v6357, 7
      %v6359 = vsub.s32 0, %v6358
      %v6360 = vrot.slane %v6139, %v6359
      %v6361 = vlaneseq
      %v6362 = vshrl.u32 %v6361, 7
      %v6363 = vsub.s32 0, %v6362
      %v6364 = vrot.slane %v6141, %v6363
      %v6365 = vlaneseq
      %v6366 = vshrl.u32 %v6365, 7
      %v6367 = vsub.s32 0, %v6366
      %v6368 = vrot.slane %v6156, %v6367
      %v6369 = vlaneseq
      %v6370 = vshrl.u32 %v6369, 7
      %v6371 = vsub.s32 0, %v6370
      %v6372 = vrot.slane %v6164, %v6371
      %v6373 = vlaneseq
      %v6374 = vshrl.u32 %v6373, 7
      %v6375 = vsub.s32 0, %v6374
      %v6376 = vrot.slane %v6163, %v6375
      %v6377 = vlaneseq
      %v6378 = vshrl.u32 %v6377, 7
      %v6379 = vsub.s32 0, %v6378
      %v6380 = vrot.slane %v6165, %v6379
      %v6381 = vlaneseq
      %v6382 = vshrl.u32 %v6381, 7
      %v6383 = vsub.s32 0, %v6382
      %v6384 = vrot.slane %v6180, %v6383
      %v6385 = vlaneseq
      %v6386 = vshrl.u32 %v6385, 7
      %v6387 = vsub.s32 0, %v6386
      %v6388 = vrot.slane %v6188, %v6387
      %v6389 = vlaneseq
      %v6390 = vshrl.u32 %v6389, 7
      %v6391 = vsub.s32 0, %v6390
      %v6392 = vrot.slane %v6187, %v6391
      %v6393 = vlaneseq
      %v6394 = vshrl.u32 %v6393, 7
      %v6395 = vsub.s32 0, %v6394
      %v6396 = vrot.slane %v6189, %v6395
      %v6397 = vlaneseq
      %v6398 = vshrl.u32 %v6397, 7
      %v6399 = vsub.s32 0, %v6398
      %v6400 = vrot.slane %v6204, %v6399
      %v6401 = vlaneseq
      %v6402 = vshrl.u32 %v6401, 7
      %v6403 = vsub.s32 0, %v6402
      %v6404 = vrot.slane %v6212, %v6403
      %v6405 = vlaneseq
      %v6406 = vshrl.u32 %v6405, 7
      %v6407 = vsub.s32 0, %v6406
      %v6408 = vrot.slane %v6211, %v6407
      %v6409 = vlaneseq
      %v6410 = vshrl.u32 %v6409, 7
      %v6411 = vsub.s32 0, %v6410
      %v6412 = vrot.slane %v6213, %v6411
      %v6413 = vsel %vm3761, %v6356, %v6352
      %v6414 = vsel %vm3763, %v6360, %v6413
      %v6415 = vsel %vm3765, %v6364, %v6414
      %v6416 = vsel %vm3767, %v6368, %v6415
      %v6417 = vsel %vm3769, %v6372, %v6416
      %v6418 = vsel %vm3771, %v6376, %v6417
      %v6419 = vsel %vm3773, %v6380, %v6418
      %v6420 = vsel %vm3761, %v6388, %v6384
      %v6421 = vsel %vm3763, %v6392, %v6420
      %v6422 = vsel %vm3765, %v6396, %v6421
      %v6423 = vsel %vm3767, %v6400, %v6422
      %v6424 = vsel %vm3769, %v6404, %v6423
      %v6425 = vsel %vm3771, %v6408, %v6424
      %v6426 = vsel %vm3773, %v6412, %v6425
      %v6429 = vlaneseq
      %v6430 = vshrl.u32 %v6429, 7
      %v6431 = vsub.s32 1, %v6430
      %v6432 = vrot.slane %v6132, %v6431
      %v6433 = vlaneseq
      %v6434 = vshrl.u32 %v6433, 7
      %v6435 = vsub.s32 1, %v6434
      %v6436 = vrot.slane %v6140, %v6435
      %v6437 = vlaneseq
      %v6438 = vshrl.u32 %v6437, 7
      %v6439 = vsub.s32 1, %v6438
      %v6440 = vrot.slane %v6139, %v6439
      %v6441 = vlaneseq
      %v6442 = vshrl.u32 %v6441, 7
      %v6443 = vsub.s32 1, %v6442
      %v6444 = vrot.slane %v6141, %v6443
      %v6445 = vlaneseq
      %v6446 = vshrl.u32 %v6445, 7
      %v6447 = vsub.s32 1, %v6446
      %v6448 = vrot.slane %v6156, %v6447
      %v6449 = vlaneseq
      %v6450 = vshrl.u32 %v6449, 7
      %v6451 = vsub.s32 1, %v6450
      %v6452 = vrot.slane %v6164, %v6451
      %v6453 = vlaneseq
      %v6454 = vshrl.u32 %v6453, 7
      %v6455 = vsub.s32 1, %v6454
      %v6456 = vrot.slane %v6163, %v6455
      %v6457 = vlaneseq
      %v6458 = vshrl.u32 %v6457, 7
      %v6459 = vsub.s32 1, %v6458
      %v6460 = vrot.slane %v6165, %v6459
      %v6461 = vlaneseq
      %v6462 = vshrl.u32 %v6461, 7
      %v6463 = vsub.s32 1, %v6462
      %v6464 = vrot.slane %v6180, %v6463
      %v6465 = vlaneseq
      %v6466 = vshrl.u32 %v6465, 7
      %v6467 = vsub.s32 1, %v6466
      %v6468 = vrot.slane %v6188, %v6467
      %v6469 = vlaneseq
      %v6470 = vshrl.u32 %v6469, 7
      %v6471 = vsub.s32 1, %v6470
      %v6472 = vrot.slane %v6187, %v6471
      %v6473 = vlaneseq
      %v6474 = vshrl.u32 %v6473, 7
      %v6475 = vsub.s32 1, %v6474
      %v6476 = vrot.slane %v6189, %v6475
      %v6477 = vlaneseq
      %v6478 = vshrl.u32 %v6477, 7
      %v6479 = vsub.s32 1, %v6478
      %v6480 = vrot.slane %v6204, %v6479
      %v6481 = vlaneseq
      %v6482 = vshrl.u32 %v6481, 7
      %v6483 = vsub.s32 1, %v6482
      %v6484 = vrot.slane %v6212, %v6483
      %v6485 = vlaneseq
      %v6486 = vshrl.u32 %v6485, 7
      %v6487 = vsub.s32 1, %v6486
      %v6488 = vrot.slane %v6211, %v6487
      %v6489 = vlaneseq
      %v6490 = vshrl.u32 %v6489, 7
      %v6491 = vsub.s32 1, %v6490
      %v6492 = vrot.slane %v6213, %v6491
      %v6493 = vsel %vm3761, %v6436, %v6432
      %v6494 = vsel %vm3763, %v6440, %v6493
      %v6495 = vsel %vm3765, %v6444, %v6494
      %v6496 = vsel %vm3767, %v6448, %v6495
      %v6497 = vsel %vm3769, %v6452, %v6496
      %v6498 = vsel %vm3771, %v6456, %v6497
      %v6499 = vsel %vm3773, %v6460, %v6498
      %v6500 = vsel %vm3761, %v6468, %v6464
      %v6501 = vsel %vm3763, %v6472, %v6500
      %v6502 = vsel %vm3765, %v6476, %v6501
      %v6503 = vsel %vm3767, %v6480, %v6502
      %v6504 = vsel %vm3769, %v6484, %v6503
      %v6505 = vsel %vm3771, %v6488, %v6504
      %v6506 = vsel %vm3773, %v6492, %v6505
      %6507 = vrot.lane.b32.xlu0 %v6499, 16
      %v6508 = vpop.permute.xlu0 %6507
      %6509 = vrot.lane.b32.xlu0 %v6506, 16
      %v6510 = vpop.permute.xlu0 %6509
      %v6513 = vlaneseq
      %v6514 = vshrl.u32 %v6513, 7
      %v6515 = vsub.s32 0, %v6514
      %v6516 = vrot.slane %v6148, %v6515
      %v6517 = vlaneseq
      %v6518 = vshrl.u32 %v6517, 7
      %v6519 = vsub.s32 0, %v6518
      %v6520 = vrot.slane %v6172, %v6519
      %v6521 = vlaneseq
      %v6522 = vshrl.u32 %v6521, 7
      %v6523 = vsub.s32 0, %v6522
      %v6524 = vrot.slane %v6196, %v6523
      %v6525 = vlaneseq
      %v6526 = vshrl.u32 %v6525, 7
      %v6527 = vsub.s32 0, %v6526
      %v6528 = vrot.slane %v6220, %v6527
      %v6529 = vsel %vm3761, %v6360, %v6356
      %v6530 = vsel %vm3763, %v6364, %v6529
      %v6531 = vsel %vm3765, %v6516, %v6530
      %v6532 = vsel %vm3767, %v6372, %v6531
      %v6533 = vsel %vm3769, %v6376, %v6532
      %v6534 = vsel %vm3771, %v6380, %v6533
      %v6535 = vsel %vm3773, %v6520, %v6534
      %v6536 = vsel %vm3761, %v6392, %v6388
      %v6537 = vsel %vm3763, %v6396, %v6536
      %v6538 = vsel %vm3765, %v6524, %v6537
      %v6539 = vsel %vm3767, %v6404, %v6538
      %v6540 = vsel %vm3769, %v6408, %v6539
      %v6541 = vsel %vm3771, %v6412, %v6540
      %v6542 = vsel %vm3773, %v6528, %v6541
      %6543 = vrot.lane.b32.xlu0 %v6535, 32
      %v6544 = vpop.permute.xlu0 %6543
      %6545 = vrot.lane.b32.xlu0 %v6542, 32
      %v6546 = vpop.permute.xlu0 %6545
      %v6549 = vlaneseq
      %v6550 = vshrl.u32 %v6549, 7
      %v6551 = vsub.s32 0, %v6550
      %v6552 = vrot.slane %v6260, %v6551
      %v6553 = vlaneseq
      %v6554 = vshrl.u32 %v6553, 7
      %v6555 = vsub.s32 0, %v6554
      %v6556 = vrot.slane %v6268, %v6555
      %v6557 = vlaneseq
      %v6558 = vshrl.u32 %v6557, 7
      %v6559 = vsub.s32 0, %v6558
      %v6560 = vrot.slane %v6267, %v6559
      %v6561 = vlaneseq
      %v6562 = vshrl.u32 %v6561, 7
      %v6563 = vsub.s32 0, %v6562
      %v6564 = vrot.slane %v6269, %v6563
      %v6565 = vlaneseq
      %v6566 = vshrl.u32 %v6565, 7
      %v6567 = vsub.s32 0, %v6566
      %v6568 = vrot.slane %v6284, %v6567
      %v6569 = vlaneseq
      %v6570 = vshrl.u32 %v6569, 7
      %v6571 = vsub.s32 0, %v6570
      %v6572 = vrot.slane %v6292, %v6571
      %v6573 = vlaneseq
      %v6574 = vshrl.u32 %v6573, 7
      %v6575 = vsub.s32 0, %v6574
      %v6576 = vrot.slane %v6291, %v6575
      %v6577 = vlaneseq
      %v6578 = vshrl.u32 %v6577, 7
      %v6579 = vsub.s32 0, %v6578
      %v6580 = vrot.slane %v6293, %v6579
      %v6581 = vlaneseq
      %v6582 = vshrl.u32 %v6581, 7
      %v6583 = vsub.s32 0, %v6582
      %v6584 = vrot.slane %v6308, %v6583
      %v6585 = vlaneseq
      %v6586 = vshrl.u32 %v6585, 7
      %v6587 = vsub.s32 0, %v6586
      %v6588 = vrot.slane %v6316, %v6587
      %v6589 = vlaneseq
      %v6590 = vshrl.u32 %v6589, 7
      %v6591 = vsub.s32 0, %v6590
      %v6592 = vrot.slane %v6315, %v6591
      %v6593 = vlaneseq
      %v6594 = vshrl.u32 %v6593, 7
      %v6595 = vsub.s32 0, %v6594
      %v6596 = vrot.slane %v6317, %v6595
      %v6597 = vlaneseq
      %v6598 = vshrl.u32 %v6597, 7
      %v6599 = vsub.s32 0, %v6598
      %v6600 = vrot.slane %v6332, %v6599
      %v6601 = vlaneseq
      %v6602 = vshrl.u32 %v6601, 7
      %v6603 = vsub.s32 0, %v6602
      %v6604 = vrot.slane %v6340, %v6603
      %v6605 = vlaneseq
      %v6606 = vshrl.u32 %v6605, 7
      %v6607 = vsub.s32 0, %v6606
      %v6608 = vrot.slane %v6339, %v6607
      %v6609 = vlaneseq
      %v6610 = vshrl.u32 %v6609, 7
      %v6611 = vsub.s32 0, %v6610
      %v6612 = vrot.slane %v6341, %v6611
      %v6613 = vsel %vm3761, %v6556, %v6552
      %v6614 = vsel %vm3763, %v6560, %v6613
      %v6615 = vsel %vm3765, %v6564, %v6614
      %v6616 = vsel %vm3767, %v6568, %v6615
      %v6617 = vsel %vm3769, %v6572, %v6616
      %v6618 = vsel %vm3771, %v6576, %v6617
      %v6619 = vsel %vm3773, %v6580, %v6618
      %v6620 = vsel %vm3761, %v6588, %v6584
      %v6621 = vsel %vm3763, %v6592, %v6620
      %v6622 = vsel %vm3765, %v6596, %v6621
      %v6623 = vsel %vm3767, %v6600, %v6622
      %v6624 = vsel %vm3769, %v6604, %v6623
      %v6625 = vsel %vm3771, %v6608, %v6624
      %v6626 = vsel %vm3773, %v6612, %v6625
      %6627 = vrot.lane.b32.xlu0 %v6619, 48
      %v6628 = vpop.permute.xlu0 %6627
      %6629 = vrot.lane.b32.xlu0 %v6626, 48
      %v6630 = vpop.permute.xlu0 %6629
      %v6633 = vlaneseq
      %v6634 = vshrl.u32 %v6633, 7
      %v6635 = vsub.s32 1, %v6634
      %v6636 = vrot.slane %v6260, %v6635
      %v6637 = vlaneseq
      %v6638 = vshrl.u32 %v6637, 7
      %v6639 = vsub.s32 1, %v6638
      %v6640 = vrot.slane %v6268, %v6639
      %v6641 = vlaneseq
      %v6642 = vshrl.u32 %v6641, 7
      %v6643 = vsub.s32 1, %v6642
      %v6644 = vrot.slane %v6267, %v6643
      %v6645 = vlaneseq
      %v6646 = vshrl.u32 %v6645, 7
      %v6647 = vsub.s32 1, %v6646
      %v6648 = vrot.slane %v6269, %v6647
      %v6649 = vlaneseq
      %v6650 = vshrl.u32 %v6649, 7
      %v6651 = vsub.s32 1, %v6650
      %v6652 = vrot.slane %v6284, %v6651
      %v6653 = vlaneseq
      %v6654 = vshrl.u32 %v6653, 7
      %v6655 = vsub.s32 1, %v6654
      %v6656 = vrot.slane %v6292, %v6655
      %v6657 = vlaneseq
      %v6658 = vshrl.u32 %v6657, 7
      %v6659 = vsub.s32 1, %v6658
      %v6660 = vrot.slane %v6291, %v6659
      %v6661 = vlaneseq
      %v6662 = vshrl.u32 %v6661, 7
      %v6663 = vsub.s32 1, %v6662
      %v6664 = vrot.slane %v6293, %v6663
      %v6665 = vlaneseq
      %v6666 = vshrl.u32 %v6665, 7
      %v6667 = vsub.s32 1, %v6666
      %v6668 = vrot.slane %v6308, %v6667
      %v6669 = vlaneseq
      %v6670 = vshrl.u32 %v6669, 7
      %v6671 = vsub.s32 1, %v6670
      %v6672 = vrot.slane %v6316, %v6671
      %v6673 = vlaneseq
      %v6674 = vshrl.u32 %v6673, 7
      %v6675 = vsub.s32 1, %v6674
      %v6676 = vrot.slane %v6315, %v6675
      %v6677 = vlaneseq
      %v6678 = vshrl.u32 %v6677, 7
      %v6679 = vsub.s32 1, %v6678
      %v6680 = vrot.slane %v6317, %v6679
      %v6681 = vlaneseq
      %v6682 = vshrl.u32 %v6681, 7
      %v6683 = vsub.s32 1, %v6682
      %v6684 = vrot.slane %v6332, %v6683
      %v6685 = vlaneseq
      %v6686 = vshrl.u32 %v6685, 7
      %v6687 = vsub.s32 1, %v6686
      %v6688 = vrot.slane %v6340, %v6687
      %v6689 = vlaneseq
      %v6690 = vshrl.u32 %v6689, 7
      %v6691 = vsub.s32 1, %v6690
      %v6692 = vrot.slane %v6339, %v6691
      %v6693 = vlaneseq
      %v6694 = vshrl.u32 %v6693, 7
      %v6695 = vsub.s32 1, %v6694
      %v6696 = vrot.slane %v6341, %v6695
      %v6697 = vsel %vm3761, %v6640, %v6636
      %v6698 = vsel %vm3763, %v6644, %v6697
      %v6699 = vsel %vm3765, %v6648, %v6698
      %v6700 = vsel %vm3767, %v6652, %v6699
      %v6701 = vsel %vm3769, %v6656, %v6700
      %v6702 = vsel %vm3771, %v6660, %v6701
      %v6703 = vsel %vm3773, %v6664, %v6702
      %v6704 = vsel %vm3761, %v6672, %v6668
      %v6705 = vsel %vm3763, %v6676, %v6704
      %v6706 = vsel %vm3765, %v6680, %v6705
      %v6707 = vsel %vm3767, %v6684, %v6706
      %v6708 = vsel %vm3769, %v6688, %v6707
      %v6709 = vsel %vm3771, %v6692, %v6708
      %v6710 = vsel %vm3773, %v6696, %v6709
      %6711 = vrot.lane.b32.xlu0 %v6703, 64
      %v6712 = vpop.permute.xlu0 %6711
      %6713 = vrot.lane.b32.xlu0 %v6710, 64
      %v6714 = vpop.permute.xlu0 %6713
      %v6717 = vlaneseq
      %v6718 = vshrl.u32 %v6717, 7
      %v6719 = vsub.s32 0, %v6718
      %v6720 = vrot.slane %v6276, %v6719
      %v6721 = vlaneseq
      %v6722 = vshrl.u32 %v6721, 7
      %v6723 = vsub.s32 0, %v6722
      %v6724 = vrot.slane %v6300, %v6723
      %v6725 = vlaneseq
      %v6726 = vshrl.u32 %v6725, 7
      %v6727 = vsub.s32 0, %v6726
      %v6728 = vrot.slane %v6324, %v6727
      %v6729 = vlaneseq
      %v6730 = vshrl.u32 %v6729, 7
      %v6731 = vsub.s32 0, %v6730
      %v6732 = vrot.slane %v6348, %v6731
      %v6733 = vsel %vm3761, %v6560, %v6556
      %v6734 = vsel %vm3763, %v6564, %v6733
      %v6735 = vsel %vm3765, %v6720, %v6734
      %v6736 = vsel %vm3767, %v6572, %v6735
      %v6737 = vsel %vm3769, %v6576, %v6736
      %v6738 = vsel %vm3771, %v6580, %v6737
      %v6739 = vsel %vm3773, %v6724, %v6738
      %v6740 = vsel %vm3761, %v6592, %v6588
      %v6741 = vsel %vm3763, %v6596, %v6740
      %v6742 = vsel %vm3765, %v6728, %v6741
      %v6743 = vsel %vm3767, %v6604, %v6742
      %v6744 = vsel %vm3769, %v6608, %v6743
      %v6745 = vsel %vm3771, %v6612, %v6744
      %v6746 = vsel %vm3773, %v6732, %v6745
      %6747 = vrot.lane.b32.xlu0 %v6739, 80
      %v6748 = vpop.permute.xlu0 %6747
      %6749 = vrot.lane.b32.xlu0 %v6746, 80
      %v6750 = vpop.permute.xlu0 %6749
      %v6753 = vlaneseq
      %v6754 = vshrl.u32 %v6753, 7
      %v6755 = vsub.s32 0, %v6754
      %v6756 = vrot.slane %v6228, %v6755
      %v6757 = vlaneseq
      %v6758 = vshrl.u32 %v6757, 7
      %v6759 = vsub.s32 0, %v6758
      %v6760 = vrot.slane %v6236, %v6759
      %v6761 = vlaneseq
      %v6762 = vshrl.u32 %v6761, 7
      %v6763 = vsub.s32 0, %v6762
      %v6764 = vrot.slane %v6235, %v6763
      %v6765 = vlaneseq
      %v6766 = vshrl.u32 %v6765, 7
      %v6767 = vsub.s32 0, %v6766
      %v6768 = vrot.slane %v6237, %v6767
      %v6769 = vsel %vm3761, %v6372, %v6368
      %v6770 = vsel %vm3763, %v6376, %v6769
      %v6771 = vsel %vm3765, %v6380, %v6770
      %v6772 = vsel %vm3767, %v6384, %v6771
      %v6773 = vsel %vm3769, %v6388, %v6772
      %v6774 = vsel %vm3771, %v6392, %v6773
      %v6775 = vsel %vm3773, %v6396, %v6774
      %v6776 = vsel %vm3761, %v6404, %v6400
      %v6777 = vsel %vm3763, %v6408, %v6776
      %v6778 = vsel %vm3765, %v6412, %v6777
      %v6779 = vsel %vm3767, %v6756, %v6778
      %v6780 = vsel %vm3769, %v6760, %v6779
      %v6781 = vsel %vm3771, %v6764, %v6780
      %v6782 = vsel %vm3773, %v6768, %v6781
      %6783 = vrot.lane.b32.xlu0 %v6775, 96
      %v6784 = vpop.permute.xlu0 %6783
      %6785 = vrot.lane.b32.xlu0 %v6782, 96
      %v6786 = vpop.permute.xlu0 %6785
      %v6789 = vlaneseq
      %v6790 = vshrl.u32 %v6789, 7
      %v6791 = vsub.s32 1, %v6790
      %v6792 = vrot.slane %v6228, %v6791
      %v6793 = vlaneseq
      %v6794 = vshrl.u32 %v6793, 7
      %v6795 = vsub.s32 1, %v6794
      %v6796 = vrot.slane %v6236, %v6795
      %v6797 = vlaneseq
      %v6798 = vshrl.u32 %v6797, 7
      %v6799 = vsub.s32 1, %v6798
      %v6800 = vrot.slane %v6235, %v6799
      %v6801 = vlaneseq
      %v6802 = vshrl.u32 %v6801, 7
      %v6803 = vsub.s32 1, %v6802
      %v6804 = vrot.slane %v6237, %v6803
      %v6805 = vsel %vm3761, %v6452, %v6448
      %v6806 = vsel %vm3763, %v6456, %v6805
      %v6807 = vsel %vm3765, %v6460, %v6806
      %v6808 = vsel %vm3767, %v6464, %v6807
      %v6809 = vsel %vm3769, %v6468, %v6808
      %v6810 = vsel %vm3771, %v6472, %v6809
      %v6811 = vsel %vm3773, %v6476, %v6810
      %v6812 = vsel %vm3761, %v6484, %v6480
      %v6813 = vsel %vm3763, %v6488, %v6812
      %v6814 = vsel %vm3765, %v6492, %v6813
      %v6815 = vsel %vm3767, %v6792, %v6814
      %v6816 = vsel %vm3769, %v6796, %v6815
      %v6817 = vsel %vm3771, %v6800, %v6816
      %v6818 = vsel %vm3773, %v6804, %v6817
      %6819 = vrot.lane.b32.xlu0 %v6811, 112
      %v6820 = vpop.permute.xlu0 %6819
      %6821 = vrot.lane.b32.xlu0 %v6818, 112
      %v6822 = vpop.permute.xlu0 %6821
      %v6825 = vlaneseq
      %v6826 = vshrl.u32 %v6825, 7
      %v6827 = vsub.s32 0, %v6826
      %v6828 = vrot.slane %v6244, %v6827
      %v6829 = vsel %vm3761, %v6376, %v6372
      %v6830 = vsel %vm3763, %v6380, %v6829
      %v6831 = vsel %vm3765, %v6520, %v6830
      %v6832 = vsel %vm3767, %v6388, %v6831
      %v6833 = vsel %vm3769, %v6392, %v6832
      %v6834 = vsel %vm3771, %v6396, %v6833
      %v6835 = vsel %vm3773, %v6524, %v6834
      %v6836 = vsel %vm3761, %v6408, %v6404
      %v6837 = vsel %vm3763, %v6412, %v6836
      %v6838 = vsel %vm3765, %v6528, %v6837
      %v6839 = vsel %vm3767, %v6760, %v6838
      %v6840 = vsel %vm3769, %v6764, %v6839
      %v6841 = vsel %vm3771, %v6768, %v6840
      %v6842 = vsel %vm3773, %v6828, %v6841
      %v6845 = vsel %vm2135, %v6419, %v6508
      %v6846 = vsel %vm2135, %v6426, %v6510
      %v6847 = vsel %vm634, %v6845, %v6544
      %v6848 = vsel %vm634, %v6846, %v6546
      %v6849 = vsel %vm5266, %v6847, %v6628
      %v6850 = vsel %vm5266, %v6848, %v6630
      %v6851 = vsel %vm5284, %v6849, %v6712
      %v6852 = vsel %vm5284, %v6850, %v6714
      %vm6853 = vcmask 654336
      %v6854 = vsel %vm6853, %v6851, %v6748
      %v6855 = vsel %vm6853, %v6852, %v6750
      %vm6856 = vcmask 785408
      %v6857 = vsel %vm6856, %v6854, %v6784
      %v6858 = vsel %vm6856, %v6855, %v6786
      %vm6859 = vcmask 916480
      %v6860 = vsel %vm6859, %v6857, %v6820
      %v6861 = vsel %vm6859, %v6858, %v6822
      %v6862 = vpack.c.bf16 %v6861, %v6860
      %v6863 = vpack.c.bf16 %v6842, %v6835
      %v6864 = vld [vmem:[%s7] sm:$0xf]
      %v6865 = vld [vmem:[%s7 + $0x4] sm:$0xf]
      %v6866 = vld [vmem:[%s7 + $0x8] sm:$0xf]
      %v6867 = vld [vmem:[%s7 + $0xc] sm:$0xf]
      %v6868 = vld [vmem:[%s7 + $0x10] sm:$0xf]
      %v6869 = vld [vmem:[%s7 + $0x14] sm:$0xf]
      %v6870 = vld [vmem:[%s7 + $0x18] sm:$0xf]
      %v6871 = vld [vmem:[%s7 + $0x1c] sm:$0xf]
      %v6872 = vld [vmem:[%s7 + $0x20] sm:$0xf]
      %v6873 = vld [vmem:[%s7 + $0x24] sm:$0xf]
      %v6874 = vld [vmem:[%s7 + $0x28] sm:$0xf]
      %v6875 = vld [vmem:[%s7 + $0x2c] sm:$0xf]
      %v6876 = vld [vmem:[%s7 + $0x30] sm:$0xf]
      %v6877 = vld [vmem:[%s7 + $0x34] sm:$0xf]
      %v6878 = vld [vmem:[%s7 + $0x38] sm:$0xf]
      %v6879 = vld [vmem:[%s7 + $0x3c] sm:$0xf]
      %v6880 = vld [vmem:[%s7 + $0x40] sm:$0xf]
      %v6881 = vld [vmem:[%s7 + $0x44] sm:$0xf]
      %v6882 = vld [vmem:[%s8] sm:$0x1]
      %v6884 = vlaneseq
      %v6885 = vshrl.u32 %v6884, 7
      %v6886 = vsub.s32 0, %v6885
      %v6887 = vrot.slane %v6882, %v6886
      %v6907 = vunpack.c.l.b16 %v6864
      %v6908 = vunpack.c.l.b16 %v6865
      %v6909 = vunpack.c.l.b16 %v6866
      %v6910 = vunpack.c.l.b16 %v6867
      %v6911 = vunpack.c.l.b16 %v6868
      %v6912 = vunpack.c.l.b16 %v6869
      %v6913 = vunpack.c.l.b16 %v6870
      %v6914 = vunpack.c.l.b16 %v6871
      %v6915 = vunpack.c.l.b16 %v6872
      %v6916 = vunpack.c.l.b16 %v6873
      %v6917 = vunpack.c.l.b16 %v6874
      %v6918 = vunpack.c.l.b16 %v6875
      %v6919 = vunpack.c.l.b16 %v6876
      %v6920 = vunpack.c.l.b16 %v6877
      %v6921 = vunpack.c.l.b16 %v6878
      %v6922 = vunpack.c.l.b16 %v6879
      %v6923 = vunpack.c.l.b16 %v6880
      %v6924 = vunpack.c.l.b16 %v6881
      %v6925 = vpack.c.b16 %v6908, %v6907
      %v6926 = vpack.c.b16 %v6910, %v6909
      %v6927 = vpack.c.b16 %v6912, %v6911
      %v6928 = vpack.c.b16 %v6914, %v6913
      %v6929 = vpack.c.b16 %v6916, %v6915
      %v6930 = vpack.c.b16 %v6918, %v6917
      %v6931 = vpack.c.b16 %v6920, %v6919
      %v6932 = vpack.c.b16 %v6922, %v6921
      %v6933 = vpack.c.b16 %v6924, %v6923
      %v6944 = vsel %vm2135, %v6863, 0
      %6946 = vmatprep.subr.bf16.mxu0 0
      %6947 = vmatpush1.bf16.msra.mxu0 %v6925
      %6948 = vmatprep.subr.bf16.mxu0 0
      %6949 = vmatpush1.bf16.msra.mxu0 %v6926
      %6950 = vmatprep.subr.bf16.mxu0 0
      %6951 = vmatpush1.bf16.msra.mxu0 %v6927
      %6952 = vmatprep.subr.bf16.mxu0 0
      %6953 = vmatpush1.bf16.msra.mxu0 %v6928
      %6954 = vmatprep.subr.bf16.mxu0 0
      %6955 = vmatpush1.bf16.msra.mxu0 %v6929
      %6956 = vmatprep.subr.bf16.mxu0 0
      %6957 = vmatpush1.bf16.msra.mxu0 %v6930
      %6958 = vmatprep.subr.bf16.mxu0 0
      %6959 = vmatpush1.bf16.msra.mxu0 %v6931
      %6960 = vmatprep.subr.bf16.mxu0 0
      %6961 = vmatpush1.bf16.msra.mxu0 %v6932
      %6962 = vmatprep.subr.bf16.mxu0 0
      %6963 = vmatpush1.bf16.msra.mxu0 %v6933
      %6964 = vmatprep.subr.bf16.mxu0 0
      %6965 = vmatpush1.bf16.msra.mxu0 0
      %6966 = vmatprep.subr.bf16.mxu0 0
      %6967 = vmatpush1.bf16.msra.mxu0 0
      %6968 = vmatprep.subr.bf16.mxu0 0
      %6969 = vmatpush1.bf16.msra.mxu0 0
      %6970 = vmatprep.subr.bf16.mxu0 0
      %6971 = vmatpush1.bf16.msra.mxu0 0
      %6972 = vmatprep.subr.bf16.mxu0 0
      %6973 = vmatpush1.bf16.msra.mxu0 0
      %6974 = vmatprep.subr.bf16.mxu0 0
      %6975 = vmatpush1.bf16.msra.mxu0 0
      %6976 = vmatprep.subr.bf16.mxu0 0
      %6977 = vmatpush1.bf16.msra.mxu0 0
      %6978 = vmatprep.mubr.bf16.mxu0 %v6944
      %6979 = vmatmul.mubr.bf16.gmra.mrb[0].mxu0 %v6862
      %v6980 = vpop.f32.mrb[0].mxu0
      %v6981 = vadd.f32 %v6887, %v6980
      %v6982 = vpop.f32.mrb[0].mxu0
      %v6983 = vpop.f32.mrb[0].mxu0
      %v6984 = vadd.f32 %v6887, %v6983
      %v6985 = vpop.f32.mrb[0].mxu0
      %6986 = vdwg.mxu0
      %v6987 = vmul.f32 %v6981, 0.2
      %v6988 = vmul.f32 %v6984, 0.2
      %v6989 = vmax.f32 %v6981, %v6987
      %v6990 = vmax.f32 %v6984, %v6988
      %v6993 = vcombine.high %v6989, %v6989
      %v6994 = vcombine.high %v6990, %v6990
      %6997 = vst.msk [vmem:[#allocation2] sm:$0xff] %vm634, 0.0
      %6998 = vst.msk [vmem:[#allocation2 + $0x8] sm:$0xff] %vm634, 0.0
      %6999 = vst.msk [vmem:[#allocation2 + $0x10] sm:$0x3] %vm637, 0.0
      %7000 = vst.msk [vmem:[#allocation2 + $0x18] sm:$0xff] %vm634, 0.0
      %7001 = vst.msk [vmem:[#allocation2 + $0x20] sm:$0xff] %vm634, 0.0
      %7002 = vst.msk [vmem:[#allocation2 + $0x28] sm:$0x3] %vm637, 0.0
      %7003 = vst.msk [vmem:[#allocation2 + $0x30] sm:$0xff] %vm634, 0.0
      %7004 = vst.msk [vmem:[#allocation2 + $0x38] sm:$0xff] %vm634, 0.0
      %7005 = vst.msk [vmem:[#allocation2 + $0x40] sm:$0x3] %vm637, 0.0
      %7006 = vst.msk [vmem:[#allocation2 + $0x48] sm:$0xff] %vm634, 0.0
      %7007 = vst.msk [vmem:[#allocation2 + $0x50] sm:$0xff] %vm634, 0.0
      %7008 = vst.msk [vmem:[#allocation2 + $0x58] sm:$0x3] %vm637, 0.0
      %7009 = vst.msk [vmem:[#allocation2 + $0x60] sm:$0xff] %vm634, 0.0
      %7010 = vst.msk [vmem:[#allocation2 + $0x68] sm:$0xff] %vm634, 0.0
      %7011 = vst.msk [vmem:[#allocation2 + $0x70] sm:$0x3] %vm637, 0.0
      %7012 = vst.msk [vmem:[#allocation2 + $0x78] sm:$0xff] %vm634, 0.0
      %7013 = vst.msk [vmem:[#allocation2 + $0x80] sm:$0xff] %vm634, 0.0
      %7014 = vst.msk [vmem:[#allocation2 + $0x88] sm:$0x3] %vm637, 0.0
      %7015 = vst.msk [vmem:[#allocation2 + $0x90] sm:$0xff] %vm634, 0.0
      %7016 = vst.msk [vmem:[#allocation2 + $0x98] sm:$0xff] %vm634, 0.0
      %7017 = vst.msk [vmem:[#allocation2 + $0xa0] sm:$0x3] %vm637, 0.0
      %7018 = vst.msk [vmem:[#allocation2 + $0xa8] sm:$0xff] %vm634, 0.0
      %7019 = vst.msk [vmem:[#allocation2 + $0xb0] sm:$0xff] %vm634, 0.0
      %7020 = vst.msk [vmem:[#allocation2 + $0xb8] sm:$0x3] %vm637, 0.0
      %7021 = vst.msk [vmem:[#allocation2 + $0xc0] sm:$0xff] %vm634, 0.0
      %7022 = vst.msk [vmem:[#allocation2 + $0xc8] sm:$0xff] %vm634, 0.0
      %7023 = vst.msk [vmem:[#allocation2 + $0xd0] sm:$0x3] %vm637, 0.0
      %7024 = vst.msk [vmem:[#allocation2 + $0xd8] sm:$0xff] %vm634, 0.0
      %7025 = vst.msk [vmem:[#allocation2 + $0xe0] sm:$0xff] %vm634, 0.0
      %7026 = vst.msk [vmem:[#allocation2 + $0xe8] sm:$0x3] %vm637, 0.0
      %7027 = vst.msk [vmem:[#allocation2 + $0xf0] sm:$0xff] %vm634, 0.0
      %7028 = vst.msk [vmem:[#allocation2 + $0xf8] sm:$0xff] %vm634, 0.0
      %7029 = vst.msk [vmem:[#allocation2 + $0x100] sm:$0x3] %vm637, 0.0
      %7030 = vst.msk [vmem:[#allocation2 + $0x108] sm:$0xff] %vm634, 0.0
      %7031 = vst.msk [vmem:[#allocation2 + $0x110] sm:$0xff] %vm634, 0.0
      %7032 = vst.msk [vmem:[#allocation2 + $0x118] sm:$0x3] %vm637, 0.0
      %7033 = vst.msk [vmem:[#allocation2 + $0x120] sm:$0xff] %vm634, 0.0
      %7034 = vst.msk [vmem:[#allocation2 + $0x128] sm:$0xff] %vm634, 0.0
      %7035 = vst.msk [vmem:[#allocation2 + $0x130] sm:$0x3] %vm637, 0.0
      %7036 = vst.msk [vmem:[#allocation2 + $0x138] sm:$0xff] %vm634, 0.0
      %7037 = vst.msk [vmem:[#allocation2 + $0x140] sm:$0xff] %vm634, 0.0
      %7038 = vst.msk [vmem:[#allocation2 + $0x148] sm:$0x3] %vm637, 0.0
      %7039 = vst.msk [vmem:[#allocation2 + $0x150] sm:$0xff] %vm634, 0.0
      %7040 = vst.msk [vmem:[#allocation2 + $0x158] sm:$0xff] %vm634, 0.0
      %7041 = vst.msk [vmem:[#allocation2 + $0x160] sm:$0x3] %vm637, 0.0
      %7042 = vst.msk [vmem:[#allocation2 + $0x168] sm:$0xff] %vm634, 0.0
      %7043 = vst.msk [vmem:[#allocation2 + $0x170] sm:$0xff] %vm634, 0.0
      %7044 = vst.msk [vmem:[#allocation2 + $0x178] sm:$0x3] %vm637, 0.0
      %7045 = vst.msk [vmem:[#allocation2 + $0x180] sm:$0xff] %vm634, 0.0
      %7046 = vst.msk [vmem:[#allocation2 + $0x188] sm:$0xff] %vm634, 0.0
      %7047 = vst.msk [vmem:[#allocation2 + $0x190] sm:$0x3] %vm637, 0.0
      %7048 = vst.msk [vmem:[#allocation2 + $0x198] sm:$0xff] %vm634, 0.0
      %7049 = vst.msk [vmem:[#allocation2 + $0x1a0] sm:$0xff] %vm634, 0.0
      %7050 = vst.msk [vmem:[#allocation2 + $0x1a8] sm:$0x3] %vm637, 0.0
      %vm7051 = vcmask 125952
      %7052 = vst.msk [vmem:[%s690 + $0x1] sm:$0xf] %vm7051, %v6989
      %7053 = vst.msk [vmem:[%s690 + $0x19] sm:$0xf] %vm7051, %v6993
      %7054 = vst.msk [vmem:[%s690 + $0x31] sm:$0xf] %vm7051, %v6990
      %7055 = vst.msk [vmem:[%s690 + $0x49] sm:$0xf] %vm7051, %v6994
      %v7056 = vld [vmem:[#allocation2] sm:$0xf]
      %v7057 = vld [vmem:[#allocation2 + $0x18] sm:$0xf]
      %v7058 = vld [vmem:[#allocation2 + $0x30] sm:$0xf]
      %v7059 = vld [vmem:[#allocation2 + $0x48] sm:$0xf]
      %v7060 = vld [vmem:[#allocation2 + $0x1] sm:$0xf]
      %v7061 = vld [vmem:[#allocation2 + $0x19] sm:$0xf]
      %v7062 = vld [vmem:[#allocation2 + $0x31] sm:$0xf]
      %v7063 = vld [vmem:[#allocation2 + $0x49] sm:$0xf]
      %v7064 = vld [vmem:[#allocation2 + $0x2] sm:$0xf]
      %v7065 = vld [vmem:[#allocation2 + $0x1a] sm:$0xf]
      %v7066 = vld [vmem:[#allocation2 + $0x32] sm:$0xf]
      %v7067 = vld [vmem:[#allocation2 + $0x4a] sm:$0xf]
      %v7068 = vld [vmem:[%s690] sm:$0xf]
      %v7069 = vld [vmem:[%s690 + $0x18] sm:$0xf]
      %v7070 = vld [vmem:[%s690 + $0x30] sm:$0xf]
      %v7071 = vld [vmem:[%s690 + $0x48] sm:$0xf]
      %v7072 = vld [vmem:[%s690 + $0x1] sm:$0xf]
      %v7073 = vld [vmem:[%s690 + $0x19] sm:$0xf]
      %v7074 = vld [vmem:[%s690 + $0x31] sm:$0xf]
      %v7075 = vld [vmem:[%s690 + $0x49] sm:$0xf]
      %v7076 = vld [vmem:[%s690 + $0x2] sm:$0xf]
      %v7077 = vld [vmem:[%s690 + $0x1a] sm:$0xf]
      %v7078 = vld [vmem:[%s690 + $0x32] sm:$0xf]
      %v7079 = vld [vmem:[%s690 + $0x4a] sm:$0xf]
      %v7080 = vld [vmem:[%s916] sm:$0xf]
      %v7081 = vld [vmem:[%s916 + $0x18] sm:$0xf]
      %v7082 = vld [vmem:[%s916 + $0x30] sm:$0xf]
      %v7083 = vld [vmem:[%s916 + $0x48] sm:$0xf]
      %v7084 = vld [vmem:[%s916 + $0x1] sm:$0xf]
      %v7085 = vld [vmem:[%s916 + $0x19] sm:$0xf]
      %v7086 = vld [vmem:[%s916 + $0x31] sm:$0xf]
      %v7087 = vld [vmem:[%s916 + $0x49] sm:$0xf]
      %v7088 = vld [vmem:[%s916 + $0x2] sm:$0xf]
      %v7089 = vld [vmem:[%s916 + $0x1a] sm:$0xf]
      %v7090 = vld [vmem:[%s916 + $0x32] sm:$0xf]
      %v7091 = vld [vmem:[%s916 + $0x4a] sm:$0xf]
      %v7096 = vcombine.low %v7056, %v7057
      %v7097 = vcombine.low %v7058, %v7059
      %v7104 = vcombine.low %v7060, %v7061
      %v7105 = vcombine.low %v7062, %v7063
      %7106 = vrot.lane.b32.xlu0 %v7104, 16
      %v7107 = vpop.permute.xlu0 %7106
      %7108 = vrot.lane.b32.xlu0 %v7105, 16
      %v7109 = vpop.permute.xlu0 %7108
      %v7116 = vcombine.low %v7064, %v7065
      %v7117 = vcombine.low %v7066, %v7067
      %7118 = vrot.lane.b32.xlu0 %v7116, 32
      %v7119 = vpop.permute.xlu0 %7118
      %7120 = vrot.lane.b32.xlu0 %v7117, 32
      %v7121 = vpop.permute.xlu0 %7120
      %v7128 = vcombine.low %v7068, %v7069
      %v7129 = vcombine.low %v7070, %v7071
      %7130 = vrot.lane.b32.xlu0 %v7128, 48
      %v7131 = vpop.permute.xlu0 %7130
      %7132 = vrot.lane.b32.xlu0 %v7129, 48
      %v7133 = vpop.permute.xlu0 %7132
      %v7140 = vcombine.low %v7072, %v7073
      %v7141 = vcombine.low %v7074, %v7075
      %7142 = vrot.lane.b32.xlu0 %v7140, 64
      %v7143 = vpop.permute.xlu0 %7142
      %7144 = vrot.lane.b32.xlu0 %v7141, 64
      %v7145 = vpop.permute.xlu0 %7144
      %v7152 = vcombine.low %v7076, %v7077
      %v7153 = vcombine.low %v7078, %v7079
      %7154 = vrot.lane.b32.xlu0 %v7152, 80
      %v7155 = vpop.permute.xlu0 %7154
      %7156 = vrot.lane.b32.xlu0 %v7153, 80
      %v7157 = vpop.permute.xlu0 %7156
      %v7164 = vcombine.low %v7080, %v7081
      %v7165 = vcombine.low %v7082, %v7083
      %7166 = vrot.lane.b32.xlu0 %v7164, 96
      %v7167 = vpop.permute.xlu0 %7166
      %7168 = vrot.lane.b32.xlu0 %v7165, 96
      %v7169 = vpop.permute.xlu0 %7168
      %v7176 = vcombine.low %v7084, %v7085
      %v7177 = vcombine.low %v7086, %v7087
      %7178 = vrot.lane.b32.xlu0 %v7176, 112
      %v7179 = vpop.permute.xlu0 %7178
      %7180 = vrot.lane.b32.xlu0 %v7177, 112
      %v7181 = vpop.permute.xlu0 %7180
      %v7188 = vcombine.low %v7088, %v7089
      %v7189 = vcombine.low %v7090, %v7091
      %v7192 = vsel %vm2135, %v7096, %v7107
      %v7193 = vsel %vm2135, %v7097, %v7109
      %v7194 = vsel %vm634, %v7192, %v7119
      %v7195 = vsel %vm634, %v7193, %v7121
      %v7196 = vsel %vm5266, %v7194, %v7131
      %v7197 = vsel %vm5266, %v7195, %v7133
      %v7198 = vsel %vm5284, %v7196, %v7143
      %v7199 = vsel %vm5284, %v7197, %v7145
      %v7200 = vsel %vm6853, %v7198, %v7155
      %v7201 = vsel %vm6853, %v7199, %v7157
      %v7202 = vsel %vm6856, %v7200, %v7167
      %v7203 = vsel %vm6856, %v7201, %v7169
      %v7204 = vsel %vm6859, %v7202, %v7179
      %v7205 = vsel %vm6859, %v7203, %v7181
      %v7206 = vpack.c.bf16 %v7205, %v7204
      %v7207 = vpack.c.bf16 %v7189, %v7188
      %v7208 = vld [vmem:[%s9] sm:$0xf]
      %v7209 = vld [vmem:[%s9 + $0x4] sm:$0xf]
      %v7210 = vld [vmem:[%s9 + $0x8] sm:$0xf]
      %v7211 = vld [vmem:[%s9 + $0xc] sm:$0xf]
      %v7212 = vld [vmem:[%s9 + $0x10] sm:$0xf]
      %v7213 = vld [vmem:[%s9 + $0x14] sm:$0xf]
      %v7214 = vld [vmem:[%s9 + $0x18] sm:$0xf]
      %v7215 = vld [vmem:[%s9 + $0x1c] sm:$0xf]
      %v7216 = vld [vmem:[%s9 + $0x20] sm:$0xf]
      %v7217 = vld [vmem:[%s9 + $0x24] sm:$0xf]
      %v7218 = vld [vmem:[%s9 + $0x28] sm:$0xf]
      %v7219 = vld [vmem:[%s9 + $0x2c] sm:$0xf]
      %v7220 = vld [vmem:[%s9 + $0x30] sm:$0xf]
      %v7221 = vld [vmem:[%s9 + $0x34] sm:$0xf]
      %v7222 = vld [vmem:[%s9 + $0x38] sm:$0xf]
      %v7223 = vld [vmem:[%s9 + $0x3c] sm:$0xf]
      %v7224 = vld [vmem:[%s9 + $0x40] sm:$0xf]
      %v7225 = vld [vmem:[%s9 + $0x44] sm:$0xf]
      %v7226 = vld [vmem:[%s10] sm:$0x1]
      %v7228 = vlaneseq
      %v7229 = vshrl.u32 %v7228, 7
      %v7230 = vsub.s32 0, %v7229
      %v7231 = vrot.slane %v7226, %v7230
      %v7251 = vunpack.c.l.b16 %v7208
      %v7252 = vunpack.c.l.b16 %v7209
      %v7253 = vunpack.c.l.b16 %v7210
      %v7254 = vunpack.c.l.b16 %v7211
      %v7255 = vunpack.c.l.b16 %v7212
      %v7256 = vunpack.c.l.b16 %v7213
      %v7257 = vunpack.c.l.b16 %v7214
      %v7258 = vunpack.c.l.b16 %v7215
      %v7259 = vunpack.c.l.b16 %v7216
      %v7260 = vunpack.c.l.b16 %v7217
      %v7261 = vunpack.c.l.b16 %v7218
      %v7262 = vunpack.c.l.b16 %v7219
      %v7263 = vunpack.c.l.b16 %v7220
      %v7264 = vunpack.c.l.b16 %v7221
      %v7265 = vunpack.c.l.b16 %v7222
      %v7266 = vunpack.c.l.b16 %v7223
      %v7267 = vunpack.c.l.b16 %v7224
      %v7268 = vunpack.c.l.b16 %v7225
      %v7269 = vpack.c.b16 %v7252, %v7251
      %v7270 = vpack.c.b16 %v7254, %v7253
      %v7271 = vpack.c.b16 %v7256, %v7255
      %v7272 = vpack.c.b16 %v7258, %v7257
      %v7273 = vpack.c.b16 %v7260, %v7259
      %v7274 = vpack.c.b16 %v7262, %v7261
      %v7275 = vpack.c.b16 %v7264, %v7263
      %v7276 = vpack.c.b16 %v7266, %v7265
      %v7277 = vpack.c.b16 %v7268, %v7267
      %v7288 = vsel %vm2135, %v7207, 0
      %7290 = vmatprep.subr.bf16.mxu0 0
      %7291 = vmatpush1.bf16.msra.mxu0 %v7269
      %7292 = vmatprep.subr.bf16.mxu0 0
      %7293 = vmatpush1.bf16.msra.mxu0 %v7270
      %7294 = vmatprep.subr.bf16.mxu0 0
      %7295 = vmatpush1.bf16.msra.mxu0 %v7271
      %7296 = vmatprep.subr.bf16.mxu0 0
      %7297 = vmatpush1.bf16.msra.mxu0 %v7272
      %7298 = vmatprep.subr.bf16.mxu0 0
      %7299 = vmatpush1.bf16.msra.mxu0 %v7273
      %7300 = vmatprep.subr.bf16.mxu0 0
      %7301 = vmatpush1.bf16.msra.mxu0 %v7274
      %7302 = vmatprep.subr.bf16.mxu0 0
      %7303 = vmatpush1.bf16.msra.mxu0 %v7275
      %7304 = vmatprep.subr.bf16.mxu0 0
      %7305 = vmatpush1.bf16.msra.mxu0 %v7276
      %7306 = vmatprep.subr.bf16.mxu0 0
      %7307 = vmatpush1.bf16.msra.mxu0 %v7277
      %7308 = vmatprep.subr.bf16.mxu0 0
      %7309 = vmatpush1.bf16.msra.mxu0 0
      %7310 = vmatprep.subr.bf16.mxu0 0
      %7311 = vmatpush1.bf16.msra.mxu0 0
      %7312 = vmatprep.subr.bf16.mxu0 0
      %7313 = vmatpush1.bf16.msra.mxu0 0
      %7314 = vmatprep.subr.bf16.mxu0 0
      %7315 = vmatpush1.bf16.msra.mxu0 0
      %7316 = vmatprep.subr.bf16.mxu0 0
      %7317 = vmatpush1.bf16.msra.mxu0 0
      %7318 = vmatprep.subr.bf16.mxu0 0
      %7319 = vmatpush1.bf16.msra.mxu0 0
      %7320 = vmatprep.subr.bf16.mxu0 0
      %7321 = vmatpush1.bf16.msra.mxu0 0
      %7322 = vmatprep.mubr.bf16.mxu0 %v7288
      %7323 = vmatmul.mubr.bf16.gmra.mrb[0].mxu0 %v7206
      %v7324 = vpop.f32.mrb[0].mxu0
      %v7325 = vadd.f32 %v7231, %v7324
      %v7326 = vpop.f32.mrb[0].mxu0
      %v7327 = vpop.f32.mrb[0].mxu0
      %v7328 = vadd.f32 %v7231, %v7327
      %v7329 = vpop.f32.mrb[0].mxu0
      %7330 = vdwg.mxu0
      %v7331 = vmul.f32 %v7325, 0.2
      %v7332 = vmul.f32 %v7328, 0.2
      %v7333 = vmax.f32 %v7325, %v7331
      %v7334 = vmax.f32 %v7328, %v7332
      %v7337 = vcombine.high %v7333, %v7333
      %v7338 = vcombine.high %v7334, %v7334
      %7341 = vst.msk [vmem:[#allocation2] sm:$0xff] %vm634, 0.0
      %7342 = vst.msk [vmem:[#allocation2 + $0x8] sm:$0xff] %vm634, 0.0
      %7343 = vst.msk [vmem:[#allocation2 + $0x10] sm:$0x3] %vm637, 0.0
      %7344 = vst.msk [vmem:[#allocation2 + $0x18] sm:$0xff] %vm634, 0.0
      %7345 = vst.msk [vmem:[#allocation2 + $0x20] sm:$0xff] %vm634, 0.0
      %7346 = vst.msk [vmem:[#allocation2 + $0x28] sm:$0x3] %vm637, 0.0
      %7347 = vst.msk [vmem:[#allocation2 + $0x30] sm:$0xff] %vm634, 0.0
      %7348 = vst.msk [vmem:[#allocation2 + $0x38] sm:$0xff] %vm634, 0.0
      %7349 = vst.msk [vmem:[#allocation2 + $0x40] sm:$0x3] %vm637, 0.0
      %7350 = vst.msk [vmem:[#allocation2 + $0x48] sm:$0xff] %vm634, 0.0
      %7351 = vst.msk [vmem:[#allocation2 + $0x50] sm:$0xff] %vm634, 0.0
      %7352 = vst.msk [vmem:[#allocation2 + $0x58] sm:$0x3] %vm637, 0.0
      %7353 = vst.msk [vmem:[#allocation2 + $0x60] sm:$0xff] %vm634, 0.0
      %7354 = vst.msk [vmem:[#allocation2 + $0x68] sm:$0xff] %vm634, 0.0
      %7355 = vst.msk [vmem:[#allocation2 + $0x70] sm:$0x3] %vm637, 0.0
      %7356 = vst.msk [vmem:[#allocation2 + $0x78] sm:$0xff] %vm634, 0.0
      %7357 = vst.msk [vmem:[#allocation2 + $0x80] sm:$0xff] %vm634, 0.0
      %7358 = vst.msk [vmem:[#allocation2 + $0x88] sm:$0x3] %vm637, 0.0
      %7359 = vst.msk [vmem:[#allocation2 + $0x90] sm:$0xff] %vm634, 0.0
      %7360 = vst.msk [vmem:[#allocation2 + $0x98] sm:$0xff] %vm634, 0.0
      %7361 = vst.msk [vmem:[#allocation2 + $0xa0] sm:$0x3] %vm637, 0.0
      %7362 = vst.msk [vmem:[#allocation2 + $0xa8] sm:$0xff] %vm634, 0.0
      %7363 = vst.msk [vmem:[#allocation2 + $0xb0] sm:$0xff] %vm634, 0.0
      %7364 = vst.msk [vmem:[#allocation2 + $0xb8] sm:$0x3] %vm637, 0.0
      %7365 = vst.msk [vmem:[#allocation2 + $0xc0] sm:$0xff] %vm634, 0.0
      %7366 = vst.msk [vmem:[#allocation2 + $0xc8] sm:$0xff] %vm634, 0.0
      %7367 = vst.msk [vmem:[#allocation2 + $0xd0] sm:$0x3] %vm637, 0.0
      %7368 = vst.msk [vmem:[#allocation2 + $0xd8] sm:$0xff] %vm634, 0.0
      %7369 = vst.msk [vmem:[#allocation2 + $0xe0] sm:$0xff] %vm634, 0.0
      %7370 = vst.msk [vmem:[#allocation2 + $0xe8] sm:$0x3] %vm637, 0.0
      %7371 = vst.msk [vmem:[#allocation2 + $0xf0] sm:$0xff] %vm634, 0.0
      %7372 = vst.msk [vmem:[#allocation2 + $0xf8] sm:$0xff] %vm634, 0.0
      %7373 = vst.msk [vmem:[#allocation2 + $0x100] sm:$0x3] %vm637, 0.0
      %7374 = vst.msk [vmem:[#allocation2 + $0x108] sm:$0xff] %vm634, 0.0
      %7375 = vst.msk [vmem:[#allocation2 + $0x110] sm:$0xff] %vm634, 0.0
      %7376 = vst.msk [vmem:[#allocation2 + $0x118] sm:$0x3] %vm637, 0.0
      %7377 = vst.msk [vmem:[#allocation2 + $0x120] sm:$0xff] %vm634, 0.0
      %7378 = vst.msk [vmem:[#allocation2 + $0x128] sm:$0xff] %vm634, 0.0
      %7379 = vst.msk [vmem:[#allocation2 + $0x130] sm:$0x3] %vm637, 0.0
      %7380 = vst.msk [vmem:[#allocation2 + $0x138] sm:$0xff] %vm634, 0.0
      %7381 = vst.msk [vmem:[#allocation2 + $0x140] sm:$0xff] %vm634, 0.0
      %7382 = vst.msk [vmem:[#allocation2 + $0x148] sm:$0x3] %vm637, 0.0
      %7383 = vst.msk [vmem:[#allocation2 + $0x150] sm:$0xff] %vm634, 0.0
      %7384 = vst.msk [vmem:[#allocation2 + $0x158] sm:$0xff] %vm634, 0.0
      %7385 = vst.msk [vmem:[#allocation2 + $0x160] sm:$0x3] %vm637, 0.0
      %7386 = vst.msk [vmem:[#allocation2 + $0x168] sm:$0xff] %vm634, 0.0
      %7387 = vst.msk [vmem:[#allocation2 + $0x170] sm:$0xff] %vm634, 0.0
      %7388 = vst.msk [vmem:[#allocation2 + $0x178] sm:$0x3] %vm637, 0.0
      %7389 = vst.msk [vmem:[#allocation2 + $0x180] sm:$0xff] %vm634, 0.0
      %7390 = vst.msk [vmem:[#allocation2 + $0x188] sm:$0xff] %vm634, 0.0
      %7391 = vst.msk [vmem:[#allocation2 + $0x190] sm:$0x3] %vm637, 0.0
      %7392 = vst.msk [vmem:[#allocation2 + $0x198] sm:$0xff] %vm634, 0.0
      %7393 = vst.msk [vmem:[#allocation2 + $0x1a0] sm:$0xff] %vm634, 0.0
      %7394 = vst.msk [vmem:[#allocation2 + $0x1a8] sm:$0x3] %vm637, 0.0
      %vm7395 = vcmask 257024
      %7396 = vst.msk [vmem:[%s690 + $0x1] sm:$0xf] %vm7395, %v7333
      %7397 = vst.msk [vmem:[%s690 + $0x19] sm:$0xf] %vm7395, %v7337
      %7398 = vst.msk [vmem:[%s690 + $0x31] sm:$0xf] %vm7395, %v7334
      %7399 = vst.msk [vmem:[%s690 + $0x49] sm:$0xf] %vm7395, %v7338
      %v7400 = vld [vmem:[#allocation2] sm:$0x3f]
      %v7401 = vld [vmem:[#allocation2 + $0x18] sm:$0x3f]
      %v7402 = vld [vmem:[#allocation2 + $0x30] sm:$0x3f]
      %v7403 = vld [vmem:[#allocation2 + $0x48] sm:$0x3f]
      %v7404 = vld [vmem:[#allocation2 + $0x60] sm:$0x3f]
      %v7408 = vcombine.high %v7400, %v7400
      %v7410 = vunpack.c.l.s4 1983009808
      %v7411 = vunpack.c.0.s8 %v7410
      %v7412 = vlaneseq
      %v7413 = vshrl.u32 %v7412, 7
      %v7414 = vsub.s32 %v7411, %v7413
      %v7415 = vrot.slane %v7400, %v7414
      %v7417 = vunpack.c.l.s4 1983009808
      %v7418 = vunpack.c.0.s8 %v7417
      %v7419 = vlaneseq
      %v7420 = vshrl.u32 %v7419, 7
      %v7421 = vsub.s32 %v7418, %v7420
      %v7422 = vrot.slane %v7408, %v7421
      %v7423 = vcombine.high %v7415, %v7415
      %v7424 = vcombine.high %v7402, %v7402
      %v7426 = vunpack.c.l.s4 1983009808
      %v7427 = vunpack.c.0.s8 %v7426
      %v7428 = vlaneseq
      %v7429 = vshrl.u32 %v7428, 7
      %v7430 = vsub.s32 %v7427, %v7429
      %v7431 = vrot.slane %v7402, %v7430
      %v7433 = vunpack.c.l.s4 1983009808
      %v7434 = vunpack.c.0.s8 %v7433
      %v7435 = vlaneseq
      %v7436 = vshrl.u32 %v7435, 7
      %v7437 = vsub.s32 %v7434, %v7436
      %v7438 = vrot.slane %v7424, %v7437
      %v7439 = vcombine.high %v7431, %v7431
      %v7440 = vcombine.high %v7404, %v7404
      %v7442 = vunpack.c.l.s4 1983009808
      %v7443 = vunpack.c.0.s8 %v7442
      %v7444 = vlaneseq
      %v7445 = vshrl.u32 %v7444, 7
      %v7446 = vsub.s32 %v7443, %v7445
      %v7447 = vrot.slane %v7404, %v7446
      %v7449 = vunpack.c.l.s4 1983009808
      %v7450 = vunpack.c.0.s8 %v7449
      %v7451 = vlaneseq
      %v7452 = vshrl.u32 %v7451, 7
      %v7453 = vsub.s32 %v7450, %v7452
      %v7454 = vrot.slane %v7440, %v7453
      %v7455 = vcombine.high %v7447, %v7447
      %v7458 = vcombine.high %v7401, %v7401
      %v7460 = vunpack.c.l.s4 1983009808
      %v7461 = vunpack.c.0.s8 %v7460
      %v7462 = vlaneseq
      %v7463 = vshrl.u32 %v7462, 7
      %v7464 = vsub.s32 %v7461, %v7463
      %v7465 = vrot.slane %v7401, %v7464
      %v7467 = vunpack.c.l.s4 1983009808
      %v7468 = vunpack.c.0.s8 %v7467
      %v7469 = vlaneseq
      %v7470 = vshrl.u32 %v7469, 7
      %v7471 = vsub.s32 %v7468, %v7470
      %v7472 = vrot.slane %v7458, %v7471
      %v7473 = vcombine.high %v7465, %v7465
      %v7474 = vcombine.high %v7403, %v7403
      %v7476 = vunpack.c.l.s4 1983009808
      %v7477 = vunpack.c.0.s8 %v7476
      %v7478 = vlaneseq
      %v7479 = vshrl.u32 %v7478, 7
      %v7480 = vsub.s32 %v7477, %v7479
      %v7481 = vrot.slane %v7403, %v7480
      %v7483 = vunpack.c.l.s4 1983009808
      %v7484 = vunpack.c.0.s8 %v7483
      %v7485 = vlaneseq
      %v7486 = vshrl.u32 %v7485, 7
      %v7487 = vsub.s32 %v7484, %v7486
      %v7488 = vrot.slane %v7474, %v7487
      %v7489 = vcombine.high %v7481, %v7481
      %v7490 = vlaneseq
      %v7491 = vshrl.u32 %v7490, 7
      %v7492 = vsub.s32 0, %v7491
      %v7493 = vrot.slane %v7415, %v7492
      %v7494 = vlaneseq
      %v7495 = vshrl.u32 %v7494, 7
      %v7496 = vsub.s32 0, %v7495
      %v7497 = vrot.slane %v7423, %v7496
      %v7498 = vlaneseq
      %v7499 = vshrl.u32 %v7498, 7
      %v7500 = vsub.s32 0, %v7499
      %v7501 = vrot.slane %v7431, %v7500
      %v7502 = vlaneseq
      %v7503 = vshrl.u32 %v7502, 7
      %v7504 = vsub.s32 0, %v7503
      %v7505 = vrot.slane %v7439, %v7504
      %v7506 = vsel %vm3761, %v7497, %v7493
      %v7507 = vsel %vm3763, %v7501, %v7506
      %v7508 = vsel %vm3765, %v7505, %v7507
      %v7510 = vlaneseq
      %v7511 = vshrl.u32 %v7510, 7
      %v7512 = vsub.s32 1, %v7511
      %v7513 = vrot.slane %v7415, %v7512
      %v7514 = vlaneseq
      %v7515 = vshrl.u32 %v7514, 7
      %v7516 = vsub.s32 1, %v7515
      %v7517 = vrot.slane %v7423, %v7516
      %v7518 = vlaneseq
      %v7519 = vshrl.u32 %v7518, 7
      %v7520 = vsub.s32 1, %v7519
      %v7521 = vrot.slane %v7431, %v7520
      %v7522 = vlaneseq
      %v7523 = vshrl.u32 %v7522, 7
      %v7524 = vsub.s32 1, %v7523
      %v7525 = vrot.slane %v7439, %v7524
      %v7526 = vsel %vm3761, %v7517, %v7513
      %v7527 = vsel %vm3763, %v7521, %v7526
      %v7528 = vsel %vm3765, %v7525, %v7527
      %7529 = vrot.lane.b32.xlu0 %v7528, 32
      %v7530 = vpop.permute.xlu0 %7529
      %v7532 = vlaneseq
      %v7533 = vshrl.u32 %v7532, 7
      %v7534 = vsub.s32 0, %v7533
      %v7535 = vrot.slane %v7422, %v7534
      %v7536 = vlaneseq
      %v7537 = vshrl.u32 %v7536, 7
      %v7538 = vsub.s32 0, %v7537
      %v7539 = vrot.slane %v7438, %v7538
      %v7540 = vsel %vm3761, %v7535, %v7497
      %v7541 = vsel %vm3763, %v7505, %v7540
      %v7542 = vsel %vm3765, %v7539, %v7541
      %7543 = vrot.lane.b32.xlu0 %v7542, 64
      %v7544 = vpop.permute.xlu0 %7543
      %v7546 = vlaneseq
      %v7547 = vshrl.u32 %v7546, 7
      %v7548 = vsub.s32 0, %v7547
      %v7549 = vrot.slane %v7465, %v7548
      %v7550 = vlaneseq
      %v7551 = vshrl.u32 %v7550, 7
      %v7552 = vsub.s32 0, %v7551
      %v7553 = vrot.slane %v7473, %v7552
      %v7554 = vlaneseq
      %v7555 = vshrl.u32 %v7554, 7
      %v7556 = vsub.s32 0, %v7555
      %v7557 = vrot.slane %v7481, %v7556
      %v7558 = vlaneseq
      %v7559 = vshrl.u32 %v7558, 7
      %v7560 = vsub.s32 0, %v7559
      %v7561 = vrot.slane %v7489, %v7560
      %v7562 = vsel %vm3761, %v7553, %v7549
      %v7563 = vsel %vm3763, %v7557, %v7562
      %v7564 = vsel %vm3765, %v7561, %v7563
      %7565 = vrot.lane.b32.xlu0 %v7564, 96
      %v7566 = vpop.permute.xlu0 %7565
      %v7568 = vlaneseq
      %v7569 = vshrl.u32 %v7568, 7
      %v7570 = vsub.s32 1, %v7569
      %v7571 = vrot.slane %v7465, %v7570
      %v7572 = vlaneseq
      %v7573 = vshrl.u32 %v7572, 7
      %v7574 = vsub.s32 1, %v7573
      %v7575 = vrot.slane %v7473, %v7574
      %v7576 = vlaneseq
      %v7577 = vshrl.u32 %v7576, 7
      %v7578 = vsub.s32 1, %v7577
      %v7579 = vrot.slane %v7481, %v7578
      %v7580 = vlaneseq
      %v7581 = vshrl.u32 %v7580, 7
      %v7582 = vsub.s32 1, %v7581
      %v7583 = vrot.slane %v7489, %v7582
      %v7584 = vsel %vm3761, %v7575, %v7571
      %v7585 = vsel %vm3763, %v7579, %v7584
      %v7586 = vsel %vm3765, %v7583, %v7585
      %v7588 = vlaneseq
      %v7589 = vshrl.u32 %v7588, 7
      %v7590 = vsub.s32 0, %v7589
      %v7591 = vrot.slane %v7472, %v7590
      %v7592 = vlaneseq
      %v7593 = vshrl.u32 %v7592, 7
      %v7594 = vsub.s32 0, %v7593
      %v7595 = vrot.slane %v7488, %v7594
      %v7596 = vsel %vm3761, %v7591, %v7553
      %v7597 = vsel %vm3763, %v7561, %v7596
      %v7598 = vsel %vm3765, %v7595, %v7597
      %7599 = vrot.lane.b32.xlu0 %v7598, 32
      %v7600 = vpop.permute.xlu0 %7599
      %v7602 = vlaneseq
      %v7603 = vshrl.u32 %v7602, 7
      %v7604 = vsub.s32 0, %v7603
      %v7605 = vrot.slane %v7447, %v7604
      %v7606 = vlaneseq
      %v7607 = vshrl.u32 %v7606, 7
      %v7608 = vsub.s32 0, %v7607
      %v7609 = vrot.slane %v7455, %v7608
      %v7610 = vsel %vm3761, %v7505, %v7501
      %v7611 = vsel %vm3763, %v7605, %v7610
      %v7612 = vsel %vm3765, %v7609, %v7611
      %7613 = vrot.lane.b32.xlu0 %v7612, 64
      %v7614 = vpop.permute.xlu0 %7613
      %v7616 = vlaneseq
      %v7617 = vshrl.u32 %v7616, 7
      %v7618 = vsub.s32 1, %v7617
      %v7619 = vrot.slane %v7447, %v7618
      %v7620 = vlaneseq
      %v7621 = vshrl.u32 %v7620, 7
      %v7622 = vsub.s32 1, %v7621
      %v7623 = vrot.slane %v7455, %v7622
      %v7624 = vsel %vm3761, %v7525, %v7521
      %v7625 = vsel %vm3763, %v7619, %v7624
      %v7626 = vsel %vm3765, %v7623, %v7625
      %7627 = vrot.lane.b32.xlu0 %v7626, 96
      %v7628 = vpop.permute.xlu0 %7627
      %v7630 = vlaneseq
      %v7631 = vshrl.u32 %v7630, 7
      %v7632 = vsub.s32 0, %v7631
      %v7633 = vrot.slane %v7454, %v7632
      %v7634 = vsel %vm3761, %v7539, %v7505
      %v7635 = vsel %vm3763, %v7609, %v7634
      %v7636 = vsel %vm3765, %v7633, %v7635
      %v7638 = vsel %vm634, %v7508, %v7530
      %v7639 = vsel %vm5284, %v7638, %v7544
      %v7640 = vsel %vm6856, %v7639, %v7566
      %v7641 = vsel %vm634, %v7586, %v7600
      %v7642 = vsel %vm5284, %v7641, %v7614
      %v7643 = vsel %vm6856, %v7642, %v7628
      %v7644 = vpack.c.bf16 %v7640, %v7640
      %v7645 = vpack.c.bf16 %v7643, %v7643
      %v7646 = vpack.c.bf16 %v7636, %v7636
      %v7647 = vld [vmem:[%s11] sm:$0xf]
      %v7648 = vld [vmem:[%s11 + $0x4] sm:$0xf]
      %v7649 = vld [vmem:[%s11 + $0x8] sm:$0xf]
      %v7650 = vld [vmem:[%s11 + $0xc] sm:$0xf]
      %v7651 = vld [vmem:[%s11 + $0x10] sm:$0xf]
      %v7652 = vld [vmem:[%s11 + $0x14] sm:$0xf]
      %v7653 = vld [vmem:[%s11 + $0x18] sm:$0xf]
      %v7654 = vld [vmem:[%s11 + $0x1c] sm:$0xf]
      %v7655 = vld [vmem:[%s11 + $0x20] sm:$0xf]
      %v7656 = vld [vmem:[%s11 + $0x24] sm:$0xf]
      %v7657 = vld [vmem:[%s11 + $0x28] sm:$0xf]
      %v7658 = vld [vmem:[%s11 + $0x2c] sm:$0xf]
      %v7659 = vld [vmem:[%s11 + $0x30] sm:$0xf]
      %v7660 = vld [vmem:[%s11 + $0x34] sm:$0xf]
      %v7661 = vld [vmem:[%s11 + $0x38] sm:$0xf]
      %v7662 = vld [vmem:[%s11 + $0x3c] sm:$0xf]
      %v7663 = vld [vmem:[%s11 + $0x40] sm:$0xf]
      %v7664 = vld [vmem:[%s11 + $0x44] sm:$0xf]
      %v7665 = vld [vmem:[%s11 + $0x48] sm:$0xf]
      %v7666 = vld [vmem:[%s11 + $0x4c] sm:$0xf]
      %v7667 = vld [vmem:[%s11 + $0x50] sm:$0xf]
      %v7668 = vld [vmem:[%s11 + $0x54] sm:$0xf]
      %v7669 = vld [vmem:[%s11 + $0x58] sm:$0xf]
      %v7670 = vld [vmem:[%s11 + $0x5c] sm:$0xf]
      %v7671 = vld [vmem:[%s11 + $0x60] sm:$0xf]
      %v7672 = vld [vmem:[%s11 + $0x64] sm:$0xf]
      %v7673 = vld [vmem:[%s11 + $0x68] sm:$0xf]
      %v7674 = vld [vmem:[%s11 + $0x6c] sm:$0xf]
      %v7675 = vld [vmem:[%s11 + $0x70] sm:$0xf]
      %v7676 = vld [vmem:[%s11 + $0x74] sm:$0xf]
      %v7677 = vld [vmem:[%s11 + $0x78] sm:$0xf]
      %v7678 = vld [vmem:[%s11 + $0x7c] sm:$0xf]
      %v7679 = vld [vmem:[%s11 + $0x80] sm:$0xf]
      %v7680 = vld [vmem:[%s11 + $0x84] sm:$0xf]
      %v7681 = vld [vmem:[%s11 + $0x88] sm:$0xf]
      %v7682 = vld [vmem:[%s11 + $0x8c] sm:$0xf]
      %v7683 = vld [vmem:[%s12] sm:$0x1]
      %v7685 = vlaneseq
      %v7686 = vshrl.u32 %v7685, 7
      %v7687 = vsub.s32 0, %v7686
      %v7688 = vrot.slane %v7683, %v7687
      %v7726 = vunpack.c.l.b16 %v7647
      %v7727 = vunpack.c.l.b16 %v7648
      %v7728 = vunpack.c.l.b16 %v7649
      %v7729 = vunpack.c.l.b16 %v7650
      %v7730 = vunpack.c.l.b16 %v7651
      %v7731 = vunpack.c.l.b16 %v7652
      %v7732 = vunpack.c.l.b16 %v7653
      %v7733 = vunpack.c.l.b16 %v7654
      %v7734 = vunpack.c.l.b16 %v7655
      %v7735 = vunpack.c.l.b16 %v7656
      %v7736 = vunpack.c.l.b16 %v7657
      %v7737 = vunpack.c.l.b16 %v7658
      %v7738 = vunpack.c.l.b16 %v7659
      %v7739 = vunpack.c.l.b16 %v7660
      %v7740 = vunpack.c.l.b16 %v7661
      %v7741 = vunpack.c.l.b16 %v7662
      %v7742 = vunpack.c.l.b16 %v7663
      %v7743 = vunpack.c.l.b16 %v7664
      %v7744 = vunpack.c.l.b16 %v7665
      %v7745 = vunpack.c.l.b16 %v7666
      %v7746 = vunpack.c.l.b16 %v7667
      %v7747 = vunpack.c.l.b16 %v7668
      %v7748 = vunpack.c.l.b16 %v7669
      %v7749 = vunpack.c.l.b16 %v7670
      %v7750 = vunpack.c.l.b16 %v7671
      %v7751 = vunpack.c.l.b16 %v7672
      %v7752 = vunpack.c.l.b16 %v7673
      %v7753 = vunpack.c.l.b16 %v7674
      %v7754 = vunpack.c.l.b16 %v7675
      %v7755 = vunpack.c.l.b16 %v7676
      %v7756 = vunpack.c.l.b16 %v7677
      %v7757 = vunpack.c.l.b16 %v7678
      %v7758 = vunpack.c.l.b16 %v7679
      %v7759 = vunpack.c.l.b16 %v7680
      %v7760 = vunpack.c.l.b16 %v7681
      %v7761 = vunpack.c.l.b16 %v7682
      %v7762 = vpack.c.b16 %v7727, %v7726
      %v7763 = vpack.c.b16 %v7729, %v7728
      %v7764 = vpack.c.b16 %v7731, %v7730
      %v7765 = vpack.c.b16 %v7733, %v7732
      %v7766 = vpack.c.b16 %v7735, %v7734
      %v7767 = vpack.c.b16 %v7737, %v7736
      %v7768 = vpack.c.b16 %v7739, %v7738
      %v7769 = vpack.c.b16 %v7741, %v7740
      %v7770 = vpack.c.b16 %v7743, %v7742
      %v7771 = vpack.c.b16 %v7745, %v7744
      %v7772 = vpack.c.b16 %v7747, %v7746
      %v7773 = vpack.c.b16 %v7749, %v7748
      %v7774 = vpack.c.b16 %v7751, %v7750
      %v7775 = vpack.c.b16 %v7753, %v7752
      %v7776 = vpack.c.b16 %v7755, %v7754
      %v7777 = vpack.c.b16 %v7757, %v7756
      %v7778 = vpack.c.b16 %v7759, %v7758
      %v7779 = vpack.c.b16 %v7761, %v7760
      %v7799 = vsel %vm634, %v7646, 0
      %7801 = vmatprep.subr.bf16.mxu0 0
      %7802 = vmatpush1.bf16.msra.mxu0 %v7762
      %7803 = vmatprep.subr.bf16.mxu0 0
      %7804 = vmatpush1.bf16.msra.mxu0 %v7763
      %7805 = vmatprep.subr.bf16.mxu0 0
      %7806 = vmatpush1.bf16.msra.mxu0 %v7764
      %7807 = vmatprep.subr.bf16.mxu0 0
      %7808 = vmatpush1.bf16.msra.mxu0 %v7765
      %7809 = vmatprep.subr.bf16.mxu0 0
      %7810 = vmatpush1.bf16.msra.mxu0 %v7766
      %7811 = vmatprep.subr.bf16.mxu0 0
      %7812 = vmatpush1.bf16.msra.mxu0 %v7767
      %7813 = vmatprep.subr.bf16.mxu0 0
      %7814 = vmatpush1.bf16.msra.mxu0 %v7768
      %7815 = vmatprep.subr.bf16.mxu0 0
      %7816 = vmatpush1.bf16.msra.mxu0 %v7769
      %7817 = vmatprep.subr.bf16.mxu0 0
      %7818 = vmatpush1.bf16.msra.mxu0 %v7770
      %7819 = vmatprep.subr.bf16.mxu0 0
      %7820 = vmatpush1.bf16.msra.mxu0 %v7771
      %7821 = vmatprep.subr.bf16.mxu0 0
      %7822 = vmatpush1.bf16.msra.mxu0 %v7772
      %7823 = vmatprep.subr.bf16.mxu0 0
      %7824 = vmatpush1.bf16.msra.mxu0 %v7773
      %7825 = vmatprep.subr.bf16.mxu0 0
      %7826 = vmatpush1.bf16.msra.mxu0 %v7774
      %7827 = vmatprep.subr.bf16.mxu0 0
      %7828 = vmatpush1.bf16.msra.mxu0 %v7775
      %7829 = vmatprep.subr.bf16.mxu0 0
      %7830 = vmatpush1.bf16.msra.mxu0 %v7776
      %7831 = vmatprep.subr.bf16.mxu0 0
      %7832 = vmatpush1.bf16.msra.mxu0 %v7777
      %7833 = vmatprep.mubr.bf16.mxu0 %v7645
      %7834 = vmatmul.mubr.bf16.gmra.mrb[0].mxu0 %v7644
      %v7835 = vpop.f32.mrb[0].mxu0
      %v7836 = vadd.f32 %v7688, %v7835
      %v7837 = vpop.f32.mrb[0].mxu0
      %v7838 = vpop.f32.mrb[0].mxu0
      %v7839 = vpop.f32.mrb[0].mxu0
      %7840 = vdwg.mxu0
      %7841 = vmatprep.subr.bf16.mxu0 0
      %7842 = vmatpush1.bf16.msra.mxu0 %v7778
      %7843 = vmatprep.subr.bf16.mxu0 0
      %7844 = vmatpush1.bf16.msra.mxu0 %v7779
      %7845 = vmatprep.subr.bf16.mxu0 0
      %7846 = vmatpush1.bf16.msra.mxu0 0
      %7847 = vmatprep.subr.bf16.mxu0 0
      %7848 = vmatpush1.bf16.msra.mxu0 0
      %7849 = vmatprep.subr.bf16.mxu0 0
      %7850 = vmatpush1.bf16.msra.mxu0 0
      %7851 = vmatprep.subr.bf16.mxu0 0
      %7852 = vmatpush1.bf16.msra.mxu0 0
      %7853 = vmatprep.subr.bf16.mxu0 0
      %7854 = vmatpush1.bf16.msra.mxu0 0
      %7855 = vmatprep.subr.bf16.mxu0 0
      %7856 = vmatpush1.bf16.msra.mxu0 0
      %7857 = vmatprep.subr.bf16.mxu0 0
      %7858 = vmatpush1.bf16.msra.mxu0 0
      %7859 = vmatprep.subr.bf16.mxu0 0
      %7860 = vmatpush1.bf16.msra.mxu0 0
      %7861 = vmatprep.subr.bf16.mxu0 0
      %7862 = vmatpush1.bf16.msra.mxu0 0
      %7863 = vmatprep.subr.bf16.mxu0 0
      %7864 = vmatpush1.bf16.msra.mxu0 0
      %7865 = vmatprep.subr.bf16.mxu0 0
      %7866 = vmatpush1.bf16.msra.mxu0 0
      %7867 = vmatprep.subr.bf16.mxu0 0
      %7868 = vmatpush1.bf16.msra.mxu0 0
      %7869 = vmatprep.subr.bf16.mxu0 0
      %7870 = vmatpush1.bf16.msra.mxu0 0
      %7871 = vmatprep.subr.bf16.mxu0 0
      %7872 = vmatpush1.bf16.msra.mxu0 0
      %7873 = vmatprep.mubr.bf16.mxu0 0
      %7874 = vmatmul.mubr.bf16.gmra.mrb[0].mxu0 %v7799
      %v7875 = vpop.f32.mrb[0].mxu0
      %v7876 = vadd.f32 %v7836, %v7875
      %v7877 = vpop.f32.mrb[0].mxu0
      %v7878 = vpop.f32.mrb[0].mxu0
      %v7879 = vpop.f32.mrb[0].mxu0
      %7880 = vdwg.mxu0
      %v7881 = vmul.f32 %v7876, 0.2
      %v7882 = vmax.f32 %v7876, %v7881
      %v7883 = vsel %vm7395, %v7882, 0.0
      %v7884 = vrot.slane %v7883, 4
      %v7885 = vadd.f32 %v7883, %v7884
      %v7886 = vrot.slane %v7885, 2
      %v7887 = vadd.f32 %v7885, %v7886
      %v7888 = vrot.slane %v7887, 1
      %v7889 = vadd.f32 %v7887, %v7888
      %v7890 = vmul.f32 %v7889, 0.25
      %v7891 = vld [vmem:[%s13] sm:$0xff]
      %v7892 = vld [vmem:[%s13 + $0x8] sm:$0xff]
      %v7893 = vld [vmem:[%s13 + $0x10] sm:$0xff]
      %v7894 = vld [vmem:[%s13 + $0x18] sm:$0xff]
      %v7895 = vld [vmem:[%s14] sm:$0x1]
      %v7897 = vsel %vm634, %v7890, 0
      %7899 = vmatprep.subr.mxu0 0.0
      %7900 = vmatpush1.msra.mxu0 %v7891
      %7901 = vmatprep.subr.mxu0 0.0
      %7902 = vmatpush1.msra.mxu0 %v7892
      %7903 = vmatprep.subr.mxu0 0.0
      %7904 = vmatpush1.msra.mxu0 %v7893
      %7905 = vmatprep.subr.mxu0 0.0
      %7906 = vmatpush1.msra.mxu0 %v7894
      %7907 = vmatprep.subr.mxu0 0.0
      %7908 = vmatpush1.msra.mxu0 0.0
      %7909 = vmatprep.subr.mxu0 0.0
      %7910 = vmatpush1.msra.mxu0 0.0
      %7911 = vmatprep.subr.mxu0 0.0
      %7912 = vmatpush1.msra.mxu0 0.0
      %7913 = vmatprep.subr.mxu0 0.0
      %7914 = vmatpush1.msra.mxu0 0.0
      %7915 = vmatprep.subr.mxu0 0.0
      %7916 = vmatpush1.msra.mxu0 0.0
      %7917 = vmatprep.subr.mxu0 0.0
      %7918 = vmatpush1.msra.mxu0 0.0
      %7919 = vmatprep.subr.mxu0 0.0
      %7920 = vmatpush1.msra.mxu0 0.0
      %7921 = vmatprep.subr.mxu0 0.0
      %7922 = vmatpush1.msra.mxu0 0.0
      %7923 = vmatprep.subr.mxu0 0.0
      %7924 = vmatpush1.msra.mxu0 0.0
      %7925 = vmatprep.subr.mxu0 0.0
      %7926 = vmatpush1.msra.mxu0 0.0
      %7927 = vmatprep.subr.mxu0 0.0
      %7928 = vmatpush1.msra.mxu0 0.0
      %7929 = vmatprep.subr.mxu0 0.0
      %7930 = vmatpush1.msra.mxu0 0.0
      %7931 = vmatprep.subr.mxu0 0.0
      %7932 = vmatpush1.msra.mxu0 0.0
      %7933 = vmatprep.subr.mxu0 0.0
      %7934 = vmatpush1.msra.mxu0 0.0
      %7935 = vmatprep.subr.mxu0 0.0
      %7936 = vmatpush1.msra.mxu0 0.0
      %7937 = vmatprep.subr.mxu0 0.0
      %7938 = vmatpush1.msra.mxu0 0.0
      %7939 = vmatprep.subr.mxu0 0.0
      %7940 = vmatpush1.msra.mxu0 0.0
      %7941 = vmatprep.subr.mxu0 0.0
      %7942 = vmatpush1.msra.mxu0 0.0
      %7943 = vmatprep.subr.mxu0 0.0
      %7944 = vmatpush1.msra.mxu0 0.0
      %7945 = vmatprep.subr.mxu0 0.0
      %7946 = vmatpush1.msra.mxu0 0.0
      %7947 = vmatprep.subr.mxu0 0.0
      %7948 = vmatpush1.msra.mxu0 0.0
      %7949 = vmatprep.subr.mxu0 0.0
      %7950 = vmatpush1.msra.mxu0 0.0
      %7951 = vmatprep.subr.mxu0 0.0
      %7952 = vmatpush1.msra.mxu0 0.0
      %7953 = vmatprep.subr.mxu0 0.0
      %7954 = vmatpush1.msra.mxu0 0.0
      %7955 = vmatprep.subr.mxu0 0.0
      %7956 = vmatpush1.msra.mxu0 0.0
      %7957 = vmatprep.subr.mxu0 0.0
      %7958 = vmatpush1.msra.mxu0 0.0
      %7959 = vmatprep.subr.mxu0 0.0
      %7960 = vmatpush1.msra.mxu0 0.0
      %7961 = vmatprep.subr.mxu0 0.0
      %7962 = vmatpush1.msra.mxu0 0.0
      %7963 = vmatprep.mubr.f32.mxu0 0.0
      %7964 = vmatmul.mubr.f32.gmra.mrb[0].mxu0 %v7897
      %v7965 = vpop.f32.mrb[0].mxu0
      %v7966 = vadd.f32 %v7895, %v7965
      %v7967 = vpop.f32.mrb[0].mxu0
      %7968 = vdwg.mxu0
      %v7969 = vmul.f32 %v7966, 0.2
      %v7970 = vmax.f32 %v7966, %v7969
      %v7971 = vld [vmem:[%s15] sm:$0xff]
      %v7972 = vld [vmem:[%s15 + $0x8] sm:$0xff]
      %v7973 = vld [vmem:[%s16] sm:$0x1]
      %v7975 = vsel %vm2135, %v7970, 0
      %7977 = vmatprep.subr.mxu0 0.0
      %7978 = vmatpush1.msra.mxu0 %v7971
      %7979 = vmatprep.subr.mxu0 0.0
      %7980 = vmatpush1.msra.mxu0 %v7972
      %7981 = vmatprep.subr.mxu0 0.0
      %7982 = vmatpush1.msra.mxu0 0.0
      %7983 = vmatprep.subr.mxu0 0.0
      %7984 = vmatpush1.msra.mxu0 0.0
      %7985 = vmatprep.subr.mxu0 0.0
      %7986 = vmatpush1.msra.mxu0 0.0
      %7987 = vmatprep.subr.mxu0 0.0
      %7988 = vmatpush1.msra.mxu0 0.0
      %7989 = vmatprep.subr.mxu0 0.0
      %7990 = vmatpush1.msra.mxu0 0.0
      %7991 = vmatprep.subr.mxu0 0.0
      %7992 = vmatpush1.msra.mxu0 0.0
      %7993 = vmatprep.subr.mxu0 0.0
      %7994 = vmatpush1.msra.mxu0 0.0
      %7995 = vmatprep.subr.mxu0 0.0
      %7996 = vmatpush1.msra.mxu0 0.0
      %7997 = vmatprep.subr.mxu0 0.0
      %7998 = vmatpush1.msra.mxu0 0.0
      %7999 = vmatprep.subr.mxu0 0.0
      %8000 = vmatpush1.msra.mxu0 0.0
      %8001 = vmatprep.subr.mxu0 0.0
      %8002 = vmatpush1.msra.mxu0 0.0
      %8003 = vmatprep.subr.mxu0 0.0
      %8004 = vmatpush1.msra.mxu0 0.0
      %8005 = vmatprep.subr.mxu0 0.0
      %8006 = vmatpush1.msra.mxu0 0.0
      %8007 = vmatprep.subr.mxu0 0.0
      %8008 = vmatpush1.msra.mxu0 0.0
      %8009 = vmatprep.subr.mxu0 0.0
      %8010 = vmatpush1.msra.mxu0 0.0
      %8011 = vmatprep.subr.mxu0 0.0
      %8012 = vmatpush1.msra.mxu0 0.0
      %8013 = vmatprep.subr.mxu0 0.0
      %8014 = vmatpush1.msra.mxu0 0.0
      %8015 = vmatprep.subr.mxu0 0.0
      %8016 = vmatpush1.msra.mxu0 0.0
      %8017 = vmatprep.subr.mxu0 0.0
      %8018 = vmatpush1.msra.mxu0 0.0
      %8019 = vmatprep.subr.mxu0 0.0
      %8020 = vmatpush1.msra.mxu0 0.0
      %8021 = vmatprep.subr.mxu0 0.0
      %8022 = vmatpush1.msra.mxu0 0.0
      %8023 = vmatprep.subr.mxu0 0.0
      %8024 = vmatpush1.msra.mxu0 0.0
      %8025 = vmatprep.subr.mxu0 0.0
      %8026 = vmatpush1.msra.mxu0 0.0
      %8027 = vmatprep.subr.mxu0 0.0
      %8028 = vmatpush1.msra.mxu0 0.0
      %8029 = vmatprep.subr.mxu0 0.0
      %8030 = vmatpush1.msra.mxu0 0.0
      %8031 = vmatprep.subr.mxu0 0.0
      %8032 = vmatpush1.msra.mxu0 0.0
      %8033 = vmatprep.subr.mxu0 0.0
      %8034 = vmatpush1.msra.mxu0 0.0
      %8035 = vmatprep.subr.mxu0 0.0
      %8036 = vmatpush1.msra.mxu0 0.0
      %8037 = vmatprep.subr.mxu0 0.0
      %8038 = vmatpush1.msra.mxu0 0.0
      %8039 = vmatprep.subr.mxu0 0.0
      %8040 = vmatpush1.msra.mxu0 0.0
      %8041 = vmatprep.mubr.f32.mxu0 0.0
      %8042 = vmatmul.mubr.f32.gmra.mrb[0].mxu0 %v7975
      %v8043 = vpop.f32.mrb[0].mxu0
      %v8044 = vadd.f32 %v7973, %v8043
      %v8045 = vpop.f32.mrb[0].mxu0
      %8046 = vdwg.mxu0
      %v8047 = vmul.f32 %v8044, 0.2
      %v8048 = vmax.f32 %v8044, %v8047
      %v8049 = vld [vmem:[%s17] sm:$0xff]
      %v8050 = vld [vmem:[#allocation3] sm:$0x1]
      %v8052 = vsel %vm2069, %v8048, 0
      %8054 = vmatprep.subr.mxu0 0.0
      %8055 = vmatpush1.msra.mxu0 %v8049
      %8056 = vmatprep.subr.mxu0 0.0
      %8057 = vmatpush1.msra.mxu0 0.0
      %8058 = vmatprep.subr.mxu0 0.0
      %8059 = vmatpush1.msra.mxu0 0.0
      %8060 = vmatprep.subr.mxu0 0.0
      %8061 = vmatpush1.msra.mxu0 0.0
      %8062 = vmatprep.subr.mxu0 0.0
      %8063 = vmatpush1.msra.mxu0 0.0
      %8064 = vmatprep.subr.mxu0 0.0
      %8065 = vmatpush1.msra.mxu0 0.0
      %8066 = vmatprep.subr.mxu0 0.0
      %8067 = vmatpush1.msra.mxu0 0.0
      %8068 = vmatprep.subr.mxu0 0.0
      %8069 = vmatpush1.msra.mxu0 0.0
      %8070 = vmatprep.subr.mxu0 0.0
      %8071 = vmatpush1.msra.mxu0 0.0
      %8072 = vmatprep.subr.mxu0 0.0
      %8073 = vmatpush1.msra.mxu0 0.0
      %8074 = vmatprep.subr.mxu0 0.0
      %8075 = vmatpush1.msra.mxu0 0.0
      %8076 = vmatprep.subr.mxu0 0.0
      %8077 = vmatpush1.msra.mxu0 0.0
      %8078 = vmatprep.subr.mxu0 0.0
      %8079 = vmatpush1.msra.mxu0 0.0
      %8080 = vmatprep.subr.mxu0 0.0
      %8081 = vmatpush1.msra.mxu0 0.0
      %8082 = vmatprep.subr.mxu0 0.0
      %8083 = vmatpush1.msra.mxu0 0.0
      %8084 = vmatprep.subr.mxu0 0.0
      %8085 = vmatpush1.msra.mxu0 0.0
      %8086 = vmatprep.subr.mxu0 0.0
      %8087 = vmatpush1.msra.mxu0 0.0
      %8088 = vmatprep.subr.mxu0 0.0
      %8089 = vmatpush1.msra.mxu0 0.0
      %8090 = vmatprep.subr.mxu0 0.0
      %8091 = vmatpush1.msra.mxu0 0.0
      %8092 = vmatprep.subr.mxu0 0.0
      %8093 = vmatpush1.msra.mxu0 0.0
      %8094 = vmatprep.subr.mxu0 0.0
      %8095 = vmatpush1.msra.mxu0 0.0
      %8096 = vmatprep.subr.mxu0 0.0
      %8097 = vmatpush1.msra.mxu0 0.0
      %8098 = vmatprep.subr.mxu0 0.0
      %8099 = vmatpush1.msra.mxu0 0.0
      %8100 = vmatprep.subr.mxu0 0.0
      %8101 = vmatpush1.msra.mxu0 0.0
      %8102 = vmatprep.subr.mxu0 0.0
      %8103 = vmatpush1.msra.mxu0 0.0
      %8104 = vmatprep.subr.mxu0 0.0
      %8105 = vmatpush1.msra.mxu0 0.0
      %8106 = vmatprep.subr.mxu0 0.0
      %8107 = vmatpush1.msra.mxu0 0.0
      %8108 = vmatprep.subr.mxu0 0.0
      %8109 = vmatpush1.msra.mxu0 0.0
      %8110 = vmatprep.subr.mxu0 0.0
      %8111 = vmatpush1.msra.mxu0 0.0
      %8112 = vmatprep.subr.mxu0 0.0
      %8113 = vmatpush1.msra.mxu0 0.0
      %8114 = vmatprep.subr.mxu0 0.0
      %8115 = vmatpush1.msra.mxu0 0.0
      %8116 = vmatprep.subr.mxu0 0.0
      %8117 = vmatpush1.msra.mxu0 0.0
      %8118 = vmatprep.mubr.f32.mxu0 0.0
      %8119 = vmatmul.mubr.f32.gmra.mrb[0].mxu0 %v8052
      %v8120 = vpop.f32.mrb[0].mxu0
      %v8121 = vadd.f32 %v8050, %v8120
      %v8122 = vpop.f32.mrb[0].mxu0
      %8123 = vdwg.mxu0
      %vm8124 = vcmask 0
      %8125 = vst.msk [vmem:[%s600] sm:$0x1] %vm8124, %v8121
      %p8126 = scmp.lt.s32.totalorder %s32, 1
      %s8127 = scalar_select %p8126, %s32, 1
      %s8128 = scalar_lea.vmem %s19, %s8127
      // Predicated region
      $region97: #{tpu_custom_call.1} parent=95 // pred_check
        %p8129 = pneg %p454
      $region98: #{tpu_custom_call.1} parent=95 // pred_check_branch
        %8131 = sbr.rel (%p8129) target = $region100
      $region99: #{tpu_custom_call.1} parent=95 // pred_region
        _
      $region100: #{tpu_custom_call.1} parent=95 // pred_fallthru
        _
    $region96: #{tpu_custom_call.1} parent=5 // pred_fallthru
      _
    %p8132 = scmp.le.s32.totalorder 2, %s27
    // Predicated region
    $region101: #{tpu_custom_call.1} parent=5 // pred_check
      %p8133 = pneg %p8132
    $region102: #{tpu_custom_call.1} parent=5 // pred_check_branch
      %8135 = sbr.rel (%p8133) target = $region104
    $region103: #{tpu_custom_call.1} parent=5 // pred_region
      %s8136 = ssub.s32 %s27, 2
      // Predicated region
      $region105: #{tpu_custom_call.1} parent=103 // pred_check
        %p8137 = pneg %p460
      $region106: #{tpu_custom_call.1} parent=103 // pred_check_branch
        %8139 = sbr.rel (%p8137) target = $region108
      $region107: #{tpu_custom_call.1} parent=103 // pred_region
        %p8140 = scmp.lt.s32.totalorder %s33, 1
        %s8141 = scalar_select %p8140, %s33, 1
        %s8142 = scalar_lea.vmem %s19, %s8141
      $region108: #{tpu_custom_call.1} parent=103 // pred_fallthru
        _
    $region104: #{tpu_custom_call.1} parent=5 // pred_fallthru
      _
  $region6: #{tpu_custom_call.1} parent=0 // loop_footer
    %s31 = sadd.s32 1, %s27
  $region7: #{tpu_custom_call.1} parent=0 // loop_footer_branch
    %26 = sbr.rel target = $region3
  $region8: #{tpu_custom_call.1} parent=0 // loop_exit
    _

</llo_original>
